<compile_context>
chip_gen: v7x
topology: tpu7x:2x2x1
jax: 0.10.0
libtpu: 0.0.40
codegen_flags: <defaults>
</compile_context>

<pallas_src>
import functools

import jax
import jax.numpy as jnp
from jax import lax
from jax.experimental import pallas as pl
from jax.experimental.pallas import tpu as pltpu


def _kth_threshold(scores, k):
    """Per-row value such that `scores >= threshold` selects (at least) the k
    largest entries. Exact duplicates of a selected value are taken together,
    which differs from torch.topk (exactly k picks) only on exact float ties.

    One cross-lane max (XLU) + one compare/select (VPU) per unrolled step; no
    running boolean mask is maintained (per perf review).
    """
    # TODO(synk): for large k (SAE aux-k of 64-512) replace the unrolled loop
    # with a two-level scheme (per-128-lane-block partial top-k, then merge).
    work = scores
    thresh = jnp.max(work, axis=-1, keepdims=True)
    for _ in range(k - 1):                     # k is a small static int -> unrolled
        work = jnp.where(work == thresh, -jnp.inf, work)
        thresh = jnp.max(work, axis=-1, keepdims=True)
    return thresh


# ----------------------------------------------------------------------------
# Pass 1: LN + encode + top-k + per-tile "latent fired" flags
# ----------------------------------------------------------------------------
def _csr_encode_kernel(x_ref, w_ref, pre_bias_ref, latent_bias_ref,
                       pre_ref, latk_ref, mu_ref, std_ref, hits_ref,
                       *, topk, normalize, eps):
    x = x_ref[...]                       # [Bt, D] f32
    pre_b = pre_bias_ref[...]            # [1, D]  f32
    lat_b = latent_bias_ref[...]         # [1, L]  f32
    _, D = x.shape

    if normalize:
        mu = jnp.mean(x, axis=-1, keepdims=True)
        xc = x - mu
        var = jnp.sum(xc * xc, axis=-1, keepdims=True) / (D - 1)   # unbiased (torch.std)
        std = jnp.sqrt(var)
        # Exact reciprocal so the f32 self-test stays tight; approx=True (EUP
        # slot, effectively free on v6e/v7x) is a production option.
        inv = pl.reciprocal(std + eps, approx=False)
        xn = xc * inv
        mu_ref[...] = mu
        std_ref[...] = std
    else:
        xn = x
        mu_ref[...] = jnp.zeros_like(mu_ref)
        std_ref[...] = jnp.ones_like(std_ref)

    # encode_pre_act: (x - pre_bias) @ W.T + latent_bias -> [Bt, L]
    # bf16 operands, f32 accumulation; contraction over D on BOTH operands.
    # NOTE: if pl.lower_as_mlir ever shows a per-step weight transpose for this
    # (1,1) contraction, pre-transpose w to [D, L] once in the wrapper instead.
    xb = (xn - pre_b).astype(jnp.bfloat16)
    pre = lax.dot_general(
        xb, w_ref[...],
        dimension_numbers=(((1,), (1,)), ((), ())),
        preferred_element_type=jnp.float32) + lat_b

    # Inter-pass `pre` stored as bf16 (halves the pass1->pass2 HBM traffic);
    # the module's returned latents_pre_act is re-written (masked) in pass 2.
    pre_ref[...] = pre.astype(jnp.bfloat16)

    # top-k scatter + relu (on the f32 pre)
    thresh = _kth_threshold(pre, topk)
    sel = pre >= thresh
    latk_ref[...] = jnp.where(jnp.logical_and(sel, pre > 0.0), pre, 0.0)

    # per-tile "latent fired" indicator; the cross-tile fold + stats update is
    # done in plain XLA in the wrapper, which keeps this grid axis "parallel"
    # (megacore-able on v7x).
    hits = jnp.max(jnp.where(jnp.logical_and(sel, pre > 1e-5), 1.0, 0.0),
                   axis=0, keepdims=True)                     # [1, L]
    hits_ref[...] = hits.reshape(hits_ref.shape)              # [1, 1, L]


# ----------------------------------------------------------------------------
# Pass 2: dead-mask + aux top-k + decode + de-normalize
# ----------------------------------------------------------------------------
def _csr_decode_kernel(pre_ref, latk_ref, mu_ref, std_ref, dead_ref,
                       w_ref, pre_bias_ref,
                       pre_out_ref, recons_ref, recons_aux_ref,
                       *, auxk, normalize):
    pre = pre_ref[...].astype(jnp.float32)   # [Bt, L] (bf16 inter-pass storage)
    dead = dead_ref[...]                     # [1, L] 0/1 mask
    pre_b = pre_bias_ref[...]                # [1, D]

    # auxk_mask_fn: torch mutates latents_pre_act in place (x.data *= dead_mask),
    # so the module's returned latents_pre_act is the masked tensor.
    pre_m = pre * dead
    pre_out_ref[...] = pre_m

    thresh = _kth_threshold(pre_m, auxk)
    lat_aux = jnp.where(jnp.logical_and(pre_m >= thresh, pre_m > 0.0), pre_m, 0.0)

    # Two decode matmuls against the resident bf16 weight; the previous
    # [2*Bt, L] concat scratch + copies are removed (MXU cost is identical).
    # TODO(synk): for SAE-sized L (>> 128*(topk+auxk)) a gather-based sparse
    # decode (DMA only the selected weight rows) removes ~L/(topk+auxk) of the
    # FLOPs; dense path kept for these shapes.
    w = w_ref[...]
    recons = lax.dot_general(
        latk_ref[...].astype(jnp.bfloat16), w,
        dimension_numbers=(((1,), (0,)), ((), ())),
        preferred_element_type=jnp.float32) + pre_b
    recons_aux = lax.dot_general(
        lat_aux.astype(jnp.bfloat16), w,
        dimension_numbers=(((1,), (0,)), ((), ())),
        preferred_element_type=jnp.float32) + pre_b

    if normalize:
        std = std_ref[...]
        mu = mu_ref[...]
        recons = recons * std + mu
        recons_aux = recons_aux * std + mu
    recons_ref[...] = recons
    recons_aux_ref[...] = recons_aux


# ----------------------------------------------------------------------------
# Wrapper
# ----------------------------------------------------------------------------
def _vmem_limit_bytes():
    # Budget ~75% of physical per-core VMEM (leave headroom for compiler
    # scratch): ~48 MiB on v7x (64 MiB physical), ~96 MiB on v5e/v6e (128 MiB).
    try:
        cap = pltpu.get_tpu_info().vmem_capacity_bytes
    except Exception:
        cap = 64 * 1024 * 1024
    return int(cap * 3 // 4)


def _csr_forward_impl(x, w, pre_bias, latent_bias, stats, *, topk, auxk,
                      dead_threshold, normalize, eps, block_b,
                      single_buffer_resident):
    B, D = x.shape
    L = w.shape[0]
    nb = B // block_b

    wb = w.astype(jnp.bfloat16)                  # cast weight once (bf16 MXU operand)
    pre_bias2 = pre_bias.reshape(1, D)
    lat_bias2 = latent_bias.reshape(1, L)

    # Grid-invariant operands (constant index_map): single VMEM buffer -- no
    # pointless double-buffering of the resident weight / biases / mask.
    res_kw = dict(pipeline_mode=pl.Buffered(1)) if single_buffer_resident else {}

    cparams = pltpu.CompilerParams(
        dimension_semantics=("parallel",),       # batch tiles are independent
        vmem_limit_bytes=_vmem_limit_bytes())

    # -------- pass 1: LN + encode + top-k + per-tile hits --------
    enc_kernel = functools.partial(_csr_encode_kernel, topk=topk,
                                   normalize=normalize, eps=eps)
    pre_b16, latk, mu, std, hits_tiles = pl.pallas_call(
        enc_kernel,
        grid_spec=pltpu.PrefetchScalarGridSpec(
            num_scalar_prefetch=0,
            grid=(nb,),
            in_specs=[
                pl.BlockSpec((block_b, D), lambda i: (i, 0)),          # x tile
                pl.BlockSpec((L, D), lambda i: (0, 0), **res_kw),      # w (bf16, resident)
                pl.BlockSpec((1, D), lambda i: (0, 0), **res_kw),      # pre_bias
                pl.BlockSpec((1, L), lambda i: (0, 0), **res_kw),      # latent_bias
            ],
            out_specs=(
                pl.BlockSpec((block_b, L), lambda i: (i, 0)),          # pre (bf16)
                pl.BlockSpec((block_b, L), lambda i: (i, 0)),          # latents_k
                pl.BlockSpec((block_b, 1), lambda i: (i, 0)),          # mu
                pl.BlockSpec((block_b, 1), lambda i: (i, 0)),          # std
                pl.BlockSpec((1, 1, L), lambda i: (i, 0, 0)),          # per-tile hits
            ),
        ),
        out_shape=(
            jax.ShapeDtypeStruct((B, L), jnp.bfloat16),
            jax.ShapeDtypeStruct((B, L), jnp.float32),
            jax.ShapeDtypeStruct((B, 1), jnp.float32),
            jax.ShapeDtypeStruct((B, 1), jnp.float32),
            jax.ShapeDtypeStruct((nb, 1, L), jnp.float32),
        ),
        compiler_params=cparams,
    )(x, wb, pre_bias2, lat_bias2)

    # -------- full-batch stats update + dead mask (tiny [L] fold, plain XLA) --------
    hits_full = jnp.max(hits_tiles, axis=(0, 1))                  # [L]
    stats_new = stats.astype(jnp.float32) * (1.0 - hits_full) + 1.0
    dead = (stats_new > dead_threshold).astype(jnp.float32).reshape(1, L)

    # -------- pass 2: dead mask + aux top-k + decode --------
    # TODO(synk): for production L*D (bf16 weight > ~16 MiB) stream the weight
    # over a contraction grid axis (D-tiles for encode, L-tiles for decode)
    # instead of keeping it fully resident -- required to scale on v7x's 64 MiB VMEM.
    dec_kernel = functools.partial(_csr_decode_kernel, auxk=auxk,
                                   normalize=normalize)
    pre_masked, recons, recons_aux = pl.pallas_call(
        dec_kernel,
        grid_spec=pltpu.PrefetchScalarGridSpec(
            num_scalar_prefetch=0,
            grid=(nb,),
            in_specs=[
                pl.BlockSpec((block_b, L), lambda i: (i, 0)),          # pre (bf16)
                pl.BlockSpec((block_b, L), lambda i: (i, 0)),          # latents_k
                pl.BlockSpec((block_b, 1), lambda i: (i, 0)),          # mu
                pl.BlockSpec((block_b, 1), lambda i: (i, 0)),          # std
                pl.BlockSpec((1, L), lambda i: (0, 0), **res_kw),      # dead mask
                pl.BlockSpec((L, D), lambda i: (0, 0), **res_kw),      # w (bf16)
                pl.BlockSpec((1, D), lambda i: (0, 0), **res_kw),      # pre_bias
            ],
            out_specs=(
                pl.BlockSpec((block_b, L), lambda i: (i, 0)),          # masked pre
                pl.BlockSpec((block_b, D), lambda i: (i, 0)),          # recons
                pl.BlockSpec((block_b, D), lambda i: (i, 0)),          # recons_aux
            ),
        ),
        out_shape=(
            jax.ShapeDtypeStruct((B, L), jnp.float32),
            jax.ShapeDtypeStruct((B, D), jnp.float32),
            jax.ShapeDtypeStruct((B, D), jnp.float32),
        ),
        compiler_params=cparams,
    )(pre_b16, latk, mu, std, dead, wb, pre_bias2)

    # forward() returns the ORIGINAL x plus the csr_forward outputs; the updated
    # stats buffer is returned separately (functional state).
    return (x, pre_masked, latk, recons, recons_aux), stats_new


def csr_forward(x, w, pre_bias, latent_bias, stats, *, topk, auxk,
                dead_threshold, normalize, eps=1e-5, block_b=None):
    B, _ = x.shape
    if block_b is None:
        # Fill the MXU M-dimension (256x256 on v6e/v7x; 2x the v5e 128 tile).
        block_b = min(B, 256)
    # TODO(synk): pad the batch when B % block_b != 0 (padded rows would also
    # need masking out of the hits reduction); not needed for this test.
    assert B % block_b == 0 and block_b % 8 == 0, (B, block_b)

    kwargs = dict(topk=topk, auxk=auxk, dead_threshold=dead_threshold,
                  normalize=normalize, eps=eps, block_b=block_b)
    try:
        return _csr_forward_impl(x, w, pre_bias, latent_bias, stats,
                                 single_buffer_resident=True, **kwargs)
    except Exception:
        # TODO(synk): pl.Buffered(1) single-buffering of grid-invariant operands
        # unsupported on this jax/Mosaic version; fall back to default
        # double-buffering (identical results, ~2x resident-operand VMEM).
        return _csr_forward_impl(x, w, pre_bias, latent_bias, stats,
                                 single_buffer_resident=False, **kwargs)


# ----------------------------------------------------------------------------
# Pure-JAX reference (mirrors the PyTorch semantics and the kernel's numeric
# choices -- bf16 MXU operands, bf16 inter-pass pre, tie-inclusive top-k -- so
# the self-test comparison stays tight).
# ----------------------------------------------------------------------------
def _select_topk_ref(scores, k):
    work = scores
    thresh = jnp.max(work, axis=-1, keepdims=True)
    for _ in range(k - 1):
        work = jnp.where(work == thresh, -jnp.inf, work)
        thresh = jnp.max(work, axis=-1, keepdims=True)
    return scores >= thresh


def ref_forward(x, w, pre_bias, latent_bias, stats, *, topk, auxk,
                dead_threshold, normalize, eps=1e-5):
    _, D = x.shape
    wb = w.astype(jnp.bfloat16)
    if normalize:
        mu = x.mean(-1, keepdims=True)
        xc = x - mu
        std = jnp.sqrt(jnp.sum(xc ** 2, -1, keepdims=True) / (D - 1))
        xn = xc * (1.0 / (std + eps))
    else:
        xn, mu, std = x, None, None
    pre = lax.dot_general((xn - pre_bias).astype(jnp.bfloat16), wb,
                          dimension_numbers=(((1,), (1,)), ((), ())),
                          preferred_element_type=jnp.float32) + latent_bias
    sel_k = _select_topk_ref(pre, topk)
    lat_k = jnp.where(sel_k & (pre > 0.0), pre, 0.0)
    hits = jnp.max(jnp.where(sel_k & (pre > 1e-5), 1.0, 0.0), axis=0)
    stats_new = stats * (1.0 - hits) + 1.0
    dead = (stats_new > dead_threshold).astype(jnp.float32)
    pre_q = pre.astype(jnp.bfloat16).astype(jnp.float32)   # bf16 inter-pass storage
    pre_m = pre_q * dead
    sel_a = _select_topk_ref(pre_m, auxk)
    lat_a = jnp.where(sel_a & (pre_m > 0.0), pre_m, 0.0)
    recons = lax.dot_general(lat_k.astype(jnp.bfloat16), wb,
                             dimension_numbers=(((1,), (0,)), ((), ())),
                             preferred_element_type=jnp.float32) + pre_bias
    recons_aux = lax.dot_general(lat_a.astype(jnp.bfloat16), wb,
                                 dimension_numbers=(((1,), (0,)), ((), ())),
                                 preferred_element_type=jnp.float32) + pre_bias
    if normalize:
        recons = recons * std + mu
        recons_aux = recons_aux * std + mu
    return pre_m, lat_k, recons, recons_aux, stats_new


if __name__ == "__main__":
    B, D, L = 512, 128, 256       # small test shapes; (8,128)-aligned
    TOPK, AUXK = 8, 8
    DEAD_THRESHOLD = 1
    NORMALIZE = True
    BLOCK_B = 256                 # fills the MXU M-dim; 2 batch tiles exercise the grid

    key = jax.random.PRNGKey(0)
    kx, kw, kpb, klb, ks = jax.random.split(key, 5)
    x = jax.random.normal(kx, (B, D), dtype=jnp.float32)
    w = jax.random.normal(kw, (L, D), dtype=jnp.float32) * 0.05     # encoder.weight
    pre_bias = jax.random.normal(kpb, (D,), dtype=jnp.float32) * 0.01
    latent_bias = jax.random.normal(klb, (L,), dtype=jnp.float32) * 0.01
    # stats_last_nonzero buffer (torch.long). Carried in f32 here: exact while
    # counts stay below 2^24 (reset/increment-by-1 semantics).
    # TODO(synk): no TPU-native int64 for exact parity with the torch buffer dtype.
    stats = jax.random.randint(ks, (L,), 0, 4).astype(jnp.float32)

    (x_out, pre_out, lat_k, recons, recons_aux), stats_new = csr_forward(
        x, w, pre_bias, latent_bias, stats,
        topk=TOPK, auxk=AUXK, dead_threshold=DEAD_THRESHOLD,
        normalize=NORMALIZE, block_b=BLOCK_B)
    jax.block_until_ready((x_out, pre_out, lat_k, recons, recons_aux, stats_new))

    # verify against the pure-JAX reference
    r_pre, r_latk, r_rec, r_reca, r_stats = ref_forward(
        x, w, pre_bias, latent_bias, stats,
        topk=TOPK, auxk=AUXK, dead_threshold=DEAD_THRESHOLD, normalize=NORMALIZE)
    assert jnp.allclose(x_out, x)
    assert jnp.allclose(stats_new, r_stats)
    assert jnp.allclose(pre_out, r_pre, atol=2e-3, rtol=2e-3)
    assert jnp.allclose(lat_k, r_latk, atol=2e-3, rtol=2e-3)
    assert jnp.allclose(recons, r_rec, atol=2e-3, rtol=2e-3)
    assert jnp.allclose(recons_aux, r_reca, atol=2e-3, rtol=2e-3)

    print("KERNEL_OK")
</pallas_src>

<mosaic_0001>
module attributes {stable_mosaic.version = 11 : i64} {
  func.func @_csr_encode_kernel(%arg0: i32, %arg1: memref<256x128xf32, #tpu.memory_space<vmem>>, %arg2: memref<256x128xbf16, #tpu.memory_space<vmem>>, %arg3: memref<1x128xf32, #tpu.memory_space<vmem>>, %arg4: memref<1x256xf32, #tpu.memory_space<vmem>>, %arg5: memref<256x256xbf16, #tpu.memory_space<vmem>>, %arg6: memref<256x256xf32, #tpu.memory_space<vmem>>, %arg7: memref<256x1xf32, #tpu.memory_space<vmem>>, %arg8: memref<256x1xf32, #tpu.memory_space<vmem>>, %arg9: memref<1x1x256xf32, #tpu.memory_space<vmem>>) attributes {dimension_semantics = [#tpu.dimension_semantics<parallel>], iteration_bounds = array<i64: 2>, scalar_prefetch = 0 : i64, scratch_operands = 0 : i64, tpu.core_type = #tpu.core_type<tc>, window_params = [{transform_indices = @transform_0, window_bounds = array<i64: 256, 128>}, {pipeline_mode = #tpu.pipeline_mode<synchronous>, transform_indices = @transform_1, window_bounds = array<i64: 256, 128>}, {pipeline_mode = #tpu.pipeline_mode<synchronous>, transform_indices = @transform_2, window_bounds = array<i64: 1, 128>}, {pipeline_mode = #tpu.pipeline_mode<synchronous>, transform_indices = @transform_3, window_bounds = array<i64: 1, 256>}, {transform_indices = @transform_4, window_bounds = array<i64: 256, 256>}, {transform_indices = @transform_5, window_bounds = array<i64: 256, 256>}, {transform_indices = @transform_6, window_bounds = array<i64: 256, 1>}, {transform_indices = @transform_7, window_bounds = array<i64: 256, 1>}, {transform_indices = @transform_8, window_bounds = array<i64: 1, 1, 256>}]} {
    %c0 = arith.constant 0 : index
    %c0_0 = arith.constant 0 : index
    %0 = vector.load %arg1[%c0, %c0_0] : memref<256x128xf32, #tpu.memory_space<vmem>>, vector<256x128xf32>
    %c0_1 = arith.constant 0 : index
    %c0_2 = arith.constant 0 : index
    %1 = vector.load %arg3[%c0_1, %c0_2] : memref<1x128xf32, #tpu.memory_space<vmem>>, vector<1x128xf32>
    %c0_3 = arith.constant 0 : index
    %c0_4 = arith.constant 0 : index
    %2 = vector.load %arg4[%c0_3, %c0_4] : memref<1x256xf32, #tpu.memory_space<vmem>>, vector<1x256xf32>
    %cst = arith.constant dense<0.000000e+00> : vector<256xf32>
    %3 = vector.multi_reduction <add>, %0, %cst [1] : vector<256x128xf32> to vector<256xf32>
    %4 = vector.shape_cast %3 : vector<256xf32> to vector<256x1xf32>
    %cst_5 = arith.constant 1.280000e+02 : f32
    %5 = vector.broadcast %cst_5 : f32 to vector<256x1xf32>
    %6 = arith.divf %4, %5 : vector<256x1xf32>
    %7 = vector.broadcast %6 : vector<256x1xf32> to vector<256x128xf32>
    %8 = arith.subf %0, %7 : vector<256x128xf32>
    %9 = arith.mulf %8, %8 : vector<256x128xf32>
    %cst_6 = arith.constant dense<0.000000e+00> : vector<256xf32>
    %10 = vector.multi_reduction <add>, %9, %cst_6 [1] : vector<256x128xf32> to vector<256xf32>
    %11 = vector.shape_cast %10 : vector<256xf32> to vector<256x1xf32>
    %cst_7 = arith.constant 1.270000e+02 : f32
    %12 = vector.broadcast %cst_7 : f32 to vector<256x1xf32>
    %13 = arith.divf %11, %12 : vector<256x1xf32>
    %14 = math.sqrt %13 : vector<256x1xf32>
    %cst_8 = arith.constant 9.99999974E-6 : f32
    %15 = vector.broadcast %cst_8 : f32 to vector<256x1xf32>
    %16 = arith.addf %14, %15 : vector<256x1xf32>
    %17 = tpu.reciprocal %16 : vector<256x1xf32> -> vector<256x1xf32>
    %18 = vector.broadcast %17 : vector<256x1xf32> to vector<256x128xf32>
    %19 = arith.mulf %8, %18 : vector<256x128xf32>
    %c0_9 = arith.constant 0 : index
    %c0_10 = arith.constant 0 : index
    %20 = vector.load %arg7[%c0_9, %c0_10] : memref<256x1xf32, #tpu.memory_space<vmem>>, vector<256x1xf32>
    tpu.vector_store %arg7[%c0_9, %c0_10], %6 {strides = array<i32>} : memref<256x1xf32, #tpu.memory_space<vmem>>, vector<256x1xf32>,
    %c0_11 = arith.constant 0 : index
    %c0_12 = arith.constant 0 : index
    %21 = vector.load %arg8[%c0_11, %c0_12] : memref<256x1xf32, #tpu.memory_space<vmem>>, vector<256x1xf32>
    tpu.vector_store %arg8[%c0_11, %c0_12], %14 {strides = array<i32>} : memref<256x1xf32, #tpu.memory_space<vmem>>, vector<256x1xf32>,
    %22 = vector.broadcast %1 : vector<1x128xf32> to vector<256x128xf32>
    %23 = arith.subf %19, %22 : vector<256x128xf32>
    %24 = arith.truncf %23 : vector<256x128xf32> to vector<256x128xbf16>
    %c0_13 = arith.constant 0 : index
    %c0_14 = arith.constant 0 : index
    %25 = vector.load %arg2[%c0_13, %c0_14] : memref<256x128xbf16, #tpu.memory_space<vmem>>, vector<256x128xbf16>
    %cst_15 = arith.constant dense<0.000000e+00> : vector<256x256xf32>
    %26 = tpu.matmul %24, %25, %cst_15 {dimension_numbers = #tpu.dot_dimension_numbers<[1], [1], [0], [0], [0, 0, 1, 0], [], []>} : vector<256x128xbf16>, vector<256x128xbf16>, vector<256x256xf32> -> vector<256x256xf32>
    %27 = vector.broadcast %2 : vector<1x256xf32> to vector<256x256xf32>
    %28 = arith.addf %26, %27 : vector<256x256xf32>
    %29 = arith.truncf %28 : vector<256x256xf32> to vector<256x256xbf16>
    %c0_16 = arith.constant 0 : index
    %c0_17 = arith.constant 0 : index
    %30 = vector.load %arg5[%c0_16, %c0_17] : memref<256x256xbf16, #tpu.memory_space<vmem>>, vector<256x256xbf16>
    tpu.vector_store %arg5[%c0_16, %c0_17], %29 {strides = array<i32>} : memref<256x256xbf16, #tpu.memory_space<vmem>>, vector<256x256xbf16>,
    %cst_18 = arith.constant dense<0xFF800000> : vector<256xf32>
    %31 = vector.multi_reduction <maximumf>, %28, %cst_18 [1] : vector<256x256xf32> to vector<256xf32>
    %32 = vector.shape_cast %31 : vector<256xf32> to vector<256x1xf32>
    %33 = vector.broadcast %32 : vector<256x1xf32> to vector<256x256xf32>
    %34 = arith.cmpf oeq, %28, %33 : vector<256x256xf32>
    %cst_19 = arith.constant 0xFF800000 : f32
    %35 = vector.broadcast %cst_19 : f32 to vector<256x256xf32>
    %36 = arith.select %34, %35, %28 : vector<256x256xi1>, vector<256x256xf32>
    %cst_20 = arith.constant dense<0xFF800000> : vector<256xf32>
    %37 = vector.multi_reduction <maximumf>, %36, %cst_20 [1] : vector<256x256xf32> to vector<256xf32>
    %38 = vector.shape_cast %37 : vector<256xf32> to vector<256x1xf32>
    %39 = vector.broadcast %38 : vector<256x1xf32> to vector<256x256xf32>
    %40 = arith.cmpf oeq, %36, %39 : vector<256x256xf32>
    %cst_21 = arith.constant 0xFF800000 : f32
    %41 = vector.broadcast %cst_21 : f32 to vector<256x256xf32>
    %42 = arith.select %40, %41, %36 : vector<256x256xi1>, vector<256x256xf32>
    %cst_22 = arith.constant dense<0xFF800000> : vector<256xf32>
    %43 = vector.multi_reduction <maximumf>, %42, %cst_22 [1] : vector<256x256xf32> to vector<256xf32>
    %44 = vector.shape_cast %43 : vector<256xf32> to vector<256x1xf32>
    %45 = vector.broadcast %44 : vector<256x1xf32> to vector<256x256xf32>
    %46 = arith.cmpf oeq, %42, %45 : vector<256x256xf32>
    %cst_23 = arith.constant 0xFF800000 : f32
    %47 = vector.broadcast %cst_23 : f32 to vector<256x256xf32>
    %48 = arith.select %46, %47, %42 : vector<256x256xi1>, vector<256x256xf32>
    %cst_24 = arith.constant dense<0xFF800000> : vector<256xf32>
    %49 = vector.multi_reduction <maximumf>, %48, %cst_24 [1] : vector<256x256xf32> to vector<256xf32>
    %50 = vector.shape_cast %49 : vector<256xf32> to vector<256x1xf32>
    %51 = vector.broadcast %50 : vector<256x1xf32> to vector<256x256xf32>
    %52 = arith.cmpf oeq, %48, %51 : vector<256x256xf32>
    %cst_25 = arith.constant 0xFF800000 : f32
    %53 = vector.broadcast %cst_25 : f32 to vector<256x256xf32>
    %54 = arith.select %52, %53, %48 : vector<256x256xi1>, vector<256x256xf32>
    %cst_26 = arith.constant dense<0xFF800000> : vector<256xf32>
    %55 = vector.multi_reduction <maximumf>, %54, %cst_26 [1] : vector<256x256xf32> to vector<256xf32>
    %56 = vector.shape_cast %55 : vector<256xf32> to vector<256x1xf32>
    %57 = vector.broadcast %56 : vector<256x1xf32> to vector<256x256xf32>
    %58 = arith.cmpf oeq, %54, %57 : vector<256x256xf32>
    %cst_27 = arith.constant 0xFF800000 : f32
    %59 = vector.broadcast %cst_27 : f32 to vector<256x256xf32>
    %60 = arith.select %58, %59, %54 : vector<256x256xi1>, vector<256x256xf32>
    %cst_28 = arith.constant dense<0xFF800000> : vector<256xf32>
    %61 = vector.multi_reduction <maximumf>, %60, %cst_28 [1] : vector<256x256xf32> to vector<256xf32>
    %62 = vector.shape_cast %61 : vector<256xf32> to vector<256x1xf32>
    %63 = vector.broadcast %62 : vector<256x1xf32> to vector<256x256xf32>
    %64 = arith.cmpf oeq, %60, %63 : vector<256x256xf32>
    %cst_29 = arith.constant 0xFF800000 : f32
    %65 = vector.broadcast %cst_29 : f32 to vector<256x256xf32>
    %66 = arith.select %64, %65, %60 : vector<256x256xi1>, vector<256x256xf32>
    %cst_30 = arith.constant dense<0xFF800000> : vector<256xf32>
    %67 = vector.multi_reduction <maximumf>, %66, %cst_30 [1] : vector<256x256xf32> to vector<256xf32>
    %68 = vector.shape_cast %67 : vector<256xf32> to vector<256x1xf32>
    %69 = vector.broadcast %68 : vector<256x1xf32> to vector<256x256xf32>
    %70 = arith.cmpf oeq, %66, %69 : vector<256x256xf32>
    %cst_31 = arith.constant 0xFF800000 : f32
    %71 = vector.broadcast %cst_31 : f32 to vector<256x256xf32>
    %72 = arith.select %70, %71, %66 : vector<256x256xi1>, vector<256x256xf32>
    %cst_32 = arith.constant dense<0xFF800000> : vector<256xf32>
    %73 = vector.multi_reduction <maximumf>, %72, %cst_32 [1] : vector<256x256xf32> to vector<256xf32>
    %74 = vector.shape_cast %73 : vector<256xf32> to vector<256x1xf32>
    %75 = vector.broadcast %74 : vector<256x1xf32> to vector<256x256xf32>
    %76 = arith.cmpf oge, %28, %75 : vector<256x256xf32>
    %cst_33 = arith.constant 0.000000e+00 : f32
    %77 = vector.broadcast %cst_33 : f32 to vector<256x256xf32>
    %78 = arith.cmpf ogt, %28, %77 : vector<256x256xf32>
    %79 = arith.andi %76, %78 : vector<256x256xi1>
    %cst_34 = arith.constant 0.000000e+00 : f32
    %80 = vector.broadcast %cst_34 : f32 to vector<256x256xf32>
    %81 = arith.select %79, %28, %80 : vector<256x256xi1>, vector<256x256xf32>
    %c0_35 = arith.constant 0 : index
    %c0_36 = arith.constant 0 : index
    %82 = vector.load %arg6[%c0_35, %c0_36] : memref<256x256xf32, #tpu.memory_space<vmem>>, vector<256x256xf32>
    tpu.vector_store %arg6[%c0_35, %c0_36], %81 {strides = array<i32>} : memref<256x256xf32, #tpu.memory_space<vmem>>, vector<256x256xf32>,
    %cst_37 = arith.constant 9.99999974E-6 : f32
    %83 = vector.broadcast %cst_37 : f32 to vector<256x256xf32>
    %84 = arith.cmpf ogt, %28, %83 : vector<256x256xf32>
    %85 = arith.andi %76, %84 : vector<256x256xi1>
    %cst_38 = arith.constant 1.000000e+00 : f32
    %cst_39 = arith.constant 0.000000e+00 : f32
    %86 = vector.broadcast %cst_38 : f32 to vector<256x256xf32>
    %87 = vector.broadcast %cst_39 : f32 to vector<256x256xf32>
    %88 = arith.select %85, %86, %87 : vector<256x256xi1>, vector<256x256xf32>
    %cst_40 = arith.constant dense<0xFF800000> : vector<256xf32>
    %89 = vector.multi_reduction <maximumf>, %88, %cst_40 [0] : vector<256x256xf32> to vector<256xf32>
    %90 = vector.shape_cast %89 : vector<256xf32> to vector<1x256xf32>
    %91 = vector.shape_cast %90 : vector<1x256xf32> to vector<1x1x256xf32>
    %c0_41 = arith.constant 0 : index
    %c0_42 = arith.constant 0 : index
    %c0_43 = arith.constant 0 : index
    %92 = vector.load %arg9[%c0_41, %c0_42, %c0_43] : memref<1x1x256xf32, #tpu.memory_space<vmem>>, vector<1x1x256xf32>
    tpu.vector_store %arg9[%c0_41, %c0_42, %c0_43], %91 {strides = array<i32>} : memref<1x1x256xf32, #tpu.memory_space<vmem>>, vector<1x1x256xf32>,
    return
  }
  func.func @transform_0(%arg0: i32) -> (i32, i32) {
    %c0_i32 = arith.constant 0 : i32
    %c0_i32_0 = arith.constant 0 : i32
    return %arg0, %c0_i32 : i32, i32
  }
  func.func @transform_1(%arg0: i32) -> (i32, i32) {
    %c0_i32 = arith.constant 0 : i32
    %c0_i32_0 = arith.constant 0 : i32
    %c0_i32_1 = arith.constant 0 : i32
    return %c0_i32, %c0_i32_0 : i32, i32
  }
  func.func @transform_2(%arg0: i32) -> (i32, i32) {
    %c0_i32 = arith.constant 0 : i32
    %c0_i32_0 = arith.constant 0 : i32
    %c0_i32_1 = arith.constant 0 : i32
    return %c0_i32, %c0_i32_0 : i32, i32
  }
  func.func @transform_3(%arg0: i32) -> (i32, i32) {
    %c0_i32 = arith.constant 0 : i32
    %c0_i32_0 = arith.constant 0 : i32
    %c0_i32_1 = arith.constant 0 : i32
    return %c0_i32, %c0_i32_0 : i32, i32
  }
  func.func @transform_4(%arg0: i32) -> (i32, i32) {
    %c0_i32 = arith.constant 0 : i32
    %c0_i32_0 = arith.constant 0 : i32
    return %arg0, %c0_i32 : i32, i32
  }
  func.func @transform_5(%arg0: i32) -> (i32, i32) {
    %c0_i32 = arith.constant 0 : i32
    %c0_i32_0 = arith.constant 0 : i32
    return %arg0, %c0_i32 : i32, i32
  }
  func.func @transform_6(%arg0: i32) -> (i32, i32) {
    %c0_i32 = arith.constant 0 : i32
    %c0_i32_0 = arith.constant 0 : i32
    return %arg0, %c0_i32 : i32, i32
  }
  func.func @transform_7(%arg0: i32) -> (i32, i32) {
    %c0_i32 = arith.constant 0 : i32
    %c0_i32_0 = arith.constant 0 : i32
    return %arg0, %c0_i32 : i32, i32
  }
  func.func @transform_8(%arg0: i32) -> (i32, i32, i32) {
    %c0_i32 = arith.constant 0 : i32
    %c0_i32_0 = arith.constant 0 : i32
    %c0_i32_1 = arith.constant 0 : i32
    return %arg0, %c0_i32, %c0_i32_0 : i32, i32, i32
  }
}

module attributes {stable_mosaic.version = 11 : i64} {
  func.func @_csr_encode_kernel(%arg0: i32, %arg1: memref<256x128xf32, #tpu.memory_space<vmem>>, %arg2: memref<256x128xbf16, #tpu.memory_space<vmem>>, %arg3: memref<1x128xf32, #tpu.memory_space<vmem>>, %arg4: memref<1x256xf32, #tpu.memory_space<vmem>>, %arg5: memref<256x256xbf16, #tpu.memory_space<vmem>>, %arg6: memref<256x256xf32, #tpu.memory_space<vmem>>, %arg7: memref<256x1xf32, #tpu.memory_space<vmem>>, %arg8: memref<256x1xf32, #tpu.memory_space<vmem>>, %arg9: memref<1x1x256xf32, #tpu.memory_space<vmem>>) attributes {dimension_semantics = [#tpu.dimension_semantics<parallel>], iteration_bounds = array<i64: 2>, scalar_prefetch = 0 : i64, scratch_operands = 0 : i64, tpu.core_type = #tpu.core_type<tc>, window_params = [{transform_indices = @transform_0, window_bounds = array<i64: 256, 128>}, {pipeline_mode = #tpu.pipeline_mode<synchronous>, transform_indices = @transform_1, window_bounds = array<i64: 256, 128>}, {pipeline_mode = #tpu.pipeline_mode<synchronous>, transform_indices = @transform_2, window_bounds = array<i64: 1, 128>}, {pipeline_mode = #tpu.pipeline_mode<synchronous>, transform_indices = @transform_3, window_bounds = array<i64: 1, 256>}, {transform_indices = @transform_4, window_bounds = array<i64: 256, 256>}, {transform_indices = @transform_5, window_bounds = array<i64: 256, 256>}, {transform_indices = @transform_6, window_bounds = array<i64: 256, 1>}, {transform_indices = @transform_7, window_bounds = array<i64: 256, 1>}, {transform_indices = @transform_8, window_bounds = array<i64: 1, 1, 256>}]} {
    %c0 = arith.constant 0 : index
    %c0_0 = arith.constant 0 : index
    %0 = vector.load %arg1[%c0, %c0_0] : memref<256x128xf32, #tpu.memory_space<vmem>>, vector<256x128xf32>
    %c0_1 = arith.constant 0 : index
    %c0_2 = arith.constant 0 : index
    %1 = vector.load %arg3[%c0_1, %c0_2] : memref<1x128xf32, #tpu.memory_space<vmem>>, vector<1x128xf32>
    %c0_3 = arith.constant 0 : index
    %c0_4 = arith.constant 0 : index
    %2 = vector.load %arg4[%c0_3, %c0_4] : memref<1x256xf32, #tpu.memory_space<vmem>>, vector<1x256xf32>
    %cst = arith.constant dense<0.000000e+00> : vector<256xf32>
    %3 = vector.multi_reduction <add>, %0, %cst [1] : vector<256x128xf32> to vector<256xf32>
    %4 = vector.shape_cast %3 : vector<256xf32> to vector<256x1xf32>
    %cst_5 = arith.constant 1.280000e+02 : f32
    %5 = vector.broadcast %cst_5 : f32 to vector<256x1xf32>
    %6 = arith.divf %4, %5 : vector<256x1xf32>
    %7 = vector.broadcast %6 : vector<256x1xf32> to vector<256x128xf32>
    %8 = arith.subf %0, %7 : vector<256x128xf32>
    %9 = arith.mulf %8, %8 : vector<256x128xf32>
    %cst_6 = arith.constant dense<0.000000e+00> : vector<256xf32>
    %10 = vector.multi_reduction <add>, %9, %cst_6 [1] : vector<256x128xf32> to vector<256xf32>
    %11 = vector.shape_cast %10 : vector<256xf32> to vector<256x1xf32>
    %cst_7 = arith.constant 1.270000e+02 : f32
    %12 = vector.broadcast %cst_7 : f32 to vector<256x1xf32>
    %13 = arith.divf %11, %12 : vector<256x1xf32>
    %14 = math.sqrt %13 : vector<256x1xf32>
    %cst_8 = arith.constant 9.99999974E-6 : f32
    %15 = vector.broadcast %cst_8 : f32 to vector<256x1xf32>
    %16 = arith.addf %14, %15 : vector<256x1xf32>
    %17 = tpu.reciprocal %16 : vector<256x1xf32> -> vector<256x1xf32>
    %18 = vector.broadcast %17 : vector<256x1xf32> to vector<256x128xf32>
    %19 = arith.mulf %8, %18 : vector<256x128xf32>
    %c0_9 = arith.constant 0 : index
    %c0_10 = arith.constant 0 : index
    %20 = vector.load %arg7[%c0_9, %c0_10] : memref<256x1xf32, #tpu.memory_space<vmem>>, vector<256x1xf32>
    tpu.vector_store %arg7[%c0_9, %c0_10], %6 {strides = array<i32>} : memref<256x1xf32, #tpu.memory_space<vmem>>, vector<256x1xf32>,
    %c0_11 = arith.constant 0 : index
    %c0_12 = arith.constant 0 : index
    %21 = vector.load %arg8[%c0_11, %c0_12] : memref<256x1xf32, #tpu.memory_space<vmem>>, vector<256x1xf32>
    tpu.vector_store %arg8[%c0_11, %c0_12], %14 {strides = array<i32>} : memref<256x1xf32, #tpu.memory_space<vmem>>, vector<256x1xf32>,
    %22 = vector.broadcast %1 : vector<1x128xf32> to vector<256x128xf32>
    %23 = arith.subf %19, %22 : vector<256x128xf32>
    %24 = arith.truncf %23 : vector<256x128xf32> to vector<256x128xbf16>
    %c0_13 = arith.constant 0 : index
    %c0_14 = arith.constant 0 : index
    %25 = vector.load %arg2[%c0_13, %c0_14] : memref<256x128xbf16, #tpu.memory_space<vmem>>, vector<256x128xbf16>
    %cst_15 = arith.constant dense<0.000000e+00> : vector<256x256xf32>
    %26 = tpu.matmul %24, %25, %cst_15 {dimension_numbers = #tpu.dot_dimension_numbers<[1], [1], [0], [0], [0, 0, 1, 0], [], []>} : vector<256x128xbf16>, vector<256x128xbf16>, vector<256x256xf32> -> vector<256x256xf32>
    %27 = vector.broadcast %2 : vector<1x256xf32> to vector<256x256xf32>
    %28 = arith.addf %26, %27 : vector<256x256xf32>
    %29 = arith.truncf %28 : vector<256x256xf32> to vector<256x256xbf16>
    %c0_16 = arith.constant 0 : index
    %c0_17 = arith.constant 0 : index
    %30 = vector.load %arg5[%c0_16, %c0_17] : memref<256x256xbf16, #tpu.memory_space<vmem>>, vector<256x256xbf16>
    tpu.vector_store %arg5[%c0_16, %c0_17], %29 {strides = array<i32>} : memref<256x256xbf16, #tpu.memory_space<vmem>>, vector<256x256xbf16>,
    %cst_18 = arith.constant dense<0xFF800000> : vector<256xf32>
    %31 = vector.multi_reduction <maximumf>, %28, %cst_18 [1] : vector<256x256xf32> to vector<256xf32>
    %32 = vector.shape_cast %31 : vector<256xf32> to vector<256x1xf32>
    %33 = vector.broadcast %32 : vector<256x1xf32> to vector<256x256xf32>
    %34 = arith.cmpf oeq, %28, %33 : vector<256x256xf32>
    %cst_19 = arith.constant 0xFF800000 : f32
    %35 = vector.broadcast %cst_19 : f32 to vector<256x256xf32>
    %36 = arith.select %34, %35, %28 : vector<256x256xi1>, vector<256x256xf32>
    %cst_20 = arith.constant dense<0xFF800000> : vector<256xf32>
    %37 = vector.multi_reduction <maximumf>, %36, %cst_20 [1] : vector<256x256xf32> to vector<256xf32>
    %38 = vector.shape_cast %37 : vector<256xf32> to vector<256x1xf32>
    %39 = vector.broadcast %38 : vector<256x1xf32> to vector<256x256xf32>
    %40 = arith.cmpf oeq, %36, %39 : vector<256x256xf32>
    %cst_21 = arith.constant 0xFF800000 : f32
    %41 = vector.broadcast %cst_21 : f32 to vector<256x256xf32>
    %42 = arith.select %40, %41, %36 : vector<256x256xi1>, vector<256x256xf32>
    %cst_22 = arith.constant dense<0xFF800000> : vector<256xf32>
    %43 = vector.multi_reduction <maximumf>, %42, %cst_22 [1] : vector<256x256xf32> to vector<256xf32>
    %44 = vector.shape_cast %43 : vector<256xf32> to vector<256x1xf32>
    %45 = vector.broadcast %44 : vector<256x1xf32> to vector<256x256xf32>
    %46 = arith.cmpf oeq, %42, %45 : vector<256x256xf32>
    %cst_23 = arith.constant 0xFF800000 : f32
    %47 = vector.broadcast %cst_23 : f32 to vector<256x256xf32>
    %48 = arith.select %46, %47, %42 : vector<256x256xi1>, vector<256x256xf32>
    %cst_24 = arith.constant dense<0xFF800000> : vector<256xf32>
    %49 = vector.multi_reduction <maximumf>, %48, %cst_24 [1] : vector<256x256xf32> to vector<256xf32>
    %50 = vector.shape_cast %49 : vector<256xf32> to vector<256x1xf32>
    %51 = vector.broadcast %50 : vector<256x1xf32> to vector<256x256xf32>
    %52 = arith.cmpf oeq, %48, %51 : vector<256x256xf32>
    %cst_25 = arith.constant 0xFF800000 : f32
    %53 = vector.broadcast %cst_25 : f32 to vector<256x256xf32>
    %54 = arith.select %52, %53, %48 : vector<256x256xi1>, vector<256x256xf32>
    %cst_26 = arith.constant dense<0xFF800000> : vector<256xf32>
    %55 = vector.multi_reduction <maximumf>, %54, %cst_26 [1] : vector<256x256xf32> to vector<256xf32>
    %56 = vector.shape_cast %55 : vector<256xf32> to vector<256x1xf32>
    %57 = vector.broadcast %56 : vector<256x1xf32> to vector<256x256xf32>
    %58 = arith.cmpf oeq, %54, %57 : vector<256x256xf32>
    %cst_27 = arith.constant 0xFF800000 : f32
    %59 = vector.broadcast %cst_27 : f32 to vector<256x256xf32>
    %60 = arith.select %58, %59, %54 : vector<256x256xi1>, vector<256x256xf32>
    %cst_28 = arith.constant dense<0xFF800000> : vector<256xf32>
    %61 = vector.multi_reduction <maximumf>, %60, %cst_28 [1] : vector<256x256xf32> to vector<256xf32>
    %62 = vector.shape_cast %61 : vector<256xf32> to vector<256x1xf32>
    %63 = vector.broadcast %62 : vector<256x1xf32> to vector<256x256xf32>
    %64 = arith.cmpf oeq, %60, %63 : vector<256x256xf32>
    %cst_29 = arith.constant 0xFF800000 : f32
    %65 = vector.broadcast %cst_29 : f32 to vector<256x256xf32>
    %66 = arith.select %64, %65, %60 : vector<256x256xi1>, vector<256x256xf32>
    %cst_30 = arith.constant dense<0xFF800000> : vector<256xf32>
    %67 = vector.multi_reduction <maximumf>, %66, %cst_30 [1] : vector<256x256xf32> to vector<256xf32>
    %68 = vector.shape_cast %67 : vector<256xf32> to vector<256x1xf32>
    %69 = vector.broadcast %68 : vector<256x1xf32> to vector<256x256xf32>
    %70 = arith.cmpf oeq, %66, %69 : vector<256x256xf32>
    %cst_31 = arith.constant 0xFF800000 : f32
    %71 = vector.broadcast %cst_31 : f32 to vector<256x256xf32>
    %72 = arith.select %70, %71, %66 : vector<256x256xi1>, vector<256x256xf32>
    %cst_32 = arith.constant dense<0xFF800000> : vector<256xf32>
    %73 = vector.multi_reduction <maximumf>, %72, %cst_32 [1] : vector<256x256xf32> to vector<256xf32>
    %74 = vector.shape_cast %73 : vector<256xf32> to vector<256x1xf32>
    %75 = vector.broadcast %74 : vector<256x1xf32> to vector<256x256xf32>
    %76 = arith.cmpf oge, %28, %75 : vector<256x256xf32>
    %cst_33 = arith.constant 0.000000e+00 : f32
    %77 = vector.broadcast %cst_33 : f32 to vector<256x256xf32>
    %78 = arith.cmpf ogt, %28, %77 : vector<256x256xf32>
    %79 = arith.andi %76, %78 : vector<256x256xi1>
    %cst_34 = arith.constant 0.000000e+00 : f32
    %80 = vector.broadcast %cst_34 : f32 to vector<256x256xf32>
    %81 = arith.select %79, %28, %80 : vector<256x256xi1>, vector<256x256xf32>
    %c0_35 = arith.constant 0 : index
    %c0_36 = arith.constant 0 : index
    %82 = vector.load %arg6[%c0_35, %c0_36] : memref<256x256xf32, #tpu.memory_space<vmem>>, vector<256x256xf32>
    tpu.vector_store %arg6[%c0_35, %c0_36], %81 {strides = array<i32>} : memref<256x256xf32, #tpu.memory_space<vmem>>, vector<256x256xf32>,
    %cst_37 = arith.constant 9.99999974E-6 : f32
    %83 = vector.broadcast %cst_37 : f32 to vector<256x256xf32>
    %84 = arith.cmpf ogt, %28, %83 : vector<256x256xf32>
    %85 = arith.andi %76, %84 : vector<256x256xi1>
    %cst_38 = arith.constant 1.000000e+00 : f32
    %cst_39 = arith.constant 0.000000e+00 : f32
    %86 = vector.broadcast %cst_38 : f32 to vector<256x256xf32>
    %87 = vector.broadcast %cst_39 : f32 to vector<256x256xf32>
    %88 = arith.select %85, %86, %87 : vector<256x256xi1>, vector<256x256xf32>
    %cst_40 = arith.constant dense<0xFF800000> : vector<256xf32>
    %89 = vector.multi_reduction <maximumf>, %88, %cst_40 [0] : vector<256x256xf32> to vector<256xf32>
    %90 = vector.shape_cast %89 : vector<256xf32> to vector<1x256xf32>
    %91 = vector.shape_cast %90 : vector<1x256xf32> to vector<1x1x256xf32>
    %c0_41 = arith.constant 0 : index
    %c0_42 = arith.constant 0 : index
    %c0_43 = arith.constant 0 : index
    %92 = vector.load %arg9[%c0_41, %c0_42, %c0_43] : memref<1x1x256xf32, #tpu.memory_space<vmem>>, vector<1x1x256xf32>
    tpu.vector_store %arg9[%c0_41, %c0_42, %c0_43], %91 {strides = array<i32>} : memref<1x1x256xf32, #tpu.memory_space<vmem>>, vector<1x1x256xf32>,
    return
  }
  func.func @transform_0(%arg0: i32) -> (i32, i32) {
    %c0_i32 = arith.constant 0 : i32
    %c0_i32_0 = arith.constant 0 : i32
    return %arg0, %c0_i32 : i32, i32
  }
  func.func @transform_1(%arg0: i32) -> (i32, i32) {
    %c0_i32 = arith.constant 0 : i32
    %c0_i32_0 = arith.constant 0 : i32
    %c0_i32_1 = arith.constant 0 : i32
    return %c0_i32, %c0_i32_0 : i32, i32
  }
  func.func @transform_2(%arg0: i32) -> (i32, i32) {
    %c0_i32 = arith.constant 0 : i32
    %c0_i32_0 = arith.constant 0 : i32
    %c0_i32_1 = arith.constant 0 : i32
    return %c0_i32, %c0_i32_0 : i32, i32
  }
  func.func @transform_3(%arg0: i32) -> (i32, i32) {
    %c0_i32 = arith.constant 0 : i32
    %c0_i32_0 = arith.constant 0 : i32
    %c0_i32_1 = arith.constant 0 : i32
    return %c0_i32, %c0_i32_0 : i32, i32
  }
  func.func @transform_4(%arg0: i32) -> (i32, i32) {
    %c0_i32 = arith.constant 0 : i32
    %c0_i32_0 = arith.constant 0 : i32
    return %arg0, %c0_i32 : i32, i32
  }
  func.func @transform_5(%arg0: i32) -> (i32, i32) {
    %c0_i32 = arith.constant 0 : i32
    %c0_i32_0 = arith.constant 0 : i32
    return %arg0, %c0_i32 : i32, i32
  }
  func.func @transform_6(%arg0: i32) -> (i32, i32) {
    %c0_i32 = arith.constant 0 : i32
    %c0_i32_0 = arith.constant 0 : i32
    return %arg0, %c0_i32 : i32, i32
  }
  func.func @transform_7(%arg0: i32) -> (i32, i32) {
    %c0_i32 = arith.constant 0 : i32
    %c0_i32_0 = arith.constant 0 : i32
    return %arg0, %c0_i32 : i32, i32
  }
  func.func @transform_8(%arg0: i32) -> (i32, i32, i32) {
    %c0_i32 = arith.constant 0 : i32
    %c0_i32_0 = arith.constant 0 : i32
    %c0_i32_1 = arith.constant 0 : i32
    return %arg0, %c0_i32, %c0_i32_0 : i32, i32, i32
  }
}

</mosaic_0001>

<llo_original>
// kernel: tpu_custom_call.1
$region0: #{tpu_custom_call.1}
  #allocation0 [shape = 'u32[]', space=smem, size = 0x4, offset = 0x4, fixed_abs, tag = 'smem constant byte address 0x4 - core index']
  #allocation1 [shape = 'u32[144,128]{1,0:T(1,128)}', space=vmem, size = 0x12000, scoped, tag = 'internal scratch']
  %s0 = inlined_call_operand.hbm [shape: f32[512,128], index: 0, kind: input, shape index: {}]
  %s1 = inlined_call_operand.hbm [shape: bf16[256,128], index: 1, kind: input, shape index: {}]
  %s2 = inlined_call_operand.vmem [shape: f32[1,128], index: 2, kind: input, shape index: {}]
  %s3 = inlined_call_operand.vmem [shape: f32[1,256], index: 3, kind: input, shape index: {}]
  %s4 = inlined_call_operand.hbm [shape: bf16[512,256], index: 4, kind: output, shape index: {0}]
  %s5 = inlined_call_operand.hbm [shape: f32[512,256], index: 5, kind: output, shape index: {1}]
  %s6 = inlined_call_operand.vmem [shape: f32[512,1], index: 6, kind: output, shape index: {2}]
  %s7 = inlined_call_operand.vmem [shape: f32[512,1], index: 7, kind: output, shape index: {3}]
  %s8 = inlined_call_operand.hbm [shape: f32[2,1,256], index: 8, kind: output, shape index: {4}]
  %9 = xla_tuple %s4, %s5, %s6, %s7, %s8
  %s10 = sld [smem:[#allocation0]]
  $region89: #{tpu_custom_call.1} parent=0
    _
  %s12 = ssub.s32 1, %s10
  %s13 = scalar_select 0, %s12, %s10
  $region1: #{tpu_custom_call.1} parent=0
    #allocation2 [shape = 'u8[262144]{0}', space=vmem, size = 0x40000, scoped, tag = 'input window, operand 0']
    #allocation3 [shape = 's32[2]{0}', space=sflag, size = 0x8, scoped, tag = 'scoped memory for tpu_custom_call.1']
    #allocation4 [shape = 's32[2]{0}', space=sflag, size = 0x8, scoped, tag = 'scoped memory for tpu_custom_call.1']
    #allocation5 [shape = 'u8[65536]{0}', space=vmem, size = 0x10000, scoped, tag = 'input window, operand 1, single buffered']
    #allocation6 [shape = 's32[1]{0}', space=sflag, size = 0x4, scoped, tag = 'scoped memory for tpu_custom_call.1']
    #allocation7 [shape = 'u8[262144]{0}', space=vmem, size = 0x40000, scoped, tag = 'output window, operand 0']
    #allocation8 [shape = 'u8[524288]{0}', space=vmem, size = 0x80000, scoped, tag = 'output window, operand 1']
    #allocation9 [shape = 's32[2]{0}', space=sflag, size = 0x8, scoped, tag = 'scoped memory for tpu_custom_call.1']
    #allocation10 [shape = 'u8[2048]{0}', space=vmem, size = 0x800, scoped, tag = 'output window, operand 4']
    %14 = vsyncpa [#allocation3], 0
    %s15 = scalar_lea.sflag [#allocation3], 1
    %16 = vsyncpa %s15, 0
    %17 = vsyncpa [#allocation6], 0
    %18 = vsyncpa [#allocation4], 0
    %s19 = scalar_lea.sflag [#allocation4], 1
    %20 = vsyncpa %s19, 0
    %21 = vsyncpa [#allocation9], 0
    %s22 = scalar_lea.sflag [#allocation9], 1
    %23 = vsyncpa %s22, 0
    loop: start=0, step=1, limit=4
    $region2: #{tpu_custom_call.1} parent=1 // loop_pre_header
      _
    $region3: #{tpu_custom_call.1} parent=1 // loop_header
      %s25 = sphi 0, %s29
      %p26 = scmp.ge.s32.totalorder %s25, 4
      %s35 = sphi 0, %s37
      %s38 = sphi 0, %s35
      %s39 = sphi 0, %s38
      %s55 = sphi 0, %s39
      %s59 = sphi 0, %s59
      %s61 = sphi 0, %s59
      %s62 = sphi 0, %s61
      %s76 = sphi 0, %s62
      %s80 = sphi 0, %s80
      %s82 = sphi 0, %s80
      %s83 = sphi 0, %s82
      %s97 = sphi 0, %s83
      %s101 = sphi 0, %s101
      %s103 = sphi 0, %s101
      %s104 = sphi 0, %s103
      %s118 = sphi 0, %s104
      %s124 = sphi 0, %s126
      %s127 = sphi 0, %s124
      %s128 = sphi 0, %s127
      %s144 = sphi 0, %s128
      %s150 = sphi 0, %s152
      %s153 = sphi 0, %s150
      %s154 = sphi 0, %s153
      %s170 = sphi 0, %s154
      %s176 = sphi 0, %s178
      %s179 = sphi 0, %s176
      %s180 = sphi 0, %s179
      %s196 = sphi 0, %s180
      %s202 = sphi 0, %s204
      %s205 = sphi 0, %s202
      %s206 = sphi 0, %s205
      %s222 = sphi 0, %s206
      %s228 = sphi 0, %s230
      %s231 = sphi 0, %s228
      %s232 = sphi 0, %s231
      %s248 = sphi 0, %s232
    $region4: #{tpu_custom_call.1} parent=1 // loop_header_branch
      %28 = sbr.rel (%p26) target = $region8
    $region5: #{tpu_custom_call.1} parent=1 // loop_body
      %s30 = ssub.s32 %s25, 1
      %s31 = ssub.s32 %s25, 2
      %s32 = sadd.s32 %s25, 1
      %s33 = ssub.s32 %s25, %s32
      %p34 = scmp.eq.s32.totalorder %s33, 0
      %s36 = sadd.s32 %s35, 1
      %s37 = scalar_select %p34, %s35, %s36
      %p40 = pneg %p34
      %p41 = scmp.eq.s32.totalorder %s25, 1
      %p42 = por %p40, %p41
      %p43 = scmp.ne.s32.totalorder %s35, %s38
      %p44 = scmp.eq.s32.totalorder %s25, 0
      %p45 = por %p43, %p44
      %p46 = scmp.ne.s32.totalorder %s35, %s38
      %p47 = scmp.eq.s32.totalorder %s30, 1
      %p48 = por %p46, %p47
      %p49 = scmp.ne.s32.totalorder %s38, %s39
      %p50 = scmp.eq.s32.totalorder %s30, 0
      %p51 = por %p49, %p50
      %p52 = scmp.ne.s32.totalorder %s38, %s39
      %p53 = scmp.eq.s32.totalorder %s31, 1
      %p54 = por %p52, %p53
      %p56 = scmp.ne.s32.totalorder %s39, %s55
      %p57 = scmp.eq.s32.totalorder %s31, 0
      %p58 = por %p56, %p57
      %s60 = sadd.s32 %s59, 1
      %p63 = scmp.eq.s32.totalorder %s25, 1
      %p64 = scmp.ne.s32.totalorder %s59, %s61
      %p65 = scmp.eq.s32.totalorder %s25, 0
      %p66 = por %p64, %p65
      %p67 = scmp.ne.s32.totalorder %s59, %s61
      %p68 = scmp.eq.s32.totalorder %s30, 1
      %p69 = por %p67, %p68
      %p70 = scmp.ne.s32.totalorder %s61, %s62
      %p71 = scmp.eq.s32.totalorder %s30, 0
      %p72 = por %p70, %p71
      %p73 = scmp.ne.s32.totalorder %s61, %s62
      %p74 = scmp.eq.s32.totalorder %s31, 1
      %p75 = por %p73, %p74
      %p77 = scmp.ne.s32.totalorder %s62, %s76
      %p78 = scmp.eq.s32.totalorder %s31, 0
      %p79 = por %p77, %p78
      %s81 = sadd.s32 %s80, 1
      %p84 = scmp.eq.s32.totalorder %s25, 1
      %p85 = scmp.ne.s32.totalorder %s80, %s82
      %p86 = scmp.eq.s32.totalorder %s25, 0
      %p87 = por %p85, %p86
      %p88 = scmp.ne.s32.totalorder %s80, %s82
      %p89 = scmp.eq.s32.totalorder %s30, 1
      %p90 = por %p88, %p89
      %p91 = scmp.ne.s32.totalorder %s82, %s83
      %p92 = scmp.eq.s32.totalorder %s30, 0
      %p93 = por %p91, %p92
      %p94 = scmp.ne.s32.totalorder %s82, %s83
      %p95 = scmp.eq.s32.totalorder %s31, 1
      %p96 = por %p94, %p95
      %p98 = scmp.ne.s32.totalorder %s83, %s97
      %p99 = scmp.eq.s32.totalorder %s31, 0
      %p100 = por %p98, %p99
      %s102 = sadd.s32 %s101, 1
      %p105 = scmp.eq.s32.totalorder %s25, 1
      %p106 = scmp.ne.s32.totalorder %s101, %s103
      %p107 = scmp.eq.s32.totalorder %s25, 0
      %p108 = por %p106, %p107
      %p109 = scmp.ne.s32.totalorder %s101, %s103
      %p110 = scmp.eq.s32.totalorder %s30, 1
      %p111 = por %p109, %p110
      %p112 = scmp.ne.s32.totalorder %s103, %s104
      %p113 = scmp.eq.s32.totalorder %s30, 0
      %p114 = por %p112, %p113
      %p115 = scmp.ne.s32.totalorder %s103, %s104
      %p116 = scmp.eq.s32.totalorder %s31, 1
      %p117 = por %p115, %p116
      %p119 = scmp.ne.s32.totalorder %s104, %s118
      %p120 = scmp.eq.s32.totalorder %s31, 0
      %p121 = por %p119, %p120
      %s122 = ssub.s32 %s25, %s32
      %p123 = scmp.eq.s32.totalorder %s122, 0
      %s125 = sadd.s32 %s124, 1
      %s126 = scalar_select %p123, %s124, %s125
      %p129 = pneg %p123
      %p130 = scmp.eq.s32.totalorder %s25, 1
      %p131 = por %p129, %p130
      %p132 = scmp.ne.s32.totalorder %s124, %s127
      %p133 = scmp.eq.s32.totalorder %s25, 0
      %p134 = por %p132, %p133
      %p135 = scmp.ne.s32.totalorder %s124, %s127
      %p136 = scmp.eq.s32.totalorder %s30, 1
      %p137 = por %p135, %p136
      %p138 = scmp.ne.s32.totalorder %s127, %s128
      %p139 = scmp.eq.s32.totalorder %s30, 0
      %p140 = por %p138, %p139
      %p141 = scmp.ne.s32.totalorder %s127, %s128
      %p142 = scmp.eq.s32.totalorder %s31, 1
      %p143 = por %p141, %p142
      %p145 = scmp.ne.s32.totalorder %s128, %s144
      %p146 = scmp.eq.s32.totalorder %s31, 0
      %p147 = por %p145, %p146
      %s148 = ssub.s32 %s25, %s32
      %p149 = scmp.eq.s32.totalorder %s148, 0
      %s151 = sadd.s32 %s150, 1
      %s152 = scalar_select %p149, %s150, %s151
      %p155 = pneg %p149
      %p156 = scmp.eq.s32.totalorder %s25, 1
      %p157 = por %p155, %p156
      %p158 = scmp.ne.s32.totalorder %s150, %s153
      %p159 = scmp.eq.s32.totalorder %s25, 0
      %p160 = por %p158, %p159
      %p161 = scmp.ne.s32.totalorder %s150, %s153
      %p162 = scmp.eq.s32.totalorder %s30, 1
      %p163 = por %p161, %p162
      %p164 = scmp.ne.s32.totalorder %s153, %s154
      %p165 = scmp.eq.s32.totalorder %s30, 0
      %p166 = por %p164, %p165
      %p167 = scmp.ne.s32.totalorder %s153, %s154
      %p168 = scmp.eq.s32.totalorder %s31, 1
      %p169 = por %p167, %p168
      %p171 = scmp.ne.s32.totalorder %s154, %s170
      %p172 = scmp.eq.s32.totalorder %s31, 0
      %p173 = por %p171, %p172
      %s174 = ssub.s32 %s25, %s32
      %p175 = scmp.eq.s32.totalorder %s174, 0
      %s177 = sadd.s32 %s176, 1
      %s178 = scalar_select %p175, %s176, %s177
      %p181 = pneg %p175
      %p182 = scmp.eq.s32.totalorder %s25, 1
      %p183 = por %p181, %p182
      %p184 = scmp.ne.s32.totalorder %s176, %s179
      %p185 = scmp.eq.s32.totalorder %s25, 0
      %p186 = por %p184, %p185
      %p187 = scmp.ne.s32.totalorder %s176, %s179
      %p188 = scmp.eq.s32.totalorder %s30, 1
      %p189 = por %p187, %p188
      %p190 = scmp.ne.s32.totalorder %s179, %s180
      %p191 = scmp.eq.s32.totalorder %s30, 0
      %p192 = por %p190, %p191
      %p193 = scmp.ne.s32.totalorder %s179, %s180
      %p194 = scmp.eq.s32.totalorder %s31, 1
      %p195 = por %p193, %p194
      %p197 = scmp.ne.s32.totalorder %s180, %s196
      %p198 = scmp.eq.s32.totalorder %s31, 0
      %p199 = por %p197, %p198
      %s200 = ssub.s32 %s25, %s32
      %p201 = scmp.eq.s32.totalorder %s200, 0
      %s203 = sadd.s32 %s202, 1
      %s204 = scalar_select %p201, %s202, %s203
      %p207 = pneg %p201
      %p208 = scmp.eq.s32.totalorder %s25, 1
      %p209 = por %p207, %p208
      %p210 = scmp.ne.s32.totalorder %s202, %s205
      %p211 = scmp.eq.s32.totalorder %s25, 0
      %p212 = por %p210, %p211
      %p213 = scmp.ne.s32.totalorder %s202, %s205
      %p214 = scmp.eq.s32.totalorder %s30, 1
      %p215 = por %p213, %p214
      %p216 = scmp.ne.s32.totalorder %s205, %s206
      %p217 = scmp.eq.s32.totalorder %s30, 0
      %p218 = por %p216, %p217
      %p219 = scmp.ne.s32.totalorder %s205, %s206
      %p220 = scmp.eq.s32.totalorder %s31, 1
      %p221 = por %p219, %p220
      %p223 = scmp.ne.s32.totalorder %s206, %s222
      %p224 = scmp.eq.s32.totalorder %s31, 0
      %p225 = por %p223, %p224
      %s226 = ssub.s32 %s25, %s32
      %p227 = scmp.eq.s32.totalorder %s226, 0
      %s229 = sadd.s32 %s228, 1
      %s230 = scalar_select %p227, %s228, %s229
      %p233 = pneg %p227
      %p234 = scmp.eq.s32.totalorder %s25, 1
      %p235 = por %p233, %p234
      %p236 = scmp.ne.s32.totalorder %s228, %s231
      %p237 = scmp.eq.s32.totalorder %s25, 0
      %p238 = por %p236, %p237
      %p239 = scmp.ne.s32.totalorder %s228, %s231
      %p240 = scmp.eq.s32.totalorder %s30, 1
      %p241 = por %p239, %p240
      %p242 = scmp.ne.s32.totalorder %s231, %s232
      %p243 = scmp.eq.s32.totalorder %s30, 0
      %p244 = por %p242, %p243
      %p245 = scmp.ne.s32.totalorder %s231, %s232
      %p246 = scmp.eq.s32.totalorder %s31, 1
      %p247 = por %p245, %p246
      %p249 = scmp.ne.s32.totalorder %s232, %s248
      %p250 = scmp.eq.s32.totalorder %s31, 0
      %p251 = por %p249, %p250
      %p252 = scmp.le.s32.totalorder 1, %s25
      %p253 = scmp.lt.s32.totalorder %s25, 3
      %p254 = pnand %p252, %p253
      %p255 = pneg %p254
      // Predicated region
      $region9: #{tpu_custom_call.1} parent=5 // pred_check
        _
      $region10: #{tpu_custom_call.1} parent=5 // pred_check_branch
        %257 = sbr.rel (%p254) target = $region12
      $region11: #{tpu_custom_call.1} parent=5 // pred_region
        %s258 = ssub.s32 %s25, 1
        // Predicated region
        $region13: #{tpu_custom_call.1} parent=11 // pred_check
          %p259 = pneg %p72
        $region14: #{tpu_custom_call.1} parent=11 // pred_check_branch
          %261 = sbr.rel (%p259) target = $region16
        $region15: #{tpu_custom_call.1} parent=11 // pred_region
          %s263 = ssub.s32 2048, 2048
          %264 = vsyncadd [#allocation6], %s263
          %s265 = sshll.u32 [#allocation5], 4
          %s266 = int_to_ptr.vmem [resolvable:$true] %s265
          %271 = dma.hbm_to_vmem [thread:$0]  %s1, 2048, %s266, [#allocation6], 64, 64, 4
        $region16: #{tpu_custom_call.1} parent=11 // pred_fallthru
          _
        // Predicated region
        $region17: #{tpu_custom_call.1} parent=11 // pred_check
          %p272 = pneg %p93
        $region18: #{tpu_custom_call.1} parent=11 // pred_check_branch
          %274 = sbr.rel (%p272) target = $region20
        $region19: #{tpu_custom_call.1} parent=11 // pred_region
          _
        $region20: #{tpu_custom_call.1} parent=11 // pred_fallthru
          _
        // Predicated region
        $region21: #{tpu_custom_call.1} parent=11 // pred_check
          %p275 = pneg %p114
        $region22: #{tpu_custom_call.1} parent=11 // pred_check_branch
          %277 = sbr.rel (%p275) target = $region24
        $region23: #{tpu_custom_call.1} parent=11 // pred_region
          _
        $region24: #{tpu_custom_call.1} parent=11 // pred_fallthru
          _
      $region12: #{tpu_custom_call.1} parent=5 // pred_fallthru
        _
      %p278 = scmp.lt.s32.totalorder %s25, 2
      // Predicated region
      $region25: #{tpu_custom_call.1} parent=5 // pred_check
        %p279 = pneg %p278
      $region26: #{tpu_custom_call.1} parent=5 // pred_check_branch
        %281 = sbr.rel (%p279) target = $region28
      $region27: #{tpu_custom_call.1} parent=5 // pred_region
        // Predicated region
        $region29: #{tpu_custom_call.1} parent=27 // pred_check
          %p282 = pneg %p45
        $region30: #{tpu_custom_call.1} parent=27 // pred_check_branch
          %284 = sbr.rel (%p282) target = $region32
        $region31: #{tpu_custom_call.1} parent=27 // pred_region
          %s285 = sand.u32 %s35, 1
          %s286 = scalar_lea.sflag [#allocation3], %s285
          %s287 = sand.u32 %s35, 1
          %s288 = smul.addr %s287, 256
          %s289 = scalar_lea.vmem [#allocation2], %s288
          %s290 = smul.u32 32, %s25
          %s292 = ssub.s32 4096, 4096
          %293 = vsyncadd %s286, %s292
          %s294 = smul.addr %s290, 128
          %s295 = scalar_lea.hbm %s0, %s294
          %s296 = sshll.u32 %s289, 4
          %s297 = int_to_ptr.vmem [resolvable:$true] %s296
          %302 = dma.hbm_to_vmem [thread:$0]  %s295, 4096, %s297, %s286, 128, 128, 8
        $region32: #{tpu_custom_call.1} parent=27 // pred_fallthru
          _
      $region28: #{tpu_custom_call.1} parent=5 // pred_fallthru
        _
      %p303 = scmp.le.s32.totalorder 1, %s25
      %p304 = scmp.lt.s32.totalorder %s25, 3
      %p305 = pnand %p303, %p304
      %p306 = pneg %p305
      // Predicated region
      $region33: #{tpu_custom_call.1} parent=5 // pred_check
        _
      $region34: #{tpu_custom_call.1} parent=5 // pred_check_branch
        %308 = sbr.rel (%p305) target = $region36
      $region35: #{tpu_custom_call.1} parent=5 // pred_region
        %s309 = ssub.s32 %s25, 1
        %s310 = sand.u32 %s38, 1
        %s311 = scalar_lea.sflag [#allocation3], %s310
        %s312 = sand.u32 %s38, 1
        %s313 = smul.addr %s312, 256
        %s314 = scalar_lea.vmem [#allocation2], %s313
        // Predicated region
        $region37: #{tpu_custom_call.1} parent=35 // pred_check
          %p315 = pneg %p51
        $region38: #{tpu_custom_call.1} parent=35 // pred_check_branch
          %317 = sbr.rel (%p315) target = $region40
        $region39: #{tpu_custom_call.1} parent=35 // pred_region
          %318 = dma.done %s311, 4096
        $region40: #{tpu_custom_call.1} parent=35 // pred_fallthru
          _
        // Predicated region
        $region41: #{tpu_custom_call.1} parent=35 // pred_check
          %p319 = pneg %p72
        $region42: #{tpu_custom_call.1} parent=35 // pred_check_branch
          %321 = sbr.rel (%p319) target = $region44
        $region43: #{tpu_custom_call.1} parent=35 // pred_region
          %322 = dma.done [#allocation6], 2048
        $region44: #{tpu_custom_call.1} parent=35 // pred_fallthru
          _
        %s323 = sand.u32 %s38, 1
        %s324 = scalar_lea.sflag [#allocation3], %s323
        %s325 = sand.u32 %s38, 1
        %s326 = smul.addr %s325, 256
        %s327 = scalar_lea.vmem [#allocation2], %s326
        %p328 = pneg %p51
        %p329 = pneg %p48
        %p330 = pneg %p72
        %p331 = pneg %p69
        %p332 = pneg %p93
        %p333 = pneg %p90
        %p334 = pneg %p114
        %p335 = pneg %p111
        %p336 = pneg %p140
        %p337 = pneg %p137
        %s338 = sand.u32 %s127, 1
        %s339 = scalar_lea.sflag [#allocation4], %s338
        %s340 = sand.u32 %s127, 1
        %s341 = smul.addr %s340, 256
        %s342 = scalar_lea.vmem [#allocation7], %s341
        %p343 = pneg %p166
        %p344 = pneg %p163
        %s345 = sand.u32 %s30, 1
        %s346 = scalar_lea.sflag [#allocation9], %s345
        %s347 = sand.u32 %s153, 1
        %s348 = smul.addr %s347, 512
        %s349 = scalar_lea.vmem [#allocation8], %s348
        %p350 = pneg %p192
        %p351 = pneg %p189
        %s352 = smul.u32 32, %s30
        %p353 = scmp.lt.s32.totalorder %s352, 63
        %s354 = scalar_select %p353, %s352, 63
        %s355 = smul.addr %s354, 8
        %s356 = scalar_lea.vmem %s6, %s355
        %p357 = pneg %p218
        %p358 = pneg %p215
        %s359 = smul.u32 32, %s30
        %p360 = scmp.lt.s32.totalorder %s359, 63
        %s361 = scalar_select %p360, %s359, 63
        %s362 = smul.addr %s361, 8
        %s363 = scalar_lea.vmem %s7, %s362
        %p364 = pneg %p244
        %p365 = pneg %p241
        %s366 = sand.u32 %s30, 1
        %s367 = scalar_lea.sflag [#allocation9], %s366
        %s368 = sand.u32 %s231, 1
        %s369 = smul.addr %s368, 2
        %s370 = scalar_lea.vmem [#allocation10], %s369
        %s371 = smul.u32 32, %s30
        %s372 = smul.u32 32, %s30
        %s373 = smul.u32 32, %s30
        %s374 = smul.u32 32, %s30
        %p375 = scmp.lt.s32.totalorder %s374, 63
        %s376 = scalar_select %p375, %s374, 63
        %s377 = smul.addr %s376, 8
        %s378 = scalar_lea.vmem %s6, %s377
        %s379 = smul.u32 32, %s30
        %s380 = smul.u32 32, %s30
        %p381 = scmp.lt.s32.totalorder %s380, 63
        %s382 = scalar_select %p381, %s380, 63
        %s383 = smul.addr %s382, 8
        %s384 = scalar_lea.vmem %s7, %s383
        %s385 = smul.u32 32, %s30
        %v387 = vld [vmem:[%s314] sm:$0xff]
        %v388 = vld [vmem:[%s314 + $0x8] sm:$0xff]
        %v389 = vld [vmem:[%s314 + $0x10] sm:$0xff]
        %v390 = vld [vmem:[%s314 + $0x18] sm:$0xff]
        %v391 = vld [vmem:[%s314 + $0x20] sm:$0xff]
        %v392 = vld [vmem:[%s314 + $0x28] sm:$0xff]
        %v393 = vld [vmem:[%s314 + $0x30] sm:$0xff]
        %v394 = vld [vmem:[%s314 + $0x38] sm:$0xff]
        %v395 = vld [vmem:[%s314 + $0x40] sm:$0xff]
        %v396 = vld [vmem:[%s314 + $0x48] sm:$0xff]
        %v397 = vld [vmem:[%s314 + $0x50] sm:$0xff]
        %v398 = vld [vmem:[%s314 + $0x58] sm:$0xff]
        %v399 = vld [vmem:[%s314 + $0x60] sm:$0xff]
        %v400 = vld [vmem:[%s314 + $0x68] sm:$0xff]
        %v401 = vld [vmem:[%s314 + $0x70] sm:$0xff]
        %v402 = vld [vmem:[%s314 + $0x78] sm:$0xff]
        %v403 = vld [vmem:[%s314 + $0x80] sm:$0xff]
        %v404 = vld [vmem:[%s314 + $0x88] sm:$0xff]
        %v405 = vld [vmem:[%s314 + $0x90] sm:$0xff]
        %v406 = vld [vmem:[%s314 + $0x98] sm:$0xff]
        %v407 = vld [vmem:[%s314 + $0xa0] sm:$0xff]
        %v408 = vld [vmem:[%s314 + $0xa8] sm:$0xff]
        %v409 = vld [vmem:[%s314 + $0xb0] sm:$0xff]
        %v410 = vld [vmem:[%s314 + $0xb8] sm:$0xff]
        %v411 = vld [vmem:[%s314 + $0xc0] sm:$0xff]
        %v412 = vld [vmem:[%s314 + $0xc8] sm:$0xff]
        %v413 = vld [vmem:[%s314 + $0xd0] sm:$0xff]
        %v414 = vld [vmem:[%s314 + $0xd8] sm:$0xff]
        %v415 = vld [vmem:[%s314 + $0xe0] sm:$0xff]
        %v416 = vld [vmem:[%s314 + $0xe8] sm:$0xff]
        %v417 = vld [vmem:[%s314 + $0xf0] sm:$0xff]
        %v418 = vld [vmem:[%s314 + $0xf8] sm:$0xff]
        %v419 = vld [vmem:[%s2] sm:$0x1]
        %v420 = vld [vmem:[%s3] sm:$0x3]
        %421 = vadd.xlane.f32.xlu0 %v387
        %v422 = vpop.xlane.xlu0 %421
        %423 = vadd.xlane.f32.xlu0 %v388
        %v424 = vpop.xlane.xlu0 %423
        %425 = vadd.xlane.f32.xlu0 %v389
        %v426 = vpop.xlane.xlu0 %425
        %427 = vadd.xlane.f32.xlu0 %v390
        %v428 = vpop.xlane.xlu0 %427
        %429 = vadd.xlane.f32.xlu0 %v391
        %v430 = vpop.xlane.xlu0 %429
        %431 = vadd.xlane.f32.xlu0 %v392
        %v432 = vpop.xlane.xlu0 %431
        %433 = vadd.xlane.f32.xlu0 %v393
        %v434 = vpop.xlane.xlu0 %433
        %435 = vadd.xlane.f32.xlu0 %v394
        %v436 = vpop.xlane.xlu0 %435
        %437 = vadd.xlane.f32.xlu0 %v395
        %v438 = vpop.xlane.xlu0 %437
        %439 = vadd.xlane.f32.xlu0 %v396
        %v440 = vpop.xlane.xlu0 %439
        %441 = vadd.xlane.f32.xlu0 %v397
        %v442 = vpop.xlane.xlu0 %441
        %443 = vadd.xlane.f32.xlu0 %v398
        %v444 = vpop.xlane.xlu0 %443
        %445 = vadd.xlane.f32.xlu0 %v399
        %v446 = vpop.xlane.xlu0 %445
        %447 = vadd.xlane.f32.xlu0 %v400
        %v448 = vpop.xlane.xlu0 %447
        %449 = vadd.xlane.f32.xlu0 %v401
        %v450 = vpop.xlane.xlu0 %449
        %451 = vadd.xlane.f32.xlu0 %v402
        %v452 = vpop.xlane.xlu0 %451
        %453 = vadd.xlane.f32.xlu0 %v403
        %v454 = vpop.xlane.xlu0 %453
        %455 = vadd.xlane.f32.xlu0 %v404
        %v456 = vpop.xlane.xlu0 %455
        %457 = vadd.xlane.f32.xlu0 %v405
        %v458 = vpop.xlane.xlu0 %457
        %459 = vadd.xlane.f32.xlu0 %v406
        %v460 = vpop.xlane.xlu0 %459
        %461 = vadd.xlane.f32.xlu0 %v407
        %v462 = vpop.xlane.xlu0 %461
        %463 = vadd.xlane.f32.xlu0 %v408
        %v464 = vpop.xlane.xlu0 %463
        %465 = vadd.xlane.f32.xlu0 %v409
        %v466 = vpop.xlane.xlu0 %465
        %467 = vadd.xlane.f32.xlu0 %v410
        %v468 = vpop.xlane.xlu0 %467
        %469 = vadd.xlane.f32.xlu0 %v411
        %v470 = vpop.xlane.xlu0 %469
        %471 = vadd.xlane.f32.xlu0 %v412
        %v472 = vpop.xlane.xlu0 %471
        %473 = vadd.xlane.f32.xlu0 %v413
        %v474 = vpop.xlane.xlu0 %473
        %475 = vadd.xlane.f32.xlu0 %v414
        %v476 = vpop.xlane.xlu0 %475
        %477 = vadd.xlane.f32.xlu0 %v415
        %v478 = vpop.xlane.xlu0 %477
        %479 = vadd.xlane.f32.xlu0 %v416
        %v480 = vpop.xlane.xlu0 %479
        %481 = vadd.xlane.f32.xlu0 %v417
        %v482 = vpop.xlane.xlu0 %481
        %483 = vadd.xlane.f32.xlu0 %v418
        %v484 = vpop.xlane.xlu0 %483
        %v485 = vrcp.pop 128.0
        %v486 = vmul.f32 %v422, %v485
        %v487 = vmul.f32 %v424, %v485
        %v488 = vmul.f32 %v426, %v485
        %v489 = vmul.f32 %v428, %v485
        %v490 = vmul.f32 %v430, %v485
        %v491 = vmul.f32 %v432, %v485
        %v492 = vmul.f32 %v434, %v485
        %v493 = vmul.f32 %v436, %v485
        %v494 = vmul.f32 %v438, %v485
        %v495 = vmul.f32 %v440, %v485
        %v496 = vmul.f32 %v442, %v485
        %v497 = vmul.f32 %v444, %v485
        %v498 = vmul.f32 %v446, %v485
        %v499 = vmul.f32 %v448, %v485
        %v500 = vmul.f32 %v450, %v485
        %v501 = vmul.f32 %v452, %v485
        %v502 = vmul.f32 %v454, %v485
        %v503 = vmul.f32 %v456, %v485
        %v504 = vmul.f32 %v458, %v485
        %v505 = vmul.f32 %v460, %v485
        %v506 = vmul.f32 %v462, %v485
        %v507 = vmul.f32 %v464, %v485
        %v508 = vmul.f32 %v466, %v485
        %v509 = vmul.f32 %v468, %v485
        %v510 = vmul.f32 %v470, %v485
        %v511 = vmul.f32 %v472, %v485
        %v512 = vmul.f32 %v474, %v485
        %v513 = vmul.f32 %v476, %v485
        %v514 = vmul.f32 %v478, %v485
        %v515 = vmul.f32 %v480, %v485
        %v516 = vmul.f32 %v482, %v485
        %v517 = vmul.f32 %v484, %v485
        %v518 = vsub.f32 %v387, %v486
        %v519 = vsub.f32 %v388, %v487
        %v520 = vsub.f32 %v389, %v488
        %v521 = vsub.f32 %v390, %v489
        %v522 = vsub.f32 %v391, %v490
        %v523 = vsub.f32 %v392, %v491
        %v524 = vsub.f32 %v393, %v492
        %v525 = vsub.f32 %v394, %v493
        %v526 = vsub.f32 %v395, %v494
        %v527 = vsub.f32 %v396, %v495
        %v528 = vsub.f32 %v397, %v496
        %v529 = vsub.f32 %v398, %v497
        %v530 = vsub.f32 %v399, %v498
        %v531 = vsub.f32 %v400, %v499
        %v532 = vsub.f32 %v401, %v500
        %v533 = vsub.f32 %v402, %v501
        %v534 = vsub.f32 %v403, %v502
        %v535 = vsub.f32 %v404, %v503
        %v536 = vsub.f32 %v405, %v504
        %v537 = vsub.f32 %v406, %v505
        %v538 = vsub.f32 %v407, %v506
        %v539 = vsub.f32 %v408, %v507
        %v540 = vsub.f32 %v409, %v508
        %v541 = vsub.f32 %v410, %v509
        %v542 = vsub.f32 %v411, %v510
        %v543 = vsub.f32 %v412, %v511
        %v544 = vsub.f32 %v413, %v512
        %v545 = vsub.f32 %v414, %v513
        %v546 = vsub.f32 %v415, %v514
        %v547 = vsub.f32 %v416, %v515
        %v548 = vsub.f32 %v417, %v516
        %v549 = vsub.f32 %v418, %v517
        %v550 = vmul.f32 %v518, %v518
        %v551 = vmul.f32 %v519, %v519
        %v552 = vmul.f32 %v520, %v520
        %v553 = vmul.f32 %v521, %v521
        %v554 = vmul.f32 %v522, %v522
        %v555 = vmul.f32 %v523, %v523
        %v556 = vmul.f32 %v524, %v524
        %v557 = vmul.f32 %v525, %v525
        %v558 = vmul.f32 %v526, %v526
        %v559 = vmul.f32 %v527, %v527
        %v560 = vmul.f32 %v528, %v528
        %v561 = vmul.f32 %v529, %v529
        %v562 = vmul.f32 %v530, %v530
        %v563 = vmul.f32 %v531, %v531
        %v564 = vmul.f32 %v532, %v532
        %v565 = vmul.f32 %v533, %v533
        %v566 = vmul.f32 %v534, %v534
        %v567 = vmul.f32 %v535, %v535
        %v568 = vmul.f32 %v536, %v536
        %v569 = vmul.f32 %v537, %v537
        %v570 = vmul.f32 %v538, %v538
        %v571 = vmul.f32 %v539, %v539
        %v572 = vmul.f32 %v540, %v540
        %v573 = vmul.f32 %v541, %v541
        %v574 = vmul.f32 %v542, %v542
        %v575 = vmul.f32 %v543, %v543
        %v576 = vmul.f32 %v544, %v544
        %v577 = vmul.f32 %v545, %v545
        %v578 = vmul.f32 %v546, %v546
        %v579 = vmul.f32 %v547, %v547
        %v580 = vmul.f32 %v548, %v548
        %v581 = vmul.f32 %v549, %v549
        %582 = vadd.xlane.f32.xlu0 %v550
        %v583 = vpop.xlane.xlu0 %582
        %584 = vadd.xlane.f32.xlu0 %v551
        %v585 = vpop.xlane.xlu0 %584
        %586 = vadd.xlane.f32.xlu0 %v552
        %v587 = vpop.xlane.xlu0 %586
        %588 = vadd.xlane.f32.xlu0 %v553
        %v589 = vpop.xlane.xlu0 %588
        %590 = vadd.xlane.f32.xlu0 %v554
        %v591 = vpop.xlane.xlu0 %590
        %592 = vadd.xlane.f32.xlu0 %v555
        %v593 = vpop.xlane.xlu0 %592
        %594 = vadd.xlane.f32.xlu0 %v556
        %v595 = vpop.xlane.xlu0 %594
        %596 = vadd.xlane.f32.xlu0 %v557
        %v597 = vpop.xlane.xlu0 %596
        %598 = vadd.xlane.f32.xlu0 %v558
        %v599 = vpop.xlane.xlu0 %598
        %600 = vadd.xlane.f32.xlu0 %v559
        %v601 = vpop.xlane.xlu0 %600
        %602 = vadd.xlane.f32.xlu0 %v560
        %v603 = vpop.xlane.xlu0 %602
        %604 = vadd.xlane.f32.xlu0 %v561
        %v605 = vpop.xlane.xlu0 %604
        %606 = vadd.xlane.f32.xlu0 %v562
        %v607 = vpop.xlane.xlu0 %606
        %608 = vadd.xlane.f32.xlu0 %v563
        %v609 = vpop.xlane.xlu0 %608
        %610 = vadd.xlane.f32.xlu0 %v564
        %v611 = vpop.xlane.xlu0 %610
        %612 = vadd.xlane.f32.xlu0 %v565
        %v613 = vpop.xlane.xlu0 %612
        %614 = vadd.xlane.f32.xlu0 %v566
        %v615 = vpop.xlane.xlu0 %614
        %616 = vadd.xlane.f32.xlu0 %v567
        %v617 = vpop.xlane.xlu0 %616
        %618 = vadd.xlane.f32.xlu0 %v568
        %v619 = vpop.xlane.xlu0 %618
        %620 = vadd.xlane.f32.xlu0 %v569
        %v621 = vpop.xlane.xlu0 %620
        %622 = vadd.xlane.f32.xlu0 %v570
        %v623 = vpop.xlane.xlu0 %622
        %624 = vadd.xlane.f32.xlu0 %v571
        %v625 = vpop.xlane.xlu0 %624
        %626 = vadd.xlane.f32.xlu0 %v572
        %v627 = vpop.xlane.xlu0 %626
        %628 = vadd.xlane.f32.xlu0 %v573
        %v629 = vpop.xlane.xlu0 %628
        %630 = vadd.xlane.f32.xlu0 %v574
        %v631 = vpop.xlane.xlu0 %630
        %632 = vadd.xlane.f32.xlu0 %v575
        %v633 = vpop.xlane.xlu0 %632
        %634 = vadd.xlane.f32.xlu0 %v576
        %v635 = vpop.xlane.xlu0 %634
        %636 = vadd.xlane.f32.xlu0 %v577
        %v637 = vpop.xlane.xlu0 %636
        %638 = vadd.xlane.f32.xlu0 %v578
        %v639 = vpop.xlane.xlu0 %638
        %640 = vadd.xlane.f32.xlu0 %v579
        %v641 = vpop.xlane.xlu0 %640
        %642 = vadd.xlane.f32.xlu0 %v580
        %v643 = vpop.xlane.xlu0 %642
        %644 = vadd.xlane.f32.xlu0 %v581
        %v645 = vpop.xlane.xlu0 %644
        %v646 = vrcp.pop 127.0
        %v647 = vmul.f32 %v583, %v646
        %v648 = vmul.f32 %v585, %v646
        %v649 = vmul.f32 %v587, %v646
        %v650 = vmul.f32 %v589, %v646
        %v651 = vmul.f32 %v591, %v646
        %v652 = vmul.f32 %v593, %v646
        %v653 = vmul.f32 %v595, %v646
        %v654 = vmul.f32 %v597, %v646
        %v655 = vmul.f32 %v599, %v646
        %v656 = vmul.f32 %v601, %v646
        %v657 = vmul.f32 %v603, %v646
        %v658 = vmul.f32 %v605, %v646
        %v659 = vmul.f32 %v607, %v646
        %v660 = vmul.f32 %v609, %v646
        %v661 = vmul.f32 %v611, %v646
        %v662 = vmul.f32 %v613, %v646
        %v663 = vmul.f32 %v615, %v646
        %v664 = vmul.f32 %v617, %v646
        %v665 = vmul.f32 %v619, %v646
        %v666 = vmul.f32 %v621, %v646
        %v667 = vmul.f32 %v623, %v646
        %v668 = vmul.f32 %v625, %v646
        %v669 = vmul.f32 %v627, %v646
        %v670 = vmul.f32 %v629, %v646
        %v671 = vmul.f32 %v631, %v646
        %v672 = vmul.f32 %v633, %v646
        %v673 = vmul.f32 %v635, %v646
        %v674 = vmul.f32 %v637, %v646
        %v675 = vmul.f32 %v639, %v646
        %v676 = vmul.f32 %v641, %v646
        %v677 = vmul.f32 %v643, %v646
        %v678 = vmul.f32 %v645, %v646
        %v679 = vrsqrt.pop %v647
        %v680 = vmul.f32 %v647, %v679
        %vm681 = vcmp.eq.f32.partialorder %v647, inf
        %v682 = vsel %vm681, %v647, %v680
        %vm683 = vcmp.eq.f32.partialorder %v647, 0.0
        %v684 = vand.u32 %v647, 2147483648
        %v685 = vsel %vm683, %v684, %v682
        %v686 = vrsqrt.pop %v648
        %v687 = vmul.f32 %v648, %v686
        %vm688 = vcmp.eq.f32.partialorder %v648, inf
        %v689 = vsel %vm688, %v648, %v687
        %vm690 = vcmp.eq.f32.partialorder %v648, 0.0
        %v691 = vand.u32 %v648, 2147483648
        %v692 = vsel %vm690, %v691, %v689
        %v693 = vrsqrt.pop %v649
        %v694 = vmul.f32 %v649, %v693
        %vm695 = vcmp.eq.f32.partialorder %v649, inf
        %v696 = vsel %vm695, %v649, %v694
        %vm697 = vcmp.eq.f32.partialorder %v649, 0.0
        %v698 = vand.u32 %v649, 2147483648
        %v699 = vsel %vm697, %v698, %v696
        %v700 = vrsqrt.pop %v650
        %v701 = vmul.f32 %v650, %v700
        %vm702 = vcmp.eq.f32.partialorder %v650, inf
        %v703 = vsel %vm702, %v650, %v701
        %vm704 = vcmp.eq.f32.partialorder %v650, 0.0
        %v705 = vand.u32 %v650, 2147483648
        %v706 = vsel %vm704, %v705, %v703
        %v707 = vrsqrt.pop %v651
        %v708 = vmul.f32 %v651, %v707
        %vm709 = vcmp.eq.f32.partialorder %v651, inf
        %v710 = vsel %vm709, %v651, %v708
        %vm711 = vcmp.eq.f32.partialorder %v651, 0.0
        %v712 = vand.u32 %v651, 2147483648
        %v713 = vsel %vm711, %v712, %v710
        %v714 = vrsqrt.pop %v652
        %v715 = vmul.f32 %v652, %v714
        %vm716 = vcmp.eq.f32.partialorder %v652, inf
        %v717 = vsel %vm716, %v652, %v715
        %vm718 = vcmp.eq.f32.partialorder %v652, 0.0
        %v719 = vand.u32 %v652, 2147483648
        %v720 = vsel %vm718, %v719, %v717
        %v721 = vrsqrt.pop %v653
        %v722 = vmul.f32 %v653, %v721
        %vm723 = vcmp.eq.f32.partialorder %v653, inf
        %v724 = vsel %vm723, %v653, %v722
        %vm725 = vcmp.eq.f32.partialorder %v653, 0.0
        %v726 = vand.u32 %v653, 2147483648
        %v727 = vsel %vm725, %v726, %v724
        %v728 = vrsqrt.pop %v654
        %v729 = vmul.f32 %v654, %v728
        %vm730 = vcmp.eq.f32.partialorder %v654, inf
        %v731 = vsel %vm730, %v654, %v729
        %vm732 = vcmp.eq.f32.partialorder %v654, 0.0
        %v733 = vand.u32 %v654, 2147483648
        %v734 = vsel %vm732, %v733, %v731
        %v735 = vrsqrt.pop %v655
        %v736 = vmul.f32 %v655, %v735
        %vm737 = vcmp.eq.f32.partialorder %v655, inf
        %v738 = vsel %vm737, %v655, %v736
        %vm739 = vcmp.eq.f32.partialorder %v655, 0.0
        %v740 = vand.u32 %v655, 2147483648
        %v741 = vsel %vm739, %v740, %v738
        %v742 = vrsqrt.pop %v656
        %v743 = vmul.f32 %v656, %v742
        %vm744 = vcmp.eq.f32.partialorder %v656, inf
        %v745 = vsel %vm744, %v656, %v743
        %vm746 = vcmp.eq.f32.partialorder %v656, 0.0
        %v747 = vand.u32 %v656, 2147483648
        %v748 = vsel %vm746, %v747, %v745
        %v749 = vrsqrt.pop %v657
        %v750 = vmul.f32 %v657, %v749
        %vm751 = vcmp.eq.f32.partialorder %v657, inf
        %v752 = vsel %vm751, %v657, %v750
        %vm753 = vcmp.eq.f32.partialorder %v657, 0.0
        %v754 = vand.u32 %v657, 2147483648
        %v755 = vsel %vm753, %v754, %v752
        %v756 = vrsqrt.pop %v658
        %v757 = vmul.f32 %v658, %v756
        %vm758 = vcmp.eq.f32.partialorder %v658, inf
        %v759 = vsel %vm758, %v658, %v757
        %vm760 = vcmp.eq.f32.partialorder %v658, 0.0
        %v761 = vand.u32 %v658, 2147483648
        %v762 = vsel %vm760, %v761, %v759
        %v763 = vrsqrt.pop %v659
        %v764 = vmul.f32 %v659, %v763
        %vm765 = vcmp.eq.f32.partialorder %v659, inf
        %v766 = vsel %vm765, %v659, %v764
        %vm767 = vcmp.eq.f32.partialorder %v659, 0.0
        %v768 = vand.u32 %v659, 2147483648
        %v769 = vsel %vm767, %v768, %v766
        %v770 = vrsqrt.pop %v660
        %v771 = vmul.f32 %v660, %v770
        %vm772 = vcmp.eq.f32.partialorder %v660, inf
        %v773 = vsel %vm772, %v660, %v771
        %vm774 = vcmp.eq.f32.partialorder %v660, 0.0
        %v775 = vand.u32 %v660, 2147483648
        %v776 = vsel %vm774, %v775, %v773
        %v777 = vrsqrt.pop %v661
        %v778 = vmul.f32 %v661, %v777
        %vm779 = vcmp.eq.f32.partialorder %v661, inf
        %v780 = vsel %vm779, %v661, %v778
        %vm781 = vcmp.eq.f32.partialorder %v661, 0.0
        %v782 = vand.u32 %v661, 2147483648
        %v783 = vsel %vm781, %v782, %v780
        %v784 = vrsqrt.pop %v662
        %v785 = vmul.f32 %v662, %v784
        %vm786 = vcmp.eq.f32.partialorder %v662, inf
        %v787 = vsel %vm786, %v662, %v785
        %vm788 = vcmp.eq.f32.partialorder %v662, 0.0
        %v789 = vand.u32 %v662, 2147483648
        %v790 = vsel %vm788, %v789, %v787
        %v791 = vrsqrt.pop %v663
        %v792 = vmul.f32 %v663, %v791
        %vm793 = vcmp.eq.f32.partialorder %v663, inf
        %v794 = vsel %vm793, %v663, %v792
        %vm795 = vcmp.eq.f32.partialorder %v663, 0.0
        %v796 = vand.u32 %v663, 2147483648
        %v797 = vsel %vm795, %v796, %v794
        %v798 = vrsqrt.pop %v664
        %v799 = vmul.f32 %v664, %v798
        %vm800 = vcmp.eq.f32.partialorder %v664, inf
        %v801 = vsel %vm800, %v664, %v799
        %vm802 = vcmp.eq.f32.partialorder %v664, 0.0
        %v803 = vand.u32 %v664, 2147483648
        %v804 = vsel %vm802, %v803, %v801
        %v805 = vrsqrt.pop %v665
        %v806 = vmul.f32 %v665, %v805
        %vm807 = vcmp.eq.f32.partialorder %v665, inf
        %v808 = vsel %vm807, %v665, %v806
        %vm809 = vcmp.eq.f32.partialorder %v665, 0.0
        %v810 = vand.u32 %v665, 2147483648
        %v811 = vsel %vm809, %v810, %v808
        %v812 = vrsqrt.pop %v666
        %v813 = vmul.f32 %v666, %v812
        %vm814 = vcmp.eq.f32.partialorder %v666, inf
        %v815 = vsel %vm814, %v666, %v813
        %vm816 = vcmp.eq.f32.partialorder %v666, 0.0
        %v817 = vand.u32 %v666, 2147483648
        %v818 = vsel %vm816, %v817, %v815
        %v819 = vrsqrt.pop %v667
        %v820 = vmul.f32 %v667, %v819
        %vm821 = vcmp.eq.f32.partialorder %v667, inf
        %v822 = vsel %vm821, %v667, %v820
        %vm823 = vcmp.eq.f32.partialorder %v667, 0.0
        %v824 = vand.u32 %v667, 2147483648
        %v825 = vsel %vm823, %v824, %v822
        %v826 = vrsqrt.pop %v668
        %v827 = vmul.f32 %v668, %v826
        %vm828 = vcmp.eq.f32.partialorder %v668, inf
        %v829 = vsel %vm828, %v668, %v827
        %vm830 = vcmp.eq.f32.partialorder %v668, 0.0
        %v831 = vand.u32 %v668, 2147483648
        %v832 = vsel %vm830, %v831, %v829
        %v833 = vrsqrt.pop %v669
        %v834 = vmul.f32 %v669, %v833
        %vm835 = vcmp.eq.f32.partialorder %v669, inf
        %v836 = vsel %vm835, %v669, %v834
        %vm837 = vcmp.eq.f32.partialorder %v669, 0.0
        %v838 = vand.u32 %v669, 2147483648
        %v839 = vsel %vm837, %v838, %v836
        %v840 = vrsqrt.pop %v670
        %v841 = vmul.f32 %v670, %v840
        %vm842 = vcmp.eq.f32.partialorder %v670, inf
        %v843 = vsel %vm842, %v670, %v841
        %vm844 = vcmp.eq.f32.partialorder %v670, 0.0
        %v845 = vand.u32 %v670, 2147483648
        %v846 = vsel %vm844, %v845, %v843
        %v847 = vrsqrt.pop %v671
        %v848 = vmul.f32 %v671, %v847
        %vm849 = vcmp.eq.f32.partialorder %v671, inf
        %v850 = vsel %vm849, %v671, %v848
        %vm851 = vcmp.eq.f32.partialorder %v671, 0.0
        %v852 = vand.u32 %v671, 2147483648
        %v853 = vsel %vm851, %v852, %v850
        %v854 = vrsqrt.pop %v672
        %v855 = vmul.f32 %v672, %v854
        %vm856 = vcmp.eq.f32.partialorder %v672, inf
        %v857 = vsel %vm856, %v672, %v855
        %vm858 = vcmp.eq.f32.partialorder %v672, 0.0
        %v859 = vand.u32 %v672, 2147483648
        %v860 = vsel %vm858, %v859, %v857
        %v861 = vrsqrt.pop %v673
        %v862 = vmul.f32 %v673, %v861
        %vm863 = vcmp.eq.f32.partialorder %v673, inf
        %v864 = vsel %vm863, %v673, %v862
        %vm865 = vcmp.eq.f32.partialorder %v673, 0.0
        %v866 = vand.u32 %v673, 2147483648
        %v867 = vsel %vm865, %v866, %v864
        %v868 = vrsqrt.pop %v674
        %v869 = vmul.f32 %v674, %v868
        %vm870 = vcmp.eq.f32.partialorder %v674, inf
        %v871 = vsel %vm870, %v674, %v869
        %vm872 = vcmp.eq.f32.partialorder %v674, 0.0
        %v873 = vand.u32 %v674, 2147483648
        %v874 = vsel %vm872, %v873, %v871
        %v875 = vrsqrt.pop %v675
        %v876 = vmul.f32 %v675, %v875
        %vm877 = vcmp.eq.f32.partialorder %v675, inf
        %v878 = vsel %vm877, %v675, %v876
        %vm879 = vcmp.eq.f32.partialorder %v675, 0.0
        %v880 = vand.u32 %v675, 2147483648
        %v881 = vsel %vm879, %v880, %v878
        %v882 = vrsqrt.pop %v676
        %v883 = vmul.f32 %v676, %v882
        %vm884 = vcmp.eq.f32.partialorder %v676, inf
        %v885 = vsel %vm884, %v676, %v883
        %vm886 = vcmp.eq.f32.partialorder %v676, 0.0
        %v887 = vand.u32 %v676, 2147483648
        %v888 = vsel %vm886, %v887, %v885
        %v889 = vrsqrt.pop %v677
        %v890 = vmul.f32 %v677, %v889
        %vm891 = vcmp.eq.f32.partialorder %v677, inf
        %v892 = vsel %vm891, %v677, %v890
        %vm893 = vcmp.eq.f32.partialorder %v677, 0.0
        %v894 = vand.u32 %v677, 2147483648
        %v895 = vsel %vm893, %v894, %v892
        %v896 = vrsqrt.pop %v678
        %v897 = vmul.f32 %v678, %v896
        %vm898 = vcmp.eq.f32.partialorder %v678, inf
        %v899 = vsel %vm898, %v678, %v897
        %vm900 = vcmp.eq.f32.partialorder %v678, 0.0
        %v901 = vand.u32 %v678, 2147483648
        %v902 = vsel %vm900, %v901, %v899
        %v903 = vadd.f32 %v685, 1e-05
        %v904 = vadd.f32 %v692, 1e-05
        %v905 = vadd.f32 %v699, 1e-05
        %v906 = vadd.f32 %v706, 1e-05
        %v907 = vadd.f32 %v713, 1e-05
        %v908 = vadd.f32 %v720, 1e-05
        %v909 = vadd.f32 %v727, 1e-05
        %v910 = vadd.f32 %v734, 1e-05
        %v911 = vadd.f32 %v741, 1e-05
        %v912 = vadd.f32 %v748, 1e-05
        %v913 = vadd.f32 %v755, 1e-05
        %v914 = vadd.f32 %v762, 1e-05
        %v915 = vadd.f32 %v769, 1e-05
        %v916 = vadd.f32 %v776, 1e-05
        %v917 = vadd.f32 %v783, 1e-05
        %v918 = vadd.f32 %v790, 1e-05
        %v919 = vadd.f32 %v797, 1e-05
        %v920 = vadd.f32 %v804, 1e-05
        %v921 = vadd.f32 %v811, 1e-05
        %v922 = vadd.f32 %v818, 1e-05
        %v923 = vadd.f32 %v825, 1e-05
        %v924 = vadd.f32 %v832, 1e-05
        %v925 = vadd.f32 %v839, 1e-05
        %v926 = vadd.f32 %v846, 1e-05
        %v927 = vadd.f32 %v853, 1e-05
        %v928 = vadd.f32 %v860, 1e-05
        %v929 = vadd.f32 %v867, 1e-05
        %v930 = vadd.f32 %v874, 1e-05
        %v931 = vadd.f32 %v881, 1e-05
        %v932 = vadd.f32 %v888, 1e-05
        %v933 = vadd.f32 %v895, 1e-05
        %v934 = vadd.f32 %v902, 1e-05
        %v935 = vrcp.pop %v903
        %v936 = vrcp.pop %v904
        %v937 = vrcp.pop %v905
        %v938 = vrcp.pop %v906
        %v939 = vrcp.pop %v907
        %v940 = vrcp.pop %v908
        %v941 = vrcp.pop %v909
        %v942 = vrcp.pop %v910
        %v943 = vrcp.pop %v911
        %v944 = vrcp.pop %v912
        %v945 = vrcp.pop %v913
        %v946 = vrcp.pop %v914
        %v947 = vrcp.pop %v915
        %v948 = vrcp.pop %v916
        %v949 = vrcp.pop %v917
        %v950 = vrcp.pop %v918
        %v951 = vrcp.pop %v919
        %v952 = vrcp.pop %v920
        %v953 = vrcp.pop %v921
        %v954 = vrcp.pop %v922
        %v955 = vrcp.pop %v923
        %v956 = vrcp.pop %v924
        %v957 = vrcp.pop %v925
        %v958 = vrcp.pop %v926
        %v959 = vrcp.pop %v927
        %v960 = vrcp.pop %v928
        %v961 = vrcp.pop %v929
        %v962 = vrcp.pop %v930
        %v963 = vrcp.pop %v931
        %v964 = vrcp.pop %v932
        %v965 = vrcp.pop %v933
        %v966 = vrcp.pop %v934
        %v967 = vmul.f32 %v518, %v935
        %v968 = vmul.f32 %v519, %v936
        %v969 = vmul.f32 %v520, %v937
        %v970 = vmul.f32 %v521, %v938
        %v971 = vmul.f32 %v522, %v939
        %v972 = vmul.f32 %v523, %v940
        %v973 = vmul.f32 %v524, %v941
        %v974 = vmul.f32 %v525, %v942
        %v975 = vmul.f32 %v526, %v943
        %v976 = vmul.f32 %v527, %v944
        %v977 = vmul.f32 %v528, %v945
        %v978 = vmul.f32 %v529, %v946
        %v979 = vmul.f32 %v530, %v947
        %v980 = vmul.f32 %v531, %v948
        %v981 = vmul.f32 %v532, %v949
        %v982 = vmul.f32 %v533, %v950
        %v983 = vmul.f32 %v534, %v951
        %v984 = vmul.f32 %v535, %v952
        %v985 = vmul.f32 %v536, %v953
        %v986 = vmul.f32 %v537, %v954
        %v987 = vmul.f32 %v538, %v955
        %v988 = vmul.f32 %v539, %v956
        %v989 = vmul.f32 %v540, %v957
        %v990 = vmul.f32 %v541, %v958
        %v991 = vmul.f32 %v542, %v959
        %v992 = vmul.f32 %v543, %v960
        %v993 = vmul.f32 %v544, %v961
        %v994 = vmul.f32 %v545, %v962
        %v995 = vmul.f32 %v546, %v963
        %v996 = vmul.f32 %v547, %v964
        %v997 = vmul.f32 %v548, %v965
        %v998 = vmul.f32 %v549, %v966
        %vm999 = vcmask 7168
        %1000 = vst.msk [vmem:[%s378] sm:$0xff] %vm999, %v486
        %1001 = vst.msk [vmem:[%s378 + $0x8] sm:$0xff] %vm999, %v487
        %1002 = vst.msk [vmem:[%s378 + $0x10] sm:$0xff] %vm999, %v488
        %1003 = vst.msk [vmem:[%s378 + $0x18] sm:$0xff] %vm999, %v489
        %1004 = vst.msk [vmem:[%s378 + $0x20] sm:$0xff] %vm999, %v490
        %1005 = vst.msk [vmem:[%s378 + $0x28] sm:$0xff] %vm999, %v491
        %1006 = vst.msk [vmem:[%s378 + $0x30] sm:$0xff] %vm999, %v492
        %1007 = vst.msk [vmem:[%s378 + $0x38] sm:$0xff] %vm999, %v493
        %1008 = vst.msk [vmem:[%s378 + $0x40] sm:$0xff] %vm999, %v494
        %1009 = vst.msk [vmem:[%s378 + $0x48] sm:$0xff] %vm999, %v495
        %1010 = vst.msk [vmem:[%s378 + $0x50] sm:$0xff] %vm999, %v496
        %1011 = vst.msk [vmem:[%s378 + $0x58] sm:$0xff] %vm999, %v497
        %1012 = vst.msk [vmem:[%s378 + $0x60] sm:$0xff] %vm999, %v498
        %1013 = vst.msk [vmem:[%s378 + $0x68] sm:$0xff] %vm999, %v499
        %1014 = vst.msk [vmem:[%s378 + $0x70] sm:$0xff] %vm999, %v500
        %1015 = vst.msk [vmem:[%s378 + $0x78] sm:$0xff] %vm999, %v501
        %1016 = vst.msk [vmem:[%s378 + $0x80] sm:$0xff] %vm999, %v502
        %1017 = vst.msk [vmem:[%s378 + $0x88] sm:$0xff] %vm999, %v503
        %1018 = vst.msk [vmem:[%s378 + $0x90] sm:$0xff] %vm999, %v504
        %1019 = vst.msk [vmem:[%s378 + $0x98] sm:$0xff] %vm999, %v505
        %1020 = vst.msk [vmem:[%s378 + $0xa0] sm:$0xff] %vm999, %v506
        %1021 = vst.msk [vmem:[%s378 + $0xa8] sm:$0xff] %vm999, %v507
        %1022 = vst.msk [vmem:[%s378 + $0xb0] sm:$0xff] %vm999, %v508
        %1023 = vst.msk [vmem:[%s378 + $0xb8] sm:$0xff] %vm999, %v509
        %1024 = vst.msk [vmem:[%s378 + $0xc0] sm:$0xff] %vm999, %v510
        %1025 = vst.msk [vmem:[%s378 + $0xc8] sm:$0xff] %vm999, %v511
        %1026 = vst.msk [vmem:[%s378 + $0xd0] sm:$0xff] %vm999, %v512
        %1027 = vst.msk [vmem:[%s378 + $0xd8] sm:$0xff] %vm999, %v513
        %1028 = vst.msk [vmem:[%s378 + $0xe0] sm:$0xff] %vm999, %v514
        %1029 = vst.msk [vmem:[%s378 + $0xe8] sm:$0xff] %vm999, %v515
        %1030 = vst.msk [vmem:[%s378 + $0xf0] sm:$0xff] %vm999, %v516
        %1031 = vst.msk [vmem:[%s378 + $0xf8] sm:$0xff] %vm999, %v517
        %1032 = vst.msk [vmem:[%s384] sm:$0xff] %vm999, %v685
        %1033 = vst.msk [vmem:[%s384 + $0x8] sm:$0xff] %vm999, %v692
        %1034 = vst.msk [vmem:[%s384 + $0x10] sm:$0xff] %vm999, %v699
        %1035 = vst.msk [vmem:[%s384 + $0x18] sm:$0xff] %vm999, %v706
        %1036 = vst.msk [vmem:[%s384 + $0x20] sm:$0xff] %vm999, %v713
        %1037 = vst.msk [vmem:[%s384 + $0x28] sm:$0xff] %vm999, %v720
        %1038 = vst.msk [vmem:[%s384 + $0x30] sm:$0xff] %vm999, %v727
        %1039 = vst.msk [vmem:[%s384 + $0x38] sm:$0xff] %vm999, %v734
        %1040 = vst.msk [vmem:[%s384 + $0x40] sm:$0xff] %vm999, %v741
        %1041 = vst.msk [vmem:[%s384 + $0x48] sm:$0xff] %vm999, %v748
        %1042 = vst.msk [vmem:[%s384 + $0x50] sm:$0xff] %vm999, %v755
        %1043 = vst.msk [vmem:[%s384 + $0x58] sm:$0xff] %vm999, %v762
        %1044 = vst.msk [vmem:[%s384 + $0x60] sm:$0xff] %vm999, %v769
        %1045 = vst.msk [vmem:[%s384 + $0x68] sm:$0xff] %vm999, %v776
        %1046 = vst.msk [vmem:[%s384 + $0x70] sm:$0xff] %vm999, %v783
        %1047 = vst.msk [vmem:[%s384 + $0x78] sm:$0xff] %vm999, %v790
        %1048 = vst.msk [vmem:[%s384 + $0x80] sm:$0xff] %vm999, %v797
        %1049 = vst.msk [vmem:[%s384 + $0x88] sm:$0xff] %vm999, %v804
        %1050 = vst.msk [vmem:[%s384 + $0x90] sm:$0xff] %vm999, %v811
        %1051 = vst.msk [vmem:[%s384 + $0x98] sm:$0xff] %vm999, %v818
        %1052 = vst.msk [vmem:[%s384 + $0xa0] sm:$0xff] %vm999, %v825
        %1053 = vst.msk [vmem:[%s384 + $0xa8] sm:$0xff] %vm999, %v832
        %1054 = vst.msk [vmem:[%s384 + $0xb0] sm:$0xff] %vm999, %v839
        %1055 = vst.msk [vmem:[%s384 + $0xb8] sm:$0xff] %vm999, %v846
        %1056 = vst.msk [vmem:[%s384 + $0xc0] sm:$0xff] %vm999, %v853
        %1057 = vst.msk [vmem:[%s384 + $0xc8] sm:$0xff] %vm999, %v860
        %1058 = vst.msk [vmem:[%s384 + $0xd0] sm:$0xff] %vm999, %v867
        %1059 = vst.msk [vmem:[%s384 + $0xd8] sm:$0xff] %vm999, %v874
        %1060 = vst.msk [vmem:[%s384 + $0xe0] sm:$0xff] %vm999, %v881
        %1061 = vst.msk [vmem:[%s384 + $0xe8] sm:$0xff] %vm999, %v888
        %1062 = vst.msk [vmem:[%s384 + $0xf0] sm:$0xff] %vm999, %v895
        %1063 = vst.msk [vmem:[%s384 + $0xf8] sm:$0xff] %vm999, %v902
        %v1065 = vlaneseq
        %v1066 = vshrl.u32 %v1065, 7
        %v1067 = vsub.s32 0, %v1066
        %v1068 = vrot.slane %v419, %v1067
        %v1070 = vsub.f32 %v967, %v1068
        %v1071 = vsub.f32 %v968, %v1068
        %v1072 = vsub.f32 %v969, %v1068
        %v1073 = vsub.f32 %v970, %v1068
        %v1074 = vsub.f32 %v971, %v1068
        %v1075 = vsub.f32 %v972, %v1068
        %v1076 = vsub.f32 %v973, %v1068
        %v1077 = vsub.f32 %v974, %v1068
        %v1078 = vsub.f32 %v975, %v1068
        %v1079 = vsub.f32 %v976, %v1068
        %v1080 = vsub.f32 %v977, %v1068
        %v1081 = vsub.f32 %v978, %v1068
        %v1082 = vsub.f32 %v979, %v1068
        %v1083 = vsub.f32 %v980, %v1068
        %v1084 = vsub.f32 %v981, %v1068
        %v1085 = vsub.f32 %v982, %v1068
        %v1086 = vsub.f32 %v983, %v1068
        %v1087 = vsub.f32 %v984, %v1068
        %v1088 = vsub.f32 %v985, %v1068
        %v1089 = vsub.f32 %v986, %v1068
        %v1090 = vsub.f32 %v987, %v1068
        %v1091 = vsub.f32 %v988, %v1068
        %v1092 = vsub.f32 %v989, %v1068
        %v1093 = vsub.f32 %v990, %v1068
        %v1094 = vsub.f32 %v991, %v1068
        %v1095 = vsub.f32 %v992, %v1068
        %v1096 = vsub.f32 %v993, %v1068
        %v1097 = vsub.f32 %v994, %v1068
        %v1098 = vsub.f32 %v995, %v1068
        %v1099 = vsub.f32 %v996, %v1068
        %v1100 = vsub.f32 %v997, %v1068
        %v1101 = vsub.f32 %v998, %v1068
        %v1102 = vpack.c.bf16 %v1071, %v1070
        %v1103 = vpack.c.bf16 %v1073, %v1072
        %v1104 = vpack.c.bf16 %v1075, %v1074
        %v1105 = vpack.c.bf16 %v1077, %v1076
        %v1106 = vpack.c.bf16 %v1079, %v1078
        %v1107 = vpack.c.bf16 %v1081, %v1080
        %v1108 = vpack.c.bf16 %v1083, %v1082
        %v1109 = vpack.c.bf16 %v1085, %v1084
        %v1110 = vpack.c.bf16 %v1087, %v1086
        %v1111 = vpack.c.bf16 %v1089, %v1088
        %v1112 = vpack.c.bf16 %v1091, %v1090
        %v1113 = vpack.c.bf16 %v1093, %v1092
        %v1114 = vpack.c.bf16 %v1095, %v1094
        %v1115 = vpack.c.bf16 %v1097, %v1096
        %v1116 = vpack.c.bf16 %v1099, %v1098
        %v1117 = vpack.c.bf16 %v1101, %v1100
        %v1118 = vld [vmem:[#allocation5] sm:$0xf]
        %v1119 = vld [vmem:[#allocation5 + $0x4] sm:$0xf]
        %v1120 = vld [vmem:[#allocation5 + $0x8] sm:$0xf]
        %v1121 = vld [vmem:[#allocation5 + $0xc] sm:$0xf]
        %v1122 = vld [vmem:[#allocation5 + $0x10] sm:$0xf]
        %v1123 = vld [vmem:[#allocation5 + $0x14] sm:$0xf]
        %v1124 = vld [vmem:[#allocation5 + $0x18] sm:$0xf]
        %v1125 = vld [vmem:[#allocation5 + $0x1c] sm:$0xf]
        %v1126 = vld [vmem:[#allocation5 + $0x20] sm:$0xf]
        %v1127 = vld [vmem:[#allocation5 + $0x24] sm:$0xf]
        %v1128 = vld [vmem:[#allocation5 + $0x28] sm:$0xf]
        %v1129 = vld [vmem:[#allocation5 + $0x2c] sm:$0xf]
        %v1130 = vld [vmem:[#allocation5 + $0x30] sm:$0xf]
        %v1131 = vld [vmem:[#allocation5 + $0x34] sm:$0xf]
        %v1132 = vld [vmem:[#allocation5 + $0x38] sm:$0xf]
        %v1133 = vld [vmem:[#allocation5 + $0x3c] sm:$0xf]
        %v1134 = vld [vmem:[#allocation5 + $0x40] sm:$0xf]
        %v1135 = vld [vmem:[#allocation5 + $0x44] sm:$0xf]
        %v1136 = vld [vmem:[#allocation5 + $0x48] sm:$0xf]
        %v1137 = vld [vmem:[#allocation5 + $0x4c] sm:$0xf]
        %v1138 = vld [vmem:[#allocation5 + $0x50] sm:$0xf]
        %v1139 = vld [vmem:[#allocation5 + $0x54] sm:$0xf]
        %v1140 = vld [vmem:[#allocation5 + $0x58] sm:$0xf]
        %v1141 = vld [vmem:[#allocation5 + $0x5c] sm:$0xf]
        %v1142 = vld [vmem:[#allocation5 + $0x60] sm:$0xf]
        %v1143 = vld [vmem:[#allocation5 + $0x64] sm:$0xf]
        %v1144 = vld [vmem:[#allocation5 + $0x68] sm:$0xf]
        %v1145 = vld [vmem:[#allocation5 + $0x6c] sm:$0xf]
        %v1146 = vld [vmem:[#allocation5 + $0x70] sm:$0xf]
        %v1147 = vld [vmem:[#allocation5 + $0x74] sm:$0xf]
        %v1148 = vld [vmem:[#allocation5 + $0x78] sm:$0xf]
        %v1149 = vld [vmem:[#allocation5 + $0x7c] sm:$0xf]
        %v1151 = vlaneseq
        %v1152 = vshrl.u32 %v1151, 7
        %v1153 = vsub.s32 0, %v1152
        %v1154 = vrot.slane %v420, %v1153
        %v1155 = vlaneseq
        %v1156 = vshrl.u32 %v1155, 7
        %v1157 = vsub.s32 1, %v1156
        %v1158 = vrot.slane %v420, %v1157
        %v1193 = vunpack.c.l.b16 %v1118
        %v1194 = vunpack.c.l.b16 %v1119
        %v1195 = vunpack.c.l.b16 %v1120
        %v1196 = vunpack.c.l.b16 %v1121
        %v1197 = vunpack.c.l.b16 %v1122
        %v1198 = vunpack.c.l.b16 %v1123
        %v1199 = vunpack.c.l.b16 %v1124
        %v1200 = vunpack.c.l.b16 %v1125
        %v1201 = vunpack.c.l.b16 %v1126
        %v1202 = vunpack.c.l.b16 %v1127
        %v1203 = vunpack.c.l.b16 %v1128
        %v1204 = vunpack.c.l.b16 %v1129
        %v1205 = vunpack.c.l.b16 %v1130
        %v1206 = vunpack.c.l.b16 %v1131
        %v1207 = vunpack.c.l.b16 %v1132
        %v1208 = vunpack.c.l.b16 %v1133
        %v1209 = vunpack.c.l.b16 %v1134
        %v1210 = vunpack.c.l.b16 %v1135
        %v1211 = vunpack.c.l.b16 %v1136
        %v1212 = vunpack.c.l.b16 %v1137
        %v1213 = vunpack.c.l.b16 %v1138
        %v1214 = vunpack.c.l.b16 %v1139
        %v1215 = vunpack.c.l.b16 %v1140
        %v1216 = vunpack.c.l.b16 %v1141
        %v1217 = vunpack.c.l.b16 %v1142
        %v1218 = vunpack.c.l.b16 %v1143
        %v1219 = vunpack.c.l.b16 %v1144
        %v1220 = vunpack.c.l.b16 %v1145
        %v1221 = vunpack.c.l.b16 %v1146
        %v1222 = vunpack.c.l.b16 %v1147
        %v1223 = vunpack.c.l.b16 %v1148
        %v1224 = vunpack.c.l.b16 %v1149
        %v1225 = vpack.c.b16 %v1194, %v1193
        %v1226 = vpack.c.b16 %v1196, %v1195
        %v1227 = vpack.c.b16 %v1198, %v1197
        %v1228 = vpack.c.b16 %v1200, %v1199
        %v1229 = vpack.c.b16 %v1202, %v1201
        %v1230 = vpack.c.b16 %v1204, %v1203
        %v1231 = vpack.c.b16 %v1206, %v1205
        %v1232 = vpack.c.b16 %v1208, %v1207
        %v1233 = vpack.c.b16 %v1210, %v1209
        %v1234 = vpack.c.b16 %v1212, %v1211
        %v1235 = vpack.c.b16 %v1214, %v1213
        %v1236 = vpack.c.b16 %v1216, %v1215
        %v1237 = vpack.c.b16 %v1218, %v1217
        %v1238 = vpack.c.b16 %v1220, %v1219
        %v1239 = vpack.c.b16 %v1222, %v1221
        %v1240 = vpack.c.b16 %v1224, %v1223
        %1257 = vmatprep.subr.bf16.mxu0 0
        %1258 = vmatpush1.bf16.xpose.msra.mxu0 %v1225
        %1259 = vmatprep.subr.bf16.mxu0 0
        %1260 = vmatpush1.bf16.xpose.msra.mxu0 %v1226
        %1261 = vmatprep.subr.bf16.mxu0 0
        %1262 = vmatpush1.bf16.xpose.msra.mxu0 %v1227
        %1263 = vmatprep.subr.bf16.mxu0 0
        %1264 = vmatpush1.bf16.xpose.msra.mxu0 %v1228
        %1265 = vmatprep.subr.bf16.mxu0 0
        %1266 = vmatpush1.bf16.xpose.msra.mxu0 %v1229
        %1267 = vmatprep.subr.bf16.mxu0 0
        %1268 = vmatpush1.bf16.xpose.msra.mxu0 %v1230
        %1269 = vmatprep.subr.bf16.mxu0 0
        %1270 = vmatpush1.bf16.xpose.msra.mxu0 %v1231
        %1271 = vmatprep.subr.bf16.mxu0 0
        %1272 = vmatpush1.bf16.xpose.msra.mxu0 %v1232
        %1273 = vmatprep.subr.bf16.mxu0 0
        %1274 = vmatpush1.bf16.xpose.msra.mxu0 %v1233
        %1275 = vmatprep.subr.bf16.mxu0 0
        %1276 = vmatpush1.bf16.xpose.msra.mxu0 %v1234
        %1277 = vmatprep.subr.bf16.mxu0 0
        %1278 = vmatpush1.bf16.xpose.msra.mxu0 %v1235
        %1279 = vmatprep.subr.bf16.mxu0 0
        %1280 = vmatpush1.bf16.xpose.msra.mxu0 %v1236
        %1281 = vmatprep.subr.bf16.mxu0 0
        %1282 = vmatpush1.bf16.xpose.msra.mxu0 %v1237
        %1283 = vmatprep.subr.bf16.mxu0 0
        %1284 = vmatpush1.bf16.xpose.msra.mxu0 %v1238
        %1285 = vmatprep.subr.bf16.mxu0 0
        %1286 = vmatpush1.bf16.xpose.msra.mxu0 %v1239
        %1287 = vmatprep.subr.bf16.mxu0 0
        %1288 = vmatpush1.bf16.xpose.msra.mxu0 %v1240
        %1289 = vmatprep.mubr.bf16.mxu0 0
        %1290 = vmatmul.mubr.bf16.gmra.mrb[0].mxu0 %v1102
        %v1291 = vpop.f32.mrb[0].mxu0
        %v1292 = vadd.f32 %v1154, %v1291
        %v1293 = vpop.f32.mrb[0].mxu0
        %v1294 = vadd.f32 %v1158, %v1293
        %v1295 = vpop.f32.mrb[0].mxu0
        %v1296 = vadd.f32 %v1154, %v1295
        %v1297 = vpop.f32.mrb[0].mxu0
        %v1298 = vadd.f32 %v1158, %v1297
        %1299 = vmatprep.mubr.bf16.mxu0 0
        %1300 = vmatmul.mubr.bf16.gmra.mrb[0].mxu0 %v1103
        %v1301 = vpop.f32.mrb[0].mxu0
        %v1302 = vadd.f32 %v1154, %v1301
        %v1303 = vpop.f32.mrb[0].mxu0
        %v1304 = vadd.f32 %v1158, %v1303
        %v1305 = vpop.f32.mrb[0].mxu0
        %v1306 = vadd.f32 %v1154, %v1305
        %v1307 = vpop.f32.mrb[0].mxu0
        %v1308 = vadd.f32 %v1158, %v1307
        %1309 = vmatprep.mubr.bf16.mxu0 0
        %1310 = vmatmul.mubr.bf16.gmra.mrb[0].mxu0 %v1104
        %v1311 = vpop.f32.mrb[0].mxu0
        %v1312 = vadd.f32 %v1154, %v1311
        %v1313 = vpop.f32.mrb[0].mxu0
        %v1314 = vadd.f32 %v1158, %v1313
        %v1315 = vpop.f32.mrb[0].mxu0
        %v1316 = vadd.f32 %v1154, %v1315
        %v1317 = vpop.f32.mrb[0].mxu0
        %v1318 = vadd.f32 %v1158, %v1317
        %1319 = vmatprep.mubr.bf16.mxu0 0
        %1320 = vmatmul.mubr.bf16.gmra.mrb[0].mxu0 %v1105
        %v1321 = vpop.f32.mrb[0].mxu0
        %v1322 = vadd.f32 %v1154, %v1321
        %v1323 = vpop.f32.mrb[0].mxu0
        %v1324 = vadd.f32 %v1158, %v1323
        %v1325 = vpop.f32.mrb[0].mxu0
        %v1326 = vadd.f32 %v1154, %v1325
        %v1327 = vpop.f32.mrb[0].mxu0
        %v1328 = vadd.f32 %v1158, %v1327
        %1329 = vmatprep.mubr.bf16.mxu0 0
        %1330 = vmatmul.mubr.bf16.gmra.mrb[0].mxu0 %v1106
        %v1331 = vpop.f32.mrb[0].mxu0
        %v1332 = vadd.f32 %v1154, %v1331
        %v1333 = vpop.f32.mrb[0].mxu0
        %v1334 = vadd.f32 %v1158, %v1333
        %v1335 = vpop.f32.mrb[0].mxu0
        %v1336 = vadd.f32 %v1154, %v1335
        %v1337 = vpop.f32.mrb[0].mxu0
        %v1338 = vadd.f32 %v1158, %v1337
        %1339 = vmatprep.mubr.bf16.mxu0 0
        %1340 = vmatmul.mubr.bf16.gmra.mrb[0].mxu0 %v1107
        %v1341 = vpop.f32.mrb[0].mxu0
        %v1342 = vadd.f32 %v1154, %v1341
        %v1343 = vpop.f32.mrb[0].mxu0
        %v1344 = vadd.f32 %v1158, %v1343
        %v1345 = vpop.f32.mrb[0].mxu0
        %v1346 = vadd.f32 %v1154, %v1345
        %v1347 = vpop.f32.mrb[0].mxu0
        %v1348 = vadd.f32 %v1158, %v1347
        %1349 = vmatprep.mubr.bf16.mxu0 0
        %1350 = vmatmul.mubr.bf16.gmra.mrb[0].mxu0 %v1108
        %v1351 = vpop.f32.mrb[0].mxu0
        %v1352 = vadd.f32 %v1154, %v1351
        %v1353 = vpop.f32.mrb[0].mxu0
        %v1354 = vadd.f32 %v1158, %v1353
        %v1355 = vpop.f32.mrb[0].mxu0
        %v1356 = vadd.f32 %v1154, %v1355
        %v1357 = vpop.f32.mrb[0].mxu0
        %v1358 = vadd.f32 %v1158, %v1357
        %1359 = vmatprep.mubr.bf16.mxu0 0
        %1360 = vmatmul.mubr.bf16.gmra.mrb[0].mxu0 %v1109
        %v1361 = vpop.f32.mrb[0].mxu0
        %v1362 = vadd.f32 %v1154, %v1361
        %v1363 = vpop.f32.mrb[0].mxu0
        %v1364 = vadd.f32 %v1158, %v1363
        %v1365 = vpop.f32.mrb[0].mxu0
        %v1366 = vadd.f32 %v1154, %v1365
        %v1367 = vpop.f32.mrb[0].mxu0
        %v1368 = vadd.f32 %v1158, %v1367
        %1369 = vmatprep.mubr.bf16.mxu0 0
        %1370 = vmatmul.mubr.bf16.gmra.mrb[0].mxu0 %v1110
        %v1371 = vpop.f32.mrb[0].mxu0
        %v1372 = vadd.f32 %v1154, %v1371
        %v1373 = vpop.f32.mrb[0].mxu0
        %v1374 = vadd.f32 %v1158, %v1373
        %v1375 = vpop.f32.mrb[0].mxu0
        %v1376 = vadd.f32 %v1154, %v1375
        %v1377 = vpop.f32.mrb[0].mxu0
        %v1378 = vadd.f32 %v1158, %v1377
        %1379 = vmatprep.mubr.bf16.mxu0 0
        %1380 = vmatmul.mubr.bf16.gmra.mrb[0].mxu0 %v1111
        %v1381 = vpop.f32.mrb[0].mxu0
        %v1382 = vadd.f32 %v1154, %v1381
        %v1383 = vpop.f32.mrb[0].mxu0
        %v1384 = vadd.f32 %v1158, %v1383
        %v1385 = vpop.f32.mrb[0].mxu0
        %v1386 = vadd.f32 %v1154, %v1385
        %v1387 = vpop.f32.mrb[0].mxu0
        %v1388 = vadd.f32 %v1158, %v1387
        %1389 = vmatprep.mubr.bf16.mxu0 0
        %1390 = vmatmul.mubr.bf16.gmra.mrb[0].mxu0 %v1112
        %v1391 = vpop.f32.mrb[0].mxu0
        %v1392 = vadd.f32 %v1154, %v1391
        %v1393 = vpop.f32.mrb[0].mxu0
        %v1394 = vadd.f32 %v1158, %v1393
        %v1395 = vpop.f32.mrb[0].mxu0
        %v1396 = vadd.f32 %v1154, %v1395
        %v1397 = vpop.f32.mrb[0].mxu0
        %v1398 = vadd.f32 %v1158, %v1397
        %1399 = vmatprep.mubr.bf16.mxu0 0
        %1400 = vmatmul.mubr.bf16.gmra.mrb[0].mxu0 %v1113
        %v1401 = vpop.f32.mrb[0].mxu0
        %v1402 = vadd.f32 %v1154, %v1401
        %v1403 = vpop.f32.mrb[0].mxu0
        %v1404 = vadd.f32 %v1158, %v1403
        %v1405 = vpop.f32.mrb[0].mxu0
        %v1406 = vadd.f32 %v1154, %v1405
        %v1407 = vpop.f32.mrb[0].mxu0
        %v1408 = vadd.f32 %v1158, %v1407
        %1409 = vmatprep.mubr.bf16.mxu0 0
        %1410 = vmatmul.mubr.bf16.gmra.mrb[0].mxu0 %v1114
        %v1411 = vpop.f32.mrb[0].mxu0
        %v1412 = vadd.f32 %v1154, %v1411
        %v1413 = vpop.f32.mrb[0].mxu0
        %v1414 = vadd.f32 %v1158, %v1413
        %v1415 = vpop.f32.mrb[0].mxu0
        %v1416 = vadd.f32 %v1154, %v1415
        %v1417 = vpop.f32.mrb[0].mxu0
        %v1418 = vadd.f32 %v1158, %v1417
        %1419 = vmatprep.mubr.bf16.mxu0 0
        %1420 = vmatmul.mubr.bf16.gmra.mrb[0].mxu0 %v1115
        %v1421 = vpop.f32.mrb[0].mxu0
        %v1422 = vadd.f32 %v1154, %v1421
        %v1423 = vpop.f32.mrb[0].mxu0
        %v1424 = vadd.f32 %v1158, %v1423
        %v1425 = vpop.f32.mrb[0].mxu0
        %v1426 = vadd.f32 %v1154, %v1425
        %v1427 = vpop.f32.mrb[0].mxu0
        %v1428 = vadd.f32 %v1158, %v1427
        %1429 = vmatprep.mubr.bf16.mxu0 0
        %1430 = vmatmul.mubr.bf16.gmra.mrb[0].mxu0 %v1116
        %v1431 = vpop.f32.mrb[0].mxu0
        %v1432 = vadd.f32 %v1154, %v1431
        %v1433 = vpop.f32.mrb[0].mxu0
        %v1434 = vadd.f32 %v1158, %v1433
        %v1435 = vpop.f32.mrb[0].mxu0
        %v1436 = vadd.f32 %v1154, %v1435
        %v1437 = vpop.f32.mrb[0].mxu0
        %v1438 = vadd.f32 %v1158, %v1437
        %1439 = vmatprep.mubr.bf16.mxu0 0
        %1440 = vmatmul.mubr.bf16.gmra.mrb[0].mxu0 %v1117
        %v1441 = vpop.f32.mrb[0].mxu0
        %v1442 = vadd.f32 %v1154, %v1441
        %v1443 = vpop.f32.mrb[0].mxu0
        %v1444 = vadd.f32 %v1158, %v1443
        %v1445 = vpop.f32.mrb[0].mxu0
        %v1446 = vadd.f32 %v1154, %v1445
        %v1447 = vpop.f32.mrb[0].mxu0
        %v1448 = vadd.f32 %v1158, %v1447
        %1449 = vdwg.mxu0
        %v1450 = vpack.c.bf16 %v1296, %v1292
        %v1451 = vpack.c.bf16 %v1298, %v1294
        %v1452 = vpack.c.bf16 %v1306, %v1302
        %v1453 = vpack.c.bf16 %v1308, %v1304
        %v1454 = vpack.c.bf16 %v1316, %v1312
        %v1455 = vpack.c.bf16 %v1318, %v1314
        %v1456 = vpack.c.bf16 %v1326, %v1322
        %v1457 = vpack.c.bf16 %v1328, %v1324
        %v1458 = vpack.c.bf16 %v1336, %v1332
        %v1459 = vpack.c.bf16 %v1338, %v1334
        %v1460 = vpack.c.bf16 %v1346, %v1342
        %v1461 = vpack.c.bf16 %v1348, %v1344
        %v1462 = vpack.c.bf16 %v1356, %v1352
        %v1463 = vpack.c.bf16 %v1358, %v1354
        %v1464 = vpack.c.bf16 %v1366, %v1362
        %v1465 = vpack.c.bf16 %v1368, %v1364
        %v1466 = vpack.c.bf16 %v1376, %v1372
        %v1467 = vpack.c.bf16 %v1378, %v1374
        %v1468 = vpack.c.bf16 %v1386, %v1382
        %v1469 = vpack.c.bf16 %v1388, %v1384
        %v1470 = vpack.c.bf16 %v1396, %v1392
        %v1471 = vpack.c.bf16 %v1398, %v1394
        %v1472 = vpack.c.bf16 %v1406, %v1402
        %v1473 = vpack.c.bf16 %v1408, %v1404
        %v1474 = vpack.c.bf16 %v1416, %v1412
        %v1475 = vpack.c.bf16 %v1418, %v1414
        %v1476 = vpack.c.bf16 %v1426, %v1422
        %v1477 = vpack.c.bf16 %v1428, %v1424
        %v1478 = vpack.c.bf16 %v1436, %v1432
        %v1479 = vpack.c.bf16 %v1438, %v1434
        %v1480 = vpack.c.bf16 %v1446, %v1442
        %v1481 = vpack.c.bf16 %v1448, %v1444
        %v1514 = vunpack.c.l.b16 %v1450
        %v1515 = vunpack.c.l.b16 %v1451
        %v1516 = vunpack.c.h.b16 %v1450
        %v1517 = vunpack.c.h.b16 %v1451
        %v1518 = vunpack.c.l.b16 %v1452
        %v1519 = vunpack.c.l.b16 %v1453
        %v1520 = vunpack.c.h.b16 %v1452
        %v1521 = vunpack.c.h.b16 %v1453
        %v1522 = vunpack.c.l.b16 %v1454
        %v1523 = vunpack.c.l.b16 %v1455
        %v1524 = vunpack.c.h.b16 %v1454
        %v1525 = vunpack.c.h.b16 %v1455
        %v1526 = vunpack.c.l.b16 %v1456
        %v1527 = vunpack.c.l.b16 %v1457
        %v1528 = vunpack.c.h.b16 %v1456
        %v1529 = vunpack.c.h.b16 %v1457
        %v1530 = vunpack.c.l.b16 %v1458
        %v1531 = vunpack.c.l.b16 %v1459
        %v1532 = vunpack.c.h.b16 %v1458
        %v1533 = vunpack.c.h.b16 %v1459
        %v1534 = vunpack.c.l.b16 %v1460
        %v1535 = vunpack.c.l.b16 %v1461
        %v1536 = vunpack.c.h.b16 %v1460
        %v1537 = vunpack.c.h.b16 %v1461
        %v1538 = vunpack.c.l.b16 %v1462
        %v1539 = vunpack.c.l.b16 %v1463
        %v1540 = vunpack.c.h.b16 %v1462
        %v1541 = vunpack.c.h.b16 %v1463
        %v1542 = vunpack.c.l.b16 %v1464
        %v1543 = vunpack.c.l.b16 %v1465
        %v1544 = vunpack.c.h.b16 %v1464
        %v1545 = vunpack.c.h.b16 %v1465
        %v1546 = vunpack.c.l.b16 %v1466
        %v1547 = vunpack.c.l.b16 %v1467
        %v1548 = vunpack.c.h.b16 %v1466
        %v1549 = vunpack.c.h.b16 %v1467
        %v1550 = vunpack.c.l.b16 %v1468
        %v1551 = vunpack.c.l.b16 %v1469
        %v1552 = vunpack.c.h.b16 %v1468
        %v1553 = vunpack.c.h.b16 %v1469
        %v1554 = vunpack.c.l.b16 %v1470
        %v1555 = vunpack.c.l.b16 %v1471
        %v1556 = vunpack.c.h.b16 %v1470
        %v1557 = vunpack.c.h.b16 %v1471
        %v1558 = vunpack.c.l.b16 %v1472
        %v1559 = vunpack.c.l.b16 %v1473
        %v1560 = vunpack.c.h.b16 %v1472
        %v1561 = vunpack.c.h.b16 %v1473
        %v1562 = vunpack.c.l.b16 %v1474
        %v1563 = vunpack.c.l.b16 %v1475
        %v1564 = vunpack.c.h.b16 %v1474
        %v1565 = vunpack.c.h.b16 %v1475
        %v1566 = vunpack.c.l.b16 %v1476
        %v1567 = vunpack.c.l.b16 %v1477
        %v1568 = vunpack.c.h.b16 %v1476
        %v1569 = vunpack.c.h.b16 %v1477
        %v1570 = vunpack.c.l.b16 %v1478
        %v1571 = vunpack.c.l.b16 %v1479
        %v1572 = vunpack.c.h.b16 %v1478
        %v1573 = vunpack.c.h.b16 %v1479
        %v1574 = vunpack.c.l.b16 %v1480
        %v1575 = vunpack.c.l.b16 %v1481
        %v1576 = vunpack.c.h.b16 %v1480
        %v1577 = vunpack.c.h.b16 %v1481
        %v1578 = vpack.c.b16 %v1515, %v1514
        %v1579 = vpack.c.b16 %v1517, %v1516
        %v1580 = vpack.c.b16 %v1519, %v1518
        %v1581 = vpack.c.b16 %v1521, %v1520
        %v1582 = vpack.c.b16 %v1523, %v1522
        %v1583 = vpack.c.b16 %v1525, %v1524
        %v1584 = vpack.c.b16 %v1527, %v1526
        %v1585 = vpack.c.b16 %v1529, %v1528
        %v1586 = vpack.c.b16 %v1531, %v1530
        %v1587 = vpack.c.b16 %v1533, %v1532
        %v1588 = vpack.c.b16 %v1535, %v1534
        %v1589 = vpack.c.b16 %v1537, %v1536
        %v1590 = vpack.c.b16 %v1539, %v1538
        %v1591 = vpack.c.b16 %v1541, %v1540
        %v1592 = vpack.c.b16 %v1543, %v1542
        %v1593 = vpack.c.b16 %v1545, %v1544
        %v1594 = vpack.c.b16 %v1547, %v1546
        %v1595 = vpack.c.b16 %v1549, %v1548
        %v1596 = vpack.c.b16 %v1551, %v1550
        %v1597 = vpack.c.b16 %v1553, %v1552
        %v1598 = vpack.c.b16 %v1555, %v1554
        %v1599 = vpack.c.b16 %v1557, %v1556
        %v1600 = vpack.c.b16 %v1559, %v1558
        %v1601 = vpack.c.b16 %v1561, %v1560
        %v1602 = vpack.c.b16 %v1563, %v1562
        %v1603 = vpack.c.b16 %v1565, %v1564
        %v1604 = vpack.c.b16 %v1567, %v1566
        %v1605 = vpack.c.b16 %v1569, %v1568
        %v1606 = vpack.c.b16 %v1571, %v1570
        %v1607 = vpack.c.b16 %v1573, %v1572
        %v1608 = vpack.c.b16 %v1575, %v1574
        %v1609 = vpack.c.b16 %v1577, %v1576
        %1642 = vst [vmem:[%s342] sm:$0xff] %v1578
        %1643 = vst [vmem:[%s342 + $0x8] sm:$0xff] %v1579
        %1644 = vst [vmem:[%s342 + $0x10] sm:$0xff] %v1580
        %1645 = vst [vmem:[%s342 + $0x18] sm:$0xff] %v1581
        %1646 = vst [vmem:[%s342 + $0x20] sm:$0xff] %v1582
        %1647 = vst [vmem:[%s342 + $0x28] sm:$0xff] %v1583
        %1648 = vst [vmem:[%s342 + $0x30] sm:$0xff] %v1584
        %1649 = vst [vmem:[%s342 + $0x38] sm:$0xff] %v1585
        %1650 = vst [vmem:[%s342 + $0x40] sm:$0xff] %v1586
        %1651 = vst [vmem:[%s342 + $0x48] sm:$0xff] %v1587
        %1652 = vst [vmem:[%s342 + $0x50] sm:$0xff] %v1588
        %1653 = vst [vmem:[%s342 + $0x58] sm:$0xff] %v1589
        %1654 = vst [vmem:[%s342 + $0x60] sm:$0xff] %v1590
        %1655 = vst [vmem:[%s342 + $0x68] sm:$0xff] %v1591
        %1656 = vst [vmem:[%s342 + $0x70] sm:$0xff] %v1592
        %1657 = vst [vmem:[%s342 + $0x78] sm:$0xff] %v1593
        %1658 = vst [vmem:[%s342 + $0x80] sm:$0xff] %v1594
        %1659 = vst [vmem:[%s342 + $0x88] sm:$0xff] %v1595
        %1660 = vst [vmem:[%s342 + $0x90] sm:$0xff] %v1596
        %1661 = vst [vmem:[%s342 + $0x98] sm:$0xff] %v1597
        %1662 = vst [vmem:[%s342 + $0xa0] sm:$0xff] %v1598
        %1663 = vst [vmem:[%s342 + $0xa8] sm:$0xff] %v1599
        %1664 = vst [vmem:[%s342 + $0xb0] sm:$0xff] %v1600
        %1665 = vst [vmem:[%s342 + $0xb8] sm:$0xff] %v1601
        %1666 = vst [vmem:[%s342 + $0xc0] sm:$0xff] %v1602
        %1667 = vst [vmem:[%s342 + $0xc8] sm:$0xff] %v1603
        %1668 = vst [vmem:[%s342 + $0xd0] sm:$0xff] %v1604
        %1669 = vst [vmem:[%s342 + $0xd8] sm:$0xff] %v1605
        %1670 = vst [vmem:[%s342 + $0xe0] sm:$0xff] %v1606
        %1671 = vst [vmem:[%s342 + $0xe8] sm:$0xff] %v1607
        %1672 = vst [vmem:[%s342 + $0xf0] sm:$0xff] %v1608
        %1673 = vst [vmem:[%s342 + $0xf8] sm:$0xff] %v1609
        %v1674 = vmax.f32 %v1292, %v1294
        %1675 = vmax.xlane.f32.xlu0 %v1674
        %v1676 = vpop.xlane.xlu0 %1675
        %v1677 = vmax.f32 %v1296, %v1298
        %1678 = vmax.xlane.f32.xlu0 %v1677
        %v1679 = vpop.xlane.xlu0 %1678
        %v1680 = vmax.f32 %v1302, %v1304
        %1681 = vmax.xlane.f32.xlu0 %v1680
        %v1682 = vpop.xlane.xlu0 %1681
        %v1683 = vmax.f32 %v1306, %v1308
        %1684 = vmax.xlane.f32.xlu0 %v1683
        %v1685 = vpop.xlane.xlu0 %1684
        %v1686 = vmax.f32 %v1312, %v1314
        %1687 = vmax.xlane.f32.xlu0 %v1686
        %v1688 = vpop.xlane.xlu0 %1687
        %v1689 = vmax.f32 %v1316, %v1318
        %1690 = vmax.xlane.f32.xlu0 %v1689
        %v1691 = vpop.xlane.xlu0 %1690
        %v1692 = vmax.f32 %v1322, %v1324
        %1693 = vmax.xlane.f32.xlu0 %v1692
        %v1694 = vpop.xlane.xlu0 %1693
        %v1695 = vmax.f32 %v1326, %v1328
        %1696 = vmax.xlane.f32.xlu0 %v1695
        %v1697 = vpop.xlane.xlu0 %1696
        %v1698 = vmax.f32 %v1332, %v1334
        %1699 = vmax.xlane.f32.xlu0 %v1698
        %v1700 = vpop.xlane.xlu0 %1699
        %v1701 = vmax.f32 %v1336, %v1338
        %1702 = vmax.xlane.f32.xlu0 %v1701
        %v1703 = vpop.xlane.xlu0 %1702
        %v1704 = vmax.f32 %v1342, %v1344
        %1705 = vmax.xlane.f32.xlu0 %v1704
        %v1706 = vpop.xlane.xlu0 %1705
        %v1707 = vmax.f32 %v1346, %v1348
        %1708 = vmax.xlane.f32.xlu0 %v1707
        %v1709 = vpop.xlane.xlu0 %1708
        %v1710 = vmax.f32 %v1352, %v1354
        %1711 = vmax.xlane.f32.xlu0 %v1710
        %v1712 = vpop.xlane.xlu0 %1711
        %v1713 = vmax.f32 %v1356, %v1358
        %1714 = vmax.xlane.f32.xlu0 %v1713
        %v1715 = vpop.xlane.xlu0 %1714
        %v1716 = vmax.f32 %v1362, %v1364
        %1717 = vmax.xlane.f32.xlu0 %v1716
        %v1718 = vpop.xlane.xlu0 %1717
        %v1719 = vmax.f32 %v1366, %v1368
        %1720 = vmax.xlane.f32.xlu0 %v1719
        %v1721 = vpop.xlane.xlu0 %1720
        %v1722 = vmax.f32 %v1372, %v1374
        %1723 = vmax.xlane.f32.xlu0 %v1722
        %v1724 = vpop.xlane.xlu0 %1723
        %v1725 = vmax.f32 %v1376, %v1378
        %1726 = vmax.xlane.f32.xlu0 %v1725
        %v1727 = vpop.xlane.xlu0 %1726
        %v1728 = vmax.f32 %v1382, %v1384
        %1729 = vmax.xlane.f32.xlu0 %v1728
        %v1730 = vpop.xlane.xlu0 %1729
        %v1731 = vmax.f32 %v1386, %v1388
        %1732 = vmax.xlane.f32.xlu0 %v1731
        %v1733 = vpop.xlane.xlu0 %1732
        %v1734 = vmax.f32 %v1392, %v1394
        %1735 = vmax.xlane.f32.xlu0 %v1734
        %v1736 = vpop.xlane.xlu0 %1735
        %v1737 = vmax.f32 %v1396, %v1398
        %1738 = vmax.xlane.f32.xlu0 %v1737
        %v1739 = vpop.xlane.xlu0 %1738
        %v1740 = vmax.f32 %v1402, %v1404
        %1741 = vmax.xlane.f32.xlu0 %v1740
        %v1742 = vpop.xlane.xlu0 %1741
        %v1743 = vmax.f32 %v1406, %v1408
        %1744 = vmax.xlane.f32.xlu0 %v1743
        %v1745 = vpop.xlane.xlu0 %1744
        %v1746 = vmax.f32 %v1412, %v1414
        %1747 = vmax.xlane.f32.xlu0 %v1746
        %v1748 = vpop.xlane.xlu0 %1747
        %v1749 = vmax.f32 %v1416, %v1418
        %1750 = vmax.xlane.f32.xlu0 %v1749
        %v1751 = vpop.xlane.xlu0 %1750
        %v1752 = vmax.f32 %v1422, %v1424
        %1753 = vmax.xlane.f32.xlu0 %v1752
        %v1754 = vpop.xlane.xlu0 %1753
        %v1755 = vmax.f32 %v1426, %v1428
        %1756 = vmax.xlane.f32.xlu0 %v1755
        %v1757 = vpop.xlane.xlu0 %1756
        %v1758 = vmax.f32 %v1432, %v1434
        %1759 = vmax.xlane.f32.xlu0 %v1758
        %v1760 = vpop.xlane.xlu0 %1759
        %v1761 = vmax.f32 %v1436, %v1438
        %1762 = vmax.xlane.f32.xlu0 %v1761
        %v1763 = vpop.xlane.xlu0 %1762
        %v1764 = vmax.f32 %v1442, %v1444
        %1765 = vmax.xlane.f32.xlu0 %v1764
        %v1766 = vpop.xlane.xlu0 %1765
        %v1767 = vmax.f32 %v1446, %v1448
        %1768 = vmax.xlane.f32.xlu0 %v1767
        %v1769 = vpop.xlane.xlu0 %1768
        %vm1770 = vcmp.eq.f32.partialorder %v1292, %v1676
        %vm1771 = vcmp.eq.f32.partialorder %v1294, %v1676
        %vm1772 = vcmp.eq.f32.partialorder %v1296, %v1679
        %vm1773 = vcmp.eq.f32.partialorder %v1298, %v1679
        %vm1774 = vcmp.eq.f32.partialorder %v1302, %v1682
        %vm1775 = vcmp.eq.f32.partialorder %v1304, %v1682
        %vm1776 = vcmp.eq.f32.partialorder %v1306, %v1685
        %vm1777 = vcmp.eq.f32.partialorder %v1308, %v1685
        %vm1778 = vcmp.eq.f32.partialorder %v1312, %v1688
        %vm1779 = vcmp.eq.f32.partialorder %v1314, %v1688
        %vm1780 = vcmp.eq.f32.partialorder %v1316, %v1691
        %vm1781 = vcmp.eq.f32.partialorder %v1318, %v1691
        %vm1782 = vcmp.eq.f32.partialorder %v1322, %v1694
        %vm1783 = vcmp.eq.f32.partialorder %v1324, %v1694
        %vm1784 = vcmp.eq.f32.partialorder %v1326, %v1697
        %vm1785 = vcmp.eq.f32.partialorder %v1328, %v1697
        %vm1786 = vcmp.eq.f32.partialorder %v1332, %v1700
        %vm1787 = vcmp.eq.f32.partialorder %v1334, %v1700
        %vm1788 = vcmp.eq.f32.partialorder %v1336, %v1703
        %vm1789 = vcmp.eq.f32.partialorder %v1338, %v1703
        %vm1790 = vcmp.eq.f32.partialorder %v1342, %v1706
        %vm1791 = vcmp.eq.f32.partialorder %v1344, %v1706
        %vm1792 = vcmp.eq.f32.partialorder %v1346, %v1709
        %vm1793 = vcmp.eq.f32.partialorder %v1348, %v1709
        %vm1794 = vcmp.eq.f32.partialorder %v1352, %v1712
        %vm1795 = vcmp.eq.f32.partialorder %v1354, %v1712
        %vm1796 = vcmp.eq.f32.partialorder %v1356, %v1715
        %vm1797 = vcmp.eq.f32.partialorder %v1358, %v1715
        %vm1798 = vcmp.eq.f32.partialorder %v1362, %v1718
        %vm1799 = vcmp.eq.f32.partialorder %v1364, %v1718
        %vm1800 = vcmp.eq.f32.partialorder %v1366, %v1721
        %vm1801 = vcmp.eq.f32.partialorder %v1368, %v1721
        %vm1802 = vcmp.eq.f32.partialorder %v1372, %v1724
        %vm1803 = vcmp.eq.f32.partialorder %v1374, %v1724
        %vm1804 = vcmp.eq.f32.partialorder %v1376, %v1727
        %vm1805 = vcmp.eq.f32.partialorder %v1378, %v1727
        %vm1806 = vcmp.eq.f32.partialorder %v1382, %v1730
        %vm1807 = vcmp.eq.f32.partialorder %v1384, %v1730
        %vm1808 = vcmp.eq.f32.partialorder %v1386, %v1733
        %vm1809 = vcmp.eq.f32.partialorder %v1388, %v1733
        %vm1810 = vcmp.eq.f32.partialorder %v1392, %v1736
        %vm1811 = vcmp.eq.f32.partialorder %v1394, %v1736
        %vm1812 = vcmp.eq.f32.partialorder %v1396, %v1739
        %vm1813 = vcmp.eq.f32.partialorder %v1398, %v1739
        %vm1814 = vcmp.eq.f32.partialorder %v1402, %v1742
        %vm1815 = vcmp.eq.f32.partialorder %v1404, %v1742
        %vm1816 = vcmp.eq.f32.partialorder %v1406, %v1745
        %vm1817 = vcmp.eq.f32.partialorder %v1408, %v1745
        %vm1818 = vcmp.eq.f32.partialorder %v1412, %v1748
        %vm1819 = vcmp.eq.f32.partialorder %v1414, %v1748
        %vm1820 = vcmp.eq.f32.partialorder %v1416, %v1751
        %vm1821 = vcmp.eq.f32.partialorder %v1418, %v1751
        %vm1822 = vcmp.eq.f32.partialorder %v1422, %v1754
        %vm1823 = vcmp.eq.f32.partialorder %v1424, %v1754
        %vm1824 = vcmp.eq.f32.partialorder %v1426, %v1757
        %vm1825 = vcmp.eq.f32.partialorder %v1428, %v1757
        %vm1826 = vcmp.eq.f32.partialorder %v1432, %v1760
        %vm1827 = vcmp.eq.f32.partialorder %v1434, %v1760
        %vm1828 = vcmp.eq.f32.partialorder %v1436, %v1763
        %vm1829 = vcmp.eq.f32.partialorder %v1438, %v1763
        %vm1830 = vcmp.eq.f32.partialorder %v1442, %v1766
        %vm1831 = vcmp.eq.f32.partialorder %v1444, %v1766
        %vm1832 = vcmp.eq.f32.partialorder %v1446, %v1769
        %vm1833 = vcmp.eq.f32.partialorder %v1448, %v1769
        %v1834 = vsel %vm1770, -inf, %v1292
        %v1835 = vsel %vm1771, -inf, %v1294
        %v1836 = vsel %vm1772, -inf, %v1296
        %v1837 = vsel %vm1773, -inf, %v1298
        %v1838 = vsel %vm1774, -inf, %v1302
        %v1839 = vsel %vm1775, -inf, %v1304
        %v1840 = vsel %vm1776, -inf, %v1306
        %v1841 = vsel %vm1777, -inf, %v1308
        %v1842 = vsel %vm1778, -inf, %v1312
        %v1843 = vsel %vm1779, -inf, %v1314
        %v1844 = vsel %vm1780, -inf, %v1316
        %v1845 = vsel %vm1781, -inf, %v1318
        %v1846 = vsel %vm1782, -inf, %v1322
        %v1847 = vsel %vm1783, -inf, %v1324
        %v1848 = vsel %vm1784, -inf, %v1326
        %v1849 = vsel %vm1785, -inf, %v1328
        %v1850 = vsel %vm1786, -inf, %v1332
        %v1851 = vsel %vm1787, -inf, %v1334
        %v1852 = vsel %vm1788, -inf, %v1336
        %v1853 = vsel %vm1789, -inf, %v1338
        %v1854 = vsel %vm1790, -inf, %v1342
        %v1855 = vsel %vm1791, -inf, %v1344
        %v1856 = vsel %vm1792, -inf, %v1346
        %v1857 = vsel %vm1793, -inf, %v1348
        %v1858 = vsel %vm1794, -inf, %v1352
        %v1859 = vsel %vm1795, -inf, %v1354
        %v1860 = vsel %vm1796, -inf, %v1356
        %v1861 = vsel %vm1797, -inf, %v1358
        %v1862 = vsel %vm1798, -inf, %v1362
        %v1863 = vsel %vm1799, -inf, %v1364
        %v1864 = vsel %vm1800, -inf, %v1366
        %v1865 = vsel %vm1801, -inf, %v1368
        %v1866 = vsel %vm1802, -inf, %v1372
        %v1867 = vsel %vm1803, -inf, %v1374
        %v1868 = vsel %vm1804, -inf, %v1376
        %v1869 = vsel %vm1805, -inf, %v1378
        %v1870 = vsel %vm1806, -inf, %v1382
        %v1871 = vsel %vm1807, -inf, %v1384
        %v1872 = vsel %vm1808, -inf, %v1386
        %v1873 = vsel %vm1809, -inf, %v1388
        %v1874 = vsel %vm1810, -inf, %v1392
        %v1875 = vsel %vm1811, -inf, %v1394
        %v1876 = vsel %vm1812, -inf, %v1396
        %v1877 = vsel %vm1813, -inf, %v1398
        %v1878 = vsel %vm1814, -inf, %v1402
        %v1879 = vsel %vm1815, -inf, %v1404
        %v1880 = vsel %vm1816, -inf, %v1406
        %v1881 = vsel %vm1817, -inf, %v1408
        %v1882 = vsel %vm1818, -inf, %v1412
        %v1883 = vsel %vm1819, -inf, %v1414
        %v1884 = vsel %vm1820, -inf, %v1416
        %v1885 = vsel %vm1821, -inf, %v1418
        %v1886 = vsel %vm1822, -inf, %v1422
        %v1887 = vsel %vm1823, -inf, %v1424
        %v1888 = vsel %vm1824, -inf, %v1426
        %v1889 = vsel %vm1825, -inf, %v1428
        %v1890 = vsel %vm1826, -inf, %v1432
        %v1891 = vsel %vm1827, -inf, %v1434
        %v1892 = vsel %vm1828, -inf, %v1436
        %v1893 = vsel %vm1829, -inf, %v1438
        %v1894 = vsel %vm1830, -inf, %v1442
        %v1895 = vsel %vm1831, -inf, %v1444
        %v1896 = vsel %vm1832, -inf, %v1446
        %v1897 = vsel %vm1833, -inf, %v1448
        %v1898 = vmax.f32 %v1834, %v1835
        %1899 = vmax.xlane.f32.xlu0 %v1898
        %v1900 = vpop.xlane.xlu0 %1899
        %v1901 = vmax.f32 %v1836, %v1837
        %1902 = vmax.xlane.f32.xlu0 %v1901
        %v1903 = vpop.xlane.xlu0 %1902
        %v1904 = vmax.f32 %v1838, %v1839
        %1905 = vmax.xlane.f32.xlu0 %v1904
        %v1906 = vpop.xlane.xlu0 %1905
        %v1907 = vmax.f32 %v1840, %v1841
        %1908 = vmax.xlane.f32.xlu0 %v1907
        %v1909 = vpop.xlane.xlu0 %1908
        %v1910 = vmax.f32 %v1842, %v1843
        %1911 = vmax.xlane.f32.xlu0 %v1910
        %v1912 = vpop.xlane.xlu0 %1911
        %v1913 = vmax.f32 %v1844, %v1845
        %1914 = vmax.xlane.f32.xlu0 %v1913
        %v1915 = vpop.xlane.xlu0 %1914
        %v1916 = vmax.f32 %v1846, %v1847
        %1917 = vmax.xlane.f32.xlu0 %v1916
        %v1918 = vpop.xlane.xlu0 %1917
        %v1919 = vmax.f32 %v1848, %v1849
        %1920 = vmax.xlane.f32.xlu0 %v1919
        %v1921 = vpop.xlane.xlu0 %1920
        %v1922 = vmax.f32 %v1850, %v1851
        %1923 = vmax.xlane.f32.xlu0 %v1922
        %v1924 = vpop.xlane.xlu0 %1923
        %v1925 = vmax.f32 %v1852, %v1853
        %1926 = vmax.xlane.f32.xlu0 %v1925
        %v1927 = vpop.xlane.xlu0 %1926
        %v1928 = vmax.f32 %v1854, %v1855
        %1929 = vmax.xlane.f32.xlu0 %v1928
        %v1930 = vpop.xlane.xlu0 %1929
        %v1931 = vmax.f32 %v1856, %v1857
        %1932 = vmax.xlane.f32.xlu0 %v1931
        %v1933 = vpop.xlane.xlu0 %1932
        %v1934 = vmax.f32 %v1858, %v1859
        %1935 = vmax.xlane.f32.xlu0 %v1934
        %v1936 = vpop.xlane.xlu0 %1935
        %v1937 = vmax.f32 %v1860, %v1861
        %1938 = vmax.xlane.f32.xlu0 %v1937
        %v1939 = vpop.xlane.xlu0 %1938
        %v1940 = vmax.f32 %v1862, %v1863
        %1941 = vmax.xlane.f32.xlu0 %v1940
        %v1942 = vpop.xlane.xlu0 %1941
        %v1943 = vmax.f32 %v1864, %v1865
        %1944 = vmax.xlane.f32.xlu0 %v1943
        %v1945 = vpop.xlane.xlu0 %1944
        %v1946 = vmax.f32 %v1866, %v1867
        %1947 = vmax.xlane.f32.xlu0 %v1946
        %v1948 = vpop.xlane.xlu0 %1947
        %v1949 = vmax.f32 %v1868, %v1869
        %1950 = vmax.xlane.f32.xlu0 %v1949
        %v1951 = vpop.xlane.xlu0 %1950
        %v1952 = vmax.f32 %v1870, %v1871
        %1953 = vmax.xlane.f32.xlu0 %v1952
        %v1954 = vpop.xlane.xlu0 %1953
        %v1955 = vmax.f32 %v1872, %v1873
        %1956 = vmax.xlane.f32.xlu0 %v1955
        %v1957 = vpop.xlane.xlu0 %1956
        %v1958 = vmax.f32 %v1874, %v1875
        %1959 = vmax.xlane.f32.xlu0 %v1958
        %v1960 = vpop.xlane.xlu0 %1959
        %v1961 = vmax.f32 %v1876, %v1877
        %1962 = vmax.xlane.f32.xlu0 %v1961
        %v1963 = vpop.xlane.xlu0 %1962
        %v1964 = vmax.f32 %v1878, %v1879
        %1965 = vmax.xlane.f32.xlu0 %v1964
        %v1966 = vpop.xlane.xlu0 %1965
        %v1967 = vmax.f32 %v1880, %v1881
        %1968 = vmax.xlane.f32.xlu0 %v1967
        %v1969 = vpop.xlane.xlu0 %1968
        %v1970 = vmax.f32 %v1882, %v1883
        %1971 = vmax.xlane.f32.xlu0 %v1970
        %v1972 = vpop.xlane.xlu0 %1971
        %v1973 = vmax.f32 %v1884, %v1885
        %1974 = vmax.xlane.f32.xlu0 %v1973
        %v1975 = vpop.xlane.xlu0 %1974
        %v1976 = vmax.f32 %v1886, %v1887
        %1977 = vmax.xlane.f32.xlu0 %v1976
        %v1978 = vpop.xlane.xlu0 %1977
        %v1979 = vmax.f32 %v1888, %v1889
        %1980 = vmax.xlane.f32.xlu0 %v1979
        %v1981 = vpop.xlane.xlu0 %1980
        %v1982 = vmax.f32 %v1890, %v1891
        %1983 = vmax.xlane.f32.xlu0 %v1982
        %v1984 = vpop.xlane.xlu0 %1983
        %v1985 = vmax.f32 %v1892, %v1893
        %1986 = vmax.xlane.f32.xlu0 %v1985
        %v1987 = vpop.xlane.xlu0 %1986
        %v1988 = vmax.f32 %v1894, %v1895
        %1989 = vmax.xlane.f32.xlu0 %v1988
        %v1990 = vpop.xlane.xlu0 %1989
        %v1991 = vmax.f32 %v1896, %v1897
        %1992 = vmax.xlane.f32.xlu0 %v1991
        %v1993 = vpop.xlane.xlu0 %1992
        %vm1994 = vcmp.eq.f32.partialorder %v1834, %v1900
        %vm1995 = vcmp.eq.f32.partialorder %v1835, %v1900
        %vm1996 = vcmp.eq.f32.partialorder %v1836, %v1903
        %vm1997 = vcmp.eq.f32.partialorder %v1837, %v1903
        %vm1998 = vcmp.eq.f32.partialorder %v1838, %v1906
        %vm1999 = vcmp.eq.f32.partialorder %v1839, %v1906
        %vm2000 = vcmp.eq.f32.partialorder %v1840, %v1909
        %vm2001 = vcmp.eq.f32.partialorder %v1841, %v1909
        %vm2002 = vcmp.eq.f32.partialorder %v1842, %v1912
        %vm2003 = vcmp.eq.f32.partialorder %v1843, %v1912
        %vm2004 = vcmp.eq.f32.partialorder %v1844, %v1915
        %vm2005 = vcmp.eq.f32.partialorder %v1845, %v1915
        %vm2006 = vcmp.eq.f32.partialorder %v1846, %v1918
        %vm2007 = vcmp.eq.f32.partialorder %v1847, %v1918
        %vm2008 = vcmp.eq.f32.partialorder %v1848, %v1921
        %vm2009 = vcmp.eq.f32.partialorder %v1849, %v1921
        %vm2010 = vcmp.eq.f32.partialorder %v1850, %v1924
        %vm2011 = vcmp.eq.f32.partialorder %v1851, %v1924
        %vm2012 = vcmp.eq.f32.partialorder %v1852, %v1927
        %vm2013 = vcmp.eq.f32.partialorder %v1853, %v1927
        %vm2014 = vcmp.eq.f32.partialorder %v1854, %v1930
        %vm2015 = vcmp.eq.f32.partialorder %v1855, %v1930
        %vm2016 = vcmp.eq.f32.partialorder %v1856, %v1933
        %vm2017 = vcmp.eq.f32.partialorder %v1857, %v1933
        %vm2018 = vcmp.eq.f32.partialorder %v1858, %v1936
        %vm2019 = vcmp.eq.f32.partialorder %v1859, %v1936
        %vm2020 = vcmp.eq.f32.partialorder %v1860, %v1939
        %vm2021 = vcmp.eq.f32.partialorder %v1861, %v1939
        %vm2022 = vcmp.eq.f32.partialorder %v1862, %v1942
        %vm2023 = vcmp.eq.f32.partialorder %v1863, %v1942
        %vm2024 = vcmp.eq.f32.partialorder %v1864, %v1945
        %vm2025 = vcmp.eq.f32.partialorder %v1865, %v1945
        %vm2026 = vcmp.eq.f32.partialorder %v1866, %v1948
        %vm2027 = vcmp.eq.f32.partialorder %v1867, %v1948
        %vm2028 = vcmp.eq.f32.partialorder %v1868, %v1951
        %vm2029 = vcmp.eq.f32.partialorder %v1869, %v1951
        %vm2030 = vcmp.eq.f32.partialorder %v1870, %v1954
        %vm2031 = vcmp.eq.f32.partialorder %v1871, %v1954
        %vm2032 = vcmp.eq.f32.partialorder %v1872, %v1957
        %vm2033 = vcmp.eq.f32.partialorder %v1873, %v1957
        %vm2034 = vcmp.eq.f32.partialorder %v1874, %v1960
        %vm2035 = vcmp.eq.f32.partialorder %v1875, %v1960
        %vm2036 = vcmp.eq.f32.partialorder %v1876, %v1963
        %vm2037 = vcmp.eq.f32.partialorder %v1877, %v1963
        %vm2038 = vcmp.eq.f32.partialorder %v1878, %v1966
        %vm2039 = vcmp.eq.f32.partialorder %v1879, %v1966
        %vm2040 = vcmp.eq.f32.partialorder %v1880, %v1969
        %vm2041 = vcmp.eq.f32.partialorder %v1881, %v1969
        %vm2042 = vcmp.eq.f32.partialorder %v1882, %v1972
        %vm2043 = vcmp.eq.f32.partialorder %v1883, %v1972
        %vm2044 = vcmp.eq.f32.partialorder %v1884, %v1975
        %vm2045 = vcmp.eq.f32.partialorder %v1885, %v1975
        %vm2046 = vcmp.eq.f32.partialorder %v1886, %v1978
        %vm2047 = vcmp.eq.f32.partialorder %v1887, %v1978
        %vm2048 = vcmp.eq.f32.partialorder %v1888, %v1981
        %vm2049 = vcmp.eq.f32.partialorder %v1889, %v1981
        %vm2050 = vcmp.eq.f32.partialorder %v1890, %v1984
        %vm2051 = vcmp.eq.f32.partialorder %v1891, %v1984
        %vm2052 = vcmp.eq.f32.partialorder %v1892, %v1987
        %vm2053 = vcmp.eq.f32.partialorder %v1893, %v1987
        %vm2054 = vcmp.eq.f32.partialorder %v1894, %v1990
        %vm2055 = vcmp.eq.f32.partialorder %v1895, %v1990
        %vm2056 = vcmp.eq.f32.partialorder %v1896, %v1993
        %vm2057 = vcmp.eq.f32.partialorder %v1897, %v1993
        %v2058 = vsel %vm1994, -inf, %v1834
        %v2059 = vsel %vm1995, -inf, %v1835
        %v2060 = vsel %vm1996, -inf, %v1836
        %v2061 = vsel %vm1997, -inf, %v1837
        %v2062 = vsel %vm1998, -inf, %v1838
        %v2063 = vsel %vm1999, -inf, %v1839
        %v2064 = vsel %vm2000, -inf, %v1840
        %v2065 = vsel %vm2001, -inf, %v1841
        %v2066 = vsel %vm2002, -inf, %v1842
        %v2067 = vsel %vm2003, -inf, %v1843
        %v2068 = vsel %vm2004, -inf, %v1844
        %v2069 = vsel %vm2005, -inf, %v1845
        %v2070 = vsel %vm2006, -inf, %v1846
        %v2071 = vsel %vm2007, -inf, %v1847
        %v2072 = vsel %vm2008, -inf, %v1848
        %v2073 = vsel %vm2009, -inf, %v1849
        %v2074 = vsel %vm2010, -inf, %v1850
        %v2075 = vsel %vm2011, -inf, %v1851
        %v2076 = vsel %vm2012, -inf, %v1852
        %v2077 = vsel %vm2013, -inf, %v1853
        %v2078 = vsel %vm2014, -inf, %v1854
        %v2079 = vsel %vm2015, -inf, %v1855
        %v2080 = vsel %vm2016, -inf, %v1856
        %v2081 = vsel %vm2017, -inf, %v1857
        %v2082 = vsel %vm2018, -inf, %v1858
        %v2083 = vsel %vm2019, -inf, %v1859
        %v2084 = vsel %vm2020, -inf, %v1860
        %v2085 = vsel %vm2021, -inf, %v1861
        %v2086 = vsel %vm2022, -inf, %v1862
        %v2087 = vsel %vm2023, -inf, %v1863
        %v2088 = vsel %vm2024, -inf, %v1864
        %v2089 = vsel %vm2025, -inf, %v1865
        %v2090 = vsel %vm2026, -inf, %v1866
        %v2091 = vsel %vm2027, -inf, %v1867
        %v2092 = vsel %vm2028, -inf, %v1868
        %v2093 = vsel %vm2029, -inf, %v1869
        %v2094 = vsel %vm2030, -inf, %v1870
        %v2095 = vsel %vm2031, -inf, %v1871
        %v2096 = vsel %vm2032, -inf, %v1872
        %v2097 = vsel %vm2033, -inf, %v1873
        %v2098 = vsel %vm2034, -inf, %v1874
        %v2099 = vsel %vm2035, -inf, %v1875
        %v2100 = vsel %vm2036, -inf, %v1876
        %v2101 = vsel %vm2037, -inf, %v1877
        %v2102 = vsel %vm2038, -inf, %v1878
        %v2103 = vsel %vm2039, -inf, %v1879
        %v2104 = vsel %vm2040, -inf, %v1880
        %v2105 = vsel %vm2041, -inf, %v1881
        %v2106 = vsel %vm2042, -inf, %v1882
        %v2107 = vsel %vm2043, -inf, %v1883
        %v2108 = vsel %vm2044, -inf, %v1884
        %v2109 = vsel %vm2045, -inf, %v1885
        %v2110 = vsel %vm2046, -inf, %v1886
        %v2111 = vsel %vm2047, -inf, %v1887
        %v2112 = vsel %vm2048, -inf, %v1888
        %v2113 = vsel %vm2049, -inf, %v1889
        %v2114 = vsel %vm2050, -inf, %v1890
        %v2115 = vsel %vm2051, -inf, %v1891
        %v2116 = vsel %vm2052, -inf, %v1892
        %v2117 = vsel %vm2053, -inf, %v1893
        %v2118 = vsel %vm2054, -inf, %v1894
        %v2119 = vsel %vm2055, -inf, %v1895
        %v2120 = vsel %vm2056, -inf, %v1896
        %v2121 = vsel %vm2057, -inf, %v1897
        %v2122 = vmax.f32 %v2058, %v2059
        %2123 = vmax.xlane.f32.xlu0 %v2122
        %v2124 = vpop.xlane.xlu0 %2123
        %v2125 = vmax.f32 %v2060, %v2061
        %2126 = vmax.xlane.f32.xlu0 %v2125
        %v2127 = vpop.xlane.xlu0 %2126
        %v2128 = vmax.f32 %v2062, %v2063
        %2129 = vmax.xlane.f32.xlu0 %v2128
        %v2130 = vpop.xlane.xlu0 %2129
        %v2131 = vmax.f32 %v2064, %v2065
        %2132 = vmax.xlane.f32.xlu0 %v2131
        %v2133 = vpop.xlane.xlu0 %2132
        %v2134 = vmax.f32 %v2066, %v2067
        %2135 = vmax.xlane.f32.xlu0 %v2134
        %v2136 = vpop.xlane.xlu0 %2135
        %v2137 = vmax.f32 %v2068, %v2069
        %2138 = vmax.xlane.f32.xlu0 %v2137
        %v2139 = vpop.xlane.xlu0 %2138
        %v2140 = vmax.f32 %v2070, %v2071
        %2141 = vmax.xlane.f32.xlu0 %v2140
        %v2142 = vpop.xlane.xlu0 %2141
        %v2143 = vmax.f32 %v2072, %v2073
        %2144 = vmax.xlane.f32.xlu0 %v2143
        %v2145 = vpop.xlane.xlu0 %2144
        %v2146 = vmax.f32 %v2074, %v2075
        %2147 = vmax.xlane.f32.xlu0 %v2146
        %v2148 = vpop.xlane.xlu0 %2147
        %v2149 = vmax.f32 %v2076, %v2077
        %2150 = vmax.xlane.f32.xlu0 %v2149
        %v2151 = vpop.xlane.xlu0 %2150
        %v2152 = vmax.f32 %v2078, %v2079
        %2153 = vmax.xlane.f32.xlu0 %v2152
        %v2154 = vpop.xlane.xlu0 %2153
        %v2155 = vmax.f32 %v2080, %v2081
        %2156 = vmax.xlane.f32.xlu0 %v2155
        %v2157 = vpop.xlane.xlu0 %2156
        %v2158 = vmax.f32 %v2082, %v2083
        %2159 = vmax.xlane.f32.xlu0 %v2158
        %v2160 = vpop.xlane.xlu0 %2159
        %v2161 = vmax.f32 %v2084, %v2085
        %2162 = vmax.xlane.f32.xlu0 %v2161
        %v2163 = vpop.xlane.xlu0 %2162
        %v2164 = vmax.f32 %v2086, %v2087
        %2165 = vmax.xlane.f32.xlu0 %v2164
        %v2166 = vpop.xlane.xlu0 %2165
        %v2167 = vmax.f32 %v2088, %v2089
        %2168 = vmax.xlane.f32.xlu0 %v2167
        %v2169 = vpop.xlane.xlu0 %2168
        %v2170 = vmax.f32 %v2090, %v2091
        %2171 = vmax.xlane.f32.xlu0 %v2170
        %v2172 = vpop.xlane.xlu0 %2171
        %v2173 = vmax.f32 %v2092, %v2093
        %2174 = vmax.xlane.f32.xlu0 %v2173
        %v2175 = vpop.xlane.xlu0 %2174
        %v2176 = vmax.f32 %v2094, %v2095
        %2177 = vmax.xlane.f32.xlu0 %v2176
        %v2178 = vpop.xlane.xlu0 %2177
        %v2179 = vmax.f32 %v2096, %v2097
        %2180 = vmax.xlane.f32.xlu0 %v2179
        %v2181 = vpop.xlane.xlu0 %2180
        %v2182 = vmax.f32 %v2098, %v2099
        %2183 = vmax.xlane.f32.xlu0 %v2182
        %v2184 = vpop.xlane.xlu0 %2183
        %v2185 = vmax.f32 %v2100, %v2101
        %2186 = vmax.xlane.f32.xlu0 %v2185
        %v2187 = vpop.xlane.xlu0 %2186
        %v2188 = vmax.f32 %v2102, %v2103
        %2189 = vmax.xlane.f32.xlu0 %v2188
        %v2190 = vpop.xlane.xlu0 %2189
        %v2191 = vmax.f32 %v2104, %v2105
        %2192 = vmax.xlane.f32.xlu0 %v2191
        %v2193 = vpop.xlane.xlu0 %2192
        %v2194 = vmax.f32 %v2106, %v2107
        %2195 = vmax.xlane.f32.xlu0 %v2194
        %v2196 = vpop.xlane.xlu0 %2195
        %v2197 = vmax.f32 %v2108, %v2109
        %2198 = vmax.xlane.f32.xlu0 %v2197
        %v2199 = vpop.xlane.xlu0 %2198
        %v2200 = vmax.f32 %v2110, %v2111
        %2201 = vmax.xlane.f32.xlu0 %v2200
        %v2202 = vpop.xlane.xlu0 %2201
        %v2203 = vmax.f32 %v2112, %v2113
        %2204 = vmax.xlane.f32.xlu0 %v2203
        %v2205 = vpop.xlane.xlu0 %2204
        %v2206 = vmax.f32 %v2114, %v2115
        %2207 = vmax.xlane.f32.xlu0 %v2206
        %v2208 = vpop.xlane.xlu0 %2207
        %v2209 = vmax.f32 %v2116, %v2117
        %2210 = vmax.xlane.f32.xlu0 %v2209
        %v2211 = vpop.xlane.xlu0 %2210
        %v2212 = vmax.f32 %v2118, %v2119
        %2213 = vmax.xlane.f32.xlu0 %v2212
        %v2214 = vpop.xlane.xlu0 %2213
        %v2215 = vmax.f32 %v2120, %v2121
        %2216 = vmax.xlane.f32.xlu0 %v2215
        %v2217 = vpop.xlane.xlu0 %2216
        %vm2218 = vcmp.eq.f32.partialorder %v2058, %v2124
        %vm2219 = vcmp.eq.f32.partialorder %v2059, %v2124
        %vm2220 = vcmp.eq.f32.partialorder %v2060, %v2127
        %vm2221 = vcmp.eq.f32.partialorder %v2061, %v2127
        %vm2222 = vcmp.eq.f32.partialorder %v2062, %v2130
        %vm2223 = vcmp.eq.f32.partialorder %v2063, %v2130
        %vm2224 = vcmp.eq.f32.partialorder %v2064, %v2133
        %vm2225 = vcmp.eq.f32.partialorder %v2065, %v2133
        %vm2226 = vcmp.eq.f32.partialorder %v2066, %v2136
        %vm2227 = vcmp.eq.f32.partialorder %v2067, %v2136
        %vm2228 = vcmp.eq.f32.partialorder %v2068, %v2139
        %vm2229 = vcmp.eq.f32.partialorder %v2069, %v2139
        %vm2230 = vcmp.eq.f32.partialorder %v2070, %v2142
        %vm2231 = vcmp.eq.f32.partialorder %v2071, %v2142
        %vm2232 = vcmp.eq.f32.partialorder %v2072, %v2145
        %vm2233 = vcmp.eq.f32.partialorder %v2073, %v2145
        %vm2234 = vcmp.eq.f32.partialorder %v2074, %v2148
        %vm2235 = vcmp.eq.f32.partialorder %v2075, %v2148
        %vm2236 = vcmp.eq.f32.partialorder %v2076, %v2151
        %vm2237 = vcmp.eq.f32.partialorder %v2077, %v2151
        %vm2238 = vcmp.eq.f32.partialorder %v2078, %v2154
        %vm2239 = vcmp.eq.f32.partialorder %v2079, %v2154
        %vm2240 = vcmp.eq.f32.partialorder %v2080, %v2157
        %vm2241 = vcmp.eq.f32.partialorder %v2081, %v2157
        %vm2242 = vcmp.eq.f32.partialorder %v2082, %v2160
        %vm2243 = vcmp.eq.f32.partialorder %v2083, %v2160
        %vm2244 = vcmp.eq.f32.partialorder %v2084, %v2163
        %vm2245 = vcmp.eq.f32.partialorder %v2085, %v2163
        %vm2246 = vcmp.eq.f32.partialorder %v2086, %v2166
        %vm2247 = vcmp.eq.f32.partialorder %v2087, %v2166
        %vm2248 = vcmp.eq.f32.partialorder %v2088, %v2169
        %vm2249 = vcmp.eq.f32.partialorder %v2089, %v2169
        %vm2250 = vcmp.eq.f32.partialorder %v2090, %v2172
        %vm2251 = vcmp.eq.f32.partialorder %v2091, %v2172
        %vm2252 = vcmp.eq.f32.partialorder %v2092, %v2175
        %vm2253 = vcmp.eq.f32.partialorder %v2093, %v2175
        %vm2254 = vcmp.eq.f32.partialorder %v2094, %v2178
        %vm2255 = vcmp.eq.f32.partialorder %v2095, %v2178
        %vm2256 = vcmp.eq.f32.partialorder %v2096, %v2181
        %vm2257 = vcmp.eq.f32.partialorder %v2097, %v2181
        %vm2258 = vcmp.eq.f32.partialorder %v2098, %v2184
        %vm2259 = vcmp.eq.f32.partialorder %v2099, %v2184
        %vm2260 = vcmp.eq.f32.partialorder %v2100, %v2187
        %vm2261 = vcmp.eq.f32.partialorder %v2101, %v2187
        %vm2262 = vcmp.eq.f32.partialorder %v2102, %v2190
        %vm2263 = vcmp.eq.f32.partialorder %v2103, %v2190
        %vm2264 = vcmp.eq.f32.partialorder %v2104, %v2193
        %vm2265 = vcmp.eq.f32.partialorder %v2105, %v2193
        %vm2266 = vcmp.eq.f32.partialorder %v2106, %v2196
        %vm2267 = vcmp.eq.f32.partialorder %v2107, %v2196
        %vm2268 = vcmp.eq.f32.partialorder %v2108, %v2199
        %vm2269 = vcmp.eq.f32.partialorder %v2109, %v2199
        %vm2270 = vcmp.eq.f32.partialorder %v2110, %v2202
        %vm2271 = vcmp.eq.f32.partialorder %v2111, %v2202
        %vm2272 = vcmp.eq.f32.partialorder %v2112, %v2205
        %vm2273 = vcmp.eq.f32.partialorder %v2113, %v2205
        %vm2274 = vcmp.eq.f32.partialorder %v2114, %v2208
        %vm2275 = vcmp.eq.f32.partialorder %v2115, %v2208
        %vm2276 = vcmp.eq.f32.partialorder %v2116, %v2211
        %vm2277 = vcmp.eq.f32.partialorder %v2117, %v2211
        %vm2278 = vcmp.eq.f32.partialorder %v2118, %v2214
        %vm2279 = vcmp.eq.f32.partialorder %v2119, %v2214
        %vm2280 = vcmp.eq.f32.partialorder %v2120, %v2217
        %vm2281 = vcmp.eq.f32.partialorder %v2121, %v2217
        %v2282 = vsel %vm2218, -inf, %v2058
        %v2283 = vsel %vm2219, -inf, %v2059
        %v2284 = vsel %vm2220, -inf, %v2060
        %v2285 = vsel %vm2221, -inf, %v2061
        %v2286 = vsel %vm2222, -inf, %v2062
        %v2287 = vsel %vm2223, -inf, %v2063
        %v2288 = vsel %vm2224, -inf, %v2064
        %v2289 = vsel %vm2225, -inf, %v2065
        %v2290 = vsel %vm2226, -inf, %v2066
        %v2291 = vsel %vm2227, -inf, %v2067
        %v2292 = vsel %vm2228, -inf, %v2068
        %v2293 = vsel %vm2229, -inf, %v2069
        %v2294 = vsel %vm2230, -inf, %v2070
        %v2295 = vsel %vm2231, -inf, %v2071
        %v2296 = vsel %vm2232, -inf, %v2072
        %v2297 = vsel %vm2233, -inf, %v2073
        %v2298 = vsel %vm2234, -inf, %v2074
        %v2299 = vsel %vm2235, -inf, %v2075
        %v2300 = vsel %vm2236, -inf, %v2076
        %v2301 = vsel %vm2237, -inf, %v2077
        %v2302 = vsel %vm2238, -inf, %v2078
        %v2303 = vsel %vm2239, -inf, %v2079
        %v2304 = vsel %vm2240, -inf, %v2080
        %v2305 = vsel %vm2241, -inf, %v2081
        %v2306 = vsel %vm2242, -inf, %v2082
        %v2307 = vsel %vm2243, -inf, %v2083
        %v2308 = vsel %vm2244, -inf, %v2084
        %v2309 = vsel %vm2245, -inf, %v2085
        %v2310 = vsel %vm2246, -inf, %v2086
        %v2311 = vsel %vm2247, -inf, %v2087
        %v2312 = vsel %vm2248, -inf, %v2088
        %v2313 = vsel %vm2249, -inf, %v2089
        %v2314 = vsel %vm2250, -inf, %v2090
        %v2315 = vsel %vm2251, -inf, %v2091
        %v2316 = vsel %vm2252, -inf, %v2092
        %v2317 = vsel %vm2253, -inf, %v2093
        %v2318 = vsel %vm2254, -inf, %v2094
        %v2319 = vsel %vm2255, -inf, %v2095
        %v2320 = vsel %vm2256, -inf, %v2096
        %v2321 = vsel %vm2257, -inf, %v2097
        %v2322 = vsel %vm2258, -inf, %v2098
        %v2323 = vsel %vm2259, -inf, %v2099
        %v2324 = vsel %vm2260, -inf, %v2100
        %v2325 = vsel %vm2261, -inf, %v2101
        %v2326 = vsel %vm2262, -inf, %v2102
        %v2327 = vsel %vm2263, -inf, %v2103
        %v2328 = vsel %vm2264, -inf, %v2104
        %v2329 = vsel %vm2265, -inf, %v2105
        %v2330 = vsel %vm2266, -inf, %v2106
        %v2331 = vsel %vm2267, -inf, %v2107
        %v2332 = vsel %vm2268, -inf, %v2108
        %v2333 = vsel %vm2269, -inf, %v2109
        %v2334 = vsel %vm2270, -inf, %v2110
        %v2335 = vsel %vm2271, -inf, %v2111
        %v2336 = vsel %vm2272, -inf, %v2112
        %v2337 = vsel %vm2273, -inf, %v2113
        %v2338 = vsel %vm2274, -inf, %v2114
        %v2339 = vsel %vm2275, -inf, %v2115
        %v2340 = vsel %vm2276, -inf, %v2116
        %v2341 = vsel %vm2277, -inf, %v2117
        %v2342 = vsel %vm2278, -inf, %v2118
        %v2343 = vsel %vm2279, -inf, %v2119
        %v2344 = vsel %vm2280, -inf, %v2120
        %v2345 = vsel %vm2281, -inf, %v2121
        %v2346 = vmax.f32 %v2282, %v2283
        %2347 = vmax.xlane.f32.xlu0 %v2346
        %v2348 = vpop.xlane.xlu0 %2347
        %v2349 = vmax.f32 %v2284, %v2285
        %2350 = vmax.xlane.f32.xlu0 %v2349
        %v2351 = vpop.xlane.xlu0 %2350
        %v2352 = vmax.f32 %v2286, %v2287
        %2353 = vmax.xlane.f32.xlu0 %v2352
        %v2354 = vpop.xlane.xlu0 %2353
        %v2355 = vmax.f32 %v2288, %v2289
        %2356 = vmax.xlane.f32.xlu0 %v2355
        %v2357 = vpop.xlane.xlu0 %2356
        %v2358 = vmax.f32 %v2290, %v2291
        %2359 = vmax.xlane.f32.xlu0 %v2358
        %v2360 = vpop.xlane.xlu0 %2359
        %v2361 = vmax.f32 %v2292, %v2293
        %2362 = vmax.xlane.f32.xlu0 %v2361
        %v2363 = vpop.xlane.xlu0 %2362
        %v2364 = vmax.f32 %v2294, %v2295
        %2365 = vmax.xlane.f32.xlu0 %v2364
        %v2366 = vpop.xlane.xlu0 %2365
        %v2367 = vmax.f32 %v2296, %v2297
        %2368 = vmax.xlane.f32.xlu0 %v2367
        %v2369 = vpop.xlane.xlu0 %2368
        %v2370 = vmax.f32 %v2298, %v2299
        %2371 = vmax.xlane.f32.xlu0 %v2370
        %v2372 = vpop.xlane.xlu0 %2371
        %v2373 = vmax.f32 %v2300, %v2301
        %2374 = vmax.xlane.f32.xlu0 %v2373
        %v2375 = vpop.xlane.xlu0 %2374
        %v2376 = vmax.f32 %v2302, %v2303
        %2377 = vmax.xlane.f32.xlu0 %v2376
        %v2378 = vpop.xlane.xlu0 %2377
        %v2379 = vmax.f32 %v2304, %v2305
        %2380 = vmax.xlane.f32.xlu0 %v2379
        %v2381 = vpop.xlane.xlu0 %2380
        %v2382 = vmax.f32 %v2306, %v2307
        %2383 = vmax.xlane.f32.xlu0 %v2382
        %v2384 = vpop.xlane.xlu0 %2383
        %v2385 = vmax.f32 %v2308, %v2309
        %2386 = vmax.xlane.f32.xlu0 %v2385
        %v2387 = vpop.xlane.xlu0 %2386
        %v2388 = vmax.f32 %v2310, %v2311
        %2389 = vmax.xlane.f32.xlu0 %v2388
        %v2390 = vpop.xlane.xlu0 %2389
        %v2391 = vmax.f32 %v2312, %v2313
        %2392 = vmax.xlane.f32.xlu0 %v2391
        %v2393 = vpop.xlane.xlu0 %2392
        %v2394 = vmax.f32 %v2314, %v2315
        %2395 = vmax.xlane.f32.xlu0 %v2394
        %v2396 = vpop.xlane.xlu0 %2395
        %v2397 = vmax.f32 %v2316, %v2317
        %2398 = vmax.xlane.f32.xlu0 %v2397
        %v2399 = vpop.xlane.xlu0 %2398
        %v2400 = vmax.f32 %v2318, %v2319
        %2401 = vmax.xlane.f32.xlu0 %v2400
        %v2402 = vpop.xlane.xlu0 %2401
        %v2403 = vmax.f32 %v2320, %v2321
        %2404 = vmax.xlane.f32.xlu0 %v2403
        %v2405 = vpop.xlane.xlu0 %2404
        %v2406 = vmax.f32 %v2322, %v2323
        %2407 = vmax.xlane.f32.xlu0 %v2406
        %v2408 = vpop.xlane.xlu0 %2407
        %v2409 = vmax.f32 %v2324, %v2325
        %2410 = vmax.xlane.f32.xlu0 %v2409
        %v2411 = vpop.xlane.xlu0 %2410
        %v2412 = vmax.f32 %v2326, %v2327
        %2413 = vmax.xlane.f32.xlu0 %v2412
        %v2414 = vpop.xlane.xlu0 %2413
        %v2415 = vmax.f32 %v2328, %v2329
        %2416 = vmax.xlane.f32.xlu0 %v2415
        %v2417 = vpop.xlane.xlu0 %2416
        %v2418 = vmax.f32 %v2330, %v2331
        %2419 = vmax.xlane.f32.xlu0 %v2418
        %v2420 = vpop.xlane.xlu0 %2419
        %v2421 = vmax.f32 %v2332, %v2333
        %2422 = vmax.xlane.f32.xlu0 %v2421
        %v2423 = vpop.xlane.xlu0 %2422
        %v2424 = vmax.f32 %v2334, %v2335
        %2425 = vmax.xlane.f32.xlu0 %v2424
        %v2426 = vpop.xlane.xlu0 %2425
        %v2427 = vmax.f32 %v2336, %v2337
        %2428 = vmax.xlane.f32.xlu0 %v2427
        %v2429 = vpop.xlane.xlu0 %2428
        %v2430 = vmax.f32 %v2338, %v2339
        %2431 = vmax.xlane.f32.xlu0 %v2430
        %v2432 = vpop.xlane.xlu0 %2431
        %v2433 = vmax.f32 %v2340, %v2341
        %2434 = vmax.xlane.f32.xlu0 %v2433
        %v2435 = vpop.xlane.xlu0 %2434
        %v2436 = vmax.f32 %v2342, %v2343
        %2437 = vmax.xlane.f32.xlu0 %v2436
        %v2438 = vpop.xlane.xlu0 %2437
        %v2439 = vmax.f32 %v2344, %v2345
        %2440 = vmax.xlane.f32.xlu0 %v2439
        %v2441 = vpop.xlane.xlu0 %2440
        %vm2442 = vcmp.eq.f32.partialorder %v2282, %v2348
        %vm2443 = vcmp.eq.f32.partialorder %v2283, %v2348
        %vm2444 = vcmp.eq.f32.partialorder %v2284, %v2351
        %vm2445 = vcmp.eq.f32.partialorder %v2285, %v2351
        %vm2446 = vcmp.eq.f32.partialorder %v2286, %v2354
        %vm2447 = vcmp.eq.f32.partialorder %v2287, %v2354
        %vm2448 = vcmp.eq.f32.partialorder %v2288, %v2357
        %vm2449 = vcmp.eq.f32.partialorder %v2289, %v2357
        %vm2450 = vcmp.eq.f32.partialorder %v2290, %v2360
        %vm2451 = vcmp.eq.f32.partialorder %v2291, %v2360
        %vm2452 = vcmp.eq.f32.partialorder %v2292, %v2363
        %vm2453 = vcmp.eq.f32.partialorder %v2293, %v2363
        %vm2454 = vcmp.eq.f32.partialorder %v2294, %v2366
        %vm2455 = vcmp.eq.f32.partialorder %v2295, %v2366
        %vm2456 = vcmp.eq.f32.partialorder %v2296, %v2369
        %vm2457 = vcmp.eq.f32.partialorder %v2297, %v2369
        %vm2458 = vcmp.eq.f32.partialorder %v2298, %v2372
        %vm2459 = vcmp.eq.f32.partialorder %v2299, %v2372
        %vm2460 = vcmp.eq.f32.partialorder %v2300, %v2375
        %vm2461 = vcmp.eq.f32.partialorder %v2301, %v2375
        %vm2462 = vcmp.eq.f32.partialorder %v2302, %v2378
        %vm2463 = vcmp.eq.f32.partialorder %v2303, %v2378
        %vm2464 = vcmp.eq.f32.partialorder %v2304, %v2381
        %vm2465 = vcmp.eq.f32.partialorder %v2305, %v2381
        %vm2466 = vcmp.eq.f32.partialorder %v2306, %v2384
        %vm2467 = vcmp.eq.f32.partialorder %v2307, %v2384
        %vm2468 = vcmp.eq.f32.partialorder %v2308, %v2387
        %vm2469 = vcmp.eq.f32.partialorder %v2309, %v2387
        %vm2470 = vcmp.eq.f32.partialorder %v2310, %v2390
        %vm2471 = vcmp.eq.f32.partialorder %v2311, %v2390
        %vm2472 = vcmp.eq.f32.partialorder %v2312, %v2393
        %vm2473 = vcmp.eq.f32.partialorder %v2313, %v2393
        %vm2474 = vcmp.eq.f32.partialorder %v2314, %v2396
        %vm2475 = vcmp.eq.f32.partialorder %v2315, %v2396
        %vm2476 = vcmp.eq.f32.partialorder %v2316, %v2399
        %vm2477 = vcmp.eq.f32.partialorder %v2317, %v2399
        %vm2478 = vcmp.eq.f32.partialorder %v2318, %v2402
        %vm2479 = vcmp.eq.f32.partialorder %v2319, %v2402
        %vm2480 = vcmp.eq.f32.partialorder %v2320, %v2405
        %vm2481 = vcmp.eq.f32.partialorder %v2321, %v2405
        %vm2482 = vcmp.eq.f32.partialorder %v2322, %v2408
        %vm2483 = vcmp.eq.f32.partialorder %v2323, %v2408
        %vm2484 = vcmp.eq.f32.partialorder %v2324, %v2411
        %vm2485 = vcmp.eq.f32.partialorder %v2325, %v2411
        %vm2486 = vcmp.eq.f32.partialorder %v2326, %v2414
        %vm2487 = vcmp.eq.f32.partialorder %v2327, %v2414
        %vm2488 = vcmp.eq.f32.partialorder %v2328, %v2417
        %vm2489 = vcmp.eq.f32.partialorder %v2329, %v2417
        %vm2490 = vcmp.eq.f32.partialorder %v2330, %v2420
        %vm2491 = vcmp.eq.f32.partialorder %v2331, %v2420
        %vm2492 = vcmp.eq.f32.partialorder %v2332, %v2423
        %vm2493 = vcmp.eq.f32.partialorder %v2333, %v2423
        %vm2494 = vcmp.eq.f32.partialorder %v2334, %v2426
        %vm2495 = vcmp.eq.f32.partialorder %v2335, %v2426
        %vm2496 = vcmp.eq.f32.partialorder %v2336, %v2429
        %vm2497 = vcmp.eq.f32.partialorder %v2337, %v2429
        %vm2498 = vcmp.eq.f32.partialorder %v2338, %v2432
        %vm2499 = vcmp.eq.f32.partialorder %v2339, %v2432
        %vm2500 = vcmp.eq.f32.partialorder %v2340, %v2435
        %vm2501 = vcmp.eq.f32.partialorder %v2341, %v2435
        %vm2502 = vcmp.eq.f32.partialorder %v2342, %v2438
        %vm2503 = vcmp.eq.f32.partialorder %v2343, %v2438
        %vm2504 = vcmp.eq.f32.partialorder %v2344, %v2441
        %vm2505 = vcmp.eq.f32.partialorder %v2345, %v2441
        %v2506 = vsel %vm2442, -inf, %v2282
        %v2507 = vsel %vm2443, -inf, %v2283
        %v2508 = vsel %vm2444, -inf, %v2284
        %v2509 = vsel %vm2445, -inf, %v2285
        %v2510 = vsel %vm2446, -inf, %v2286
        %v2511 = vsel %vm2447, -inf, %v2287
        %v2512 = vsel %vm2448, -inf, %v2288
        %v2513 = vsel %vm2449, -inf, %v2289
        %v2514 = vsel %vm2450, -inf, %v2290
        %v2515 = vsel %vm2451, -inf, %v2291
        %v2516 = vsel %vm2452, -inf, %v2292
        %v2517 = vsel %vm2453, -inf, %v2293
        %v2518 = vsel %vm2454, -inf, %v2294
        %v2519 = vsel %vm2455, -inf, %v2295
        %v2520 = vsel %vm2456, -inf, %v2296
        %v2521 = vsel %vm2457, -inf, %v2297
        %v2522 = vsel %vm2458, -inf, %v2298
        %v2523 = vsel %vm2459, -inf, %v2299
        %v2524 = vsel %vm2460, -inf, %v2300
        %v2525 = vsel %vm2461, -inf, %v2301
        %v2526 = vsel %vm2462, -inf, %v2302
        %v2527 = vsel %vm2463, -inf, %v2303
        %v2528 = vsel %vm2464, -inf, %v2304
        %v2529 = vsel %vm2465, -inf, %v2305
        %v2530 = vsel %vm2466, -inf, %v2306
        %v2531 = vsel %vm2467, -inf, %v2307
        %v2532 = vsel %vm2468, -inf, %v2308
        %v2533 = vsel %vm2469, -inf, %v2309
        %v2534 = vsel %vm2470, -inf, %v2310
        %v2535 = vsel %vm2471, -inf, %v2311
        %v2536 = vsel %vm2472, -inf, %v2312
        %v2537 = vsel %vm2473, -inf, %v2313
        %v2538 = vsel %vm2474, -inf, %v2314
        %v2539 = vsel %vm2475, -inf, %v2315
        %v2540 = vsel %vm2476, -inf, %v2316
        %v2541 = vsel %vm2477, -inf, %v2317
        %v2542 = vsel %vm2478, -inf, %v2318
        %v2543 = vsel %vm2479, -inf, %v2319
        %v2544 = vsel %vm2480, -inf, %v2320
        %v2545 = vsel %vm2481, -inf, %v2321
        %v2546 = vsel %vm2482, -inf, %v2322
        %v2547 = vsel %vm2483, -inf, %v2323
        %v2548 = vsel %vm2484, -inf, %v2324
        %v2549 = vsel %vm2485, -inf, %v2325
        %v2550 = vsel %vm2486, -inf, %v2326
        %v2551 = vsel %vm2487, -inf, %v2327
        %v2552 = vsel %vm2488, -inf, %v2328
        %v2553 = vsel %vm2489, -inf, %v2329
        %v2554 = vsel %vm2490, -inf, %v2330
        %v2555 = vsel %vm2491, -inf, %v2331
        %v2556 = vsel %vm2492, -inf, %v2332
        %v2557 = vsel %vm2493, -inf, %v2333
        %v2558 = vsel %vm2494, -inf, %v2334
        %v2559 = vsel %vm2495, -inf, %v2335
        %v2560 = vsel %vm2496, -inf, %v2336
        %v2561 = vsel %vm2497, -inf, %v2337
        %v2562 = vsel %vm2498, -inf, %v2338
        %v2563 = vsel %vm2499, -inf, %v2339
        %v2564 = vsel %vm2500, -inf, %v2340
        %v2565 = vsel %vm2501, -inf, %v2341
        %v2566 = vsel %vm2502, -inf, %v2342
        %v2567 = vsel %vm2503, -inf, %v2343
        %v2568 = vsel %vm2504, -inf, %v2344
        %v2569 = vsel %vm2505, -inf, %v2345
        %v2570 = vmax.f32 %v2506, %v2507
        %2571 = vmax.xlane.f32.xlu0 %v2570
        %v2572 = vpop.xlane.xlu0 %2571
        %v2573 = vmax.f32 %v2508, %v2509
        %2574 = vmax.xlane.f32.xlu0 %v2573
        %v2575 = vpop.xlane.xlu0 %2574
        %v2576 = vmax.f32 %v2510, %v2511
        %2577 = vmax.xlane.f32.xlu0 %v2576
        %v2578 = vpop.xlane.xlu0 %2577
        %v2579 = vmax.f32 %v2512, %v2513
        %2580 = vmax.xlane.f32.xlu0 %v2579
        %v2581 = vpop.xlane.xlu0 %2580
        %v2582 = vmax.f32 %v2514, %v2515
        %2583 = vmax.xlane.f32.xlu0 %v2582
        %v2584 = vpop.xlane.xlu0 %2583
        %v2585 = vmax.f32 %v2516, %v2517
        %2586 = vmax.xlane.f32.xlu0 %v2585
        %v2587 = vpop.xlane.xlu0 %2586
        %v2588 = vmax.f32 %v2518, %v2519
        %2589 = vmax.xlane.f32.xlu0 %v2588
        %v2590 = vpop.xlane.xlu0 %2589
        %v2591 = vmax.f32 %v2520, %v2521
        %2592 = vmax.xlane.f32.xlu0 %v2591
        %v2593 = vpop.xlane.xlu0 %2592
        %v2594 = vmax.f32 %v2522, %v2523
        %2595 = vmax.xlane.f32.xlu0 %v2594
        %v2596 = vpop.xlane.xlu0 %2595
        %v2597 = vmax.f32 %v2524, %v2525
        %2598 = vmax.xlane.f32.xlu0 %v2597
        %v2599 = vpop.xlane.xlu0 %2598
        %v2600 = vmax.f32 %v2526, %v2527
        %2601 = vmax.xlane.f32.xlu0 %v2600
        %v2602 = vpop.xlane.xlu0 %2601
        %v2603 = vmax.f32 %v2528, %v2529
        %2604 = vmax.xlane.f32.xlu0 %v2603
        %v2605 = vpop.xlane.xlu0 %2604
        %v2606 = vmax.f32 %v2530, %v2531
        %2607 = vmax.xlane.f32.xlu0 %v2606
        %v2608 = vpop.xlane.xlu0 %2607
        %v2609 = vmax.f32 %v2532, %v2533
        %2610 = vmax.xlane.f32.xlu0 %v2609
        %v2611 = vpop.xlane.xlu0 %2610
        %v2612 = vmax.f32 %v2534, %v2535
        %2613 = vmax.xlane.f32.xlu0 %v2612
        %v2614 = vpop.xlane.xlu0 %2613
        %v2615 = vmax.f32 %v2536, %v2537
        %2616 = vmax.xlane.f32.xlu0 %v2615
        %v2617 = vpop.xlane.xlu0 %2616
        %v2618 = vmax.f32 %v2538, %v2539
        %2619 = vmax.xlane.f32.xlu0 %v2618
        %v2620 = vpop.xlane.xlu0 %2619
        %v2621 = vmax.f32 %v2540, %v2541
        %2622 = vmax.xlane.f32.xlu0 %v2621
        %v2623 = vpop.xlane.xlu0 %2622
        %v2624 = vmax.f32 %v2542, %v2543
        %2625 = vmax.xlane.f32.xlu0 %v2624
        %v2626 = vpop.xlane.xlu0 %2625
        %v2627 = vmax.f32 %v2544, %v2545
        %2628 = vmax.xlane.f32.xlu0 %v2627
        %v2629 = vpop.xlane.xlu0 %2628
        %v2630 = vmax.f32 %v2546, %v2547
        %2631 = vmax.xlane.f32.xlu0 %v2630
        %v2632 = vpop.xlane.xlu0 %2631
        %v2633 = vmax.f32 %v2548, %v2549
        %2634 = vmax.xlane.f32.xlu0 %v2633
        %v2635 = vpop.xlane.xlu0 %2634
        %v2636 = vmax.f32 %v2550, %v2551
        %2637 = vmax.xlane.f32.xlu0 %v2636
        %v2638 = vpop.xlane.xlu0 %2637
        %v2639 = vmax.f32 %v2552, %v2553
        %2640 = vmax.xlane.f32.xlu0 %v2639
        %v2641 = vpop.xlane.xlu0 %2640
        %v2642 = vmax.f32 %v2554, %v2555
        %2643 = vmax.xlane.f32.xlu0 %v2642
        %v2644 = vpop.xlane.xlu0 %2643
        %v2645 = vmax.f32 %v2556, %v2557
        %2646 = vmax.xlane.f32.xlu0 %v2645
        %v2647 = vpop.xlane.xlu0 %2646
        %v2648 = vmax.f32 %v2558, %v2559
        %2649 = vmax.xlane.f32.xlu0 %v2648
        %v2650 = vpop.xlane.xlu0 %2649
        %v2651 = vmax.f32 %v2560, %v2561
        %2652 = vmax.xlane.f32.xlu0 %v2651
        %v2653 = vpop.xlane.xlu0 %2652
        %v2654 = vmax.f32 %v2562, %v2563
        %2655 = vmax.xlane.f32.xlu0 %v2654
        %v2656 = vpop.xlane.xlu0 %2655
        %v2657 = vmax.f32 %v2564, %v2565
        %2658 = vmax.xlane.f32.xlu0 %v2657
        %v2659 = vpop.xlane.xlu0 %2658
        %v2660 = vmax.f32 %v2566, %v2567
        %2661 = vmax.xlane.f32.xlu0 %v2660
        %v2662 = vpop.xlane.xlu0 %2661
        %v2663 = vmax.f32 %v2568, %v2569
        %2664 = vmax.xlane.f32.xlu0 %v2663
        %v2665 = vpop.xlane.xlu0 %2664
        %vm2666 = vcmp.eq.f32.partialorder %v2506, %v2572
        %vm2667 = vcmp.eq.f32.partialorder %v2507, %v2572
        %vm2668 = vcmp.eq.f32.partialorder %v2508, %v2575
        %vm2669 = vcmp.eq.f32.partialorder %v2509, %v2575
        %vm2670 = vcmp.eq.f32.partialorder %v2510, %v2578
        %vm2671 = vcmp.eq.f32.partialorder %v2511, %v2578
        %vm2672 = vcmp.eq.f32.partialorder %v2512, %v2581
        %vm2673 = vcmp.eq.f32.partialorder %v2513, %v2581
        %vm2674 = vcmp.eq.f32.partialorder %v2514, %v2584
        %vm2675 = vcmp.eq.f32.partialorder %v2515, %v2584
        %vm2676 = vcmp.eq.f32.partialorder %v2516, %v2587
        %vm2677 = vcmp.eq.f32.partialorder %v2517, %v2587
        %vm2678 = vcmp.eq.f32.partialorder %v2518, %v2590
        %vm2679 = vcmp.eq.f32.partialorder %v2519, %v2590
        %vm2680 = vcmp.eq.f32.partialorder %v2520, %v2593
        %vm2681 = vcmp.eq.f32.partialorder %v2521, %v2593
        %vm2682 = vcmp.eq.f32.partialorder %v2522, %v2596
        %vm2683 = vcmp.eq.f32.partialorder %v2523, %v2596
        %vm2684 = vcmp.eq.f32.partialorder %v2524, %v2599
        %vm2685 = vcmp.eq.f32.partialorder %v2525, %v2599
        %vm2686 = vcmp.eq.f32.partialorder %v2526, %v2602
        %vm2687 = vcmp.eq.f32.partialorder %v2527, %v2602
        %vm2688 = vcmp.eq.f32.partialorder %v2528, %v2605
        %vm2689 = vcmp.eq.f32.partialorder %v2529, %v2605
        %vm2690 = vcmp.eq.f32.partialorder %v2530, %v2608
        %vm2691 = vcmp.eq.f32.partialorder %v2531, %v2608
        %vm2692 = vcmp.eq.f32.partialorder %v2532, %v2611
        %vm2693 = vcmp.eq.f32.partialorder %v2533, %v2611
        %vm2694 = vcmp.eq.f32.partialorder %v2534, %v2614
        %vm2695 = vcmp.eq.f32.partialorder %v2535, %v2614
        %vm2696 = vcmp.eq.f32.partialorder %v2536, %v2617
        %vm2697 = vcmp.eq.f32.partialorder %v2537, %v2617
        %vm2698 = vcmp.eq.f32.partialorder %v2538, %v2620
        %vm2699 = vcmp.eq.f32.partialorder %v2539, %v2620
        %vm2700 = vcmp.eq.f32.partialorder %v2540, %v2623
        %vm2701 = vcmp.eq.f32.partialorder %v2541, %v2623
        %vm2702 = vcmp.eq.f32.partialorder %v2542, %v2626
        %vm2703 = vcmp.eq.f32.partialorder %v2543, %v2626
        %vm2704 = vcmp.eq.f32.partialorder %v2544, %v2629
        %vm2705 = vcmp.eq.f32.partialorder %v2545, %v2629
        %vm2706 = vcmp.eq.f32.partialorder %v2546, %v2632
        %vm2707 = vcmp.eq.f32.partialorder %v2547, %v2632
        %vm2708 = vcmp.eq.f32.partialorder %v2548, %v2635
        %vm2709 = vcmp.eq.f32.partialorder %v2549, %v2635
        %vm2710 = vcmp.eq.f32.partialorder %v2550, %v2638
        %vm2711 = vcmp.eq.f32.partialorder %v2551, %v2638
        %vm2712 = vcmp.eq.f32.partialorder %v2552, %v2641
        %vm2713 = vcmp.eq.f32.partialorder %v2553, %v2641
        %vm2714 = vcmp.eq.f32.partialorder %v2554, %v2644
        %vm2715 = vcmp.eq.f32.partialorder %v2555, %v2644
        %vm2716 = vcmp.eq.f32.partialorder %v2556, %v2647
        %vm2717 = vcmp.eq.f32.partialorder %v2557, %v2647
        %vm2718 = vcmp.eq.f32.partialorder %v2558, %v2650
        %vm2719 = vcmp.eq.f32.partialorder %v2559, %v2650
        %vm2720 = vcmp.eq.f32.partialorder %v2560, %v2653
        %vm2721 = vcmp.eq.f32.partialorder %v2561, %v2653
        %vm2722 = vcmp.eq.f32.partialorder %v2562, %v2656
        %vm2723 = vcmp.eq.f32.partialorder %v2563, %v2656
        %vm2724 = vcmp.eq.f32.partialorder %v2564, %v2659
        %vm2725 = vcmp.eq.f32.partialorder %v2565, %v2659
        %vm2726 = vcmp.eq.f32.partialorder %v2566, %v2662
        %vm2727 = vcmp.eq.f32.partialorder %v2567, %v2662
        %vm2728 = vcmp.eq.f32.partialorder %v2568, %v2665
        %vm2729 = vcmp.eq.f32.partialorder %v2569, %v2665
        %v2730 = vsel %vm2666, -inf, %v2506
        %v2731 = vsel %vm2667, -inf, %v2507
        %v2732 = vsel %vm2668, -inf, %v2508
        %v2733 = vsel %vm2669, -inf, %v2509
        %v2734 = vsel %vm2670, -inf, %v2510
        %v2735 = vsel %vm2671, -inf, %v2511
        %v2736 = vsel %vm2672, -inf, %v2512
        %v2737 = vsel %vm2673, -inf, %v2513
        %v2738 = vsel %vm2674, -inf, %v2514
        %v2739 = vsel %vm2675, -inf, %v2515
        %v2740 = vsel %vm2676, -inf, %v2516
        %v2741 = vsel %vm2677, -inf, %v2517
        %v2742 = vsel %vm2678, -inf, %v2518
        %v2743 = vsel %vm2679, -inf, %v2519
        %v2744 = vsel %vm2680, -inf, %v2520
        %v2745 = vsel %vm2681, -inf, %v2521
        %v2746 = vsel %vm2682, -inf, %v2522
        %v2747 = vsel %vm2683, -inf, %v2523
        %v2748 = vsel %vm2684, -inf, %v2524
        %v2749 = vsel %vm2685, -inf, %v2525
        %v2750 = vsel %vm2686, -inf, %v2526
        %v2751 = vsel %vm2687, -inf, %v2527
        %v2752 = vsel %vm2688, -inf, %v2528
        %v2753 = vsel %vm2689, -inf, %v2529
        %v2754 = vsel %vm2690, -inf, %v2530
        %v2755 = vsel %vm2691, -inf, %v2531
        %v2756 = vsel %vm2692, -inf, %v2532
        %v2757 = vsel %vm2693, -inf, %v2533
        %v2758 = vsel %vm2694, -inf, %v2534
        %v2759 = vsel %vm2695, -inf, %v2535
        %v2760 = vsel %vm2696, -inf, %v2536
        %v2761 = vsel %vm2697, -inf, %v2537
        %v2762 = vsel %vm2698, -inf, %v2538
        %v2763 = vsel %vm2699, -inf, %v2539
        %v2764 = vsel %vm2700, -inf, %v2540
        %v2765 = vsel %vm2701, -inf, %v2541
        %v2766 = vsel %vm2702, -inf, %v2542
        %v2767 = vsel %vm2703, -inf, %v2543
        %v2768 = vsel %vm2704, -inf, %v2544
        %v2769 = vsel %vm2705, -inf, %v2545
        %v2770 = vsel %vm2706, -inf, %v2546
        %v2771 = vsel %vm2707, -inf, %v2547
        %v2772 = vsel %vm2708, -inf, %v2548
        %v2773 = vsel %vm2709, -inf, %v2549
        %v2774 = vsel %vm2710, -inf, %v2550
        %v2775 = vsel %vm2711, -inf, %v2551
        %v2776 = vsel %vm2712, -inf, %v2552
        %v2777 = vsel %vm2713, -inf, %v2553
        %v2778 = vsel %vm2714, -inf, %v2554
        %v2779 = vsel %vm2715, -inf, %v2555
        %v2780 = vsel %vm2716, -inf, %v2556
        %v2781 = vsel %vm2717, -inf, %v2557
        %v2782 = vsel %vm2718, -inf, %v2558
        %v2783 = vsel %vm2719, -inf, %v2559
        %v2784 = vsel %vm2720, -inf, %v2560
        %v2785 = vsel %vm2721, -inf, %v2561
        %v2786 = vsel %vm2722, -inf, %v2562
        %v2787 = vsel %vm2723, -inf, %v2563
        %v2788 = vsel %vm2724, -inf, %v2564
        %v2789 = vsel %vm2725, -inf, %v2565
        %v2790 = vsel %vm2726, -inf, %v2566
        %v2791 = vsel %vm2727, -inf, %v2567
        %v2792 = vsel %vm2728, -inf, %v2568
        %v2793 = vsel %vm2729, -inf, %v2569
        %v2794 = vmax.f32 %v2730, %v2731
        %2795 = vmax.xlane.f32.xlu0 %v2794
        %v2796 = vpop.xlane.xlu0 %2795
        %v2797 = vmax.f32 %v2732, %v2733
        %2798 = vmax.xlane.f32.xlu0 %v2797
        %v2799 = vpop.xlane.xlu0 %2798
        %v2800 = vmax.f32 %v2734, %v2735
        %2801 = vmax.xlane.f32.xlu0 %v2800
        %v2802 = vpop.xlane.xlu0 %2801
        %v2803 = vmax.f32 %v2736, %v2737
        %2804 = vmax.xlane.f32.xlu0 %v2803
        %v2805 = vpop.xlane.xlu0 %2804
        %v2806 = vmax.f32 %v2738, %v2739
        %2807 = vmax.xlane.f32.xlu0 %v2806
        %v2808 = vpop.xlane.xlu0 %2807
        %v2809 = vmax.f32 %v2740, %v2741
        %2810 = vmax.xlane.f32.xlu0 %v2809
        %v2811 = vpop.xlane.xlu0 %2810
        %v2812 = vmax.f32 %v2742, %v2743
        %2813 = vmax.xlane.f32.xlu0 %v2812
        %v2814 = vpop.xlane.xlu0 %2813
        %v2815 = vmax.f32 %v2744, %v2745
        %2816 = vmax.xlane.f32.xlu0 %v2815
        %v2817 = vpop.xlane.xlu0 %2816
        %v2818 = vmax.f32 %v2746, %v2747
        %2819 = vmax.xlane.f32.xlu0 %v2818
        %v2820 = vpop.xlane.xlu0 %2819
        %v2821 = vmax.f32 %v2748, %v2749
        %2822 = vmax.xlane.f32.xlu0 %v2821
        %v2823 = vpop.xlane.xlu0 %2822
        %v2824 = vmax.f32 %v2750, %v2751
        %2825 = vmax.xlane.f32.xlu0 %v2824
        %v2826 = vpop.xlane.xlu0 %2825
        %v2827 = vmax.f32 %v2752, %v2753
        %2828 = vmax.xlane.f32.xlu0 %v2827
        %v2829 = vpop.xlane.xlu0 %2828
        %v2830 = vmax.f32 %v2754, %v2755
        %2831 = vmax.xlane.f32.xlu0 %v2830
        %v2832 = vpop.xlane.xlu0 %2831
        %v2833 = vmax.f32 %v2756, %v2757
        %2834 = vmax.xlane.f32.xlu0 %v2833
        %v2835 = vpop.xlane.xlu0 %2834
        %v2836 = vmax.f32 %v2758, %v2759
        %2837 = vmax.xlane.f32.xlu0 %v2836
        %v2838 = vpop.xlane.xlu0 %2837
        %v2839 = vmax.f32 %v2760, %v2761
        %2840 = vmax.xlane.f32.xlu0 %v2839
        %v2841 = vpop.xlane.xlu0 %2840
        %v2842 = vmax.f32 %v2762, %v2763
        %2843 = vmax.xlane.f32.xlu0 %v2842
        %v2844 = vpop.xlane.xlu0 %2843
        %v2845 = vmax.f32 %v2764, %v2765
        %2846 = vmax.xlane.f32.xlu0 %v2845
        %v2847 = vpop.xlane.xlu0 %2846
        %v2848 = vmax.f32 %v2766, %v2767
        %2849 = vmax.xlane.f32.xlu0 %v2848
        %v2850 = vpop.xlane.xlu0 %2849
        %v2851 = vmax.f32 %v2768, %v2769
        %2852 = vmax.xlane.f32.xlu0 %v2851
        %v2853 = vpop.xlane.xlu0 %2852
        %v2854 = vmax.f32 %v2770, %v2771
        %2855 = vmax.xlane.f32.xlu0 %v2854
        %v2856 = vpop.xlane.xlu0 %2855
        %v2857 = vmax.f32 %v2772, %v2773
        %2858 = vmax.xlane.f32.xlu0 %v2857
        %v2859 = vpop.xlane.xlu0 %2858
        %v2860 = vmax.f32 %v2774, %v2775
        %2861 = vmax.xlane.f32.xlu0 %v2860
        %v2862 = vpop.xlane.xlu0 %2861
        %v2863 = vmax.f32 %v2776, %v2777
        %2864 = vmax.xlane.f32.xlu0 %v2863
        %v2865 = vpop.xlane.xlu0 %2864
        %v2866 = vmax.f32 %v2778, %v2779
        %2867 = vmax.xlane.f32.xlu0 %v2866
        %v2868 = vpop.xlane.xlu0 %2867
        %v2869 = vmax.f32 %v2780, %v2781
        %2870 = vmax.xlane.f32.xlu0 %v2869
        %v2871 = vpop.xlane.xlu0 %2870
        %v2872 = vmax.f32 %v2782, %v2783
        %2873 = vmax.xlane.f32.xlu0 %v2872
        %v2874 = vpop.xlane.xlu0 %2873
        %v2875 = vmax.f32 %v2784, %v2785
        %2876 = vmax.xlane.f32.xlu0 %v2875
        %v2877 = vpop.xlane.xlu0 %2876
        %v2878 = vmax.f32 %v2786, %v2787
        %2879 = vmax.xlane.f32.xlu0 %v2878
        %v2880 = vpop.xlane.xlu0 %2879
        %v2881 = vmax.f32 %v2788, %v2789
        %2882 = vmax.xlane.f32.xlu0 %v2881
        %v2883 = vpop.xlane.xlu0 %2882
        %v2884 = vmax.f32 %v2790, %v2791
        %2885 = vmax.xlane.f32.xlu0 %v2884
        %v2886 = vpop.xlane.xlu0 %2885
        %v2887 = vmax.f32 %v2792, %v2793
        %2888 = vmax.xlane.f32.xlu0 %v2887
        %v2889 = vpop.xlane.xlu0 %2888
        %vm2890 = vcmp.eq.f32.partialorder %v2730, %v2796
        %vm2891 = vcmp.eq.f32.partialorder %v2731, %v2796
        %vm2892 = vcmp.eq.f32.partialorder %v2732, %v2799
        %vm2893 = vcmp.eq.f32.partialorder %v2733, %v2799
        %vm2894 = vcmp.eq.f32.partialorder %v2734, %v2802
        %vm2895 = vcmp.eq.f32.partialorder %v2735, %v2802
        %vm2896 = vcmp.eq.f32.partialorder %v2736, %v2805
        %vm2897 = vcmp.eq.f32.partialorder %v2737, %v2805
        %vm2898 = vcmp.eq.f32.partialorder %v2738, %v2808
        %vm2899 = vcmp.eq.f32.partialorder %v2739, %v2808
        %vm2900 = vcmp.eq.f32.partialorder %v2740, %v2811
        %vm2901 = vcmp.eq.f32.partialorder %v2741, %v2811
        %vm2902 = vcmp.eq.f32.partialorder %v2742, %v2814
        %vm2903 = vcmp.eq.f32.partialorder %v2743, %v2814
        %vm2904 = vcmp.eq.f32.partialorder %v2744, %v2817
        %vm2905 = vcmp.eq.f32.partialorder %v2745, %v2817
        %vm2906 = vcmp.eq.f32.partialorder %v2746, %v2820
        %vm2907 = vcmp.eq.f32.partialorder %v2747, %v2820
        %vm2908 = vcmp.eq.f32.partialorder %v2748, %v2823
        %vm2909 = vcmp.eq.f32.partialorder %v2749, %v2823
        %vm2910 = vcmp.eq.f32.partialorder %v2750, %v2826
        %vm2911 = vcmp.eq.f32.partialorder %v2751, %v2826
        %vm2912 = vcmp.eq.f32.partialorder %v2752, %v2829
        %vm2913 = vcmp.eq.f32.partialorder %v2753, %v2829
        %vm2914 = vcmp.eq.f32.partialorder %v2754, %v2832
        %vm2915 = vcmp.eq.f32.partialorder %v2755, %v2832
        %vm2916 = vcmp.eq.f32.partialorder %v2756, %v2835
        %vm2917 = vcmp.eq.f32.partialorder %v2757, %v2835
        %vm2918 = vcmp.eq.f32.partialorder %v2758, %v2838
        %vm2919 = vcmp.eq.f32.partialorder %v2759, %v2838
        %vm2920 = vcmp.eq.f32.partialorder %v2760, %v2841
        %vm2921 = vcmp.eq.f32.partialorder %v2761, %v2841
        %vm2922 = vcmp.eq.f32.partialorder %v2762, %v2844
        %vm2923 = vcmp.eq.f32.partialorder %v2763, %v2844
        %vm2924 = vcmp.eq.f32.partialorder %v2764, %v2847
        %vm2925 = vcmp.eq.f32.partialorder %v2765, %v2847
        %vm2926 = vcmp.eq.f32.partialorder %v2766, %v2850
        %vm2927 = vcmp.eq.f32.partialorder %v2767, %v2850
        %vm2928 = vcmp.eq.f32.partialorder %v2768, %v2853
        %vm2929 = vcmp.eq.f32.partialorder %v2769, %v2853
        %vm2930 = vcmp.eq.f32.partialorder %v2770, %v2856
        %vm2931 = vcmp.eq.f32.partialorder %v2771, %v2856
        %vm2932 = vcmp.eq.f32.partialorder %v2772, %v2859
        %vm2933 = vcmp.eq.f32.partialorder %v2773, %v2859
        %vm2934 = vcmp.eq.f32.partialorder %v2774, %v2862
        %vm2935 = vcmp.eq.f32.partialorder %v2775, %v2862
        %vm2936 = vcmp.eq.f32.partialorder %v2776, %v2865
        %vm2937 = vcmp.eq.f32.partialorder %v2777, %v2865
        %vm2938 = vcmp.eq.f32.partialorder %v2778, %v2868
        %vm2939 = vcmp.eq.f32.partialorder %v2779, %v2868
        %vm2940 = vcmp.eq.f32.partialorder %v2780, %v2871
        %vm2941 = vcmp.eq.f32.partialorder %v2781, %v2871
        %vm2942 = vcmp.eq.f32.partialorder %v2782, %v2874
        %vm2943 = vcmp.eq.f32.partialorder %v2783, %v2874
        %vm2944 = vcmp.eq.f32.partialorder %v2784, %v2877
        %vm2945 = vcmp.eq.f32.partialorder %v2785, %v2877
        %vm2946 = vcmp.eq.f32.partialorder %v2786, %v2880
        %vm2947 = vcmp.eq.f32.partialorder %v2787, %v2880
        %vm2948 = vcmp.eq.f32.partialorder %v2788, %v2883
        %vm2949 = vcmp.eq.f32.partialorder %v2789, %v2883
        %vm2950 = vcmp.eq.f32.partialorder %v2790, %v2886
        %vm2951 = vcmp.eq.f32.partialorder %v2791, %v2886
        %vm2952 = vcmp.eq.f32.partialorder %v2792, %v2889
        %vm2953 = vcmp.eq.f32.partialorder %v2793, %v2889
        %v2954 = vsel %vm2890, -inf, %v2730
        %v2955 = vsel %vm2891, -inf, %v2731
        %v2956 = vsel %vm2892, -inf, %v2732
        %v2957 = vsel %vm2893, -inf, %v2733
        %v2958 = vsel %vm2894, -inf, %v2734
        %v2959 = vsel %vm2895, -inf, %v2735
        %v2960 = vsel %vm2896, -inf, %v2736
        %v2961 = vsel %vm2897, -inf, %v2737
        %v2962 = vsel %vm2898, -inf, %v2738
        %v2963 = vsel %vm2899, -inf, %v2739
        %v2964 = vsel %vm2900, -inf, %v2740
        %v2965 = vsel %vm2901, -inf, %v2741
        %v2966 = vsel %vm2902, -inf, %v2742
        %v2967 = vsel %vm2903, -inf, %v2743
        %v2968 = vsel %vm2904, -inf, %v2744
        %v2969 = vsel %vm2905, -inf, %v2745
        %v2970 = vsel %vm2906, -inf, %v2746
        %v2971 = vsel %vm2907, -inf, %v2747
        %v2972 = vsel %vm2908, -inf, %v2748
        %v2973 = vsel %vm2909, -inf, %v2749
        %v2974 = vsel %vm2910, -inf, %v2750
        %v2975 = vsel %vm2911, -inf, %v2751
        %v2976 = vsel %vm2912, -inf, %v2752
        %v2977 = vsel %vm2913, -inf, %v2753
        %v2978 = vsel %vm2914, -inf, %v2754
        %v2979 = vsel %vm2915, -inf, %v2755
        %v2980 = vsel %vm2916, -inf, %v2756
        %v2981 = vsel %vm2917, -inf, %v2757
        %v2982 = vsel %vm2918, -inf, %v2758
        %v2983 = vsel %vm2919, -inf, %v2759
        %v2984 = vsel %vm2920, -inf, %v2760
        %v2985 = vsel %vm2921, -inf, %v2761
        %v2986 = vsel %vm2922, -inf, %v2762
        %v2987 = vsel %vm2923, -inf, %v2763
        %v2988 = vsel %vm2924, -inf, %v2764
        %v2989 = vsel %vm2925, -inf, %v2765
        %v2990 = vsel %vm2926, -inf, %v2766
        %v2991 = vsel %vm2927, -inf, %v2767
        %v2992 = vsel %vm2928, -inf, %v2768
        %v2993 = vsel %vm2929, -inf, %v2769
        %v2994 = vsel %vm2930, -inf, %v2770
        %v2995 = vsel %vm2931, -inf, %v2771
        %v2996 = vsel %vm2932, -inf, %v2772
        %v2997 = vsel %vm2933, -inf, %v2773
        %v2998 = vsel %vm2934, -inf, %v2774
        %v2999 = vsel %vm2935, -inf, %v2775
        %v3000 = vsel %vm2936, -inf, %v2776
        %v3001 = vsel %vm2937, -inf, %v2777
        %v3002 = vsel %vm2938, -inf, %v2778
        %v3003 = vsel %vm2939, -inf, %v2779
        %v3004 = vsel %vm2940, -inf, %v2780
        %v3005 = vsel %vm2941, -inf, %v2781
        %v3006 = vsel %vm2942, -inf, %v2782
        %v3007 = vsel %vm2943, -inf, %v2783
        %v3008 = vsel %vm2944, -inf, %v2784
        %v3009 = vsel %vm2945, -inf, %v2785
        %v3010 = vsel %vm2946, -inf, %v2786
        %v3011 = vsel %vm2947, -inf, %v2787
        %v3012 = vsel %vm2948, -inf, %v2788
        %v3013 = vsel %vm2949, -inf, %v2789
        %v3014 = vsel %vm2950, -inf, %v2790
        %v3015 = vsel %vm2951, -inf, %v2791
        %v3016 = vsel %vm2952, -inf, %v2792
        %v3017 = vsel %vm2953, -inf, %v2793
        %v3018 = vmax.f32 %v2954, %v2955
        %3019 = vmax.xlane.f32.xlu0 %v3018
        %v3020 = vpop.xlane.xlu0 %3019
        %v3021 = vmax.f32 %v2956, %v2957
        %3022 = vmax.xlane.f32.xlu0 %v3021
        %v3023 = vpop.xlane.xlu0 %3022
        %v3024 = vmax.f32 %v2958, %v2959
        %3025 = vmax.xlane.f32.xlu0 %v3024
        %v3026 = vpop.xlane.xlu0 %3025
        %v3027 = vmax.f32 %v2960, %v2961
        %3028 = vmax.xlane.f32.xlu0 %v3027
        %v3029 = vpop.xlane.xlu0 %3028
        %v3030 = vmax.f32 %v2962, %v2963
        %3031 = vmax.xlane.f32.xlu0 %v3030
        %v3032 = vpop.xlane.xlu0 %3031
        %v3033 = vmax.f32 %v2964, %v2965
        %3034 = vmax.xlane.f32.xlu0 %v3033
        %v3035 = vpop.xlane.xlu0 %3034
        %v3036 = vmax.f32 %v2966, %v2967
        %3037 = vmax.xlane.f32.xlu0 %v3036
        %v3038 = vpop.xlane.xlu0 %3037
        %v3039 = vmax.f32 %v2968, %v2969
        %3040 = vmax.xlane.f32.xlu0 %v3039
        %v3041 = vpop.xlane.xlu0 %3040
        %v3042 = vmax.f32 %v2970, %v2971
        %3043 = vmax.xlane.f32.xlu0 %v3042
        %v3044 = vpop.xlane.xlu0 %3043
        %v3045 = vmax.f32 %v2972, %v2973
        %3046 = vmax.xlane.f32.xlu0 %v3045
        %v3047 = vpop.xlane.xlu0 %3046
        %v3048 = vmax.f32 %v2974, %v2975
        %3049 = vmax.xlane.f32.xlu0 %v3048
        %v3050 = vpop.xlane.xlu0 %3049
        %v3051 = vmax.f32 %v2976, %v2977
        %3052 = vmax.xlane.f32.xlu0 %v3051
        %v3053 = vpop.xlane.xlu0 %3052
        %v3054 = vmax.f32 %v2978, %v2979
        %3055 = vmax.xlane.f32.xlu0 %v3054
        %v3056 = vpop.xlane.xlu0 %3055
        %v3057 = vmax.f32 %v2980, %v2981
        %3058 = vmax.xlane.f32.xlu0 %v3057
        %v3059 = vpop.xlane.xlu0 %3058
        %v3060 = vmax.f32 %v2982, %v2983
        %3061 = vmax.xlane.f32.xlu0 %v3060
        %v3062 = vpop.xlane.xlu0 %3061
        %v3063 = vmax.f32 %v2984, %v2985
        %3064 = vmax.xlane.f32.xlu0 %v3063
        %v3065 = vpop.xlane.xlu0 %3064
        %v3066 = vmax.f32 %v2986, %v2987
        %3067 = vmax.xlane.f32.xlu0 %v3066
        %v3068 = vpop.xlane.xlu0 %3067
        %v3069 = vmax.f32 %v2988, %v2989
        %3070 = vmax.xlane.f32.xlu0 %v3069
        %v3071 = vpop.xlane.xlu0 %3070
        %v3072 = vmax.f32 %v2990, %v2991
        %3073 = vmax.xlane.f32.xlu0 %v3072
        %v3074 = vpop.xlane.xlu0 %3073
        %v3075 = vmax.f32 %v2992, %v2993
        %3076 = vmax.xlane.f32.xlu0 %v3075
        %v3077 = vpop.xlane.xlu0 %3076
        %v3078 = vmax.f32 %v2994, %v2995
        %3079 = vmax.xlane.f32.xlu0 %v3078
        %v3080 = vpop.xlane.xlu0 %3079
        %v3081 = vmax.f32 %v2996, %v2997
        %3082 = vmax.xlane.f32.xlu0 %v3081
        %v3083 = vpop.xlane.xlu0 %3082
        %v3084 = vmax.f32 %v2998, %v2999
        %3085 = vmax.xlane.f32.xlu0 %v3084
        %v3086 = vpop.xlane.xlu0 %3085
        %v3087 = vmax.f32 %v3000, %v3001
        %3088 = vmax.xlane.f32.xlu0 %v3087
        %v3089 = vpop.xlane.xlu0 %3088
        %v3090 = vmax.f32 %v3002, %v3003
        %3091 = vmax.xlane.f32.xlu0 %v3090
        %v3092 = vpop.xlane.xlu0 %3091
        %v3093 = vmax.f32 %v3004, %v3005
        %3094 = vmax.xlane.f32.xlu0 %v3093
        %v3095 = vpop.xlane.xlu0 %3094
        %v3096 = vmax.f32 %v3006, %v3007
        %3097 = vmax.xlane.f32.xlu0 %v3096
        %v3098 = vpop.xlane.xlu0 %3097
        %v3099 = vmax.f32 %v3008, %v3009
        %3100 = vmax.xlane.f32.xlu0 %v3099
        %v3101 = vpop.xlane.xlu0 %3100
        %v3102 = vmax.f32 %v3010, %v3011
        %3103 = vmax.xlane.f32.xlu0 %v3102
        %v3104 = vpop.xlane.xlu0 %3103
        %v3105 = vmax.f32 %v3012, %v3013
        %3106 = vmax.xlane.f32.xlu0 %v3105
        %v3107 = vpop.xlane.xlu0 %3106
        %v3108 = vmax.f32 %v3014, %v3015
        %3109 = vmax.xlane.f32.xlu0 %v3108
        %v3110 = vpop.xlane.xlu0 %3109
        %v3111 = vmax.f32 %v3016, %v3017
        %3112 = vmax.xlane.f32.xlu0 %v3111
        %v3113 = vpop.xlane.xlu0 %3112
        %vm3114 = vcmp.eq.f32.partialorder %v2954, %v3020
        %vm3115 = vcmp.eq.f32.partialorder %v2955, %v3020
        %vm3116 = vcmp.eq.f32.partialorder %v2956, %v3023
        %vm3117 = vcmp.eq.f32.partialorder %v2957, %v3023
        %vm3118 = vcmp.eq.f32.partialorder %v2958, %v3026
        %vm3119 = vcmp.eq.f32.partialorder %v2959, %v3026
        %vm3120 = vcmp.eq.f32.partialorder %v2960, %v3029
        %vm3121 = vcmp.eq.f32.partialorder %v2961, %v3029
        %vm3122 = vcmp.eq.f32.partialorder %v2962, %v3032
        %vm3123 = vcmp.eq.f32.partialorder %v2963, %v3032
        %vm3124 = vcmp.eq.f32.partialorder %v2964, %v3035
        %vm3125 = vcmp.eq.f32.partialorder %v2965, %v3035
        %vm3126 = vcmp.eq.f32.partialorder %v2966, %v3038
        %vm3127 = vcmp.eq.f32.partialorder %v2967, %v3038
        %vm3128 = vcmp.eq.f32.partialorder %v2968, %v3041
        %vm3129 = vcmp.eq.f32.partialorder %v2969, %v3041
        %vm3130 = vcmp.eq.f32.partialorder %v2970, %v3044
        %vm3131 = vcmp.eq.f32.partialorder %v2971, %v3044
        %vm3132 = vcmp.eq.f32.partialorder %v2972, %v3047
        %vm3133 = vcmp.eq.f32.partialorder %v2973, %v3047
        %vm3134 = vcmp.eq.f32.partialorder %v2974, %v3050
        %vm3135 = vcmp.eq.f32.partialorder %v2975, %v3050
        %vm3136 = vcmp.eq.f32.partialorder %v2976, %v3053
        %vm3137 = vcmp.eq.f32.partialorder %v2977, %v3053
        %vm3138 = vcmp.eq.f32.partialorder %v2978, %v3056
        %vm3139 = vcmp.eq.f32.partialorder %v2979, %v3056
        %vm3140 = vcmp.eq.f32.partialorder %v2980, %v3059
        %vm3141 = vcmp.eq.f32.partialorder %v2981, %v3059
        %vm3142 = vcmp.eq.f32.partialorder %v2982, %v3062
        %vm3143 = vcmp.eq.f32.partialorder %v2983, %v3062
        %vm3144 = vcmp.eq.f32.partialorder %v2984, %v3065
        %vm3145 = vcmp.eq.f32.partialorder %v2985, %v3065
        %vm3146 = vcmp.eq.f32.partialorder %v2986, %v3068
        %vm3147 = vcmp.eq.f32.partialorder %v2987, %v3068
        %vm3148 = vcmp.eq.f32.partialorder %v2988, %v3071
        %vm3149 = vcmp.eq.f32.partialorder %v2989, %v3071
        %vm3150 = vcmp.eq.f32.partialorder %v2990, %v3074
        %vm3151 = vcmp.eq.f32.partialorder %v2991, %v3074
        %vm3152 = vcmp.eq.f32.partialorder %v2992, %v3077
        %vm3153 = vcmp.eq.f32.partialorder %v2993, %v3077
        %vm3154 = vcmp.eq.f32.partialorder %v2994, %v3080
        %vm3155 = vcmp.eq.f32.partialorder %v2995, %v3080
        %vm3156 = vcmp.eq.f32.partialorder %v2996, %v3083
        %vm3157 = vcmp.eq.f32.partialorder %v2997, %v3083
        %vm3158 = vcmp.eq.f32.partialorder %v2998, %v3086
        %vm3159 = vcmp.eq.f32.partialorder %v2999, %v3086
        %vm3160 = vcmp.eq.f32.partialorder %v3000, %v3089
        %vm3161 = vcmp.eq.f32.partialorder %v3001, %v3089
        %vm3162 = vcmp.eq.f32.partialorder %v3002, %v3092
        %vm3163 = vcmp.eq.f32.partialorder %v3003, %v3092
        %vm3164 = vcmp.eq.f32.partialorder %v3004, %v3095
        %vm3165 = vcmp.eq.f32.partialorder %v3005, %v3095
        %vm3166 = vcmp.eq.f32.partialorder %v3006, %v3098
        %vm3167 = vcmp.eq.f32.partialorder %v3007, %v3098
        %vm3168 = vcmp.eq.f32.partialorder %v3008, %v3101
        %vm3169 = vcmp.eq.f32.partialorder %v3009, %v3101
        %vm3170 = vcmp.eq.f32.partialorder %v3010, %v3104
        %vm3171 = vcmp.eq.f32.partialorder %v3011, %v3104
        %vm3172 = vcmp.eq.f32.partialorder %v3012, %v3107
        %vm3173 = vcmp.eq.f32.partialorder %v3013, %v3107
        %vm3174 = vcmp.eq.f32.partialorder %v3014, %v3110
        %vm3175 = vcmp.eq.f32.partialorder %v3015, %v3110
        %vm3176 = vcmp.eq.f32.partialorder %v3016, %v3113
        %vm3177 = vcmp.eq.f32.partialorder %v3017, %v3113
        %v3178 = vsel %vm3114, -inf, %v2954
        %v3179 = vsel %vm3115, -inf, %v2955
        %v3180 = vsel %vm3116, -inf, %v2956
        %v3181 = vsel %vm3117, -inf, %v2957
        %v3182 = vsel %vm3118, -inf, %v2958
        %v3183 = vsel %vm3119, -inf, %v2959
        %v3184 = vsel %vm3120, -inf, %v2960
        %v3185 = vsel %vm3121, -inf, %v2961
        %v3186 = vsel %vm3122, -inf, %v2962
        %v3187 = vsel %vm3123, -inf, %v2963
        %v3188 = vsel %vm3124, -inf, %v2964
        %v3189 = vsel %vm3125, -inf, %v2965
        %v3190 = vsel %vm3126, -inf, %v2966
        %v3191 = vsel %vm3127, -inf, %v2967
        %v3192 = vsel %vm3128, -inf, %v2968
        %v3193 = vsel %vm3129, -inf, %v2969
        %v3194 = vsel %vm3130, -inf, %v2970
        %v3195 = vsel %vm3131, -inf, %v2971
        %v3196 = vsel %vm3132, -inf, %v2972
        %v3197 = vsel %vm3133, -inf, %v2973
        %v3198 = vsel %vm3134, -inf, %v2974
        %v3199 = vsel %vm3135, -inf, %v2975
        %v3200 = vsel %vm3136, -inf, %v2976
        %v3201 = vsel %vm3137, -inf, %v2977
        %v3202 = vsel %vm3138, -inf, %v2978
        %v3203 = vsel %vm3139, -inf, %v2979
        %v3204 = vsel %vm3140, -inf, %v2980
        %v3205 = vsel %vm3141, -inf, %v2981
        %v3206 = vsel %vm3142, -inf, %v2982
        %v3207 = vsel %vm3143, -inf, %v2983
        %v3208 = vsel %vm3144, -inf, %v2984
        %v3209 = vsel %vm3145, -inf, %v2985
        %v3210 = vsel %vm3146, -inf, %v2986
        %v3211 = vsel %vm3147, -inf, %v2987
        %v3212 = vsel %vm3148, -inf, %v2988
        %v3213 = vsel %vm3149, -inf, %v2989
        %v3214 = vsel %vm3150, -inf, %v2990
        %v3215 = vsel %vm3151, -inf, %v2991
        %v3216 = vsel %vm3152, -inf, %v2992
        %v3217 = vsel %vm3153, -inf, %v2993
        %v3218 = vsel %vm3154, -inf, %v2994
        %v3219 = vsel %vm3155, -inf, %v2995
        %v3220 = vsel %vm3156, -inf, %v2996
        %v3221 = vsel %vm3157, -inf, %v2997
        %v3222 = vsel %vm3158, -inf, %v2998
        %v3223 = vsel %vm3159, -inf, %v2999
        %v3224 = vsel %vm3160, -inf, %v3000
        %v3225 = vsel %vm3161, -inf, %v3001
        %v3226 = vsel %vm3162, -inf, %v3002
        %v3227 = vsel %vm3163, -inf, %v3003
        %v3228 = vsel %vm3164, -inf, %v3004
        %v3229 = vsel %vm3165, -inf, %v3005
        %v3230 = vsel %vm3166, -inf, %v3006
        %v3231 = vsel %vm3167, -inf, %v3007
        %v3232 = vsel %vm3168, -inf, %v3008
        %v3233 = vsel %vm3169, -inf, %v3009
        %v3234 = vsel %vm3170, -inf, %v3010
        %v3235 = vsel %vm3171, -inf, %v3011
        %v3236 = vsel %vm3172, -inf, %v3012
        %v3237 = vsel %vm3173, -inf, %v3013
        %v3238 = vsel %vm3174, -inf, %v3014
        %v3239 = vsel %vm3175, -inf, %v3015
        %v3240 = vsel %vm3176, -inf, %v3016
        %v3241 = vsel %vm3177, -inf, %v3017
        %v3242 = vmax.f32 %v3178, %v3179
        %3243 = vmax.xlane.f32.xlu0 %v3242
        %v3244 = vpop.xlane.xlu0 %3243
        %v3245 = vmax.f32 %v3180, %v3181
        %3246 = vmax.xlane.f32.xlu0 %v3245
        %v3247 = vpop.xlane.xlu0 %3246
        %v3248 = vmax.f32 %v3182, %v3183
        %3249 = vmax.xlane.f32.xlu0 %v3248
        %v3250 = vpop.xlane.xlu0 %3249
        %v3251 = vmax.f32 %v3184, %v3185
        %3252 = vmax.xlane.f32.xlu0 %v3251
        %v3253 = vpop.xlane.xlu0 %3252
        %v3254 = vmax.f32 %v3186, %v3187
        %3255 = vmax.xlane.f32.xlu0 %v3254
        %v3256 = vpop.xlane.xlu0 %3255
        %v3257 = vmax.f32 %v3188, %v3189
        %3258 = vmax.xlane.f32.xlu0 %v3257
        %v3259 = vpop.xlane.xlu0 %3258
        %v3260 = vmax.f32 %v3190, %v3191
        %3261 = vmax.xlane.f32.xlu0 %v3260
        %v3262 = vpop.xlane.xlu0 %3261
        %v3263 = vmax.f32 %v3192, %v3193
        %3264 = vmax.xlane.f32.xlu0 %v3263
        %v3265 = vpop.xlane.xlu0 %3264
        %v3266 = vmax.f32 %v3194, %v3195
        %3267 = vmax.xlane.f32.xlu0 %v3266
        %v3268 = vpop.xlane.xlu0 %3267
        %v3269 = vmax.f32 %v3196, %v3197
        %3270 = vmax.xlane.f32.xlu0 %v3269
        %v3271 = vpop.xlane.xlu0 %3270
        %v3272 = vmax.f32 %v3198, %v3199
        %3273 = vmax.xlane.f32.xlu0 %v3272
        %v3274 = vpop.xlane.xlu0 %3273
        %v3275 = vmax.f32 %v3200, %v3201
        %3276 = vmax.xlane.f32.xlu0 %v3275
        %v3277 = vpop.xlane.xlu0 %3276
        %v3278 = vmax.f32 %v3202, %v3203
        %3279 = vmax.xlane.f32.xlu0 %v3278
        %v3280 = vpop.xlane.xlu0 %3279
        %v3281 = vmax.f32 %v3204, %v3205
        %3282 = vmax.xlane.f32.xlu0 %v3281
        %v3283 = vpop.xlane.xlu0 %3282
        %v3284 = vmax.f32 %v3206, %v3207
        %3285 = vmax.xlane.f32.xlu0 %v3284
        %v3286 = vpop.xlane.xlu0 %3285
        %v3287 = vmax.f32 %v3208, %v3209
        %3288 = vmax.xlane.f32.xlu0 %v3287
        %v3289 = vpop.xlane.xlu0 %3288
        %v3290 = vmax.f32 %v3210, %v3211
        %3291 = vmax.xlane.f32.xlu0 %v3290
        %v3292 = vpop.xlane.xlu0 %3291
        %v3293 = vmax.f32 %v3212, %v3213
        %3294 = vmax.xlane.f32.xlu0 %v3293
        %v3295 = vpop.xlane.xlu0 %3294
        %v3296 = vmax.f32 %v3214, %v3215
        %3297 = vmax.xlane.f32.xlu0 %v3296
        %v3298 = vpop.xlane.xlu0 %3297
        %v3299 = vmax.f32 %v3216, %v3217
        %3300 = vmax.xlane.f32.xlu0 %v3299
        %v3301 = vpop.xlane.xlu0 %3300
        %v3302 = vmax.f32 %v3218, %v3219
        %3303 = vmax.xlane.f32.xlu0 %v3302
        %v3304 = vpop.xlane.xlu0 %3303
        %v3305 = vmax.f32 %v3220, %v3221
        %3306 = vmax.xlane.f32.xlu0 %v3305
        %v3307 = vpop.xlane.xlu0 %3306
        %v3308 = vmax.f32 %v3222, %v3223
        %3309 = vmax.xlane.f32.xlu0 %v3308
        %v3310 = vpop.xlane.xlu0 %3309
        %v3311 = vmax.f32 %v3224, %v3225
        %3312 = vmax.xlane.f32.xlu0 %v3311
        %v3313 = vpop.xlane.xlu0 %3312
        %v3314 = vmax.f32 %v3226, %v3227
        %3315 = vmax.xlane.f32.xlu0 %v3314
        %v3316 = vpop.xlane.xlu0 %3315
        %v3317 = vmax.f32 %v3228, %v3229
        %3318 = vmax.xlane.f32.xlu0 %v3317
        %v3319 = vpop.xlane.xlu0 %3318
        %v3320 = vmax.f32 %v3230, %v3231
        %3321 = vmax.xlane.f32.xlu0 %v3320
        %v3322 = vpop.xlane.xlu0 %3321
        %v3323 = vmax.f32 %v3232, %v3233
        %3324 = vmax.xlane.f32.xlu0 %v3323
        %v3325 = vpop.xlane.xlu0 %3324
        %v3326 = vmax.f32 %v3234, %v3235
        %3327 = vmax.xlane.f32.xlu0 %v3326
        %v3328 = vpop.xlane.xlu0 %3327
        %v3329 = vmax.f32 %v3236, %v3237
        %3330 = vmax.xlane.f32.xlu0 %v3329
        %v3331 = vpop.xlane.xlu0 %3330
        %v3332 = vmax.f32 %v3238, %v3239
        %3333 = vmax.xlane.f32.xlu0 %v3332
        %v3334 = vpop.xlane.xlu0 %3333
        %v3335 = vmax.f32 %v3240, %v3241
        %3336 = vmax.xlane.f32.xlu0 %v3335
        %v3337 = vpop.xlane.xlu0 %3336
        %vm3338 = vcmp.ge.f32.partialorder %v1292, %v3244
        %vm3339 = vcmp.ge.f32.partialorder %v1294, %v3244
        %vm3340 = vcmp.ge.f32.partialorder %v1296, %v3247
        %vm3341 = vcmp.ge.f32.partialorder %v1298, %v3247
        %vm3342 = vcmp.ge.f32.partialorder %v1302, %v3250
        %vm3343 = vcmp.ge.f32.partialorder %v1304, %v3250
        %vm3344 = vcmp.ge.f32.partialorder %v1306, %v3253
        %vm3345 = vcmp.ge.f32.partialorder %v1308, %v3253
        %vm3346 = vcmp.ge.f32.partialorder %v1312, %v3256
        %vm3347 = vcmp.ge.f32.partialorder %v1314, %v3256
        %vm3348 = vcmp.ge.f32.partialorder %v1316, %v3259
        %vm3349 = vcmp.ge.f32.partialorder %v1318, %v3259
        %vm3350 = vcmp.ge.f32.partialorder %v1322, %v3262
        %vm3351 = vcmp.ge.f32.partialorder %v1324, %v3262
        %vm3352 = vcmp.ge.f32.partialorder %v1326, %v3265
        %vm3353 = vcmp.ge.f32.partialorder %v1328, %v3265
        %vm3354 = vcmp.ge.f32.partialorder %v1332, %v3268
        %vm3355 = vcmp.ge.f32.partialorder %v1334, %v3268
        %vm3356 = vcmp.ge.f32.partialorder %v1336, %v3271
        %vm3357 = vcmp.ge.f32.partialorder %v1338, %v3271
        %vm3358 = vcmp.ge.f32.partialorder %v1342, %v3274
        %vm3359 = vcmp.ge.f32.partialorder %v1344, %v3274
        %vm3360 = vcmp.ge.f32.partialorder %v1346, %v3277
        %vm3361 = vcmp.ge.f32.partialorder %v1348, %v3277
        %vm3362 = vcmp.ge.f32.partialorder %v1352, %v3280
        %vm3363 = vcmp.ge.f32.partialorder %v1354, %v3280
        %vm3364 = vcmp.ge.f32.partialorder %v1356, %v3283
        %vm3365 = vcmp.ge.f32.partialorder %v1358, %v3283
        %vm3366 = vcmp.ge.f32.partialorder %v1362, %v3286
        %vm3367 = vcmp.ge.f32.partialorder %v1364, %v3286
        %vm3368 = vcmp.ge.f32.partialorder %v1366, %v3289
        %vm3369 = vcmp.ge.f32.partialorder %v1368, %v3289
        %vm3370 = vcmp.ge.f32.partialorder %v1372, %v3292
        %vm3371 = vcmp.ge.f32.partialorder %v1374, %v3292
        %vm3372 = vcmp.ge.f32.partialorder %v1376, %v3295
        %vm3373 = vcmp.ge.f32.partialorder %v1378, %v3295
        %vm3374 = vcmp.ge.f32.partialorder %v1382, %v3298
        %vm3375 = vcmp.ge.f32.partialorder %v1384, %v3298
        %vm3376 = vcmp.ge.f32.partialorder %v1386, %v3301
        %vm3377 = vcmp.ge.f32.partialorder %v1388, %v3301
        %vm3378 = vcmp.ge.f32.partialorder %v1392, %v3304
        %vm3379 = vcmp.ge.f32.partialorder %v1394, %v3304
        %vm3380 = vcmp.ge.f32.partialorder %v1396, %v3307
        %vm3381 = vcmp.ge.f32.partialorder %v1398, %v3307
        %vm3382 = vcmp.ge.f32.partialorder %v1402, %v3310
        %vm3383 = vcmp.ge.f32.partialorder %v1404, %v3310
        %vm3384 = vcmp.ge.f32.partialorder %v1406, %v3313
        %vm3385 = vcmp.ge.f32.partialorder %v1408, %v3313
        %vm3386 = vcmp.ge.f32.partialorder %v1412, %v3316
        %vm3387 = vcmp.ge.f32.partialorder %v1414, %v3316
        %vm3388 = vcmp.ge.f32.partialorder %v1416, %v3319
        %vm3389 = vcmp.ge.f32.partialorder %v1418, %v3319
        %vm3390 = vcmp.ge.f32.partialorder %v1422, %v3322
        %vm3391 = vcmp.ge.f32.partialorder %v1424, %v3322
        %vm3392 = vcmp.ge.f32.partialorder %v1426, %v3325
        %vm3393 = vcmp.ge.f32.partialorder %v1428, %v3325
        %vm3394 = vcmp.ge.f32.partialorder %v1432, %v3328
        %vm3395 = vcmp.ge.f32.partialorder %v1434, %v3328
        %vm3396 = vcmp.ge.f32.partialorder %v1436, %v3331
        %vm3397 = vcmp.ge.f32.partialorder %v1438, %v3331
        %vm3398 = vcmp.ge.f32.partialorder %v1442, %v3334
        %vm3399 = vcmp.ge.f32.partialorder %v1444, %v3334
        %vm3400 = vcmp.ge.f32.partialorder %v1446, %v3337
        %vm3401 = vcmp.ge.f32.partialorder %v1448, %v3337
        %vm3402 = vcmp.gt.f32.partialorder %v1292, 0.0
        %vm3403 = vcmp.gt.f32.partialorder %v1294, 0.0
        %vm3404 = vcmp.gt.f32.partialorder %v1296, 0.0
        %vm3405 = vcmp.gt.f32.partialorder %v1298, 0.0
        %vm3406 = vcmp.gt.f32.partialorder %v1302, 0.0
        %vm3407 = vcmp.gt.f32.partialorder %v1304, 0.0
        %vm3408 = vcmp.gt.f32.partialorder %v1306, 0.0
        %vm3409 = vcmp.gt.f32.partialorder %v1308, 0.0
        %vm3410 = vcmp.gt.f32.partialorder %v1312, 0.0
        %vm3411 = vcmp.gt.f32.partialorder %v1314, 0.0
        %vm3412 = vcmp.gt.f32.partialorder %v1316, 0.0
        %vm3413 = vcmp.gt.f32.partialorder %v1318, 0.0
        %vm3414 = vcmp.gt.f32.partialorder %v1322, 0.0
        %vm3415 = vcmp.gt.f32.partialorder %v1324, 0.0
        %vm3416 = vcmp.gt.f32.partialorder %v1326, 0.0
        %vm3417 = vcmp.gt.f32.partialorder %v1328, 0.0
        %vm3418 = vcmp.gt.f32.partialorder %v1332, 0.0
        %vm3419 = vcmp.gt.f32.partialorder %v1334, 0.0
        %vm3420 = vcmp.gt.f32.partialorder %v1336, 0.0
        %vm3421 = vcmp.gt.f32.partialorder %v1338, 0.0
        %vm3422 = vcmp.gt.f32.partialorder %v1342, 0.0
        %vm3423 = vcmp.gt.f32.partialorder %v1344, 0.0
        %vm3424 = vcmp.gt.f32.partialorder %v1346, 0.0
        %vm3425 = vcmp.gt.f32.partialorder %v1348, 0.0
        %vm3426 = vcmp.gt.f32.partialorder %v1352, 0.0
        %vm3427 = vcmp.gt.f32.partialorder %v1354, 0.0
        %vm3428 = vcmp.gt.f32.partialorder %v1356, 0.0
        %vm3429 = vcmp.gt.f32.partialorder %v1358, 0.0
        %vm3430 = vcmp.gt.f32.partialorder %v1362, 0.0
        %vm3431 = vcmp.gt.f32.partialorder %v1364, 0.0
        %vm3432 = vcmp.gt.f32.partialorder %v1366, 0.0
        %vm3433 = vcmp.gt.f32.partialorder %v1368, 0.0
        %vm3434 = vcmp.gt.f32.partialorder %v1372, 0.0
        %vm3435 = vcmp.gt.f32.partialorder %v1374, 0.0
        %vm3436 = vcmp.gt.f32.partialorder %v1376, 0.0
        %vm3437 = vcmp.gt.f32.partialorder %v1378, 0.0
        %vm3438 = vcmp.gt.f32.partialorder %v1382, 0.0
        %vm3439 = vcmp.gt.f32.partialorder %v1384, 0.0
        %vm3440 = vcmp.gt.f32.partialorder %v1386, 0.0
        %vm3441 = vcmp.gt.f32.partialorder %v1388, 0.0
        %vm3442 = vcmp.gt.f32.partialorder %v1392, 0.0
        %vm3443 = vcmp.gt.f32.partialorder %v1394, 0.0
        %vm3444 = vcmp.gt.f32.partialorder %v1396, 0.0
        %vm3445 = vcmp.gt.f32.partialorder %v1398, 0.0
        %vm3446 = vcmp.gt.f32.partialorder %v1402, 0.0
        %vm3447 = vcmp.gt.f32.partialorder %v1404, 0.0
        %vm3448 = vcmp.gt.f32.partialorder %v1406, 0.0
        %vm3449 = vcmp.gt.f32.partialorder %v1408, 0.0
        %vm3450 = vcmp.gt.f32.partialorder %v1412, 0.0
        %vm3451 = vcmp.gt.f32.partialorder %v1414, 0.0
        %vm3452 = vcmp.gt.f32.partialorder %v1416, 0.0
        %vm3453 = vcmp.gt.f32.partialorder %v1418, 0.0
        %vm3454 = vcmp.gt.f32.partialorder %v1422, 0.0
        %vm3455 = vcmp.gt.f32.partialorder %v1424, 0.0
        %vm3456 = vcmp.gt.f32.partialorder %v1426, 0.0
        %vm3457 = vcmp.gt.f32.partialorder %v1428, 0.0
        %vm3458 = vcmp.gt.f32.partialorder %v1432, 0.0
        %vm3459 = vcmp.gt.f32.partialorder %v1434, 0.0
        %vm3460 = vcmp.gt.f32.partialorder %v1436, 0.0
        %vm3461 = vcmp.gt.f32.partialorder %v1438, 0.0
        %vm3462 = vcmp.gt.f32.partialorder %v1442, 0.0
        %vm3463 = vcmp.gt.f32.partialorder %v1444, 0.0
        %vm3464 = vcmp.gt.f32.partialorder %v1446, 0.0
        %vm3465 = vcmp.gt.f32.partialorder %v1448, 0.0
        %vm3466 = vmand %vm3338, %vm3402
        %vm3467 = vmand %vm3339, %vm3403
        %vm3468 = vmand %vm3340, %vm3404
        %vm3469 = vmand %vm3341, %vm3405
        %vm3470 = vmand %vm3342, %vm3406
        %vm3471 = vmand %vm3343, %vm3407
        %vm3472 = vmand %vm3344, %vm3408
        %vm3473 = vmand %vm3345, %vm3409
        %vm3474 = vmand %vm3346, %vm3410
        %vm3475 = vmand %vm3347, %vm3411
        %vm3476 = vmand %vm3348, %vm3412
        %vm3477 = vmand %vm3349, %vm3413
        %vm3478 = vmand %vm3350, %vm3414
        %vm3479 = vmand %vm3351, %vm3415
        %vm3480 = vmand %vm3352, %vm3416
        %vm3481 = vmand %vm3353, %vm3417
        %vm3482 = vmand %vm3354, %vm3418
        %vm3483 = vmand %vm3355, %vm3419
        %vm3484 = vmand %vm3356, %vm3420
        %vm3485 = vmand %vm3357, %vm3421
        %vm3486 = vmand %vm3358, %vm3422
        %vm3487 = vmand %vm3359, %vm3423
        %vm3488 = vmand %vm3360, %vm3424
        %vm3489 = vmand %vm3361, %vm3425
        %vm3490 = vmand %vm3362, %vm3426
        %vm3491 = vmand %vm3363, %vm3427
        %vm3492 = vmand %vm3364, %vm3428
        %vm3493 = vmand %vm3365, %vm3429
        %vm3494 = vmand %vm3366, %vm3430
        %vm3495 = vmand %vm3367, %vm3431
        %vm3496 = vmand %vm3368, %vm3432
        %vm3497 = vmand %vm3369, %vm3433
        %vm3498 = vmand %vm3370, %vm3434
        %vm3499 = vmand %vm3371, %vm3435
        %vm3500 = vmand %vm3372, %vm3436
        %vm3501 = vmand %vm3373, %vm3437
        %vm3502 = vmand %vm3374, %vm3438
        %vm3503 = vmand %vm3375, %vm3439
        %vm3504 = vmand %vm3376, %vm3440
        %vm3505 = vmand %vm3377, %vm3441
        %vm3506 = vmand %vm3378, %vm3442
        %vm3507 = vmand %vm3379, %vm3443
        %vm3508 = vmand %vm3380, %vm3444
        %vm3509 = vmand %vm3381, %vm3445
        %vm3510 = vmand %vm3382, %vm3446
        %vm3511 = vmand %vm3383, %vm3447
        %vm3512 = vmand %vm3384, %vm3448
        %vm3513 = vmand %vm3385, %vm3449
        %vm3514 = vmand %vm3386, %vm3450
        %vm3515 = vmand %vm3387, %vm3451
        %vm3516 = vmand %vm3388, %vm3452
        %vm3517 = vmand %vm3389, %vm3453
        %vm3518 = vmand %vm3390, %vm3454
        %vm3519 = vmand %vm3391, %vm3455
        %vm3520 = vmand %vm3392, %vm3456
        %vm3521 = vmand %vm3393, %vm3457
        %vm3522 = vmand %vm3394, %vm3458
        %vm3523 = vmand %vm3395, %vm3459
        %vm3524 = vmand %vm3396, %vm3460
        %vm3525 = vmand %vm3397, %vm3461
        %vm3526 = vmand %vm3398, %vm3462
        %vm3527 = vmand %vm3399, %vm3463
        %vm3528 = vmand %vm3400, %vm3464
        %vm3529 = vmand %vm3401, %vm3465
        %v3530 = vsel %vm3466, %v1292, 0.0
        %v3531 = vsel %vm3467, %v1294, 0.0
        %v3532 = vsel %vm3468, %v1296, 0.0
        %v3533 = vsel %vm3469, %v1298, 0.0
        %v3534 = vsel %vm3470, %v1302, 0.0
        %v3535 = vsel %vm3471, %v1304, 0.0
        %v3536 = vsel %vm3472, %v1306, 0.0
        %v3537 = vsel %vm3473, %v1308, 0.0
        %v3538 = vsel %vm3474, %v1312, 0.0
        %v3539 = vsel %vm3475, %v1314, 0.0
        %v3540 = vsel %vm3476, %v1316, 0.0
        %v3541 = vsel %vm3477, %v1318, 0.0
        %v3542 = vsel %vm3478, %v1322, 0.0
        %v3543 = vsel %vm3479, %v1324, 0.0
        %v3544 = vsel %vm3480, %v1326, 0.0
        %v3545 = vsel %vm3481, %v1328, 0.0
        %v3546 = vsel %vm3482, %v1332, 0.0
        %v3547 = vsel %vm3483, %v1334, 0.0
        %v3548 = vsel %vm3484, %v1336, 0.0
        %v3549 = vsel %vm3485, %v1338, 0.0
        %v3550 = vsel %vm3486, %v1342, 0.0
        %v3551 = vsel %vm3487, %v1344, 0.0
        %v3552 = vsel %vm3488, %v1346, 0.0
        %v3553 = vsel %vm3489, %v1348, 0.0
        %v3554 = vsel %vm3490, %v1352, 0.0
        %v3555 = vsel %vm3491, %v1354, 0.0
        %v3556 = vsel %vm3492, %v1356, 0.0
        %v3557 = vsel %vm3493, %v1358, 0.0
        %v3558 = vsel %vm3494, %v1362, 0.0
        %v3559 = vsel %vm3495, %v1364, 0.0
        %v3560 = vsel %vm3496, %v1366, 0.0
        %v3561 = vsel %vm3497, %v1368, 0.0
        %v3562 = vsel %vm3498, %v1372, 0.0
        %v3563 = vsel %vm3499, %v1374, 0.0
        %v3564 = vsel %vm3500, %v1376, 0.0
        %v3565 = vsel %vm3501, %v1378, 0.0
        %v3566 = vsel %vm3502, %v1382, 0.0
        %v3567 = vsel %vm3503, %v1384, 0.0
        %v3568 = vsel %vm3504, %v1386, 0.0
        %v3569 = vsel %vm3505, %v1388, 0.0
        %v3570 = vsel %vm3506, %v1392, 0.0
        %v3571 = vsel %vm3507, %v1394, 0.0
        %v3572 = vsel %vm3508, %v1396, 0.0
        %v3573 = vsel %vm3509, %v1398, 0.0
        %v3574 = vsel %vm3510, %v1402, 0.0
        %v3575 = vsel %vm3511, %v1404, 0.0
        %v3576 = vsel %vm3512, %v1406, 0.0
        %v3577 = vsel %vm3513, %v1408, 0.0
        %v3578 = vsel %vm3514, %v1412, 0.0
        %v3579 = vsel %vm3515, %v1414, 0.0
        %v3580 = vsel %vm3516, %v1416, 0.0
        %v3581 = vsel %vm3517, %v1418, 0.0
        %v3582 = vsel %vm3518, %v1422, 0.0
        %v3583 = vsel %vm3519, %v1424, 0.0
        %v3584 = vsel %vm3520, %v1426, 0.0
        %v3585 = vsel %vm3521, %v1428, 0.0
        %v3586 = vsel %vm3522, %v1432, 0.0
        %v3587 = vsel %vm3523, %v1434, 0.0
        %v3588 = vsel %vm3524, %v1436, 0.0
        %v3589 = vsel %vm3525, %v1438, 0.0
        %v3590 = vsel %vm3526, %v1442, 0.0
        %v3591 = vsel %vm3527, %v1444, 0.0
        %v3592 = vsel %vm3528, %v1446, 0.0
        %v3593 = vsel %vm3529, %v1448, 0.0
        %3594 = vst [vmem:[%s349] sm:$0xff] %v3530
        %3595 = vst [vmem:[%s349 + $0x8] sm:$0xff] %v3531
        %3596 = vst [vmem:[%s349 + $0x10] sm:$0xff] %v3532
        %3597 = vst [vmem:[%s349 + $0x18] sm:$0xff] %v3533
        %3598 = vst [vmem:[%s349 + $0x20] sm:$0xff] %v3534
        %3599 = vst [vmem:[%s349 + $0x28] sm:$0xff] %v3535
        %3600 = vst [vmem:[%s349 + $0x30] sm:$0xff] %v3536
        %3601 = vst [vmem:[%s349 + $0x38] sm:$0xff] %v3537
        %3602 = vst [vmem:[%s349 + $0x40] sm:$0xff] %v3538
        %3603 = vst [vmem:[%s349 + $0x48] sm:$0xff] %v3539
        %3604 = vst [vmem:[%s349 + $0x50] sm:$0xff] %v3540
        %3605 = vst [vmem:[%s349 + $0x58] sm:$0xff] %v3541
        %3606 = vst [vmem:[%s349 + $0x60] sm:$0xff] %v3542
        %3607 = vst [vmem:[%s349 + $0x68] sm:$0xff] %v3543
        %3608 = vst [vmem:[%s349 + $0x70] sm:$0xff] %v3544
        %3609 = vst [vmem:[%s349 + $0x78] sm:$0xff] %v3545
        %3610 = vst [vmem:[%s349 + $0x80] sm:$0xff] %v3546
        %3611 = vst [vmem:[%s349 + $0x88] sm:$0xff] %v3547
        %3612 = vst [vmem:[%s349 + $0x90] sm:$0xff] %v3548
        %3613 = vst [vmem:[%s349 + $0x98] sm:$0xff] %v3549
        %3614 = vst [vmem:[%s349 + $0xa0] sm:$0xff] %v3550
        %3615 = vst [vmem:[%s349 + $0xa8] sm:$0xff] %v3551
        %3616 = vst [vmem:[%s349 + $0xb0] sm:$0xff] %v3552
        %3617 = vst [vmem:[%s349 + $0xb8] sm:$0xff] %v3553
        %3618 = vst [vmem:[%s349 + $0xc0] sm:$0xff] %v3554
        %3619 = vst [vmem:[%s349 + $0xc8] sm:$0xff] %v3555
        %3620 = vst [vmem:[%s349 + $0xd0] sm:$0xff] %v3556
        %3621 = vst [vmem:[%s349 + $0xd8] sm:$0xff] %v3557
        %3622 = vst [vmem:[%s349 + $0xe0] sm:$0xff] %v3558
        %3623 = vst [vmem:[%s349 + $0xe8] sm:$0xff] %v3559
        %3624 = vst [vmem:[%s349 + $0xf0] sm:$0xff] %v3560
        %3625 = vst [vmem:[%s349 + $0xf8] sm:$0xff] %v3561
        %3626 = vst [vmem:[%s349 + $0x100] sm:$0xff] %v3562
        %3627 = vst [vmem:[%s349 + $0x108] sm:$0xff] %v3563
        %3628 = vst [vmem:[%s349 + $0x110] sm:$0xff] %v3564
        %3629 = vst [vmem:[%s349 + $0x118] sm:$0xff] %v3565
        %3630 = vst [vmem:[%s349 + $0x120] sm:$0xff] %v3566
        %3631 = vst [vmem:[%s349 + $0x128] sm:$0xff] %v3567
        %3632 = vst [vmem:[%s349 + $0x130] sm:$0xff] %v3568
        %3633 = vst [vmem:[%s349 + $0x138] sm:$0xff] %v3569
        %3634 = vst [vmem:[%s349 + $0x140] sm:$0xff] %v3570
        %3635 = vst [vmem:[%s349 + $0x148] sm:$0xff] %v3571
        %3636 = vst [vmem:[%s349 + $0x150] sm:$0xff] %v3572
        %3637 = vst [vmem:[%s349 + $0x158] sm:$0xff] %v3573
        %3638 = vst [vmem:[%s349 + $0x160] sm:$0xff] %v3574
        %3639 = vst [vmem:[%s349 + $0x168] sm:$0xff] %v3575
        %3640 = vst [vmem:[%s349 + $0x170] sm:$0xff] %v3576
        %3641 = vst [vmem:[%s349 + $0x178] sm:$0xff] %v3577
        %3642 = vst [vmem:[%s349 + $0x180] sm:$0xff] %v3578
        %3643 = vst [vmem:[%s349 + $0x188] sm:$0xff] %v3579
        %3644 = vst [vmem:[%s349 + $0x190] sm:$0xff] %v3580
        %3645 = vst [vmem:[%s349 + $0x198] sm:$0xff] %v3581
        %3646 = vst [vmem:[%s349 + $0x1a0] sm:$0xff] %v3582
        %3647 = vst [vmem:[%s349 + $0x1a8] sm:$0xff] %v3583
        %3648 = vst [vmem:[%s349 + $0x1b0] sm:$0xff] %v3584
        %3649 = vst [vmem:[%s349 + $0x1b8] sm:$0xff] %v3585
        %3650 = vst [vmem:[%s349 + $0x1c0] sm:$0xff] %v3586
        %3651 = vst [vmem:[%s349 + $0x1c8] sm:$0xff] %v3587
        %3652 = vst [vmem:[%s349 + $0x1d0] sm:$0xff] %v3588
        %3653 = vst [vmem:[%s349 + $0x1d8] sm:$0xff] %v3589
        %3654 = vst [vmem:[%s349 + $0x1e0] sm:$0xff] %v3590
        %3655 = vst [vmem:[%s349 + $0x1e8] sm:$0xff] %v3591
        %3656 = vst [vmem:[%s349 + $0x1f0] sm:$0xff] %v3592
        %3657 = vst [vmem:[%s349 + $0x1f8] sm:$0xff] %v3593
        %vm3658 = vcmp.gt.f32.partialorder %v1292, 1e-05
        %vm3659 = vcmp.gt.f32.partialorder %v1294, 1e-05
        %vm3660 = vcmp.gt.f32.partialorder %v1296, 1e-05
        %vm3661 = vcmp.gt.f32.partialorder %v1298, 1e-05
        %vm3662 = vcmp.gt.f32.partialorder %v1302, 1e-05
        %vm3663 = vcmp.gt.f32.partialorder %v1304, 1e-05
        %vm3664 = vcmp.gt.f32.partialorder %v1306, 1e-05
        %vm3665 = vcmp.gt.f32.partialorder %v1308, 1e-05
        %vm3666 = vcmp.gt.f32.partialorder %v1312, 1e-05
        %vm3667 = vcmp.gt.f32.partialorder %v1314, 1e-05
        %vm3668 = vcmp.gt.f32.partialorder %v1316, 1e-05
        %vm3669 = vcmp.gt.f32.partialorder %v1318, 1e-05
        %vm3670 = vcmp.gt.f32.partialorder %v1322, 1e-05
        %vm3671 = vcmp.gt.f32.partialorder %v1324, 1e-05
        %vm3672 = vcmp.gt.f32.partialorder %v1326, 1e-05
        %vm3673 = vcmp.gt.f32.partialorder %v1328, 1e-05
        %vm3674 = vcmp.gt.f32.partialorder %v1332, 1e-05
        %vm3675 = vcmp.gt.f32.partialorder %v1334, 1e-05
        %vm3676 = vcmp.gt.f32.partialorder %v1336, 1e-05
        %vm3677 = vcmp.gt.f32.partialorder %v1338, 1e-05
        %vm3678 = vcmp.gt.f32.partialorder %v1342, 1e-05
        %vm3679 = vcmp.gt.f32.partialorder %v1344, 1e-05
        %vm3680 = vcmp.gt.f32.partialorder %v1346, 1e-05
        %vm3681 = vcmp.gt.f32.partialorder %v1348, 1e-05
        %vm3682 = vcmp.gt.f32.partialorder %v1352, 1e-05
        %vm3683 = vcmp.gt.f32.partialorder %v1354, 1e-05
        %vm3684 = vcmp.gt.f32.partialorder %v1356, 1e-05
        %vm3685 = vcmp.gt.f32.partialorder %v1358, 1e-05
        %vm3686 = vcmp.gt.f32.partialorder %v1362, 1e-05
        %vm3687 = vcmp.gt.f32.partialorder %v1364, 1e-05
        %vm3688 = vcmp.gt.f32.partialorder %v1366, 1e-05
        %vm3689 = vcmp.gt.f32.partialorder %v1368, 1e-05
        %vm3690 = vcmp.gt.f32.partialorder %v1372, 1e-05
        %vm3691 = vcmp.gt.f32.partialorder %v1374, 1e-05
        %vm3692 = vcmp.gt.f32.partialorder %v1376, 1e-05
        %vm3693 = vcmp.gt.f32.partialorder %v1378, 1e-05
        %vm3694 = vcmp.gt.f32.partialorder %v1382, 1e-05
        %vm3695 = vcmp.gt.f32.partialorder %v1384, 1e-05
        %vm3696 = vcmp.gt.f32.partialorder %v1386, 1e-05
        %vm3697 = vcmp.gt.f32.partialorder %v1388, 1e-05
        %vm3698 = vcmp.gt.f32.partialorder %v1392, 1e-05
        %vm3699 = vcmp.gt.f32.partialorder %v1394, 1e-05
        %vm3700 = vcmp.gt.f32.partialorder %v1396, 1e-05
        %vm3701 = vcmp.gt.f32.partialorder %v1398, 1e-05
        %vm3702 = vcmp.gt.f32.partialorder %v1402, 1e-05
        %vm3703 = vcmp.gt.f32.partialorder %v1404, 1e-05
        %vm3704 = vcmp.gt.f32.partialorder %v1406, 1e-05
        %vm3705 = vcmp.gt.f32.partialorder %v1408, 1e-05
        %vm3706 = vcmp.gt.f32.partialorder %v1412, 1e-05
        %vm3707 = vcmp.gt.f32.partialorder %v1414, 1e-05
        %vm3708 = vcmp.gt.f32.partialorder %v1416, 1e-05
        %vm3709 = vcmp.gt.f32.partialorder %v1418, 1e-05
        %vm3710 = vcmp.gt.f32.partialorder %v1422, 1e-05
        %vm3711 = vcmp.gt.f32.partialorder %v1424, 1e-05
        %vm3712 = vcmp.gt.f32.partialorder %v1426, 1e-05
        %vm3713 = vcmp.gt.f32.partialorder %v1428, 1e-05
        %vm3714 = vcmp.gt.f32.partialorder %v1432, 1e-05
        %vm3715 = vcmp.gt.f32.partialorder %v1434, 1e-05
        %vm3716 = vcmp.gt.f32.partialorder %v1436, 1e-05
        %vm3717 = vcmp.gt.f32.partialorder %v1438, 1e-05
        %vm3718 = vcmp.gt.f32.partialorder %v1442, 1e-05
        %vm3719 = vcmp.gt.f32.partialorder %v1444, 1e-05
        %vm3720 = vcmp.gt.f32.partialorder %v1446, 1e-05
        %vm3721 = vcmp.gt.f32.partialorder %v1448, 1e-05
        %vm3722 = vmand %vm3338, %vm3658
        %vm3723 = vmand %vm3339, %vm3659
        %vm3724 = vmand %vm3340, %vm3660
        %vm3725 = vmand %vm3341, %vm3661
        %vm3726 = vmand %vm3342, %vm3662
        %vm3727 = vmand %vm3343, %vm3663
        %vm3728 = vmand %vm3344, %vm3664
        %vm3729 = vmand %vm3345, %vm3665
        %vm3730 = vmand %vm3346, %vm3666
        %vm3731 = vmand %vm3347, %vm3667
        %vm3732 = vmand %vm3348, %vm3668
        %vm3733 = vmand %vm3349, %vm3669
        %vm3734 = vmand %vm3350, %vm3670
        %vm3735 = vmand %vm3351, %vm3671
        %vm3736 = vmand %vm3352, %vm3672
        %vm3737 = vmand %vm3353, %vm3673
        %vm3738 = vmand %vm3354, %vm3674
        %vm3739 = vmand %vm3355, %vm3675
        %vm3740 = vmand %vm3356, %vm3676
        %vm3741 = vmand %vm3357, %vm3677
        %vm3742 = vmand %vm3358, %vm3678
        %vm3743 = vmand %vm3359, %vm3679
        %vm3744 = vmand %vm3360, %vm3680
        %vm3745 = vmand %vm3361, %vm3681
        %vm3746 = vmand %vm3362, %vm3682
        %vm3747 = vmand %vm3363, %vm3683
        %vm3748 = vmand %vm3364, %vm3684
        %vm3749 = vmand %vm3365, %vm3685
        %vm3750 = vmand %vm3366, %vm3686
        %vm3751 = vmand %vm3367, %vm3687
        %vm3752 = vmand %vm3368, %vm3688
        %vm3753 = vmand %vm3369, %vm3689
        %vm3754 = vmand %vm3370, %vm3690
        %vm3755 = vmand %vm3371, %vm3691
        %vm3756 = vmand %vm3372, %vm3692
        %vm3757 = vmand %vm3373, %vm3693
        %vm3758 = vmand %vm3374, %vm3694
        %vm3759 = vmand %vm3375, %vm3695
        %vm3760 = vmand %vm3376, %vm3696
        %vm3761 = vmand %vm3377, %vm3697
        %vm3762 = vmand %vm3378, %vm3698
        %vm3763 = vmand %vm3379, %vm3699
        %vm3764 = vmand %vm3380, %vm3700
        %vm3765 = vmand %vm3381, %vm3701
        %vm3766 = vmand %vm3382, %vm3702
        %vm3767 = vmand %vm3383, %vm3703
        %vm3768 = vmand %vm3384, %vm3704
        %vm3769 = vmand %vm3385, %vm3705
        %vm3770 = vmand %vm3386, %vm3706
        %vm3771 = vmand %vm3387, %vm3707
        %vm3772 = vmand %vm3388, %vm3708
        %vm3773 = vmand %vm3389, %vm3709
        %vm3774 = vmand %vm3390, %vm3710
        %vm3775 = vmand %vm3391, %vm3711
        %vm3776 = vmand %vm3392, %vm3712
        %vm3777 = vmand %vm3393, %vm3713
        %vm3778 = vmand %vm3394, %vm3714
        %vm3779 = vmand %vm3395, %vm3715
        %vm3780 = vmand %vm3396, %vm3716
        %vm3781 = vmand %vm3397, %vm3717
        %vm3782 = vmand %vm3398, %vm3718
        %vm3783 = vmand %vm3399, %vm3719
        %vm3784 = vmand %vm3400, %vm3720
        %vm3785 = vmand %vm3401, %vm3721
        %v3786 = vsel %vm3722, 1.0, 0.0
        %v3787 = vsel %vm3723, 1.0, 0.0
        %v3788 = vsel %vm3724, 1.0, 0.0
        %v3789 = vsel %vm3725, 1.0, 0.0
        %v3790 = vsel %vm3726, 1.0, 0.0
        %v3791 = vsel %vm3727, 1.0, 0.0
        %v3792 = vsel %vm3728, 1.0, 0.0
        %v3793 = vsel %vm3729, 1.0, 0.0
        %v3794 = vsel %vm3730, 1.0, 0.0
        %v3795 = vsel %vm3731, 1.0, 0.0
        %v3796 = vsel %vm3732, 1.0, 0.0
        %v3797 = vsel %vm3733, 1.0, 0.0
        %v3798 = vsel %vm3734, 1.0, 0.0
        %v3799 = vsel %vm3735, 1.0, 0.0
        %v3800 = vsel %vm3736, 1.0, 0.0
        %v3801 = vsel %vm3737, 1.0, 0.0
        %v3802 = vsel %vm3738, 1.0, 0.0
        %v3803 = vsel %vm3739, 1.0, 0.0
        %v3804 = vsel %vm3740, 1.0, 0.0
        %v3805 = vsel %vm3741, 1.0, 0.0
        %v3806 = vsel %vm3742, 1.0, 0.0
        %v3807 = vsel %vm3743, 1.0, 0.0
        %v3808 = vsel %vm3744, 1.0, 0.0
        %v3809 = vsel %vm3745, 1.0, 0.0
        %v3810 = vsel %vm3746, 1.0, 0.0
        %v3811 = vsel %vm3747, 1.0, 0.0
        %v3812 = vsel %vm3748, 1.0, 0.0
        %v3813 = vsel %vm3749, 1.0, 0.0
        %v3814 = vsel %vm3750, 1.0, 0.0
        %v3815 = vsel %vm3751, 1.0, 0.0
        %v3816 = vsel %vm3752, 1.0, 0.0
        %v3817 = vsel %vm3753, 1.0, 0.0
        %v3818 = vsel %vm3754, 1.0, 0.0
        %v3819 = vsel %vm3755, 1.0, 0.0
        %v3820 = vsel %vm3756, 1.0, 0.0
        %v3821 = vsel %vm3757, 1.0, 0.0
        %v3822 = vsel %vm3758, 1.0, 0.0
        %v3823 = vsel %vm3759, 1.0, 0.0
        %v3824 = vsel %vm3760, 1.0, 0.0
        %v3825 = vsel %vm3761, 1.0, 0.0
        %v3826 = vsel %vm3762, 1.0, 0.0
        %v3827 = vsel %vm3763, 1.0, 0.0
        %v3828 = vsel %vm3764, 1.0, 0.0
        %v3829 = vsel %vm3765, 1.0, 0.0
        %v3830 = vsel %vm3766, 1.0, 0.0
        %v3831 = vsel %vm3767, 1.0, 0.0
        %v3832 = vsel %vm3768, 1.0, 0.0
        %v3833 = vsel %vm3769, 1.0, 0.0
        %v3834 = vsel %vm3770, 1.0, 0.0
        %v3835 = vsel %vm3771, 1.0, 0.0
        %v3836 = vsel %vm3772, 1.0, 0.0
        %v3837 = vsel %vm3773, 1.0, 0.0
        %v3838 = vsel %vm3774, 1.0, 0.0
        %v3839 = vsel %vm3775, 1.0, 0.0
        %v3840 = vsel %vm3776, 1.0, 0.0
        %v3841 = vsel %vm3777, 1.0, 0.0
        %v3842 = vsel %vm3778, 1.0, 0.0
        %v3843 = vsel %vm3779, 1.0, 0.0
        %v3844 = vsel %vm3780, 1.0, 0.0
        %v3845 = vsel %vm3781, 1.0, 0.0
        %v3846 = vsel %vm3782, 1.0, 0.0
        %v3847 = vsel %vm3783, 1.0, 0.0
        %v3848 = vsel %vm3784, 1.0, 0.0
        %v3849 = vsel %vm3785, 1.0, 0.0
        %v3850 = vmax.f32 %v3786, %v3790
        %v3851 = vmax.f32 %v3788, %v3792
        %v3852 = vmax.f32 %v3850, %v3794
        %v3853 = vmax.f32 %v3851, %v3796
        %v3854 = vmax.f32 %v3852, %v3798
        %v3855 = vmax.f32 %v3853, %v3800
        %v3856 = vmax.f32 %v3854, %v3802
        %v3857 = vmax.f32 %v3855, %v3804
        %v3858 = vmax.f32 %v3856, %v3806
        %v3859 = vmax.f32 %v3857, %v3808
        %v3860 = vmax.f32 %v3858, %v3810
        %v3861 = vmax.f32 %v3859, %v3812
        %v3862 = vmax.f32 %v3860, %v3814
        %v3863 = vmax.f32 %v3861, %v3816
        %v3864 = vmax.f32 %v3862, %v3818
        %v3865 = vmax.f32 %v3863, %v3820
        %v3866 = vmax.f32 %v3864, %v3822
        %v3867 = vmax.f32 %v3865, %v3824
        %v3868 = vmax.f32 %v3866, %v3826
        %v3869 = vmax.f32 %v3867, %v3828
        %v3870 = vmax.f32 %v3868, %v3830
        %v3871 = vmax.f32 %v3869, %v3832
        %v3872 = vmax.f32 %v3870, %v3834
        %v3873 = vmax.f32 %v3871, %v3836
        %v3874 = vmax.f32 %v3872, %v3838
        %v3875 = vmax.f32 %v3873, %v3840
        %v3876 = vmax.f32 %v3874, %v3842
        %v3877 = vmax.f32 %v3875, %v3844
        %v3878 = vmax.f32 %v3876, %v3846
        %v3879 = vmax.f32 %v3877, %v3848
        %v3880 = vmax.f32 %v3878, %v3879
        %v3881 = vrot.slane %v3880, 4
        %v3882 = vmax.f32 %v3880, %v3881
        %v3883 = vrot.slane %v3882, 2
        %v3884 = vmax.f32 %v3882, %v3883
        %v3885 = vrot.slane %v3884, 1
        %v3886 = vmax.f32 %v3884, %v3885
        %v3887 = vmax.f32 %v3787, %v3791
        %v3888 = vmax.f32 %v3789, %v3793
        %v3889 = vmax.f32 %v3887, %v3795
        %v3890 = vmax.f32 %v3888, %v3797
        %v3891 = vmax.f32 %v3889, %v3799
        %v3892 = vmax.f32 %v3890, %v3801
        %v3893 = vmax.f32 %v3891, %v3803
        %v3894 = vmax.f32 %v3892, %v3805
        %v3895 = vmax.f32 %v3893, %v3807
        %v3896 = vmax.f32 %v3894, %v3809
        %v3897 = vmax.f32 %v3895, %v3811
        %v3898 = vmax.f32 %v3896, %v3813
        %v3899 = vmax.f32 %v3897, %v3815
        %v3900 = vmax.f32 %v3898, %v3817
        %v3901 = vmax.f32 %v3899, %v3819
        %v3902 = vmax.f32 %v3900, %v3821
        %v3903 = vmax.f32 %v3901, %v3823
        %v3904 = vmax.f32 %v3902, %v3825
        %v3905 = vmax.f32 %v3903, %v3827
        %v3906 = vmax.f32 %v3904, %v3829
        %v3907 = vmax.f32 %v3905, %v3831
        %v3908 = vmax.f32 %v3906, %v3833
        %v3909 = vmax.f32 %v3907, %v3835
        %v3910 = vmax.f32 %v3908, %v3837
        %v3911 = vmax.f32 %v3909, %v3839
        %v3912 = vmax.f32 %v3910, %v3841
        %v3913 = vmax.f32 %v3911, %v3843
        %v3914 = vmax.f32 %v3912, %v3845
        %v3915 = vmax.f32 %v3913, %v3847
        %v3916 = vmax.f32 %v3914, %v3849
        %v3917 = vmax.f32 %v3915, %v3916
        %v3918 = vrot.slane %v3917, 4
        %v3919 = vmax.f32 %v3917, %v3918
        %v3920 = vrot.slane %v3919, 2
        %v3921 = vmax.f32 %v3919, %v3920
        %v3922 = vrot.slane %v3921, 1
        %v3923 = vmax.f32 %v3921, %v3922
        %v3926 = vcombine.low %v3886, %v3923
        %v3928 = vunpack.c.l.s4 1966171168
        %v3929 = vunpack.c.0.s8 %v3928
        %v3930 = vlaneseq
        %v3931 = vshrl.u32 %v3930, 7
        %v3932 = vsub.s32 %v3929, %v3931
        %v3933 = vrot.slane %v3926, %v3932
        %v3935 = vunpack.c.l.s4 1966171168
        %v3936 = vunpack.c.0.s8 %v3935
        %v3937 = vlaneseq
        %v3938 = vshrl.u32 %v3937, 7
        %v3939 = vsub.s32 %v3936, %v3938
        %v3940 = vrot.slane %v3933, %v3939
        %v3942 = vlaneseq
        %vm3943 = vcmp.ge.s32.totalorder %v3942, 0
        %vm3944 = vcmp.lt.s32.totalorder %v3942, 256
        %vm3945 = vmand %vm3943, %vm3944
        %3946 = vst.msk [vmem:[%s370] sm:$0x3] %vm3945, %v3940
        %s3947 = sand.u32 %s127, 1
        %s3948 = scalar_lea.sflag [#allocation4], %s3947
        %s3949 = sand.u32 %s127, 1
        %s3950 = smul.addr %s3949, 256
        %s3951 = scalar_lea.vmem [#allocation7], %s3950
        %s3952 = sand.u32 %s30, 1
        %s3953 = scalar_lea.sflag [#allocation9], %s3952
        %s3954 = sand.u32 %s153, 1
        %s3955 = smul.addr %s3954, 512
        %s3956 = scalar_lea.vmem [#allocation8], %s3955
        %s3957 = smul.u32 32, %s30
        %p3958 = scmp.lt.s32.totalorder %s3957, 63
        %s3959 = scalar_select %p3958, %s3957, 63
        %s3960 = smul.addr %s3959, 8
        %s3961 = scalar_lea.vmem %s6, %s3960
        %s3962 = smul.u32 32, %s30
        %p3963 = scmp.lt.s32.totalorder %s3962, 63
        %s3964 = scalar_select %p3963, %s3962, 63
        %s3965 = smul.addr %s3964, 8
        %s3966 = scalar_lea.vmem %s7, %s3965
        %s3967 = sand.u32 %s30, 1
        %s3968 = scalar_lea.sflag [#allocation9], %s3967
        %s3969 = sand.u32 %s231, 1
        %s3970 = smul.addr %s3969, 2
        %s3971 = scalar_lea.vmem [#allocation10], %s3970
        // Predicated region
        $region45: #{tpu_custom_call.1} parent=35 // pred_check
          %p3972 = pneg %p137
        $region46: #{tpu_custom_call.1} parent=35 // pred_check_branch
          %3974 = sbr.rel (%p3972) target = $region48
        $region47: #{tpu_custom_call.1} parent=35 // pred_region
          %s3975 = smul.u32 32, %s30
          %s3977 = ssub.s32 4096, 4096
          %3978 = vsyncadd %s3948, %s3977
          %s3979 = smul.addr %s3975, 2
          %s3980 = smul.addr %s3979, 64
          %s3981 = scalar_lea.hbm %s4, %s3980
          %s3982 = sshll.u32 %s3951, 4
          %s3983 = int_to_ptr.vmem [resolvable:$true] %s3982
          %3988 = dma.vmem_to_hbm [thread:$0]  %s3983, 4096, %s3981, %s3948, 128, 128, 8
        $region48: #{tpu_custom_call.1} parent=35 // pred_fallthru
          _
        // Predicated region
        $region49: #{tpu_custom_call.1} parent=35 // pred_check
          %p3989 = pneg %p163
        $region50: #{tpu_custom_call.1} parent=35 // pred_check_branch
          %3991 = sbr.rel (%p3989) target = $region52
        $region51: #{tpu_custom_call.1} parent=35 // pred_region
          %s3992 = smul.u32 32, %s30
          %s3994 = ssub.s32 8192, 8192
          %3995 = vsyncadd %s3953, %s3994
          %s3996 = smul.addr %s3992, 2
          %s3997 = smul.addr %s3996, 128
          %s3998 = scalar_lea.hbm %s5, %s3997
          %s3999 = sshll.u32 %s3956, 4
          %s4000 = int_to_ptr.vmem [resolvable:$true] %s3999
          %4005 = dma.vmem_to_hbm [thread:$0]  %s4000, 8192, %s3998, %s3953, 256, 256, 16
        $region52: #{tpu_custom_call.1} parent=35 // pred_fallthru
          _
        // Predicated region
        $region53: #{tpu_custom_call.1} parent=35 // pred_check
          %p4006 = pneg %p189
        $region54: #{tpu_custom_call.1} parent=35 // pred_check_branch
          %4008 = sbr.rel (%p4006) target = $region56
        $region55: #{tpu_custom_call.1} parent=35 // pred_region
          %s4009 = smul.u32 32, %s30
        $region56: #{tpu_custom_call.1} parent=35 // pred_fallthru
          _
        // Predicated region
        $region57: #{tpu_custom_call.1} parent=35 // pred_check
          %p4010 = pneg %p215
        $region58: #{tpu_custom_call.1} parent=35 // pred_check_branch
          %4012 = sbr.rel (%p4010) target = $region60
        $region59: #{tpu_custom_call.1} parent=35 // pred_region
          %s4013 = smul.u32 32, %s30
        $region60: #{tpu_custom_call.1} parent=35 // pred_fallthru
          _
        // Predicated region
        $region61: #{tpu_custom_call.1} parent=35 // pred_check
          %p4014 = pneg %p241
        $region62: #{tpu_custom_call.1} parent=35 // pred_check_branch
          %4016 = sbr.rel (%p4014) target = $region64
        $region63: #{tpu_custom_call.1} parent=35 // pred_region
          %s4018 = ssub.s32 32, 32
          %4019 = vsyncadd %s3968, %s4018
          %s4020 = smul.addr %s30, 2
          %s4021 = smul.addr %s4020, 16
          %s4022 = scalar_lea.hbm %s8, %s4021
          %s4024 = sshll.u32 %s3971, 4
          %s4025 = int_to_ptr.vmem [resolvable:$true] %s4024
          %4027 = dma.vmem_to_hbm [thread:$0]  %s4025, 32, %s4022, %s3968
        $region64: #{tpu_custom_call.1} parent=35 // pred_fallthru
          _
      $region36: #{tpu_custom_call.1} parent=5 // pred_fallthru
        _
      %p4028 = scmp.le.s32.totalorder 2, %s25
      // Predicated region
      $region65: #{tpu_custom_call.1} parent=5 // pred_check
        %p4029 = pneg %p4028
      $region66: #{tpu_custom_call.1} parent=5 // pred_check_branch
        %4031 = sbr.rel (%p4029) target = $region68
      $region67: #{tpu_custom_call.1} parent=5 // pred_region
        %s4032 = ssub.s32 %s25, 2
        // Predicated region
        $region69: #{tpu_custom_call.1} parent=67 // pred_check
          %p4033 = pneg %p143
        $region70: #{tpu_custom_call.1} parent=67 // pred_check_branch
          %4035 = sbr.rel (%p4033) target = $region72
        $region71: #{tpu_custom_call.1} parent=67 // pred_region
          %s4036 = sand.u32 %s128, 1
          %s4037 = scalar_lea.sflag [#allocation4], %s4036
          %s4038 = sand.u32 %s128, 1
          %s4039 = smul.addr %s4038, 256
          %s4040 = scalar_lea.vmem [#allocation7], %s4039
          %4041 = dma.done %s4037, 4096
        $region72: #{tpu_custom_call.1} parent=67 // pred_fallthru
          _
        // Predicated region
        $region73: #{tpu_custom_call.1} parent=67 // pred_check
          %p4042 = pneg %p169
        $region74: #{tpu_custom_call.1} parent=67 // pred_check_branch
          %4044 = sbr.rel (%p4042) target = $region76
        $region75: #{tpu_custom_call.1} parent=67 // pred_region
          %s4045 = sand.u32 %s31, 1
          %s4046 = scalar_lea.sflag [#allocation9], %s4045
          %s4047 = sand.u32 %s154, 1
          %s4048 = smul.addr %s4047, 512
          %s4049 = scalar_lea.vmem [#allocation8], %s4048
          %4050 = dma.done %s4046, 8192
        $region76: #{tpu_custom_call.1} parent=67 // pred_fallthru
          _
        // Predicated region
        $region77: #{tpu_custom_call.1} parent=67 // pred_check
          %p4051 = pneg %p195
        $region78: #{tpu_custom_call.1} parent=67 // pred_check_branch
          %4053 = sbr.rel (%p4051) target = $region80
        $region79: #{tpu_custom_call.1} parent=67 // pred_region
          %s4054 = smul.u32 32, %s31
          %p4055 = scmp.lt.s32.totalorder %s4054, 63
          %s4056 = scalar_select %p4055, %s4054, 63
          %s4057 = smul.addr %s4056, 8
          %s4058 = scalar_lea.vmem %s6, %s4057
        $region80: #{tpu_custom_call.1} parent=67 // pred_fallthru
          _
        // Predicated region
        $region81: #{tpu_custom_call.1} parent=67 // pred_check
          %p4059 = pneg %p221
        $region82: #{tpu_custom_call.1} parent=67 // pred_check_branch
          %4061 = sbr.rel (%p4059) target = $region84
        $region83: #{tpu_custom_call.1} parent=67 // pred_region
          %s4062 = smul.u32 32, %s31
          %p4063 = scmp.lt.s32.totalorder %s4062, 63
          %s4064 = scalar_select %p4063, %s4062, 63
          %s4065 = smul.addr %s4064, 8
          %s4066 = scalar_lea.vmem %s7, %s4065
        $region84: #{tpu_custom_call.1} parent=67 // pred_fallthru
          _
        // Predicated region
        $region85: #{tpu_custom_call.1} parent=67 // pred_check
          %p4067 = pneg %p247
        $region86: #{tpu_custom_call.1} parent=67 // pred_check_branch
          %4069 = sbr.rel (%p4067) target = $region88
        $region87: #{tpu_custom_call.1} parent=67 // pred_region
          %s4070 = sand.u32 %s31, 1
          %s4071 = scalar_lea.sflag [#allocation9], %s4070
          %s4072 = sand.u32 %s232, 1
          %s4073 = smul.addr %s4072, 2
          %s4074 = scalar_lea.vmem [#allocation10], %s4073
          %4075 = dma.done %s4071, 32
        $region88: #{tpu_custom_call.1} parent=67 // pred_fallthru
          _
      $region68: #{tpu_custom_call.1} parent=5 // pred_fallthru
        _
    $region6: #{tpu_custom_call.1} parent=1 // loop_footer
      %s29 = sadd.s32 1, %s25
    $region7: #{tpu_custom_call.1} parent=1 // loop_footer_branch
      %24 = sbr.rel target = $region3
    $region8: #{tpu_custom_call.1} parent=1 // loop_exit
      _
    %4076 = vsyncpa [#allocation3], 1
    %s4077 = scalar_lea.sflag [#allocation3], 1
    %4078 = vsyncpa %s4077, 1
    %4079 = vsyncpa [#allocation6], 1
    %4080 = vsyncpa [#allocation4], 1
    %s4081 = scalar_lea.sflag [#allocation4], 1
    %4082 = vsyncpa %s4081, 1
    %4083 = vsyncpa [#allocation9], 1
    %s4084 = scalar_lea.sflag [#allocation9], 1
    %4085 = vsyncpa %s4084, 1

// kernel: tpu_custom_call.1
$region0: #{tpu_custom_call.1}
  #allocation0 [shape = 'u32[]', space=smem, size = 0x4, offset = 0x4, fixed_abs, tag = 'smem constant byte address 0x4 - core index']
  #allocation1 [shape = 'u32[144,128]{1,0:T(1,128)}', space=vmem, size = 0x12000, scoped, tag = 'internal scratch']
  %s0 = inlined_call_operand.hbm [shape: f32[512,128], index: 0, kind: input, shape index: {}]
  %s1 = inlined_call_operand.hbm [shape: bf16[256,128], index: 1, kind: input, shape index: {}]
  %s2 = inlined_call_operand.vmem [shape: f32[1,128], index: 2, kind: input, shape index: {}]
  %s3 = inlined_call_operand.vmem [shape: f32[1,256], index: 3, kind: input, shape index: {}]
  %s4 = inlined_call_operand.hbm [shape: bf16[512,256], index: 4, kind: output, shape index: {0}]
  %s5 = inlined_call_operand.hbm [shape: f32[512,256], index: 5, kind: output, shape index: {1}]
  %s6 = inlined_call_operand.vmem [shape: f32[512,1], index: 6, kind: output, shape index: {2}]
  %s7 = inlined_call_operand.vmem [shape: f32[512,1], index: 7, kind: output, shape index: {3}]
  %s8 = inlined_call_operand.hbm [shape: f32[2,1,256], index: 8, kind: output, shape index: {4}]
  %9 = xla_tuple %s4, %s5, %s6, %s7, %s8
  %s10 = sld [smem:[#allocation0]]
  $region89: #{tpu_custom_call.1} parent=0
    _
  %s12 = ssub.s32 1, %s10
  %s13 = scalar_select 0, %s12, %s10
  $region1: #{tpu_custom_call.1} parent=0
    #allocation2 [shape = 'u8[262144]{0}', space=vmem, size = 0x40000, scoped, tag = 'input window, operand 0']
    #allocation3 [shape = 's32[2]{0}', space=sflag, size = 0x8, scoped, tag = 'scoped memory for tpu_custom_call.1']
    #allocation4 [shape = 's32[2]{0}', space=sflag, size = 0x8, scoped, tag = 'scoped memory for tpu_custom_call.1']
    #allocation5 [shape = 'u8[65536]{0}', space=vmem, size = 0x10000, scoped, tag = 'input window, operand 1, single buffered']
    #allocation6 [shape = 's32[1]{0}', space=sflag, size = 0x4, scoped, tag = 'scoped memory for tpu_custom_call.1']
    #allocation7 [shape = 'u8[262144]{0}', space=vmem, size = 0x40000, scoped, tag = 'output window, operand 0']
    #allocation8 [shape = 'u8[524288]{0}', space=vmem, size = 0x80000, scoped, tag = 'output window, operand 1']
    #allocation9 [shape = 's32[2]{0}', space=sflag, size = 0x8, scoped, tag = 'scoped memory for tpu_custom_call.1']
    #allocation10 [shape = 'u8[2048]{0}', space=vmem, size = 0x800, scoped, tag = 'output window, operand 4']
    %14 = vsyncpa [#allocation3], 0
    %s15 = scalar_lea.sflag [#allocation3], 1
    %16 = vsyncpa %s15, 0
    %17 = vsyncpa [#allocation6], 0
    %18 = vsyncpa [#allocation4], 0
    %s19 = scalar_lea.sflag [#allocation4], 1
    %20 = vsyncpa %s19, 0
    %21 = vsyncpa [#allocation9], 0
    %s22 = scalar_lea.sflag [#allocation9], 1
    %23 = vsyncpa %s22, 0
    loop: start=0, step=1, limit=4
    $region2: #{tpu_custom_call.1} parent=1 // loop_pre_header
      _
    $region3: #{tpu_custom_call.1} parent=1 // loop_header
      %s25 = sphi 0, %s29
      %p26 = scmp.ge.s32.totalorder %s25, 4
      %s35 = sphi 0, %s37
      %s38 = sphi 0, %s35
      %s39 = sphi 0, %s38
      %s55 = sphi 0, %s39
      %s59 = sphi 0, %s59
      %s61 = sphi 0, %s59
      %s62 = sphi 0, %s61
      %s76 = sphi 0, %s62
      %s80 = sphi 0, %s80
      %s82 = sphi 0, %s80
      %s83 = sphi 0, %s82
      %s97 = sphi 0, %s83
      %s101 = sphi 0, %s101
      %s103 = sphi 0, %s101
      %s104 = sphi 0, %s103
      %s118 = sphi 0, %s104
      %s124 = sphi 0, %s126
      %s127 = sphi 0, %s124
      %s128 = sphi 0, %s127
      %s144 = sphi 0, %s128
      %s150 = sphi 0, %s152
      %s153 = sphi 0, %s150
      %s154 = sphi 0, %s153
      %s170 = sphi 0, %s154
      %s176 = sphi 0, %s178
      %s179 = sphi 0, %s176
      %s180 = sphi 0, %s179
      %s196 = sphi 0, %s180
      %s202 = sphi 0, %s204
      %s205 = sphi 0, %s202
      %s206 = sphi 0, %s205
      %s222 = sphi 0, %s206
      %s228 = sphi 0, %s230
      %s231 = sphi 0, %s228
      %s232 = sphi 0, %s231
      %s248 = sphi 0, %s232
    $region4: #{tpu_custom_call.1} parent=1 // loop_header_branch
      %28 = sbr.rel (%p26) target = $region8
    $region5: #{tpu_custom_call.1} parent=1 // loop_body
      %s30 = ssub.s32 %s25, 1
      %s31 = ssub.s32 %s25, 2
      %s32 = sadd.s32 %s25, 1
      %s33 = ssub.s32 %s25, %s32
      %p34 = scmp.eq.s32.totalorder %s33, 0
      %s36 = sadd.s32 %s35, 1
      %s37 = scalar_select %p34, %s35, %s36
      %p40 = pneg %p34
      %p41 = scmp.eq.s32.totalorder %s25, 1
      %p42 = por %p40, %p41
      %p43 = scmp.ne.s32.totalorder %s35, %s38
      %p44 = scmp.eq.s32.totalorder %s25, 0
      %p45 = por %p43, %p44
      %p46 = scmp.ne.s32.totalorder %s35, %s38
      %p47 = scmp.eq.s32.totalorder %s30, 1
      %p48 = por %p46, %p47
      %p49 = scmp.ne.s32.totalorder %s38, %s39
      %p50 = scmp.eq.s32.totalorder %s30, 0
      %p51 = por %p49, %p50
      %p52 = scmp.ne.s32.totalorder %s38, %s39
      %p53 = scmp.eq.s32.totalorder %s31, 1
      %p54 = por %p52, %p53
      %p56 = scmp.ne.s32.totalorder %s39, %s55
      %p57 = scmp.eq.s32.totalorder %s31, 0
      %p58 = por %p56, %p57
      %s60 = sadd.s32 %s59, 1
      %p63 = scmp.eq.s32.totalorder %s25, 1
      %p64 = scmp.ne.s32.totalorder %s59, %s61
      %p65 = scmp.eq.s32.totalorder %s25, 0
      %p66 = por %p64, %p65
      %p67 = scmp.ne.s32.totalorder %s59, %s61
      %p68 = scmp.eq.s32.totalorder %s30, 1
      %p69 = por %p67, %p68
      %p70 = scmp.ne.s32.totalorder %s61, %s62
      %p71 = scmp.eq.s32.totalorder %s30, 0
      %p72 = por %p70, %p71
      %p73 = scmp.ne.s32.totalorder %s61, %s62
      %p74 = scmp.eq.s32.totalorder %s31, 1
      %p75 = por %p73, %p74
      %p77 = scmp.ne.s32.totalorder %s62, %s76
      %p78 = scmp.eq.s32.totalorder %s31, 0
      %p79 = por %p77, %p78
      %s81 = sadd.s32 %s80, 1
      %p84 = scmp.eq.s32.totalorder %s25, 1
      %p85 = scmp.ne.s32.totalorder %s80, %s82
      %p86 = scmp.eq.s32.totalorder %s25, 0
      %p87 = por %p85, %p86
      %p88 = scmp.ne.s32.totalorder %s80, %s82
      %p89 = scmp.eq.s32.totalorder %s30, 1
      %p90 = por %p88, %p89
      %p91 = scmp.ne.s32.totalorder %s82, %s83
      %p92 = scmp.eq.s32.totalorder %s30, 0
      %p93 = por %p91, %p92
      %p94 = scmp.ne.s32.totalorder %s82, %s83
      %p95 = scmp.eq.s32.totalorder %s31, 1
      %p96 = por %p94, %p95
      %p98 = scmp.ne.s32.totalorder %s83, %s97
      %p99 = scmp.eq.s32.totalorder %s31, 0
      %p100 = por %p98, %p99
      %s102 = sadd.s32 %s101, 1
      %p105 = scmp.eq.s32.totalorder %s25, 1
      %p106 = scmp.ne.s32.totalorder %s101, %s103
      %p107 = scmp.eq.s32.totalorder %s25, 0
      %p108 = por %p106, %p107
      %p109 = scmp.ne.s32.totalorder %s101, %s103
      %p110 = scmp.eq.s32.totalorder %s30, 1
      %p111 = por %p109, %p110
      %p112 = scmp.ne.s32.totalorder %s103, %s104
      %p113 = scmp.eq.s32.totalorder %s30, 0
      %p114 = por %p112, %p113
      %p115 = scmp.ne.s32.totalorder %s103, %s104
      %p116 = scmp.eq.s32.totalorder %s31, 1
      %p117 = por %p115, %p116
      %p119 = scmp.ne.s32.totalorder %s104, %s118
      %p120 = scmp.eq.s32.totalorder %s31, 0
      %p121 = por %p119, %p120
      %s122 = ssub.s32 %s25, %s32
      %p123 = scmp.eq.s32.totalorder %s122, 0
      %s125 = sadd.s32 %s124, 1
      %s126 = scalar_select %p123, %s124, %s125
      %p129 = pneg %p123
      %p130 = scmp.eq.s32.totalorder %s25, 1
      %p131 = por %p129, %p130
      %p132 = scmp.ne.s32.totalorder %s124, %s127
      %p133 = scmp.eq.s32.totalorder %s25, 0
      %p134 = por %p132, %p133
      %p135 = scmp.ne.s32.totalorder %s124, %s127
      %p136 = scmp.eq.s32.totalorder %s30, 1
      %p137 = por %p135, %p136
      %p138 = scmp.ne.s32.totalorder %s127, %s128
      %p139 = scmp.eq.s32.totalorder %s30, 0
      %p140 = por %p138, %p139
      %p141 = scmp.ne.s32.totalorder %s127, %s128
      %p142 = scmp.eq.s32.totalorder %s31, 1
      %p143 = por %p141, %p142
      %p145 = scmp.ne.s32.totalorder %s128, %s144
      %p146 = scmp.eq.s32.totalorder %s31, 0
      %p147 = por %p145, %p146
      %s148 = ssub.s32 %s25, %s32
      %p149 = scmp.eq.s32.totalorder %s148, 0
      %s151 = sadd.s32 %s150, 1
      %s152 = scalar_select %p149, %s150, %s151
      %p155 = pneg %p149
      %p156 = scmp.eq.s32.totalorder %s25, 1
      %p157 = por %p155, %p156
      %p158 = scmp.ne.s32.totalorder %s150, %s153
      %p159 = scmp.eq.s32.totalorder %s25, 0
      %p160 = por %p158, %p159
      %p161 = scmp.ne.s32.totalorder %s150, %s153
      %p162 = scmp.eq.s32.totalorder %s30, 1
      %p163 = por %p161, %p162
      %p164 = scmp.ne.s32.totalorder %s153, %s154
      %p165 = scmp.eq.s32.totalorder %s30, 0
      %p166 = por %p164, %p165
      %p167 = scmp.ne.s32.totalorder %s153, %s154
      %p168 = scmp.eq.s32.totalorder %s31, 1
      %p169 = por %p167, %p168
      %p171 = scmp.ne.s32.totalorder %s154, %s170
      %p172 = scmp.eq.s32.totalorder %s31, 0
      %p173 = por %p171, %p172
      %s174 = ssub.s32 %s25, %s32
      %p175 = scmp.eq.s32.totalorder %s174, 0
      %s177 = sadd.s32 %s176, 1
      %s178 = scalar_select %p175, %s176, %s177
      %p181 = pneg %p175
      %p182 = scmp.eq.s32.totalorder %s25, 1
      %p183 = por %p181, %p182
      %p184 = scmp.ne.s32.totalorder %s176, %s179
      %p185 = scmp.eq.s32.totalorder %s25, 0
      %p186 = por %p184, %p185
      %p187 = scmp.ne.s32.totalorder %s176, %s179
      %p188 = scmp.eq.s32.totalorder %s30, 1
      %p189 = por %p187, %p188
      %p190 = scmp.ne.s32.totalorder %s179, %s180
      %p191 = scmp.eq.s32.totalorder %s30, 0
      %p192 = por %p190, %p191
      %p193 = scmp.ne.s32.totalorder %s179, %s180
      %p194 = scmp.eq.s32.totalorder %s31, 1
      %p195 = por %p193, %p194
      %p197 = scmp.ne.s32.totalorder %s180, %s196
      %p198 = scmp.eq.s32.totalorder %s31, 0
      %p199 = por %p197, %p198
      %s200 = ssub.s32 %s25, %s32
      %p201 = scmp.eq.s32.totalorder %s200, 0
      %s203 = sadd.s32 %s202, 1
      %s204 = scalar_select %p201, %s202, %s203
      %p207 = pneg %p201
      %p208 = scmp.eq.s32.totalorder %s25, 1
      %p209 = por %p207, %p208
      %p210 = scmp.ne.s32.totalorder %s202, %s205
      %p211 = scmp.eq.s32.totalorder %s25, 0
      %p212 = por %p210, %p211
      %p213 = scmp.ne.s32.totalorder %s202, %s205
      %p214 = scmp.eq.s32.totalorder %s30, 1
      %p215 = por %p213, %p214
      %p216 = scmp.ne.s32.totalorder %s205, %s206
      %p217 = scmp.eq.s32.totalorder %s30, 0
      %p218 = por %p216, %p217
      %p219 = scmp.ne.s32.totalorder %s205, %s206
      %p220 = scmp.eq.s32.totalorder %s31, 1
      %p221 = por %p219, %p220
      %p223 = scmp.ne.s32.totalorder %s206, %s222
      %p224 = scmp.eq.s32.totalorder %s31, 0
      %p225 = por %p223, %p224
      %s226 = ssub.s32 %s25, %s32
      %p227 = scmp.eq.s32.totalorder %s226, 0
      %s229 = sadd.s32 %s228, 1
      %s230 = scalar_select %p227, %s228, %s229
      %p233 = pneg %p227
      %p234 = scmp.eq.s32.totalorder %s25, 1
      %p235 = por %p233, %p234
      %p236 = scmp.ne.s32.totalorder %s228, %s231
      %p237 = scmp.eq.s32.totalorder %s25, 0
      %p238 = por %p236, %p237
      %p239 = scmp.ne.s32.totalorder %s228, %s231
      %p240 = scmp.eq.s32.totalorder %s30, 1
      %p241 = por %p239, %p240
      %p242 = scmp.ne.s32.totalorder %s231, %s232
      %p243 = scmp.eq.s32.totalorder %s30, 0
      %p244 = por %p242, %p243
      %p245 = scmp.ne.s32.totalorder %s231, %s232
      %p246 = scmp.eq.s32.totalorder %s31, 1
      %p247 = por %p245, %p246
      %p249 = scmp.ne.s32.totalorder %s232, %s248
      %p250 = scmp.eq.s32.totalorder %s31, 0
      %p251 = por %p249, %p250
      %p252 = scmp.le.s32.totalorder 1, %s25
      %p253 = scmp.lt.s32.totalorder %s25, 3
      %p254 = pnand %p252, %p253
      %p255 = pneg %p254
      // Predicated region
      $region9: #{tpu_custom_call.1} parent=5 // pred_check
        _
      $region10: #{tpu_custom_call.1} parent=5 // pred_check_branch
        %257 = sbr.rel (%p254) target = $region12
      $region11: #{tpu_custom_call.1} parent=5 // pred_region
        %s258 = ssub.s32 %s25, 1
        // Predicated region
        $region13: #{tpu_custom_call.1} parent=11 // pred_check
          %p259 = pneg %p72
        $region14: #{tpu_custom_call.1} parent=11 // pred_check_branch
          %261 = sbr.rel (%p259) target = $region16
        $region15: #{tpu_custom_call.1} parent=11 // pred_region
          %s263 = ssub.s32 2048, 2048
          %264 = vsyncadd [#allocation6], %s263
          %s265 = sshll.u32 [#allocation5], 4
          %s266 = int_to_ptr.vmem [resolvable:$true] %s265
          %271 = dma.hbm_to_vmem [thread:$0]  %s1, 2048, %s266, [#allocation6], 64, 64, 4
        $region16: #{tpu_custom_call.1} parent=11 // pred_fallthru
          _
        // Predicated region
        $region17: #{tpu_custom_call.1} parent=11 // pred_check
          %p272 = pneg %p93
        $region18: #{tpu_custom_call.1} parent=11 // pred_check_branch
          %274 = sbr.rel (%p272) target = $region20
        $region19: #{tpu_custom_call.1} parent=11 // pred_region
          _
        $region20: #{tpu_custom_call.1} parent=11 // pred_fallthru
          _
        // Predicated region
        $region21: #{tpu_custom_call.1} parent=11 // pred_check
          %p275 = pneg %p114
        $region22: #{tpu_custom_call.1} parent=11 // pred_check_branch
          %277 = sbr.rel (%p275) target = $region24
        $region23: #{tpu_custom_call.1} parent=11 // pred_region
          _
        $region24: #{tpu_custom_call.1} parent=11 // pred_fallthru
          _
      $region12: #{tpu_custom_call.1} parent=5 // pred_fallthru
        _
      %p278 = scmp.lt.s32.totalorder %s25, 2
      // Predicated region
      $region25: #{tpu_custom_call.1} parent=5 // pred_check
        %p279 = pneg %p278
      $region26: #{tpu_custom_call.1} parent=5 // pred_check_branch
        %281 = sbr.rel (%p279) target = $region28
      $region27: #{tpu_custom_call.1} parent=5 // pred_region
        // Predicated region
        $region29: #{tpu_custom_call.1} parent=27 // pred_check
          %p282 = pneg %p45
        $region30: #{tpu_custom_call.1} parent=27 // pred_check_branch
          %284 = sbr.rel (%p282) target = $region32
        $region31: #{tpu_custom_call.1} parent=27 // pred_region
          %s285 = sand.u32 %s35, 1
          %s286 = scalar_lea.sflag [#allocation3], %s285
          %s287 = sand.u32 %s35, 1
          %s288 = smul.addr %s287, 256
          %s289 = scalar_lea.vmem [#allocation2], %s288
          %s290 = smul.u32 32, %s25
          %s292 = ssub.s32 4096, 4096
          %293 = vsyncadd %s286, %s292
          %s294 = smul.addr %s290, 128
          %s295 = scalar_lea.hbm %s0, %s294
          %s296 = sshll.u32 %s289, 4
          %s297 = int_to_ptr.vmem [resolvable:$true] %s296
          %302 = dma.hbm_to_vmem [thread:$0]  %s295, 4096, %s297, %s286, 128, 128, 8
        $region32: #{tpu_custom_call.1} parent=27 // pred_fallthru
          _
      $region28: #{tpu_custom_call.1} parent=5 // pred_fallthru
        _
      %p303 = scmp.le.s32.totalorder 1, %s25
      %p304 = scmp.lt.s32.totalorder %s25, 3
      %p305 = pnand %p303, %p304
      %p306 = pneg %p305
      // Predicated region
      $region33: #{tpu_custom_call.1} parent=5 // pred_check
        _
      $region34: #{tpu_custom_call.1} parent=5 // pred_check_branch
        %308 = sbr.rel (%p305) target = $region36
      $region35: #{tpu_custom_call.1} parent=5 // pred_region
        %s309 = ssub.s32 %s25, 1
        %s310 = sand.u32 %s38, 1
        %s311 = scalar_lea.sflag [#allocation3], %s310
        %s312 = sand.u32 %s38, 1
        %s313 = smul.addr %s312, 256
        %s314 = scalar_lea.vmem [#allocation2], %s313
        // Predicated region
        $region37: #{tpu_custom_call.1} parent=35 // pred_check
          %p315 = pneg %p51
        $region38: #{tpu_custom_call.1} parent=35 // pred_check_branch
          %317 = sbr.rel (%p315) target = $region40
        $region39: #{tpu_custom_call.1} parent=35 // pred_region
          %318 = dma.done %s311, 4096
        $region40: #{tpu_custom_call.1} parent=35 // pred_fallthru
          _
        // Predicated region
        $region41: #{tpu_custom_call.1} parent=35 // pred_check
          %p319 = pneg %p72
        $region42: #{tpu_custom_call.1} parent=35 // pred_check_branch
          %321 = sbr.rel (%p319) target = $region44
        $region43: #{tpu_custom_call.1} parent=35 // pred_region
          %322 = dma.done [#allocation6], 2048
        $region44: #{tpu_custom_call.1} parent=35 // pred_fallthru
          _
        %s323 = sand.u32 %s38, 1
        %s324 = scalar_lea.sflag [#allocation3], %s323
        %s325 = sand.u32 %s38, 1
        %s326 = smul.addr %s325, 256
        %s327 = scalar_lea.vmem [#allocation2], %s326
        %p328 = pneg %p51
        %p329 = pneg %p48
        %p330 = pneg %p72
        %p331 = pneg %p69
        %p332 = pneg %p93
        %p333 = pneg %p90
        %p334 = pneg %p114
        %p335 = pneg %p111
        %p336 = pneg %p140
        %p337 = pneg %p137
        %s338 = sand.u32 %s127, 1
        %s339 = scalar_lea.sflag [#allocation4], %s338
        %s340 = sand.u32 %s127, 1
        %s341 = smul.addr %s340, 256
        %s342 = scalar_lea.vmem [#allocation7], %s341
        %p343 = pneg %p166
        %p344 = pneg %p163
        %s345 = sand.u32 %s30, 1
        %s346 = scalar_lea.sflag [#allocation9], %s345
        %s347 = sand.u32 %s153, 1
        %s348 = smul.addr %s347, 512
        %s349 = scalar_lea.vmem [#allocation8], %s348
        %p350 = pneg %p192
        %p351 = pneg %p189
        %s352 = smul.u32 32, %s30
        %p353 = scmp.lt.s32.totalorder %s352, 63
        %s354 = scalar_select %p353, %s352, 63
        %s355 = smul.addr %s354, 8
        %s356 = scalar_lea.vmem %s6, %s355
        %p357 = pneg %p218
        %p358 = pneg %p215
        %s359 = smul.u32 32, %s30
        %p360 = scmp.lt.s32.totalorder %s359, 63
        %s361 = scalar_select %p360, %s359, 63
        %s362 = smul.addr %s361, 8
        %s363 = scalar_lea.vmem %s7, %s362
        %p364 = pneg %p244
        %p365 = pneg %p241
        %s366 = sand.u32 %s30, 1
        %s367 = scalar_lea.sflag [#allocation9], %s366
        %s368 = sand.u32 %s231, 1
        %s369 = smul.addr %s368, 2
        %s370 = scalar_lea.vmem [#allocation10], %s369
        %s371 = smul.u32 32, %s30
        %s372 = smul.u32 32, %s30
        %s373 = smul.u32 32, %s30
        %s374 = smul.u32 32, %s30
        %p375 = scmp.lt.s32.totalorder %s374, 63
        %s376 = scalar_select %p375, %s374, 63
        %s377 = smul.addr %s376, 8
        %s378 = scalar_lea.vmem %s6, %s377
        %s379 = smul.u32 32, %s30
        %s380 = smul.u32 32, %s30
        %p381 = scmp.lt.s32.totalorder %s380, 63
        %s382 = scalar_select %p381, %s380, 63
        %s383 = smul.addr %s382, 8
        %s384 = scalar_lea.vmem %s7, %s383
        %s385 = smul.u32 32, %s30
        %v387 = vld [vmem:[%s314] sm:$0xff]
        %v388 = vld [vmem:[%s314 + $0x8] sm:$0xff]
        %v389 = vld [vmem:[%s314 + $0x10] sm:$0xff]
        %v390 = vld [vmem:[%s314 + $0x18] sm:$0xff]
        %v391 = vld [vmem:[%s314 + $0x20] sm:$0xff]
        %v392 = vld [vmem:[%s314 + $0x28] sm:$0xff]
        %v393 = vld [vmem:[%s314 + $0x30] sm:$0xff]
        %v394 = vld [vmem:[%s314 + $0x38] sm:$0xff]
        %v395 = vld [vmem:[%s314 + $0x40] sm:$0xff]
        %v396 = vld [vmem:[%s314 + $0x48] sm:$0xff]
        %v397 = vld [vmem:[%s314 + $0x50] sm:$0xff]
        %v398 = vld [vmem:[%s314 + $0x58] sm:$0xff]
        %v399 = vld [vmem:[%s314 + $0x60] sm:$0xff]
        %v400 = vld [vmem:[%s314 + $0x68] sm:$0xff]
        %v401 = vld [vmem:[%s314 + $0x70] sm:$0xff]
        %v402 = vld [vmem:[%s314 + $0x78] sm:$0xff]
        %v403 = vld [vmem:[%s314 + $0x80] sm:$0xff]
        %v404 = vld [vmem:[%s314 + $0x88] sm:$0xff]
        %v405 = vld [vmem:[%s314 + $0x90] sm:$0xff]
        %v406 = vld [vmem:[%s314 + $0x98] sm:$0xff]
        %v407 = vld [vmem:[%s314 + $0xa0] sm:$0xff]
        %v408 = vld [vmem:[%s314 + $0xa8] sm:$0xff]
        %v409 = vld [vmem:[%s314 + $0xb0] sm:$0xff]
        %v410 = vld [vmem:[%s314 + $0xb8] sm:$0xff]
        %v411 = vld [vmem:[%s314 + $0xc0] sm:$0xff]
        %v412 = vld [vmem:[%s314 + $0xc8] sm:$0xff]
        %v413 = vld [vmem:[%s314 + $0xd0] sm:$0xff]
        %v414 = vld [vmem:[%s314 + $0xd8] sm:$0xff]
        %v415 = vld [vmem:[%s314 + $0xe0] sm:$0xff]
        %v416 = vld [vmem:[%s314 + $0xe8] sm:$0xff]
        %v417 = vld [vmem:[%s314 + $0xf0] sm:$0xff]
        %v418 = vld [vmem:[%s314 + $0xf8] sm:$0xff]
        %v419 = vld [vmem:[%s2] sm:$0x1]
        %v420 = vld [vmem:[%s3] sm:$0x3]
        %421 = vadd.xlane.f32.xlu0 %v387
        %v422 = vpop.xlane.xlu0 %421
        %423 = vadd.xlane.f32.xlu0 %v388
        %v424 = vpop.xlane.xlu0 %423
        %425 = vadd.xlane.f32.xlu0 %v389
        %v426 = vpop.xlane.xlu0 %425
        %427 = vadd.xlane.f32.xlu0 %v390
        %v428 = vpop.xlane.xlu0 %427
        %429 = vadd.xlane.f32.xlu0 %v391
        %v430 = vpop.xlane.xlu0 %429
        %431 = vadd.xlane.f32.xlu0 %v392
        %v432 = vpop.xlane.xlu0 %431
        %433 = vadd.xlane.f32.xlu0 %v393
        %v434 = vpop.xlane.xlu0 %433
        %435 = vadd.xlane.f32.xlu0 %v394
        %v436 = vpop.xlane.xlu0 %435
        %437 = vadd.xlane.f32.xlu0 %v395
        %v438 = vpop.xlane.xlu0 %437
        %439 = vadd.xlane.f32.xlu0 %v396
        %v440 = vpop.xlane.xlu0 %439
        %441 = vadd.xlane.f32.xlu0 %v397
        %v442 = vpop.xlane.xlu0 %441
        %443 = vadd.xlane.f32.xlu0 %v398
        %v444 = vpop.xlane.xlu0 %443
        %445 = vadd.xlane.f32.xlu0 %v399
        %v446 = vpop.xlane.xlu0 %445
        %447 = vadd.xlane.f32.xlu0 %v400
        %v448 = vpop.xlane.xlu0 %447
        %449 = vadd.xlane.f32.xlu0 %v401
        %v450 = vpop.xlane.xlu0 %449
        %451 = vadd.xlane.f32.xlu0 %v402
        %v452 = vpop.xlane.xlu0 %451
        %453 = vadd.xlane.f32.xlu0 %v403
        %v454 = vpop.xlane.xlu0 %453
        %455 = vadd.xlane.f32.xlu0 %v404
        %v456 = vpop.xlane.xlu0 %455
        %457 = vadd.xlane.f32.xlu0 %v405
        %v458 = vpop.xlane.xlu0 %457
        %459 = vadd.xlane.f32.xlu0 %v406
        %v460 = vpop.xlane.xlu0 %459
        %461 = vadd.xlane.f32.xlu0 %v407
        %v462 = vpop.xlane.xlu0 %461
        %463 = vadd.xlane.f32.xlu0 %v408
        %v464 = vpop.xlane.xlu0 %463
        %465 = vadd.xlane.f32.xlu0 %v409
        %v466 = vpop.xlane.xlu0 %465
        %467 = vadd.xlane.f32.xlu0 %v410
        %v468 = vpop.xlane.xlu0 %467
        %469 = vadd.xlane.f32.xlu0 %v411
        %v470 = vpop.xlane.xlu0 %469
        %471 = vadd.xlane.f32.xlu0 %v412
        %v472 = vpop.xlane.xlu0 %471
        %473 = vadd.xlane.f32.xlu0 %v413
        %v474 = vpop.xlane.xlu0 %473
        %475 = vadd.xlane.f32.xlu0 %v414
        %v476 = vpop.xlane.xlu0 %475
        %477 = vadd.xlane.f32.xlu0 %v415
        %v478 = vpop.xlane.xlu0 %477
        %479 = vadd.xlane.f32.xlu0 %v416
        %v480 = vpop.xlane.xlu0 %479
        %481 = vadd.xlane.f32.xlu0 %v417
        %v482 = vpop.xlane.xlu0 %481
        %483 = vadd.xlane.f32.xlu0 %v418
        %v484 = vpop.xlane.xlu0 %483
        %v485 = vrcp.pop 128.0
        %v486 = vmul.f32 %v422, %v485
        %v487 = vmul.f32 %v424, %v485
        %v488 = vmul.f32 %v426, %v485
        %v489 = vmul.f32 %v428, %v485
        %v490 = vmul.f32 %v430, %v485
        %v491 = vmul.f32 %v432, %v485
        %v492 = vmul.f32 %v434, %v485
        %v493 = vmul.f32 %v436, %v485
        %v494 = vmul.f32 %v438, %v485
        %v495 = vmul.f32 %v440, %v485
        %v496 = vmul.f32 %v442, %v485
        %v497 = vmul.f32 %v444, %v485
        %v498 = vmul.f32 %v446, %v485
        %v499 = vmul.f32 %v448, %v485
        %v500 = vmul.f32 %v450, %v485
        %v501 = vmul.f32 %v452, %v485
        %v502 = vmul.f32 %v454, %v485
        %v503 = vmul.f32 %v456, %v485
        %v504 = vmul.f32 %v458, %v485
        %v505 = vmul.f32 %v460, %v485
        %v506 = vmul.f32 %v462, %v485
        %v507 = vmul.f32 %v464, %v485
        %v508 = vmul.f32 %v466, %v485
        %v509 = vmul.f32 %v468, %v485
        %v510 = vmul.f32 %v470, %v485
        %v511 = vmul.f32 %v472, %v485
        %v512 = vmul.f32 %v474, %v485
        %v513 = vmul.f32 %v476, %v485
        %v514 = vmul.f32 %v478, %v485
        %v515 = vmul.f32 %v480, %v485
        %v516 = vmul.f32 %v482, %v485
        %v517 = vmul.f32 %v484, %v485
        %v518 = vsub.f32 %v387, %v486
        %v519 = vsub.f32 %v388, %v487
        %v520 = vsub.f32 %v389, %v488
        %v521 = vsub.f32 %v390, %v489
        %v522 = vsub.f32 %v391, %v490
        %v523 = vsub.f32 %v392, %v491
        %v524 = vsub.f32 %v393, %v492
        %v525 = vsub.f32 %v394, %v493
        %v526 = vsub.f32 %v395, %v494
        %v527 = vsub.f32 %v396, %v495
        %v528 = vsub.f32 %v397, %v496
        %v529 = vsub.f32 %v398, %v497
        %v530 = vsub.f32 %v399, %v498
        %v531 = vsub.f32 %v400, %v499
        %v532 = vsub.f32 %v401, %v500
        %v533 = vsub.f32 %v402, %v501
        %v534 = vsub.f32 %v403, %v502
        %v535 = vsub.f32 %v404, %v503
        %v536 = vsub.f32 %v405, %v504
        %v537 = vsub.f32 %v406, %v505
        %v538 = vsub.f32 %v407, %v506
        %v539 = vsub.f32 %v408, %v507
        %v540 = vsub.f32 %v409, %v508
        %v541 = vsub.f32 %v410, %v509
        %v542 = vsub.f32 %v411, %v510
        %v543 = vsub.f32 %v412, %v511
        %v544 = vsub.f32 %v413, %v512
        %v545 = vsub.f32 %v414, %v513
        %v546 = vsub.f32 %v415, %v514
        %v547 = vsub.f32 %v416, %v515
        %v548 = vsub.f32 %v417, %v516
        %v549 = vsub.f32 %v418, %v517
        %v550 = vmul.f32 %v518, %v518
        %v551 = vmul.f32 %v519, %v519
        %v552 = vmul.f32 %v520, %v520
        %v553 = vmul.f32 %v521, %v521
        %v554 = vmul.f32 %v522, %v522
        %v555 = vmul.f32 %v523, %v523
        %v556 = vmul.f32 %v524, %v524
        %v557 = vmul.f32 %v525, %v525
        %v558 = vmul.f32 %v526, %v526
        %v559 = vmul.f32 %v527, %v527
        %v560 = vmul.f32 %v528, %v528
        %v561 = vmul.f32 %v529, %v529
        %v562 = vmul.f32 %v530, %v530
        %v563 = vmul.f32 %v531, %v531
        %v564 = vmul.f32 %v532, %v532
        %v565 = vmul.f32 %v533, %v533
        %v566 = vmul.f32 %v534, %v534
        %v567 = vmul.f32 %v535, %v535
        %v568 = vmul.f32 %v536, %v536
        %v569 = vmul.f32 %v537, %v537
        %v570 = vmul.f32 %v538, %v538
        %v571 = vmul.f32 %v539, %v539
        %v572 = vmul.f32 %v540, %v540
        %v573 = vmul.f32 %v541, %v541
        %v574 = vmul.f32 %v542, %v542
        %v575 = vmul.f32 %v543, %v543
        %v576 = vmul.f32 %v544, %v544
        %v577 = vmul.f32 %v545, %v545
        %v578 = vmul.f32 %v546, %v546
        %v579 = vmul.f32 %v547, %v547
        %v580 = vmul.f32 %v548, %v548
        %v581 = vmul.f32 %v549, %v549
        %582 = vadd.xlane.f32.xlu0 %v550
        %v583 = vpop.xlane.xlu0 %582
        %584 = vadd.xlane.f32.xlu0 %v551
        %v585 = vpop.xlane.xlu0 %584
        %586 = vadd.xlane.f32.xlu0 %v552
        %v587 = vpop.xlane.xlu0 %586
        %588 = vadd.xlane.f32.xlu0 %v553
        %v589 = vpop.xlane.xlu0 %588
        %590 = vadd.xlane.f32.xlu0 %v554
        %v591 = vpop.xlane.xlu0 %590
        %592 = vadd.xlane.f32.xlu0 %v555
        %v593 = vpop.xlane.xlu0 %592
        %594 = vadd.xlane.f32.xlu0 %v556
        %v595 = vpop.xlane.xlu0 %594
        %596 = vadd.xlane.f32.xlu0 %v557
        %v597 = vpop.xlane.xlu0 %596
        %598 = vadd.xlane.f32.xlu0 %v558
        %v599 = vpop.xlane.xlu0 %598
        %600 = vadd.xlane.f32.xlu0 %v559
        %v601 = vpop.xlane.xlu0 %600
        %602 = vadd.xlane.f32.xlu0 %v560
        %v603 = vpop.xlane.xlu0 %602
        %604 = vadd.xlane.f32.xlu0 %v561
        %v605 = vpop.xlane.xlu0 %604
        %606 = vadd.xlane.f32.xlu0 %v562
        %v607 = vpop.xlane.xlu0 %606
        %608 = vadd.xlane.f32.xlu0 %v563
        %v609 = vpop.xlane.xlu0 %608
        %610 = vadd.xlane.f32.xlu0 %v564
        %v611 = vpop.xlane.xlu0 %610
        %612 = vadd.xlane.f32.xlu0 %v565
        %v613 = vpop.xlane.xlu0 %612
        %614 = vadd.xlane.f32.xlu0 %v566
        %v615 = vpop.xlane.xlu0 %614
        %616 = vadd.xlane.f32.xlu0 %v567
        %v617 = vpop.xlane.xlu0 %616
        %618 = vadd.xlane.f32.xlu0 %v568
        %v619 = vpop.xlane.xlu0 %618
        %620 = vadd.xlane.f32.xlu0 %v569
        %v621 = vpop.xlane.xlu0 %620
        %622 = vadd.xlane.f32.xlu0 %v570
        %v623 = vpop.xlane.xlu0 %622
        %624 = vadd.xlane.f32.xlu0 %v571
        %v625 = vpop.xlane.xlu0 %624
        %626 = vadd.xlane.f32.xlu0 %v572
        %v627 = vpop.xlane.xlu0 %626
        %628 = vadd.xlane.f32.xlu0 %v573
        %v629 = vpop.xlane.xlu0 %628
        %630 = vadd.xlane.f32.xlu0 %v574
        %v631 = vpop.xlane.xlu0 %630
        %632 = vadd.xlane.f32.xlu0 %v575
        %v633 = vpop.xlane.xlu0 %632
        %634 = vadd.xlane.f32.xlu0 %v576
        %v635 = vpop.xlane.xlu0 %634
        %636 = vadd.xlane.f32.xlu0 %v577
        %v637 = vpop.xlane.xlu0 %636
        %638 = vadd.xlane.f32.xlu0 %v578
        %v639 = vpop.xlane.xlu0 %638
        %640 = vadd.xlane.f32.xlu0 %v579
        %v641 = vpop.xlane.xlu0 %640
        %642 = vadd.xlane.f32.xlu0 %v580
        %v643 = vpop.xlane.xlu0 %642
        %644 = vadd.xlane.f32.xlu0 %v581
        %v645 = vpop.xlane.xlu0 %644
        %v646 = vrcp.pop 127.0
        %v647 = vmul.f32 %v583, %v646
        %v648 = vmul.f32 %v585, %v646
        %v649 = vmul.f32 %v587, %v646
        %v650 = vmul.f32 %v589, %v646
        %v651 = vmul.f32 %v591, %v646
        %v652 = vmul.f32 %v593, %v646
        %v653 = vmul.f32 %v595, %v646
        %v654 = vmul.f32 %v597, %v646
        %v655 = vmul.f32 %v599, %v646
        %v656 = vmul.f32 %v601, %v646
        %v657 = vmul.f32 %v603, %v646
        %v658 = vmul.f32 %v605, %v646
        %v659 = vmul.f32 %v607, %v646
        %v660 = vmul.f32 %v609, %v646
        %v661 = vmul.f32 %v611, %v646
        %v662 = vmul.f32 %v613, %v646
        %v663 = vmul.f32 %v615, %v646
        %v664 = vmul.f32 %v617, %v646
        %v665 = vmul.f32 %v619, %v646
        %v666 = vmul.f32 %v621, %v646
        %v667 = vmul.f32 %v623, %v646
        %v668 = vmul.f32 %v625, %v646
        %v669 = vmul.f32 %v627, %v646
        %v670 = vmul.f32 %v629, %v646
        %v671 = vmul.f32 %v631, %v646
        %v672 = vmul.f32 %v633, %v646
        %v673 = vmul.f32 %v635, %v646
        %v674 = vmul.f32 %v637, %v646
        %v675 = vmul.f32 %v639, %v646
        %v676 = vmul.f32 %v641, %v646
        %v677 = vmul.f32 %v643, %v646
        %v678 = vmul.f32 %v645, %v646
        %v679 = vrsqrt.pop %v647
        %v680 = vmul.f32 %v647, %v679
        %vm681 = vcmp.eq.f32.partialorder %v647, inf
        %v682 = vsel %vm681, %v647, %v680
        %vm683 = vcmp.eq.f32.partialorder %v647, 0.0
        %v684 = vand.u32 %v647, 2147483648
        %v685 = vsel %vm683, %v684, %v682
        %v686 = vrsqrt.pop %v648
        %v687 = vmul.f32 %v648, %v686
        %vm688 = vcmp.eq.f32.partialorder %v648, inf
        %v689 = vsel %vm688, %v648, %v687
        %vm690 = vcmp.eq.f32.partialorder %v648, 0.0
        %v691 = vand.u32 %v648, 2147483648
        %v692 = vsel %vm690, %v691, %v689
        %v693 = vrsqrt.pop %v649
        %v694 = vmul.f32 %v649, %v693
        %vm695 = vcmp.eq.f32.partialorder %v649, inf
        %v696 = vsel %vm695, %v649, %v694
        %vm697 = vcmp.eq.f32.partialorder %v649, 0.0
        %v698 = vand.u32 %v649, 2147483648
        %v699 = vsel %vm697, %v698, %v696
        %v700 = vrsqrt.pop %v650
        %v701 = vmul.f32 %v650, %v700
        %vm702 = vcmp.eq.f32.partialorder %v650, inf
        %v703 = vsel %vm702, %v650, %v701
        %vm704 = vcmp.eq.f32.partialorder %v650, 0.0
        %v705 = vand.u32 %v650, 2147483648
        %v706 = vsel %vm704, %v705, %v703
        %v707 = vrsqrt.pop %v651
        %v708 = vmul.f32 %v651, %v707
        %vm709 = vcmp.eq.f32.partialorder %v651, inf
        %v710 = vsel %vm709, %v651, %v708
        %vm711 = vcmp.eq.f32.partialorder %v651, 0.0
        %v712 = vand.u32 %v651, 2147483648
        %v713 = vsel %vm711, %v712, %v710
        %v714 = vrsqrt.pop %v652
        %v715 = vmul.f32 %v652, %v714
        %vm716 = vcmp.eq.f32.partialorder %v652, inf
        %v717 = vsel %vm716, %v652, %v715
        %vm718 = vcmp.eq.f32.partialorder %v652, 0.0
        %v719 = vand.u32 %v652, 2147483648
        %v720 = vsel %vm718, %v719, %v717
        %v721 = vrsqrt.pop %v653
        %v722 = vmul.f32 %v653, %v721
        %vm723 = vcmp.eq.f32.partialorder %v653, inf
        %v724 = vsel %vm723, %v653, %v722
        %vm725 = vcmp.eq.f32.partialorder %v653, 0.0
        %v726 = vand.u32 %v653, 2147483648
        %v727 = vsel %vm725, %v726, %v724
        %v728 = vrsqrt.pop %v654
        %v729 = vmul.f32 %v654, %v728
        %vm730 = vcmp.eq.f32.partialorder %v654, inf
        %v731 = vsel %vm730, %v654, %v729
        %vm732 = vcmp.eq.f32.partialorder %v654, 0.0
        %v733 = vand.u32 %v654, 2147483648
        %v734 = vsel %vm732, %v733, %v731
        %v735 = vrsqrt.pop %v655
        %v736 = vmul.f32 %v655, %v735
        %vm737 = vcmp.eq.f32.partialorder %v655, inf
        %v738 = vsel %vm737, %v655, %v736
        %vm739 = vcmp.eq.f32.partialorder %v655, 0.0
        %v740 = vand.u32 %v655, 2147483648
        %v741 = vsel %vm739, %v740, %v738
        %v742 = vrsqrt.pop %v656
        %v743 = vmul.f32 %v656, %v742
        %vm744 = vcmp.eq.f32.partialorder %v656, inf
        %v745 = vsel %vm744, %v656, %v743
        %vm746 = vcmp.eq.f32.partialorder %v656, 0.0
        %v747 = vand.u32 %v656, 2147483648
        %v748 = vsel %vm746, %v747, %v745
        %v749 = vrsqrt.pop %v657
        %v750 = vmul.f32 %v657, %v749
        %vm751 = vcmp.eq.f32.partialorder %v657, inf
        %v752 = vsel %vm751, %v657, %v750
        %vm753 = vcmp.eq.f32.partialorder %v657, 0.0
        %v754 = vand.u32 %v657, 2147483648
        %v755 = vsel %vm753, %v754, %v752
        %v756 = vrsqrt.pop %v658
        %v757 = vmul.f32 %v658, %v756
        %vm758 = vcmp.eq.f32.partialorder %v658, inf
        %v759 = vsel %vm758, %v658, %v757
        %vm760 = vcmp.eq.f32.partialorder %v658, 0.0
        %v761 = vand.u32 %v658, 2147483648
        %v762 = vsel %vm760, %v761, %v759
        %v763 = vrsqrt.pop %v659
        %v764 = vmul.f32 %v659, %v763
        %vm765 = vcmp.eq.f32.partialorder %v659, inf
        %v766 = vsel %vm765, %v659, %v764
        %vm767 = vcmp.eq.f32.partialorder %v659, 0.0
        %v768 = vand.u32 %v659, 2147483648
        %v769 = vsel %vm767, %v768, %v766
        %v770 = vrsqrt.pop %v660
        %v771 = vmul.f32 %v660, %v770
        %vm772 = vcmp.eq.f32.partialorder %v660, inf
        %v773 = vsel %vm772, %v660, %v771
        %vm774 = vcmp.eq.f32.partialorder %v660, 0.0
        %v775 = vand.u32 %v660, 2147483648
        %v776 = vsel %vm774, %v775, %v773
        %v777 = vrsqrt.pop %v661
        %v778 = vmul.f32 %v661, %v777
        %vm779 = vcmp.eq.f32.partialorder %v661, inf
        %v780 = vsel %vm779, %v661, %v778
        %vm781 = vcmp.eq.f32.partialorder %v661, 0.0
        %v782 = vand.u32 %v661, 2147483648
        %v783 = vsel %vm781, %v782, %v780
        %v784 = vrsqrt.pop %v662
        %v785 = vmul.f32 %v662, %v784
        %vm786 = vcmp.eq.f32.partialorder %v662, inf
        %v787 = vsel %vm786, %v662, %v785
        %vm788 = vcmp.eq.f32.partialorder %v662, 0.0
        %v789 = vand.u32 %v662, 2147483648
        %v790 = vsel %vm788, %v789, %v787
        %v791 = vrsqrt.pop %v663
        %v792 = vmul.f32 %v663, %v791
        %vm793 = vcmp.eq.f32.partialorder %v663, inf
        %v794 = vsel %vm793, %v663, %v792
        %vm795 = vcmp.eq.f32.partialorder %v663, 0.0
        %v796 = vand.u32 %v663, 2147483648
        %v797 = vsel %vm795, %v796, %v794
        %v798 = vrsqrt.pop %v664
        %v799 = vmul.f32 %v664, %v798
        %vm800 = vcmp.eq.f32.partialorder %v664, inf
        %v801 = vsel %vm800, %v664, %v799
        %vm802 = vcmp.eq.f32.partialorder %v664, 0.0
        %v803 = vand.u32 %v664, 2147483648
        %v804 = vsel %vm802, %v803, %v801
        %v805 = vrsqrt.pop %v665
        %v806 = vmul.f32 %v665, %v805
        %vm807 = vcmp.eq.f32.partialorder %v665, inf
        %v808 = vsel %vm807, %v665, %v806
        %vm809 = vcmp.eq.f32.partialorder %v665, 0.0
        %v810 = vand.u32 %v665, 2147483648
        %v811 = vsel %vm809, %v810, %v808
        %v812 = vrsqrt.pop %v666
        %v813 = vmul.f32 %v666, %v812
        %vm814 = vcmp.eq.f32.partialorder %v666, inf
        %v815 = vsel %vm814, %v666, %v813
        %vm816 = vcmp.eq.f32.partialorder %v666, 0.0
        %v817 = vand.u32 %v666, 2147483648
        %v818 = vsel %vm816, %v817, %v815
        %v819 = vrsqrt.pop %v667
        %v820 = vmul.f32 %v667, %v819
        %vm821 = vcmp.eq.f32.partialorder %v667, inf
        %v822 = vsel %vm821, %v667, %v820
        %vm823 = vcmp.eq.f32.partialorder %v667, 0.0
        %v824 = vand.u32 %v667, 2147483648
        %v825 = vsel %vm823, %v824, %v822
        %v826 = vrsqrt.pop %v668
        %v827 = vmul.f32 %v668, %v826
        %vm828 = vcmp.eq.f32.partialorder %v668, inf
        %v829 = vsel %vm828, %v668, %v827
        %vm830 = vcmp.eq.f32.partialorder %v668, 0.0
        %v831 = vand.u32 %v668, 2147483648
        %v832 = vsel %vm830, %v831, %v829
        %v833 = vrsqrt.pop %v669
        %v834 = vmul.f32 %v669, %v833
        %vm835 = vcmp.eq.f32.partialorder %v669, inf
        %v836 = vsel %vm835, %v669, %v834
        %vm837 = vcmp.eq.f32.partialorder %v669, 0.0
        %v838 = vand.u32 %v669, 2147483648
        %v839 = vsel %vm837, %v838, %v836
        %v840 = vrsqrt.pop %v670
        %v841 = vmul.f32 %v670, %v840
        %vm842 = vcmp.eq.f32.partialorder %v670, inf
        %v843 = vsel %vm842, %v670, %v841
        %vm844 = vcmp.eq.f32.partialorder %v670, 0.0
        %v845 = vand.u32 %v670, 2147483648
        %v846 = vsel %vm844, %v845, %v843
        %v847 = vrsqrt.pop %v671
        %v848 = vmul.f32 %v671, %v847
        %vm849 = vcmp.eq.f32.partialorder %v671, inf
        %v850 = vsel %vm849, %v671, %v848
        %vm851 = vcmp.eq.f32.partialorder %v671, 0.0
        %v852 = vand.u32 %v671, 2147483648
        %v853 = vsel %vm851, %v852, %v850
        %v854 = vrsqrt.pop %v672
        %v855 = vmul.f32 %v672, %v854
        %vm856 = vcmp.eq.f32.partialorder %v672, inf
        %v857 = vsel %vm856, %v672, %v855
        %vm858 = vcmp.eq.f32.partialorder %v672, 0.0
        %v859 = vand.u32 %v672, 2147483648
        %v860 = vsel %vm858, %v859, %v857
        %v861 = vrsqrt.pop %v673
        %v862 = vmul.f32 %v673, %v861
        %vm863 = vcmp.eq.f32.partialorder %v673, inf
        %v864 = vsel %vm863, %v673, %v862
        %vm865 = vcmp.eq.f32.partialorder %v673, 0.0
        %v866 = vand.u32 %v673, 2147483648
        %v867 = vsel %vm865, %v866, %v864
        %v868 = vrsqrt.pop %v674
        %v869 = vmul.f32 %v674, %v868
        %vm870 = vcmp.eq.f32.partialorder %v674, inf
        %v871 = vsel %vm870, %v674, %v869
        %vm872 = vcmp.eq.f32.partialorder %v674, 0.0
        %v873 = vand.u32 %v674, 2147483648
        %v874 = vsel %vm872, %v873, %v871
        %v875 = vrsqrt.pop %v675
        %v876 = vmul.f32 %v675, %v875
        %vm877 = vcmp.eq.f32.partialorder %v675, inf
        %v878 = vsel %vm877, %v675, %v876
        %vm879 = vcmp.eq.f32.partialorder %v675, 0.0
        %v880 = vand.u32 %v675, 2147483648
        %v881 = vsel %vm879, %v880, %v878
        %v882 = vrsqrt.pop %v676
        %v883 = vmul.f32 %v676, %v882
        %vm884 = vcmp.eq.f32.partialorder %v676, inf
        %v885 = vsel %vm884, %v676, %v883
        %vm886 = vcmp.eq.f32.partialorder %v676, 0.0
        %v887 = vand.u32 %v676, 2147483648
        %v888 = vsel %vm886, %v887, %v885
        %v889 = vrsqrt.pop %v677
        %v890 = vmul.f32 %v677, %v889
        %vm891 = vcmp.eq.f32.partialorder %v677, inf
        %v892 = vsel %vm891, %v677, %v890
        %vm893 = vcmp.eq.f32.partialorder %v677, 0.0
        %v894 = vand.u32 %v677, 2147483648
        %v895 = vsel %vm893, %v894, %v892
        %v896 = vrsqrt.pop %v678
        %v897 = vmul.f32 %v678, %v896
        %vm898 = vcmp.eq.f32.partialorder %v678, inf
        %v899 = vsel %vm898, %v678, %v897
        %vm900 = vcmp.eq.f32.partialorder %v678, 0.0
        %v901 = vand.u32 %v678, 2147483648
        %v902 = vsel %vm900, %v901, %v899
        %v903 = vadd.f32 %v685, 1e-05
        %v904 = vadd.f32 %v692, 1e-05
        %v905 = vadd.f32 %v699, 1e-05
        %v906 = vadd.f32 %v706, 1e-05
        %v907 = vadd.f32 %v713, 1e-05
        %v908 = vadd.f32 %v720, 1e-05
        %v909 = vadd.f32 %v727, 1e-05
        %v910 = vadd.f32 %v734, 1e-05
        %v911 = vadd.f32 %v741, 1e-05
        %v912 = vadd.f32 %v748, 1e-05
        %v913 = vadd.f32 %v755, 1e-05
        %v914 = vadd.f32 %v762, 1e-05
        %v915 = vadd.f32 %v769, 1e-05
        %v916 = vadd.f32 %v776, 1e-05
        %v917 = vadd.f32 %v783, 1e-05
        %v918 = vadd.f32 %v790, 1e-05
        %v919 = vadd.f32 %v797, 1e-05
        %v920 = vadd.f32 %v804, 1e-05
        %v921 = vadd.f32 %v811, 1e-05
        %v922 = vadd.f32 %v818, 1e-05
        %v923 = vadd.f32 %v825, 1e-05
        %v924 = vadd.f32 %v832, 1e-05
        %v925 = vadd.f32 %v839, 1e-05
        %v926 = vadd.f32 %v846, 1e-05
        %v927 = vadd.f32 %v853, 1e-05
        %v928 = vadd.f32 %v860, 1e-05
        %v929 = vadd.f32 %v867, 1e-05
        %v930 = vadd.f32 %v874, 1e-05
        %v931 = vadd.f32 %v881, 1e-05
        %v932 = vadd.f32 %v888, 1e-05
        %v933 = vadd.f32 %v895, 1e-05
        %v934 = vadd.f32 %v902, 1e-05
        %v935 = vrcp.pop %v903
        %v936 = vrcp.pop %v904
        %v937 = vrcp.pop %v905
        %v938 = vrcp.pop %v906
        %v939 = vrcp.pop %v907
        %v940 = vrcp.pop %v908
        %v941 = vrcp.pop %v909
        %v942 = vrcp.pop %v910
        %v943 = vrcp.pop %v911
        %v944 = vrcp.pop %v912
        %v945 = vrcp.pop %v913
        %v946 = vrcp.pop %v914
        %v947 = vrcp.pop %v915
        %v948 = vrcp.pop %v916
        %v949 = vrcp.pop %v917
        %v950 = vrcp.pop %v918
        %v951 = vrcp.pop %v919
        %v952 = vrcp.pop %v920
        %v953 = vrcp.pop %v921
        %v954 = vrcp.pop %v922
        %v955 = vrcp.pop %v923
        %v956 = vrcp.pop %v924
        %v957 = vrcp.pop %v925
        %v958 = vrcp.pop %v926
        %v959 = vrcp.pop %v927
        %v960 = vrcp.pop %v928
        %v961 = vrcp.pop %v929
        %v962 = vrcp.pop %v930
        %v963 = vrcp.pop %v931
        %v964 = vrcp.pop %v932
        %v965 = vrcp.pop %v933
        %v966 = vrcp.pop %v934
        %v967 = vmul.f32 %v518, %v935
        %v968 = vmul.f32 %v519, %v936
        %v969 = vmul.f32 %v520, %v937
        %v970 = vmul.f32 %v521, %v938
        %v971 = vmul.f32 %v522, %v939
        %v972 = vmul.f32 %v523, %v940
        %v973 = vmul.f32 %v524, %v941
        %v974 = vmul.f32 %v525, %v942
        %v975 = vmul.f32 %v526, %v943
        %v976 = vmul.f32 %v527, %v944
        %v977 = vmul.f32 %v528, %v945
        %v978 = vmul.f32 %v529, %v946
        %v979 = vmul.f32 %v530, %v947
        %v980 = vmul.f32 %v531, %v948
        %v981 = vmul.f32 %v532, %v949
        %v982 = vmul.f32 %v533, %v950
        %v983 = vmul.f32 %v534, %v951
        %v984 = vmul.f32 %v535, %v952
        %v985 = vmul.f32 %v536, %v953
        %v986 = vmul.f32 %v537, %v954
        %v987 = vmul.f32 %v538, %v955
        %v988 = vmul.f32 %v539, %v956
        %v989 = vmul.f32 %v540, %v957
        %v990 = vmul.f32 %v541, %v958
        %v991 = vmul.f32 %v542, %v959
        %v992 = vmul.f32 %v543, %v960
        %v993 = vmul.f32 %v544, %v961
        %v994 = vmul.f32 %v545, %v962
        %v995 = vmul.f32 %v546, %v963
        %v996 = vmul.f32 %v547, %v964
        %v997 = vmul.f32 %v548, %v965
        %v998 = vmul.f32 %v549, %v966
        %vm999 = vcmask 7168
        %1000 = vst.msk [vmem:[%s378] sm:$0xff] %vm999, %v486
        %1001 = vst.msk [vmem:[%s378 + $0x8] sm:$0xff] %vm999, %v487
        %1002 = vst.msk [vmem:[%s378 + $0x10] sm:$0xff] %vm999, %v488
        %1003 = vst.msk [vmem:[%s378 + $0x18] sm:$0xff] %vm999, %v489
        %1004 = vst.msk [vmem:[%s378 + $0x20] sm:$0xff] %vm999, %v490
        %1005 = vst.msk [vmem:[%s378 + $0x28] sm:$0xff] %vm999, %v491
        %1006 = vst.msk [vmem:[%s378 + $0x30] sm:$0xff] %vm999, %v492
        %1007 = vst.msk [vmem:[%s378 + $0x38] sm:$0xff] %vm999, %v493
        %1008 = vst.msk [vmem:[%s378 + $0x40] sm:$0xff] %vm999, %v494
        %1009 = vst.msk [vmem:[%s378 + $0x48] sm:$0xff] %vm999, %v495
        %1010 = vst.msk [vmem:[%s378 + $0x50] sm:$0xff] %vm999, %v496
        %1011 = vst.msk [vmem:[%s378 + $0x58] sm:$0xff] %vm999, %v497
        %1012 = vst.msk [vmem:[%s378 + $0x60] sm:$0xff] %vm999, %v498
        %1013 = vst.msk [vmem:[%s378 + $0x68] sm:$0xff] %vm999, %v499
        %1014 = vst.msk [vmem:[%s378 + $0x70] sm:$0xff] %vm999, %v500
        %1015 = vst.msk [vmem:[%s378 + $0x78] sm:$0xff] %vm999, %v501
        %1016 = vst.msk [vmem:[%s378 + $0x80] sm:$0xff] %vm999, %v502
        %1017 = vst.msk [vmem:[%s378 + $0x88] sm:$0xff] %vm999, %v503
        %1018 = vst.msk [vmem:[%s378 + $0x90] sm:$0xff] %vm999, %v504
        %1019 = vst.msk [vmem:[%s378 + $0x98] sm:$0xff] %vm999, %v505
        %1020 = vst.msk [vmem:[%s378 + $0xa0] sm:$0xff] %vm999, %v506
        %1021 = vst.msk [vmem:[%s378 + $0xa8] sm:$0xff] %vm999, %v507
        %1022 = vst.msk [vmem:[%s378 + $0xb0] sm:$0xff] %vm999, %v508
        %1023 = vst.msk [vmem:[%s378 + $0xb8] sm:$0xff] %vm999, %v509
        %1024 = vst.msk [vmem:[%s378 + $0xc0] sm:$0xff] %vm999, %v510
        %1025 = vst.msk [vmem:[%s378 + $0xc8] sm:$0xff] %vm999, %v511
        %1026 = vst.msk [vmem:[%s378 + $0xd0] sm:$0xff] %vm999, %v512
        %1027 = vst.msk [vmem:[%s378 + $0xd8] sm:$0xff] %vm999, %v513
        %1028 = vst.msk [vmem:[%s378 + $0xe0] sm:$0xff] %vm999, %v514
        %1029 = vst.msk [vmem:[%s378 + $0xe8] sm:$0xff] %vm999, %v515
        %1030 = vst.msk [vmem:[%s378 + $0xf0] sm:$0xff] %vm999, %v516
        %1031 = vst.msk [vmem:[%s378 + $0xf8] sm:$0xff] %vm999, %v517
        %1032 = vst.msk [vmem:[%s384] sm:$0xff] %vm999, %v685
        %1033 = vst.msk [vmem:[%s384 + $0x8] sm:$0xff] %vm999, %v692
        %1034 = vst.msk [vmem:[%s384 + $0x10] sm:$0xff] %vm999, %v699
        %1035 = vst.msk [vmem:[%s384 + $0x18] sm:$0xff] %vm999, %v706
        %1036 = vst.msk [vmem:[%s384 + $0x20] sm:$0xff] %vm999, %v713
        %1037 = vst.msk [vmem:[%s384 + $0x28] sm:$0xff] %vm999, %v720
        %1038 = vst.msk [vmem:[%s384 + $0x30] sm:$0xff] %vm999, %v727
        %1039 = vst.msk [vmem:[%s384 + $0x38] sm:$0xff] %vm999, %v734
        %1040 = vst.msk [vmem:[%s384 + $0x40] sm:$0xff] %vm999, %v741
        %1041 = vst.msk [vmem:[%s384 + $0x48] sm:$0xff] %vm999, %v748
        %1042 = vst.msk [vmem:[%s384 + $0x50] sm:$0xff] %vm999, %v755
        %1043 = vst.msk [vmem:[%s384 + $0x58] sm:$0xff] %vm999, %v762
        %1044 = vst.msk [vmem:[%s384 + $0x60] sm:$0xff] %vm999, %v769
        %1045 = vst.msk [vmem:[%s384 + $0x68] sm:$0xff] %vm999, %v776
        %1046 = vst.msk [vmem:[%s384 + $0x70] sm:$0xff] %vm999, %v783
        %1047 = vst.msk [vmem:[%s384 + $0x78] sm:$0xff] %vm999, %v790
        %1048 = vst.msk [vmem:[%s384 + $0x80] sm:$0xff] %vm999, %v797
        %1049 = vst.msk [vmem:[%s384 + $0x88] sm:$0xff] %vm999, %v804
        %1050 = vst.msk [vmem:[%s384 + $0x90] sm:$0xff] %vm999, %v811
        %1051 = vst.msk [vmem:[%s384 + $0x98] sm:$0xff] %vm999, %v818
        %1052 = vst.msk [vmem:[%s384 + $0xa0] sm:$0xff] %vm999, %v825
        %1053 = vst.msk [vmem:[%s384 + $0xa8] sm:$0xff] %vm999, %v832
        %1054 = vst.msk [vmem:[%s384 + $0xb0] sm:$0xff] %vm999, %v839
        %1055 = vst.msk [vmem:[%s384 + $0xb8] sm:$0xff] %vm999, %v846
        %1056 = vst.msk [vmem:[%s384 + $0xc0] sm:$0xff] %vm999, %v853
        %1057 = vst.msk [vmem:[%s384 + $0xc8] sm:$0xff] %vm999, %v860
        %1058 = vst.msk [vmem:[%s384 + $0xd0] sm:$0xff] %vm999, %v867
        %1059 = vst.msk [vmem:[%s384 + $0xd8] sm:$0xff] %vm999, %v874
        %1060 = vst.msk [vmem:[%s384 + $0xe0] sm:$0xff] %vm999, %v881
        %1061 = vst.msk [vmem:[%s384 + $0xe8] sm:$0xff] %vm999, %v888
        %1062 = vst.msk [vmem:[%s384 + $0xf0] sm:$0xff] %vm999, %v895
        %1063 = vst.msk [vmem:[%s384 + $0xf8] sm:$0xff] %vm999, %v902
        %v1065 = vlaneseq
        %v1066 = vshrl.u32 %v1065, 7
        %v1067 = vsub.s32 0, %v1066
        %v1068 = vrot.slane %v419, %v1067
        %v1070 = vsub.f32 %v967, %v1068
        %v1071 = vsub.f32 %v968, %v1068
        %v1072 = vsub.f32 %v969, %v1068
        %v1073 = vsub.f32 %v970, %v1068
        %v1074 = vsub.f32 %v971, %v1068
        %v1075 = vsub.f32 %v972, %v1068
        %v1076 = vsub.f32 %v973, %v1068
        %v1077 = vsub.f32 %v974, %v1068
        %v1078 = vsub.f32 %v975, %v1068
        %v1079 = vsub.f32 %v976, %v1068
        %v1080 = vsub.f32 %v977, %v1068
        %v1081 = vsub.f32 %v978, %v1068
        %v1082 = vsub.f32 %v979, %v1068
        %v1083 = vsub.f32 %v980, %v1068
        %v1084 = vsub.f32 %v981, %v1068
        %v1085 = vsub.f32 %v982, %v1068
        %v1086 = vsub.f32 %v983, %v1068
        %v1087 = vsub.f32 %v984, %v1068
        %v1088 = vsub.f32 %v985, %v1068
        %v1089 = vsub.f32 %v986, %v1068
        %v1090 = vsub.f32 %v987, %v1068
        %v1091 = vsub.f32 %v988, %v1068
        %v1092 = vsub.f32 %v989, %v1068
        %v1093 = vsub.f32 %v990, %v1068
        %v1094 = vsub.f32 %v991, %v1068
        %v1095 = vsub.f32 %v992, %v1068
        %v1096 = vsub.f32 %v993, %v1068
        %v1097 = vsub.f32 %v994, %v1068
        %v1098 = vsub.f32 %v995, %v1068
        %v1099 = vsub.f32 %v996, %v1068
        %v1100 = vsub.f32 %v997, %v1068
        %v1101 = vsub.f32 %v998, %v1068
        %v1102 = vpack.c.bf16 %v1071, %v1070
        %v1103 = vpack.c.bf16 %v1073, %v1072
        %v1104 = vpack.c.bf16 %v1075, %v1074
        %v1105 = vpack.c.bf16 %v1077, %v1076
        %v1106 = vpack.c.bf16 %v1079, %v1078
        %v1107 = vpack.c.bf16 %v1081, %v1080
        %v1108 = vpack.c.bf16 %v1083, %v1082
        %v1109 = vpack.c.bf16 %v1085, %v1084
        %v1110 = vpack.c.bf16 %v1087, %v1086
        %v1111 = vpack.c.bf16 %v1089, %v1088
        %v1112 = vpack.c.bf16 %v1091, %v1090
        %v1113 = vpack.c.bf16 %v1093, %v1092
        %v1114 = vpack.c.bf16 %v1095, %v1094
        %v1115 = vpack.c.bf16 %v1097, %v1096
        %v1116 = vpack.c.bf16 %v1099, %v1098
        %v1117 = vpack.c.bf16 %v1101, %v1100
        %v1118 = vld [vmem:[#allocation5] sm:$0xf]
        %v1119 = vld [vmem:[#allocation5 + $0x4] sm:$0xf]
        %v1120 = vld [vmem:[#allocation5 + $0x8] sm:$0xf]
        %v1121 = vld [vmem:[#allocation5 + $0xc] sm:$0xf]
        %v1122 = vld [vmem:[#allocation5 + $0x10] sm:$0xf]
        %v1123 = vld [vmem:[#allocation5 + $0x14] sm:$0xf]
        %v1124 = vld [vmem:[#allocation5 + $0x18] sm:$0xf]
        %v1125 = vld [vmem:[#allocation5 + $0x1c] sm:$0xf]
        %v1126 = vld [vmem:[#allocation5 + $0x20] sm:$0xf]
        %v1127 = vld [vmem:[#allocation5 + $0x24] sm:$0xf]
        %v1128 = vld [vmem:[#allocation5 + $0x28] sm:$0xf]
        %v1129 = vld [vmem:[#allocation5 + $0x2c] sm:$0xf]
        %v1130 = vld [vmem:[#allocation5 + $0x30] sm:$0xf]
        %v1131 = vld [vmem:[#allocation5 + $0x34] sm:$0xf]
        %v1132 = vld [vmem:[#allocation5 + $0x38] sm:$0xf]
        %v1133 = vld [vmem:[#allocation5 + $0x3c] sm:$0xf]
        %v1134 = vld [vmem:[#allocation5 + $0x40] sm:$0xf]
        %v1135 = vld [vmem:[#allocation5 + $0x44] sm:$0xf]
        %v1136 = vld [vmem:[#allocation5 + $0x48] sm:$0xf]
        %v1137 = vld [vmem:[#allocation5 + $0x4c] sm:$0xf]
        %v1138 = vld [vmem:[#allocation5 + $0x50] sm:$0xf]
        %v1139 = vld [vmem:[#allocation5 + $0x54] sm:$0xf]
        %v1140 = vld [vmem:[#allocation5 + $0x58] sm:$0xf]
        %v1141 = vld [vmem:[#allocation5 + $0x5c] sm:$0xf]
        %v1142 = vld [vmem:[#allocation5 + $0x60] sm:$0xf]
        %v1143 = vld [vmem:[#allocation5 + $0x64] sm:$0xf]
        %v1144 = vld [vmem:[#allocation5 + $0x68] sm:$0xf]
        %v1145 = vld [vmem:[#allocation5 + $0x6c] sm:$0xf]
        %v1146 = vld [vmem:[#allocation5 + $0x70] sm:$0xf]
        %v1147 = vld [vmem:[#allocation5 + $0x74] sm:$0xf]
        %v1148 = vld [vmem:[#allocation5 + $0x78] sm:$0xf]
        %v1149 = vld [vmem:[#allocation5 + $0x7c] sm:$0xf]
        %v1151 = vlaneseq
        %v1152 = vshrl.u32 %v1151, 7
        %v1153 = vsub.s32 0, %v1152
        %v1154 = vrot.slane %v420, %v1153
        %v1155 = vlaneseq
        %v1156 = vshrl.u32 %v1155, 7
        %v1157 = vsub.s32 1, %v1156
        %v1158 = vrot.slane %v420, %v1157
        %v1193 = vunpack.c.l.b16 %v1118
        %v1194 = vunpack.c.l.b16 %v1119
        %v1195 = vunpack.c.l.b16 %v1120
        %v1196 = vunpack.c.l.b16 %v1121
        %v1197 = vunpack.c.l.b16 %v1122
        %v1198 = vunpack.c.l.b16 %v1123
        %v1199 = vunpack.c.l.b16 %v1124
        %v1200 = vunpack.c.l.b16 %v1125
        %v1201 = vunpack.c.l.b16 %v1126
        %v1202 = vunpack.c.l.b16 %v1127
        %v1203 = vunpack.c.l.b16 %v1128
        %v1204 = vunpack.c.l.b16 %v1129
        %v1205 = vunpack.c.l.b16 %v1130
        %v1206 = vunpack.c.l.b16 %v1131
        %v1207 = vunpack.c.l.b16 %v1132
        %v1208 = vunpack.c.l.b16 %v1133
        %v1209 = vunpack.c.l.b16 %v1134
        %v1210 = vunpack.c.l.b16 %v1135
        %v1211 = vunpack.c.l.b16 %v1136
        %v1212 = vunpack.c.l.b16 %v1137
        %v1213 = vunpack.c.l.b16 %v1138
        %v1214 = vunpack.c.l.b16 %v1139
        %v1215 = vunpack.c.l.b16 %v1140
        %v1216 = vunpack.c.l.b16 %v1141
        %v1217 = vunpack.c.l.b16 %v1142
        %v1218 = vunpack.c.l.b16 %v1143
        %v1219 = vunpack.c.l.b16 %v1144
        %v1220 = vunpack.c.l.b16 %v1145
        %v1221 = vunpack.c.l.b16 %v1146
        %v1222 = vunpack.c.l.b16 %v1147
        %v1223 = vunpack.c.l.b16 %v1148
        %v1224 = vunpack.c.l.b16 %v1149
        %v1225 = vpack.c.b16 %v1194, %v1193
        %v1226 = vpack.c.b16 %v1196, %v1195
        %v1227 = vpack.c.b16 %v1198, %v1197
        %v1228 = vpack.c.b16 %v1200, %v1199
        %v1229 = vpack.c.b16 %v1202, %v1201
        %v1230 = vpack.c.b16 %v1204, %v1203
        %v1231 = vpack.c.b16 %v1206, %v1205
        %v1232 = vpack.c.b16 %v1208, %v1207
        %v1233 = vpack.c.b16 %v1210, %v1209
        %v1234 = vpack.c.b16 %v1212, %v1211
        %v1235 = vpack.c.b16 %v1214, %v1213
        %v1236 = vpack.c.b16 %v1216, %v1215
        %v1237 = vpack.c.b16 %v1218, %v1217
        %v1238 = vpack.c.b16 %v1220, %v1219
        %v1239 = vpack.c.b16 %v1222, %v1221
        %v1240 = vpack.c.b16 %v1224, %v1223
        %1257 = vmatprep.subr.bf16.mxu0 0
        %1258 = vmatpush1.bf16.xpose.msra.mxu0 %v1225
        %1259 = vmatprep.subr.bf16.mxu0 0
        %1260 = vmatpush1.bf16.xpose.msra.mxu0 %v1226
        %1261 = vmatprep.subr.bf16.mxu0 0
        %1262 = vmatpush1.bf16.xpose.msra.mxu0 %v1227
        %1263 = vmatprep.subr.bf16.mxu0 0
        %1264 = vmatpush1.bf16.xpose.msra.mxu0 %v1228
        %1265 = vmatprep.subr.bf16.mxu0 0
        %1266 = vmatpush1.bf16.xpose.msra.mxu0 %v1229
        %1267 = vmatprep.subr.bf16.mxu0 0
        %1268 = vmatpush1.bf16.xpose.msra.mxu0 %v1230
        %1269 = vmatprep.subr.bf16.mxu0 0
        %1270 = vmatpush1.bf16.xpose.msra.mxu0 %v1231
        %1271 = vmatprep.subr.bf16.mxu0 0
        %1272 = vmatpush1.bf16.xpose.msra.mxu0 %v1232
        %1273 = vmatprep.subr.bf16.mxu0 0
        %1274 = vmatpush1.bf16.xpose.msra.mxu0 %v1233
        %1275 = vmatprep.subr.bf16.mxu0 0
        %1276 = vmatpush1.bf16.xpose.msra.mxu0 %v1234
        %1277 = vmatprep.subr.bf16.mxu0 0
        %1278 = vmatpush1.bf16.xpose.msra.mxu0 %v1235
        %1279 = vmatprep.subr.bf16.mxu0 0
        %1280 = vmatpush1.bf16.xpose.msra.mxu0 %v1236
        %1281 = vmatprep.subr.bf16.mxu0 0
        %1282 = vmatpush1.bf16.xpose.msra.mxu0 %v1237
        %1283 = vmatprep.subr.bf16.mxu0 0
        %1284 = vmatpush1.bf16.xpose.msra.mxu0 %v1238
        %1285 = vmatprep.subr.bf16.mxu0 0
        %1286 = vmatpush1.bf16.xpose.msra.mxu0 %v1239
        %1287 = vmatprep.subr.bf16.mxu0 0
        %1288 = vmatpush1.bf16.xpose.msra.mxu0 %v1240
        %1289 = vmatprep.mubr.bf16.mxu0 0
        %1290 = vmatmul.mubr.bf16.gmra.mrb[0].mxu0 %v1102
        %v1291 = vpop.f32.mrb[0].mxu0
        %v1292 = vadd.f32 %v1154, %v1291
        %v1293 = vpop.f32.mrb[0].mxu0
        %v1294 = vadd.f32 %v1158, %v1293
        %v1295 = vpop.f32.mrb[0].mxu0
        %v1296 = vadd.f32 %v1154, %v1295
        %v1297 = vpop.f32.mrb[0].mxu0
        %v1298 = vadd.f32 %v1158, %v1297
        %1299 = vmatprep.mubr.bf16.mxu0 0
        %1300 = vmatmul.mubr.bf16.gmra.mrb[0].mxu0 %v1103
        %v1301 = vpop.f32.mrb[0].mxu0
        %v1302 = vadd.f32 %v1154, %v1301
        %v1303 = vpop.f32.mrb[0].mxu0
        %v1304 = vadd.f32 %v1158, %v1303
        %v1305 = vpop.f32.mrb[0].mxu0
        %v1306 = vadd.f32 %v1154, %v1305
        %v1307 = vpop.f32.mrb[0].mxu0
        %v1308 = vadd.f32 %v1158, %v1307
        %1309 = vmatprep.mubr.bf16.mxu0 0
        %1310 = vmatmul.mubr.bf16.gmra.mrb[0].mxu0 %v1104
        %v1311 = vpop.f32.mrb[0].mxu0
        %v1312 = vadd.f32 %v1154, %v1311
        %v1313 = vpop.f32.mrb[0].mxu0
        %v1314 = vadd.f32 %v1158, %v1313
        %v1315 = vpop.f32.mrb[0].mxu0
        %v1316 = vadd.f32 %v1154, %v1315
        %v1317 = vpop.f32.mrb[0].mxu0
        %v1318 = vadd.f32 %v1158, %v1317
        %1319 = vmatprep.mubr.bf16.mxu0 0
        %1320 = vmatmul.mubr.bf16.gmra.mrb[0].mxu0 %v1105
        %v1321 = vpop.f32.mrb[0].mxu0
        %v1322 = vadd.f32 %v1154, %v1321
        %v1323 = vpop.f32.mrb[0].mxu0
        %v1324 = vadd.f32 %v1158, %v1323
        %v1325 = vpop.f32.mrb[0].mxu0
        %v1326 = vadd.f32 %v1154, %v1325
        %v1327 = vpop.f32.mrb[0].mxu0
        %v1328 = vadd.f32 %v1158, %v1327
        %1329 = vmatprep.mubr.bf16.mxu0 0
        %1330 = vmatmul.mubr.bf16.gmra.mrb[0].mxu0 %v1106
        %v1331 = vpop.f32.mrb[0].mxu0
        %v1332 = vadd.f32 %v1154, %v1331
        %v1333 = vpop.f32.mrb[0].mxu0
        %v1334 = vadd.f32 %v1158, %v1333
        %v1335 = vpop.f32.mrb[0].mxu0
        %v1336 = vadd.f32 %v1154, %v1335
        %v1337 = vpop.f32.mrb[0].mxu0
        %v1338 = vadd.f32 %v1158, %v1337
        %1339 = vmatprep.mubr.bf16.mxu0 0
        %1340 = vmatmul.mubr.bf16.gmra.mrb[0].mxu0 %v1107
        %v1341 = vpop.f32.mrb[0].mxu0
        %v1342 = vadd.f32 %v1154, %v1341
        %v1343 = vpop.f32.mrb[0].mxu0
        %v1344 = vadd.f32 %v1158, %v1343
        %v1345 = vpop.f32.mrb[0].mxu0
        %v1346 = vadd.f32 %v1154, %v1345
        %v1347 = vpop.f32.mrb[0].mxu0
        %v1348 = vadd.f32 %v1158, %v1347
        %1349 = vmatprep.mubr.bf16.mxu0 0
        %1350 = vmatmul.mubr.bf16.gmra.mrb[0].mxu0 %v1108
        %v1351 = vpop.f32.mrb[0].mxu0
        %v1352 = vadd.f32 %v1154, %v1351
        %v1353 = vpop.f32.mrb[0].mxu0
        %v1354 = vadd.f32 %v1158, %v1353
        %v1355 = vpop.f32.mrb[0].mxu0
        %v1356 = vadd.f32 %v1154, %v1355
        %v1357 = vpop.f32.mrb[0].mxu0
        %v1358 = vadd.f32 %v1158, %v1357
        %1359 = vmatprep.mubr.bf16.mxu0 0
        %1360 = vmatmul.mubr.bf16.gmra.mrb[0].mxu0 %v1109
        %v1361 = vpop.f32.mrb[0].mxu0
        %v1362 = vadd.f32 %v1154, %v1361
        %v1363 = vpop.f32.mrb[0].mxu0
        %v1364 = vadd.f32 %v1158, %v1363
        %v1365 = vpop.f32.mrb[0].mxu0
        %v1366 = vadd.f32 %v1154, %v1365
        %v1367 = vpop.f32.mrb[0].mxu0
        %v1368 = vadd.f32 %v1158, %v1367
        %1369 = vmatprep.mubr.bf16.mxu0 0
        %1370 = vmatmul.mubr.bf16.gmra.mrb[0].mxu0 %v1110
        %v1371 = vpop.f32.mrb[0].mxu0
        %v1372 = vadd.f32 %v1154, %v1371
        %v1373 = vpop.f32.mrb[0].mxu0
        %v1374 = vadd.f32 %v1158, %v1373
        %v1375 = vpop.f32.mrb[0].mxu0
        %v1376 = vadd.f32 %v1154, %v1375
        %v1377 = vpop.f32.mrb[0].mxu0
        %v1378 = vadd.f32 %v1158, %v1377
        %1379 = vmatprep.mubr.bf16.mxu0 0
        %1380 = vmatmul.mubr.bf16.gmra.mrb[0].mxu0 %v1111
        %v1381 = vpop.f32.mrb[0].mxu0
        %v1382 = vadd.f32 %v1154, %v1381
        %v1383 = vpop.f32.mrb[0].mxu0
        %v1384 = vadd.f32 %v1158, %v1383
        %v1385 = vpop.f32.mrb[0].mxu0
        %v1386 = vadd.f32 %v1154, %v1385
        %v1387 = vpop.f32.mrb[0].mxu0
        %v1388 = vadd.f32 %v1158, %v1387
        %1389 = vmatprep.mubr.bf16.mxu0 0
        %1390 = vmatmul.mubr.bf16.gmra.mrb[0].mxu0 %v1112
        %v1391 = vpop.f32.mrb[0].mxu0
        %v1392 = vadd.f32 %v1154, %v1391
        %v1393 = vpop.f32.mrb[0].mxu0
        %v1394 = vadd.f32 %v1158, %v1393
        %v1395 = vpop.f32.mrb[0].mxu0
        %v1396 = vadd.f32 %v1154, %v1395
        %v1397 = vpop.f32.mrb[0].mxu0
        %v1398 = vadd.f32 %v1158, %v1397
        %1399 = vmatprep.mubr.bf16.mxu0 0
        %1400 = vmatmul.mubr.bf16.gmra.mrb[0].mxu0 %v1113
        %v1401 = vpop.f32.mrb[0].mxu0
        %v1402 = vadd.f32 %v1154, %v1401
        %v1403 = vpop.f32.mrb[0].mxu0
        %v1404 = vadd.f32 %v1158, %v1403
        %v1405 = vpop.f32.mrb[0].mxu0
        %v1406 = vadd.f32 %v1154, %v1405
        %v1407 = vpop.f32.mrb[0].mxu0
        %v1408 = vadd.f32 %v1158, %v1407
        %1409 = vmatprep.mubr.bf16.mxu0 0
        %1410 = vmatmul.mubr.bf16.gmra.mrb[0].mxu0 %v1114
        %v1411 = vpop.f32.mrb[0].mxu0
        %v1412 = vadd.f32 %v1154, %v1411
        %v1413 = vpop.f32.mrb[0].mxu0
        %v1414 = vadd.f32 %v1158, %v1413
        %v1415 = vpop.f32.mrb[0].mxu0
        %v1416 = vadd.f32 %v1154, %v1415
        %v1417 = vpop.f32.mrb[0].mxu0
        %v1418 = vadd.f32 %v1158, %v1417
        %1419 = vmatprep.mubr.bf16.mxu0 0
        %1420 = vmatmul.mubr.bf16.gmra.mrb[0].mxu0 %v1115
        %v1421 = vpop.f32.mrb[0].mxu0
        %v1422 = vadd.f32 %v1154, %v1421
        %v1423 = vpop.f32.mrb[0].mxu0
        %v1424 = vadd.f32 %v1158, %v1423
        %v1425 = vpop.f32.mrb[0].mxu0
        %v1426 = vadd.f32 %v1154, %v1425
        %v1427 = vpop.f32.mrb[0].mxu0
        %v1428 = vadd.f32 %v1158, %v1427
        %1429 = vmatprep.mubr.bf16.mxu0 0
        %1430 = vmatmul.mubr.bf16.gmra.mrb[0].mxu0 %v1116
        %v1431 = vpop.f32.mrb[0].mxu0
        %v1432 = vadd.f32 %v1154, %v1431
        %v1433 = vpop.f32.mrb[0].mxu0
        %v1434 = vadd.f32 %v1158, %v1433
        %v1435 = vpop.f32.mrb[0].mxu0
        %v1436 = vadd.f32 %v1154, %v1435
        %v1437 = vpop.f32.mrb[0].mxu0
        %v1438 = vadd.f32 %v1158, %v1437
        %1439 = vmatprep.mubr.bf16.mxu0 0
        %1440 = vmatmul.mubr.bf16.gmra.mrb[0].mxu0 %v1117
        %v1441 = vpop.f32.mrb[0].mxu0
        %v1442 = vadd.f32 %v1154, %v1441
        %v1443 = vpop.f32.mrb[0].mxu0
        %v1444 = vadd.f32 %v1158, %v1443
        %v1445 = vpop.f32.mrb[0].mxu0
        %v1446 = vadd.f32 %v1154, %v1445
        %v1447 = vpop.f32.mrb[0].mxu0
        %v1448 = vadd.f32 %v1158, %v1447
        %1449 = vdwg.mxu0
        %v1450 = vpack.c.bf16 %v1296, %v1292
        %v1451 = vpack.c.bf16 %v1298, %v1294
        %v1452 = vpack.c.bf16 %v1306, %v1302
        %v1453 = vpack.c.bf16 %v1308, %v1304
        %v1454 = vpack.c.bf16 %v1316, %v1312
        %v1455 = vpack.c.bf16 %v1318, %v1314
        %v1456 = vpack.c.bf16 %v1326, %v1322
        %v1457 = vpack.c.bf16 %v1328, %v1324
        %v1458 = vpack.c.bf16 %v1336, %v1332
        %v1459 = vpack.c.bf16 %v1338, %v1334
        %v1460 = vpack.c.bf16 %v1346, %v1342
        %v1461 = vpack.c.bf16 %v1348, %v1344
        %v1462 = vpack.c.bf16 %v1356, %v1352
        %v1463 = vpack.c.bf16 %v1358, %v1354
        %v1464 = vpack.c.bf16 %v1366, %v1362
        %v1465 = vpack.c.bf16 %v1368, %v1364
        %v1466 = vpack.c.bf16 %v1376, %v1372
        %v1467 = vpack.c.bf16 %v1378, %v1374
        %v1468 = vpack.c.bf16 %v1386, %v1382
        %v1469 = vpack.c.bf16 %v1388, %v1384
        %v1470 = vpack.c.bf16 %v1396, %v1392
        %v1471 = vpack.c.bf16 %v1398, %v1394
        %v1472 = vpack.c.bf16 %v1406, %v1402
        %v1473 = vpack.c.bf16 %v1408, %v1404
        %v1474 = vpack.c.bf16 %v1416, %v1412
        %v1475 = vpack.c.bf16 %v1418, %v1414
        %v1476 = vpack.c.bf16 %v1426, %v1422
        %v1477 = vpack.c.bf16 %v1428, %v1424
        %v1478 = vpack.c.bf16 %v1436, %v1432
        %v1479 = vpack.c.bf16 %v1438, %v1434
        %v1480 = vpack.c.bf16 %v1446, %v1442
        %v1481 = vpack.c.bf16 %v1448, %v1444
        %v1514 = vunpack.c.l.b16 %v1450
        %v1515 = vunpack.c.l.b16 %v1451
        %v1516 = vunpack.c.h.b16 %v1450
        %v1517 = vunpack.c.h.b16 %v1451
        %v1518 = vunpack.c.l.b16 %v1452
        %v1519 = vunpack.c.l.b16 %v1453
        %v1520 = vunpack.c.h.b16 %v1452
        %v1521 = vunpack.c.h.b16 %v1453
        %v1522 = vunpack.c.l.b16 %v1454
        %v1523 = vunpack.c.l.b16 %v1455
        %v1524 = vunpack.c.h.b16 %v1454
        %v1525 = vunpack.c.h.b16 %v1455
        %v1526 = vunpack.c.l.b16 %v1456
        %v1527 = vunpack.c.l.b16 %v1457
        %v1528 = vunpack.c.h.b16 %v1456
        %v1529 = vunpack.c.h.b16 %v1457
        %v1530 = vunpack.c.l.b16 %v1458
        %v1531 = vunpack.c.l.b16 %v1459
        %v1532 = vunpack.c.h.b16 %v1458
        %v1533 = vunpack.c.h.b16 %v1459
        %v1534 = vunpack.c.l.b16 %v1460
        %v1535 = vunpack.c.l.b16 %v1461
        %v1536 = vunpack.c.h.b16 %v1460
        %v1537 = vunpack.c.h.b16 %v1461
        %v1538 = vunpack.c.l.b16 %v1462
        %v1539 = vunpack.c.l.b16 %v1463
        %v1540 = vunpack.c.h.b16 %v1462
        %v1541 = vunpack.c.h.b16 %v1463
        %v1542 = vunpack.c.l.b16 %v1464
        %v1543 = vunpack.c.l.b16 %v1465
        %v1544 = vunpack.c.h.b16 %v1464
        %v1545 = vunpack.c.h.b16 %v1465
        %v1546 = vunpack.c.l.b16 %v1466
        %v1547 = vunpack.c.l.b16 %v1467
        %v1548 = vunpack.c.h.b16 %v1466
        %v1549 = vunpack.c.h.b16 %v1467
        %v1550 = vunpack.c.l.b16 %v1468
        %v1551 = vunpack.c.l.b16 %v1469
        %v1552 = vunpack.c.h.b16 %v1468
        %v1553 = vunpack.c.h.b16 %v1469
        %v1554 = vunpack.c.l.b16 %v1470
        %v1555 = vunpack.c.l.b16 %v1471
        %v1556 = vunpack.c.h.b16 %v1470
        %v1557 = vunpack.c.h.b16 %v1471
        %v1558 = vunpack.c.l.b16 %v1472
        %v1559 = vunpack.c.l.b16 %v1473
        %v1560 = vunpack.c.h.b16 %v1472
        %v1561 = vunpack.c.h.b16 %v1473
        %v1562 = vunpack.c.l.b16 %v1474
        %v1563 = vunpack.c.l.b16 %v1475
        %v1564 = vunpack.c.h.b16 %v1474
        %v1565 = vunpack.c.h.b16 %v1475
        %v1566 = vunpack.c.l.b16 %v1476
        %v1567 = vunpack.c.l.b16 %v1477
        %v1568 = vunpack.c.h.b16 %v1476
        %v1569 = vunpack.c.h.b16 %v1477
        %v1570 = vunpack.c.l.b16 %v1478
        %v1571 = vunpack.c.l.b16 %v1479
        %v1572 = vunpack.c.h.b16 %v1478
        %v1573 = vunpack.c.h.b16 %v1479
        %v1574 = vunpack.c.l.b16 %v1480
        %v1575 = vunpack.c.l.b16 %v1481
        %v1576 = vunpack.c.h.b16 %v1480
        %v1577 = vunpack.c.h.b16 %v1481
        %v1578 = vpack.c.b16 %v1515, %v1514
        %v1579 = vpack.c.b16 %v1517, %v1516
        %v1580 = vpack.c.b16 %v1519, %v1518
        %v1581 = vpack.c.b16 %v1521, %v1520
        %v1582 = vpack.c.b16 %v1523, %v1522
        %v1583 = vpack.c.b16 %v1525, %v1524
        %v1584 = vpack.c.b16 %v1527, %v1526
        %v1585 = vpack.c.b16 %v1529, %v1528
        %v1586 = vpack.c.b16 %v1531, %v1530
        %v1587 = vpack.c.b16 %v1533, %v1532
        %v1588 = vpack.c.b16 %v1535, %v1534
        %v1589 = vpack.c.b16 %v1537, %v1536
        %v1590 = vpack.c.b16 %v1539, %v1538
        %v1591 = vpack.c.b16 %v1541, %v1540
        %v1592 = vpack.c.b16 %v1543, %v1542
        %v1593 = vpack.c.b16 %v1545, %v1544
        %v1594 = vpack.c.b16 %v1547, %v1546
        %v1595 = vpack.c.b16 %v1549, %v1548
        %v1596 = vpack.c.b16 %v1551, %v1550
        %v1597 = vpack.c.b16 %v1553, %v1552
        %v1598 = vpack.c.b16 %v1555, %v1554
        %v1599 = vpack.c.b16 %v1557, %v1556
        %v1600 = vpack.c.b16 %v1559, %v1558
        %v1601 = vpack.c.b16 %v1561, %v1560
        %v1602 = vpack.c.b16 %v1563, %v1562
        %v1603 = vpack.c.b16 %v1565, %v1564
        %v1604 = vpack.c.b16 %v1567, %v1566
        %v1605 = vpack.c.b16 %v1569, %v1568
        %v1606 = vpack.c.b16 %v1571, %v1570
        %v1607 = vpack.c.b16 %v1573, %v1572
        %v1608 = vpack.c.b16 %v1575, %v1574
        %v1609 = vpack.c.b16 %v1577, %v1576
        %1642 = vst [vmem:[%s342] sm:$0xff] %v1578
        %1643 = vst [vmem:[%s342 + $0x8] sm:$0xff] %v1579
        %1644 = vst [vmem:[%s342 + $0x10] sm:$0xff] %v1580
        %1645 = vst [vmem:[%s342 + $0x18] sm:$0xff] %v1581
        %1646 = vst [vmem:[%s342 + $0x20] sm:$0xff] %v1582
        %1647 = vst [vmem:[%s342 + $0x28] sm:$0xff] %v1583
        %1648 = vst [vmem:[%s342 + $0x30] sm:$0xff] %v1584
        %1649 = vst [vmem:[%s342 + $0x38] sm:$0xff] %v1585
        %1650 = vst [vmem:[%s342 + $0x40] sm:$0xff] %v1586
        %1651 = vst [vmem:[%s342 + $0x48] sm:$0xff] %v1587
        %1652 = vst [vmem:[%s342 + $0x50] sm:$0xff] %v1588
        %1653 = vst [vmem:[%s342 + $0x58] sm:$0xff] %v1589
        %1654 = vst [vmem:[%s342 + $0x60] sm:$0xff] %v1590
        %1655 = vst [vmem:[%s342 + $0x68] sm:$0xff] %v1591
        %1656 = vst [vmem:[%s342 + $0x70] sm:$0xff] %v1592
        %1657 = vst [vmem:[%s342 + $0x78] sm:$0xff] %v1593
        %1658 = vst [vmem:[%s342 + $0x80] sm:$0xff] %v1594
        %1659 = vst [vmem:[%s342 + $0x88] sm:$0xff] %v1595
        %1660 = vst [vmem:[%s342 + $0x90] sm:$0xff] %v1596
        %1661 = vst [vmem:[%s342 + $0x98] sm:$0xff] %v1597
        %1662 = vst [vmem:[%s342 + $0xa0] sm:$0xff] %v1598
        %1663 = vst [vmem:[%s342 + $0xa8] sm:$0xff] %v1599
        %1664 = vst [vmem:[%s342 + $0xb0] sm:$0xff] %v1600
        %1665 = vst [vmem:[%s342 + $0xb8] sm:$0xff] %v1601
        %1666 = vst [vmem:[%s342 + $0xc0] sm:$0xff] %v1602
        %1667 = vst [vmem:[%s342 + $0xc8] sm:$0xff] %v1603
        %1668 = vst [vmem:[%s342 + $0xd0] sm:$0xff] %v1604
        %1669 = vst [vmem:[%s342 + $0xd8] sm:$0xff] %v1605
        %1670 = vst [vmem:[%s342 + $0xe0] sm:$0xff] %v1606
        %1671 = vst [vmem:[%s342 + $0xe8] sm:$0xff] %v1607
        %1672 = vst [vmem:[%s342 + $0xf0] sm:$0xff] %v1608
        %1673 = vst [vmem:[%s342 + $0xf8] sm:$0xff] %v1609
        %v1674 = vmax.f32 %v1292, %v1294
        %1675 = vmax.xlane.f32.xlu0 %v1674
        %v1676 = vpop.xlane.xlu0 %1675
        %v1677 = vmax.f32 %v1296, %v1298
        %1678 = vmax.xlane.f32.xlu0 %v1677
        %v1679 = vpop.xlane.xlu0 %1678
        %v1680 = vmax.f32 %v1302, %v1304
        %1681 = vmax.xlane.f32.xlu0 %v1680
        %v1682 = vpop.xlane.xlu0 %1681
        %v1683 = vmax.f32 %v1306, %v1308
        %1684 = vmax.xlane.f32.xlu0 %v1683
        %v1685 = vpop.xlane.xlu0 %1684
        %v1686 = vmax.f32 %v1312, %v1314
        %1687 = vmax.xlane.f32.xlu0 %v1686
        %v1688 = vpop.xlane.xlu0 %1687
        %v1689 = vmax.f32 %v1316, %v1318
        %1690 = vmax.xlane.f32.xlu0 %v1689
        %v1691 = vpop.xlane.xlu0 %1690
        %v1692 = vmax.f32 %v1322, %v1324
        %1693 = vmax.xlane.f32.xlu0 %v1692
        %v1694 = vpop.xlane.xlu0 %1693
        %v1695 = vmax.f32 %v1326, %v1328
        %1696 = vmax.xlane.f32.xlu0 %v1695
        %v1697 = vpop.xlane.xlu0 %1696
        %v1698 = vmax.f32 %v1332, %v1334
        %1699 = vmax.xlane.f32.xlu0 %v1698
        %v1700 = vpop.xlane.xlu0 %1699
        %v1701 = vmax.f32 %v1336, %v1338
        %1702 = vmax.xlane.f32.xlu0 %v1701
        %v1703 = vpop.xlane.xlu0 %1702
        %v1704 = vmax.f32 %v1342, %v1344
        %1705 = vmax.xlane.f32.xlu0 %v1704
        %v1706 = vpop.xlane.xlu0 %1705
        %v1707 = vmax.f32 %v1346, %v1348
        %1708 = vmax.xlane.f32.xlu0 %v1707
        %v1709 = vpop.xlane.xlu0 %1708
        %v1710 = vmax.f32 %v1352, %v1354
        %1711 = vmax.xlane.f32.xlu0 %v1710
        %v1712 = vpop.xlane.xlu0 %1711
        %v1713 = vmax.f32 %v1356, %v1358
        %1714 = vmax.xlane.f32.xlu0 %v1713
        %v1715 = vpop.xlane.xlu0 %1714
        %v1716 = vmax.f32 %v1362, %v1364
        %1717 = vmax.xlane.f32.xlu0 %v1716
        %v1718 = vpop.xlane.xlu0 %1717
        %v1719 = vmax.f32 %v1366, %v1368
        %1720 = vmax.xlane.f32.xlu0 %v1719
        %v1721 = vpop.xlane.xlu0 %1720
        %v1722 = vmax.f32 %v1372, %v1374
        %1723 = vmax.xlane.f32.xlu0 %v1722
        %v1724 = vpop.xlane.xlu0 %1723
        %v1725 = vmax.f32 %v1376, %v1378
        %1726 = vmax.xlane.f32.xlu0 %v1725
        %v1727 = vpop.xlane.xlu0 %1726
        %v1728 = vmax.f32 %v1382, %v1384
        %1729 = vmax.xlane.f32.xlu0 %v1728
        %v1730 = vpop.xlane.xlu0 %1729
        %v1731 = vmax.f32 %v1386, %v1388
        %1732 = vmax.xlane.f32.xlu0 %v1731
        %v1733 = vpop.xlane.xlu0 %1732
        %v1734 = vmax.f32 %v1392, %v1394
        %1735 = vmax.xlane.f32.xlu0 %v1734
        %v1736 = vpop.xlane.xlu0 %1735
        %v1737 = vmax.f32 %v1396, %v1398
        %1738 = vmax.xlane.f32.xlu0 %v1737
        %v1739 = vpop.xlane.xlu0 %1738
        %v1740 = vmax.f32 %v1402, %v1404
        %1741 = vmax.xlane.f32.xlu0 %v1740
        %v1742 = vpop.xlane.xlu0 %1741
        %v1743 = vmax.f32 %v1406, %v1408
        %1744 = vmax.xlane.f32.xlu0 %v1743
        %v1745 = vpop.xlane.xlu0 %1744
        %v1746 = vmax.f32 %v1412, %v1414
        %1747 = vmax.xlane.f32.xlu0 %v1746
        %v1748 = vpop.xlane.xlu0 %1747
        %v1749 = vmax.f32 %v1416, %v1418
        %1750 = vmax.xlane.f32.xlu0 %v1749
        %v1751 = vpop.xlane.xlu0 %1750
        %v1752 = vmax.f32 %v1422, %v1424
        %1753 = vmax.xlane.f32.xlu0 %v1752
        %v1754 = vpop.xlane.xlu0 %1753
        %v1755 = vmax.f32 %v1426, %v1428
        %1756 = vmax.xlane.f32.xlu0 %v1755
        %v1757 = vpop.xlane.xlu0 %1756
        %v1758 = vmax.f32 %v1432, %v1434
        %1759 = vmax.xlane.f32.xlu0 %v1758
        %v1760 = vpop.xlane.xlu0 %1759
        %v1761 = vmax.f32 %v1436, %v1438
        %1762 = vmax.xlane.f32.xlu0 %v1761
        %v1763 = vpop.xlane.xlu0 %1762
        %v1764 = vmax.f32 %v1442, %v1444
        %1765 = vmax.xlane.f32.xlu0 %v1764
        %v1766 = vpop.xlane.xlu0 %1765
        %v1767 = vmax.f32 %v1446, %v1448
        %1768 = vmax.xlane.f32.xlu0 %v1767
        %v1769 = vpop.xlane.xlu0 %1768
        %vm1770 = vcmp.eq.f32.partialorder %v1292, %v1676
        %vm1771 = vcmp.eq.f32.partialorder %v1294, %v1676
        %vm1772 = vcmp.eq.f32.partialorder %v1296, %v1679
        %vm1773 = vcmp.eq.f32.partialorder %v1298, %v1679
        %vm1774 = vcmp.eq.f32.partialorder %v1302, %v1682
        %vm1775 = vcmp.eq.f32.partialorder %v1304, %v1682
        %vm1776 = vcmp.eq.f32.partialorder %v1306, %v1685
        %vm1777 = vcmp.eq.f32.partialorder %v1308, %v1685
        %vm1778 = vcmp.eq.f32.partialorder %v1312, %v1688
        %vm1779 = vcmp.eq.f32.partialorder %v1314, %v1688
        %vm1780 = vcmp.eq.f32.partialorder %v1316, %v1691
        %vm1781 = vcmp.eq.f32.partialorder %v1318, %v1691
        %vm1782 = vcmp.eq.f32.partialorder %v1322, %v1694
        %vm1783 = vcmp.eq.f32.partialorder %v1324, %v1694
        %vm1784 = vcmp.eq.f32.partialorder %v1326, %v1697
        %vm1785 = vcmp.eq.f32.partialorder %v1328, %v1697
        %vm1786 = vcmp.eq.f32.partialorder %v1332, %v1700
        %vm1787 = vcmp.eq.f32.partialorder %v1334, %v1700
        %vm1788 = vcmp.eq.f32.partialorder %v1336, %v1703
        %vm1789 = vcmp.eq.f32.partialorder %v1338, %v1703
        %vm1790 = vcmp.eq.f32.partialorder %v1342, %v1706
        %vm1791 = vcmp.eq.f32.partialorder %v1344, %v1706
        %vm1792 = vcmp.eq.f32.partialorder %v1346, %v1709
        %vm1793 = vcmp.eq.f32.partialorder %v1348, %v1709
        %vm1794 = vcmp.eq.f32.partialorder %v1352, %v1712
        %vm1795 = vcmp.eq.f32.partialorder %v1354, %v1712
        %vm1796 = vcmp.eq.f32.partialorder %v1356, %v1715
        %vm1797 = vcmp.eq.f32.partialorder %v1358, %v1715
        %vm1798 = vcmp.eq.f32.partialorder %v1362, %v1718
        %vm1799 = vcmp.eq.f32.partialorder %v1364, %v1718
        %vm1800 = vcmp.eq.f32.partialorder %v1366, %v1721
        %vm1801 = vcmp.eq.f32.partialorder %v1368, %v1721
        %vm1802 = vcmp.eq.f32.partialorder %v1372, %v1724
        %vm1803 = vcmp.eq.f32.partialorder %v1374, %v1724
        %vm1804 = vcmp.eq.f32.partialorder %v1376, %v1727
        %vm1805 = vcmp.eq.f32.partialorder %v1378, %v1727
        %vm1806 = vcmp.eq.f32.partialorder %v1382, %v1730
        %vm1807 = vcmp.eq.f32.partialorder %v1384, %v1730
        %vm1808 = vcmp.eq.f32.partialorder %v1386, %v1733
        %vm1809 = vcmp.eq.f32.partialorder %v1388, %v1733
        %vm1810 = vcmp.eq.f32.partialorder %v1392, %v1736
        %vm1811 = vcmp.eq.f32.partialorder %v1394, %v1736
        %vm1812 = vcmp.eq.f32.partialorder %v1396, %v1739
        %vm1813 = vcmp.eq.f32.partialorder %v1398, %v1739
        %vm1814 = vcmp.eq.f32.partialorder %v1402, %v1742
        %vm1815 = vcmp.eq.f32.partialorder %v1404, %v1742
        %vm1816 = vcmp.eq.f32.partialorder %v1406, %v1745
        %vm1817 = vcmp.eq.f32.partialorder %v1408, %v1745
        %vm1818 = vcmp.eq.f32.partialorder %v1412, %v1748
        %vm1819 = vcmp.eq.f32.partialorder %v1414, %v1748
        %vm1820 = vcmp.eq.f32.partialorder %v1416, %v1751
        %vm1821 = vcmp.eq.f32.partialorder %v1418, %v1751
        %vm1822 = vcmp.eq.f32.partialorder %v1422, %v1754
        %vm1823 = vcmp.eq.f32.partialorder %v1424, %v1754
        %vm1824 = vcmp.eq.f32.partialorder %v1426, %v1757
        %vm1825 = vcmp.eq.f32.partialorder %v1428, %v1757
        %vm1826 = vcmp.eq.f32.partialorder %v1432, %v1760
        %vm1827 = vcmp.eq.f32.partialorder %v1434, %v1760
        %vm1828 = vcmp.eq.f32.partialorder %v1436, %v1763
        %vm1829 = vcmp.eq.f32.partialorder %v1438, %v1763
        %vm1830 = vcmp.eq.f32.partialorder %v1442, %v1766
        %vm1831 = vcmp.eq.f32.partialorder %v1444, %v1766
        %vm1832 = vcmp.eq.f32.partialorder %v1446, %v1769
        %vm1833 = vcmp.eq.f32.partialorder %v1448, %v1769
        %v1834 = vsel %vm1770, -inf, %v1292
        %v1835 = vsel %vm1771, -inf, %v1294
        %v1836 = vsel %vm1772, -inf, %v1296
        %v1837 = vsel %vm1773, -inf, %v1298
        %v1838 = vsel %vm1774, -inf, %v1302
        %v1839 = vsel %vm1775, -inf, %v1304
        %v1840 = vsel %vm1776, -inf, %v1306
        %v1841 = vsel %vm1777, -inf, %v1308
        %v1842 = vsel %vm1778, -inf, %v1312
        %v1843 = vsel %vm1779, -inf, %v1314
        %v1844 = vsel %vm1780, -inf, %v1316
        %v1845 = vsel %vm1781, -inf, %v1318
        %v1846 = vsel %vm1782, -inf, %v1322
        %v1847 = vsel %vm1783, -inf, %v1324
        %v1848 = vsel %vm1784, -inf, %v1326
        %v1849 = vsel %vm1785, -inf, %v1328
        %v1850 = vsel %vm1786, -inf, %v1332
        %v1851 = vsel %vm1787, -inf, %v1334
        %v1852 = vsel %vm1788, -inf, %v1336
        %v1853 = vsel %vm1789, -inf, %v1338
        %v1854 = vsel %vm1790, -inf, %v1342
        %v1855 = vsel %vm1791, -inf, %v1344
        %v1856 = vsel %vm1792, -inf, %v1346
        %v1857 = vsel %vm1793, -inf, %v1348
        %v1858 = vsel %vm1794, -inf, %v1352
        %v1859 = vsel %vm1795, -inf, %v1354
        %v1860 = vsel %vm1796, -inf, %v1356
        %v1861 = vsel %vm1797, -inf, %v1358
        %v1862 = vsel %vm1798, -inf, %v1362
        %v1863 = vsel %vm1799, -inf, %v1364
        %v1864 = vsel %vm1800, -inf, %v1366
        %v1865 = vsel %vm1801, -inf, %v1368
        %v1866 = vsel %vm1802, -inf, %v1372
        %v1867 = vsel %vm1803, -inf, %v1374
        %v1868 = vsel %vm1804, -inf, %v1376
        %v1869 = vsel %vm1805, -inf, %v1378
        %v1870 = vsel %vm1806, -inf, %v1382
        %v1871 = vsel %vm1807, -inf, %v1384
        %v1872 = vsel %vm1808, -inf, %v1386
        %v1873 = vsel %vm1809, -inf, %v1388
        %v1874 = vsel %vm1810, -inf, %v1392
        %v1875 = vsel %vm1811, -inf, %v1394
        %v1876 = vsel %vm1812, -inf, %v1396
        %v1877 = vsel %vm1813, -inf, %v1398
        %v1878 = vsel %vm1814, -inf, %v1402
        %v1879 = vsel %vm1815, -inf, %v1404
        %v1880 = vsel %vm1816, -inf, %v1406
        %v1881 = vsel %vm1817, -inf, %v1408
        %v1882 = vsel %vm1818, -inf, %v1412
        %v1883 = vsel %vm1819, -inf, %v1414
        %v1884 = vsel %vm1820, -inf, %v1416
        %v1885 = vsel %vm1821, -inf, %v1418
        %v1886 = vsel %vm1822, -inf, %v1422
        %v1887 = vsel %vm1823, -inf, %v1424
        %v1888 = vsel %vm1824, -inf, %v1426
        %v1889 = vsel %vm1825, -inf, %v1428
        %v1890 = vsel %vm1826, -inf, %v1432
        %v1891 = vsel %vm1827, -inf, %v1434
        %v1892 = vsel %vm1828, -inf, %v1436
        %v1893 = vsel %vm1829, -inf, %v1438
        %v1894 = vsel %vm1830, -inf, %v1442
        %v1895 = vsel %vm1831, -inf, %v1444
        %v1896 = vsel %vm1832, -inf, %v1446
        %v1897 = vsel %vm1833, -inf, %v1448
        %v1898 = vmax.f32 %v1834, %v1835
        %1899 = vmax.xlane.f32.xlu0 %v1898
        %v1900 = vpop.xlane.xlu0 %1899
        %v1901 = vmax.f32 %v1836, %v1837
        %1902 = vmax.xlane.f32.xlu0 %v1901
        %v1903 = vpop.xlane.xlu0 %1902
        %v1904 = vmax.f32 %v1838, %v1839
        %1905 = vmax.xlane.f32.xlu0 %v1904
        %v1906 = vpop.xlane.xlu0 %1905
        %v1907 = vmax.f32 %v1840, %v1841
        %1908 = vmax.xlane.f32.xlu0 %v1907
        %v1909 = vpop.xlane.xlu0 %1908
        %v1910 = vmax.f32 %v1842, %v1843
        %1911 = vmax.xlane.f32.xlu0 %v1910
        %v1912 = vpop.xlane.xlu0 %1911
        %v1913 = vmax.f32 %v1844, %v1845
        %1914 = vmax.xlane.f32.xlu0 %v1913
        %v1915 = vpop.xlane.xlu0 %1914
        %v1916 = vmax.f32 %v1846, %v1847
        %1917 = vmax.xlane.f32.xlu0 %v1916
        %v1918 = vpop.xlane.xlu0 %1917
        %v1919 = vmax.f32 %v1848, %v1849
        %1920 = vmax.xlane.f32.xlu0 %v1919
        %v1921 = vpop.xlane.xlu0 %1920
        %v1922 = vmax.f32 %v1850, %v1851
        %1923 = vmax.xlane.f32.xlu0 %v1922
        %v1924 = vpop.xlane.xlu0 %1923
        %v1925 = vmax.f32 %v1852, %v1853
        %1926 = vmax.xlane.f32.xlu0 %v1925
        %v1927 = vpop.xlane.xlu0 %1926
        %v1928 = vmax.f32 %v1854, %v1855
        %1929 = vmax.xlane.f32.xlu0 %v1928
        %v1930 = vpop.xlane.xlu0 %1929
        %v1931 = vmax.f32 %v1856, %v1857
        %1932 = vmax.xlane.f32.xlu0 %v1931
        %v1933 = vpop.xlane.xlu0 %1932
        %v1934 = vmax.f32 %v1858, %v1859
        %1935 = vmax.xlane.f32.xlu0 %v1934
        %v1936 = vpop.xlane.xlu0 %1935
        %v1937 = vmax.f32 %v1860, %v1861
        %1938 = vmax.xlane.f32.xlu0 %v1937
        %v1939 = vpop.xlane.xlu0 %1938
        %v1940 = vmax.f32 %v1862, %v1863
        %1941 = vmax.xlane.f32.xlu0 %v1940
        %v1942 = vpop.xlane.xlu0 %1941
        %v1943 = vmax.f32 %v1864, %v1865
        %1944 = vmax.xlane.f32.xlu0 %v1943
        %v1945 = vpop.xlane.xlu0 %1944
        %v1946 = vmax.f32 %v1866, %v1867
        %1947 = vmax.xlane.f32.xlu0 %v1946
        %v1948 = vpop.xlane.xlu0 %1947
        %v1949 = vmax.f32 %v1868, %v1869
        %1950 = vmax.xlane.f32.xlu0 %v1949
        %v1951 = vpop.xlane.xlu0 %1950
        %v1952 = vmax.f32 %v1870, %v1871
        %1953 = vmax.xlane.f32.xlu0 %v1952
        %v1954 = vpop.xlane.xlu0 %1953
        %v1955 = vmax.f32 %v1872, %v1873
        %1956 = vmax.xlane.f32.xlu0 %v1955
        %v1957 = vpop.xlane.xlu0 %1956
        %v1958 = vmax.f32 %v1874, %v1875
        %1959 = vmax.xlane.f32.xlu0 %v1958
        %v1960 = vpop.xlane.xlu0 %1959
        %v1961 = vmax.f32 %v1876, %v1877
        %1962 = vmax.xlane.f32.xlu0 %v1961
        %v1963 = vpop.xlane.xlu0 %1962
        %v1964 = vmax.f32 %v1878, %v1879
        %1965 = vmax.xlane.f32.xlu0 %v1964
        %v1966 = vpop.xlane.xlu0 %1965
        %v1967 = vmax.f32 %v1880, %v1881
        %1968 = vmax.xlane.f32.xlu0 %v1967
        %v1969 = vpop.xlane.xlu0 %1968
        %v1970 = vmax.f32 %v1882, %v1883
        %1971 = vmax.xlane.f32.xlu0 %v1970
        %v1972 = vpop.xlane.xlu0 %1971
        %v1973 = vmax.f32 %v1884, %v1885
        %1974 = vmax.xlane.f32.xlu0 %v1973
        %v1975 = vpop.xlane.xlu0 %1974
        %v1976 = vmax.f32 %v1886, %v1887
        %1977 = vmax.xlane.f32.xlu0 %v1976
        %v1978 = vpop.xlane.xlu0 %1977
        %v1979 = vmax.f32 %v1888, %v1889
        %1980 = vmax.xlane.f32.xlu0 %v1979
        %v1981 = vpop.xlane.xlu0 %1980
        %v1982 = vmax.f32 %v1890, %v1891
        %1983 = vmax.xlane.f32.xlu0 %v1982
        %v1984 = vpop.xlane.xlu0 %1983
        %v1985 = vmax.f32 %v1892, %v1893
        %1986 = vmax.xlane.f32.xlu0 %v1985
        %v1987 = vpop.xlane.xlu0 %1986
        %v1988 = vmax.f32 %v1894, %v1895
        %1989 = vmax.xlane.f32.xlu0 %v1988
        %v1990 = vpop.xlane.xlu0 %1989
        %v1991 = vmax.f32 %v1896, %v1897
        %1992 = vmax.xlane.f32.xlu0 %v1991
        %v1993 = vpop.xlane.xlu0 %1992
        %vm1994 = vcmp.eq.f32.partialorder %v1834, %v1900
        %vm1995 = vcmp.eq.f32.partialorder %v1835, %v1900
        %vm1996 = vcmp.eq.f32.partialorder %v1836, %v1903
        %vm1997 = vcmp.eq.f32.partialorder %v1837, %v1903
        %vm1998 = vcmp.eq.f32.partialorder %v1838, %v1906
        %vm1999 = vcmp.eq.f32.partialorder %v1839, %v1906
        %vm2000 = vcmp.eq.f32.partialorder %v1840, %v1909
        %vm2001 = vcmp.eq.f32.partialorder %v1841, %v1909
        %vm2002 = vcmp.eq.f32.partialorder %v1842, %v1912
        %vm2003 = vcmp.eq.f32.partialorder %v1843, %v1912
        %vm2004 = vcmp.eq.f32.partialorder %v1844, %v1915
        %vm2005 = vcmp.eq.f32.partialorder %v1845, %v1915
        %vm2006 = vcmp.eq.f32.partialorder %v1846, %v1918
        %vm2007 = vcmp.eq.f32.partialorder %v1847, %v1918
        %vm2008 = vcmp.eq.f32.partialorder %v1848, %v1921
        %vm2009 = vcmp.eq.f32.partialorder %v1849, %v1921
        %vm2010 = vcmp.eq.f32.partialorder %v1850, %v1924
        %vm2011 = vcmp.eq.f32.partialorder %v1851, %v1924
        %vm2012 = vcmp.eq.f32.partialorder %v1852, %v1927
        %vm2013 = vcmp.eq.f32.partialorder %v1853, %v1927
        %vm2014 = vcmp.eq.f32.partialorder %v1854, %v1930
        %vm2015 = vcmp.eq.f32.partialorder %v1855, %v1930
        %vm2016 = vcmp.eq.f32.partialorder %v1856, %v1933
        %vm2017 = vcmp.eq.f32.partialorder %v1857, %v1933
        %vm2018 = vcmp.eq.f32.partialorder %v1858, %v1936
        %vm2019 = vcmp.eq.f32.partialorder %v1859, %v1936
        %vm2020 = vcmp.eq.f32.partialorder %v1860, %v1939
        %vm2021 = vcmp.eq.f32.partialorder %v1861, %v1939
        %vm2022 = vcmp.eq.f32.partialorder %v1862, %v1942
        %vm2023 = vcmp.eq.f32.partialorder %v1863, %v1942
        %vm2024 = vcmp.eq.f32.partialorder %v1864, %v1945
        %vm2025 = vcmp.eq.f32.partialorder %v1865, %v1945
        %vm2026 = vcmp.eq.f32.partialorder %v1866, %v1948
        %vm2027 = vcmp.eq.f32.partialorder %v1867, %v1948
        %vm2028 = vcmp.eq.f32.partialorder %v1868, %v1951
        %vm2029 = vcmp.eq.f32.partialorder %v1869, %v1951
        %vm2030 = vcmp.eq.f32.partialorder %v1870, %v1954
        %vm2031 = vcmp.eq.f32.partialorder %v1871, %v1954
        %vm2032 = vcmp.eq.f32.partialorder %v1872, %v1957
        %vm2033 = vcmp.eq.f32.partialorder %v1873, %v1957
        %vm2034 = vcmp.eq.f32.partialorder %v1874, %v1960
        %vm2035 = vcmp.eq.f32.partialorder %v1875, %v1960
        %vm2036 = vcmp.eq.f32.partialorder %v1876, %v1963
        %vm2037 = vcmp.eq.f32.partialorder %v1877, %v1963
        %vm2038 = vcmp.eq.f32.partialorder %v1878, %v1966
        %vm2039 = vcmp.eq.f32.partialorder %v1879, %v1966
        %vm2040 = vcmp.eq.f32.partialorder %v1880, %v1969
        %vm2041 = vcmp.eq.f32.partialorder %v1881, %v1969
        %vm2042 = vcmp.eq.f32.partialorder %v1882, %v1972
        %vm2043 = vcmp.eq.f32.partialorder %v1883, %v1972
        %vm2044 = vcmp.eq.f32.partialorder %v1884, %v1975
        %vm2045 = vcmp.eq.f32.partialorder %v1885, %v1975
        %vm2046 = vcmp.eq.f32.partialorder %v1886, %v1978
        %vm2047 = vcmp.eq.f32.partialorder %v1887, %v1978
        %vm2048 = vcmp.eq.f32.partialorder %v1888, %v1981
        %vm2049 = vcmp.eq.f32.partialorder %v1889, %v1981
        %vm2050 = vcmp.eq.f32.partialorder %v1890, %v1984
        %vm2051 = vcmp.eq.f32.partialorder %v1891, %v1984
        %vm2052 = vcmp.eq.f32.partialorder %v1892, %v1987
        %vm2053 = vcmp.eq.f32.partialorder %v1893, %v1987
        %vm2054 = vcmp.eq.f32.partialorder %v1894, %v1990
        %vm2055 = vcmp.eq.f32.partialorder %v1895, %v1990
        %vm2056 = vcmp.eq.f32.partialorder %v1896, %v1993
        %vm2057 = vcmp.eq.f32.partialorder %v1897, %v1993
        %v2058 = vsel %vm1994, -inf, %v1834
        %v2059 = vsel %vm1995, -inf, %v1835
        %v2060 = vsel %vm1996, -inf, %v1836
        %v2061 = vsel %vm1997, -inf, %v1837
        %v2062 = vsel %vm1998, -inf, %v1838
        %v2063 = vsel %vm1999, -inf, %v1839
        %v2064 = vsel %vm2000, -inf, %v1840
        %v2065 = vsel %vm2001, -inf, %v1841
        %v2066 = vsel %vm2002, -inf, %v1842
        %v2067 = vsel %vm2003, -inf, %v1843
        %v2068 = vsel %vm2004, -inf, %v1844
        %v2069 = vsel %vm2005, -inf, %v1845
        %v2070 = vsel %vm2006, -inf, %v1846
        %v2071 = vsel %vm2007, -inf, %v1847
        %v2072 = vsel %vm2008, -inf, %v1848
        %v2073 = vsel %vm2009, -inf, %v1849
        %v2074 = vsel %vm2010, -inf, %v1850
        %v2075 = vsel %vm2011, -inf, %v1851
        %v2076 = vsel %vm2012, -inf, %v1852
        %v2077 = vsel %vm2013, -inf, %v1853
        %v2078 = vsel %vm2014, -inf, %v1854
        %v2079 = vsel %vm2015, -inf, %v1855
        %v2080 = vsel %vm2016, -inf, %v1856
        %v2081 = vsel %vm2017, -inf, %v1857
        %v2082 = vsel %vm2018, -inf, %v1858
        %v2083 = vsel %vm2019, -inf, %v1859
        %v2084 = vsel %vm2020, -inf, %v1860
        %v2085 = vsel %vm2021, -inf, %v1861
        %v2086 = vsel %vm2022, -inf, %v1862
        %v2087 = vsel %vm2023, -inf, %v1863
        %v2088 = vsel %vm2024, -inf, %v1864
        %v2089 = vsel %vm2025, -inf, %v1865
        %v2090 = vsel %vm2026, -inf, %v1866
        %v2091 = vsel %vm2027, -inf, %v1867
        %v2092 = vsel %vm2028, -inf, %v1868
        %v2093 = vsel %vm2029, -inf, %v1869
        %v2094 = vsel %vm2030, -inf, %v1870
        %v2095 = vsel %vm2031, -inf, %v1871
        %v2096 = vsel %vm2032, -inf, %v1872
        %v2097 = vsel %vm2033, -inf, %v1873
        %v2098 = vsel %vm2034, -inf, %v1874
        %v2099 = vsel %vm2035, -inf, %v1875
        %v2100 = vsel %vm2036, -inf, %v1876
        %v2101 = vsel %vm2037, -inf, %v1877
        %v2102 = vsel %vm2038, -inf, %v1878
        %v2103 = vsel %vm2039, -inf, %v1879
        %v2104 = vsel %vm2040, -inf, %v1880
        %v2105 = vsel %vm2041, -inf, %v1881
        %v2106 = vsel %vm2042, -inf, %v1882
        %v2107 = vsel %vm2043, -inf, %v1883
        %v2108 = vsel %vm2044, -inf, %v1884
        %v2109 = vsel %vm2045, -inf, %v1885
        %v2110 = vsel %vm2046, -inf, %v1886
        %v2111 = vsel %vm2047, -inf, %v1887
        %v2112 = vsel %vm2048, -inf, %v1888
        %v2113 = vsel %vm2049, -inf, %v1889
        %v2114 = vsel %vm2050, -inf, %v1890
        %v2115 = vsel %vm2051, -inf, %v1891
        %v2116 = vsel %vm2052, -inf, %v1892
        %v2117 = vsel %vm2053, -inf, %v1893
        %v2118 = vsel %vm2054, -inf, %v1894
        %v2119 = vsel %vm2055, -inf, %v1895
        %v2120 = vsel %vm2056, -inf, %v1896
        %v2121 = vsel %vm2057, -inf, %v1897
        %v2122 = vmax.f32 %v2058, %v2059
        %2123 = vmax.xlane.f32.xlu0 %v2122
        %v2124 = vpop.xlane.xlu0 %2123
        %v2125 = vmax.f32 %v2060, %v2061
        %2126 = vmax.xlane.f32.xlu0 %v2125
        %v2127 = vpop.xlane.xlu0 %2126
        %v2128 = vmax.f32 %v2062, %v2063
        %2129 = vmax.xlane.f32.xlu0 %v2128
        %v2130 = vpop.xlane.xlu0 %2129
        %v2131 = vmax.f32 %v2064, %v2065
        %2132 = vmax.xlane.f32.xlu0 %v2131
        %v2133 = vpop.xlane.xlu0 %2132
        %v2134 = vmax.f32 %v2066, %v2067
        %2135 = vmax.xlane.f32.xlu0 %v2134
        %v2136 = vpop.xlane.xlu0 %2135
        %v2137 = vmax.f32 %v2068, %v2069
        %2138 = vmax.xlane.f32.xlu0 %v2137
        %v2139 = vpop.xlane.xlu0 %2138
        %v2140 = vmax.f32 %v2070, %v2071
        %2141 = vmax.xlane.f32.xlu0 %v2140
        %v2142 = vpop.xlane.xlu0 %2141
        %v2143 = vmax.f32 %v2072, %v2073
        %2144 = vmax.xlane.f32.xlu0 %v2143
        %v2145 = vpop.xlane.xlu0 %2144
        %v2146 = vmax.f32 %v2074, %v2075
        %2147 = vmax.xlane.f32.xlu0 %v2146
        %v2148 = vpop.xlane.xlu0 %2147
        %v2149 = vmax.f32 %v2076, %v2077
        %2150 = vmax.xlane.f32.xlu0 %v2149
        %v2151 = vpop.xlane.xlu0 %2150
        %v2152 = vmax.f32 %v2078, %v2079
        %2153 = vmax.xlane.f32.xlu0 %v2152
        %v2154 = vpop.xlane.xlu0 %2153
        %v2155 = vmax.f32 %v2080, %v2081
        %2156 = vmax.xlane.f32.xlu0 %v2155
        %v2157 = vpop.xlane.xlu0 %2156
        %v2158 = vmax.f32 %v2082, %v2083
        %2159 = vmax.xlane.f32.xlu0 %v2158
        %v2160 = vpop.xlane.xlu0 %2159
        %v2161 = vmax.f32 %v2084, %v2085
        %2162 = vmax.xlane.f32.xlu0 %v2161
        %v2163 = vpop.xlane.xlu0 %2162
        %v2164 = vmax.f32 %v2086, %v2087
        %2165 = vmax.xlane.f32.xlu0 %v2164
        %v2166 = vpop.xlane.xlu0 %2165
        %v2167 = vmax.f32 %v2088, %v2089
        %2168 = vmax.xlane.f32.xlu0 %v2167
        %v2169 = vpop.xlane.xlu0 %2168
        %v2170 = vmax.f32 %v2090, %v2091
        %2171 = vmax.xlane.f32.xlu0 %v2170
        %v2172 = vpop.xlane.xlu0 %2171
        %v2173 = vmax.f32 %v2092, %v2093
        %2174 = vmax.xlane.f32.xlu0 %v2173
        %v2175 = vpop.xlane.xlu0 %2174
        %v2176 = vmax.f32 %v2094, %v2095
        %2177 = vmax.xlane.f32.xlu0 %v2176
        %v2178 = vpop.xlane.xlu0 %2177
        %v2179 = vmax.f32 %v2096, %v2097
        %2180 = vmax.xlane.f32.xlu0 %v2179
        %v2181 = vpop.xlane.xlu0 %2180
        %v2182 = vmax.f32 %v2098, %v2099
        %2183 = vmax.xlane.f32.xlu0 %v2182
        %v2184 = vpop.xlane.xlu0 %2183
        %v2185 = vmax.f32 %v2100, %v2101
        %2186 = vmax.xlane.f32.xlu0 %v2185
        %v2187 = vpop.xlane.xlu0 %2186
        %v2188 = vmax.f32 %v2102, %v2103
        %2189 = vmax.xlane.f32.xlu0 %v2188
        %v2190 = vpop.xlane.xlu0 %2189
        %v2191 = vmax.f32 %v2104, %v2105
        %2192 = vmax.xlane.f32.xlu0 %v2191
        %v2193 = vpop.xlane.xlu0 %2192
        %v2194 = vmax.f32 %v2106, %v2107
        %2195 = vmax.xlane.f32.xlu0 %v2194
        %v2196 = vpop.xlane.xlu0 %2195
        %v2197 = vmax.f32 %v2108, %v2109
        %2198 = vmax.xlane.f32.xlu0 %v2197
        %v2199 = vpop.xlane.xlu0 %2198
        %v2200 = vmax.f32 %v2110, %v2111
        %2201 = vmax.xlane.f32.xlu0 %v2200
        %v2202 = vpop.xlane.xlu0 %2201
        %v2203 = vmax.f32 %v2112, %v2113
        %2204 = vmax.xlane.f32.xlu0 %v2203
        %v2205 = vpop.xlane.xlu0 %2204
        %v2206 = vmax.f32 %v2114, %v2115
        %2207 = vmax.xlane.f32.xlu0 %v2206
        %v2208 = vpop.xlane.xlu0 %2207
        %v2209 = vmax.f32 %v2116, %v2117
        %2210 = vmax.xlane.f32.xlu0 %v2209
        %v2211 = vpop.xlane.xlu0 %2210
        %v2212 = vmax.f32 %v2118, %v2119
        %2213 = vmax.xlane.f32.xlu0 %v2212
        %v2214 = vpop.xlane.xlu0 %2213
        %v2215 = vmax.f32 %v2120, %v2121
        %2216 = vmax.xlane.f32.xlu0 %v2215
        %v2217 = vpop.xlane.xlu0 %2216
        %vm2218 = vcmp.eq.f32.partialorder %v2058, %v2124
        %vm2219 = vcmp.eq.f32.partialorder %v2059, %v2124
        %vm2220 = vcmp.eq.f32.partialorder %v2060, %v2127
        %vm2221 = vcmp.eq.f32.partialorder %v2061, %v2127
        %vm2222 = vcmp.eq.f32.partialorder %v2062, %v2130
        %vm2223 = vcmp.eq.f32.partialorder %v2063, %v2130
        %vm2224 = vcmp.eq.f32.partialorder %v2064, %v2133
        %vm2225 = vcmp.eq.f32.partialorder %v2065, %v2133
        %vm2226 = vcmp.eq.f32.partialorder %v2066, %v2136
        %vm2227 = vcmp.eq.f32.partialorder %v2067, %v2136
        %vm2228 = vcmp.eq.f32.partialorder %v2068, %v2139
        %vm2229 = vcmp.eq.f32.partialorder %v2069, %v2139
        %vm2230 = vcmp.eq.f32.partialorder %v2070, %v2142
        %vm2231 = vcmp.eq.f32.partialorder %v2071, %v2142
        %vm2232 = vcmp.eq.f32.partialorder %v2072, %v2145
        %vm2233 = vcmp.eq.f32.partialorder %v2073, %v2145
        %vm2234 = vcmp.eq.f32.partialorder %v2074, %v2148
        %vm2235 = vcmp.eq.f32.partialorder %v2075, %v2148
        %vm2236 = vcmp.eq.f32.partialorder %v2076, %v2151
        %vm2237 = vcmp.eq.f32.partialorder %v2077, %v2151
        %vm2238 = vcmp.eq.f32.partialorder %v2078, %v2154
        %vm2239 = vcmp.eq.f32.partialorder %v2079, %v2154
        %vm2240 = vcmp.eq.f32.partialorder %v2080, %v2157
        %vm2241 = vcmp.eq.f32.partialorder %v2081, %v2157
        %vm2242 = vcmp.eq.f32.partialorder %v2082, %v2160
        %vm2243 = vcmp.eq.f32.partialorder %v2083, %v2160
        %vm2244 = vcmp.eq.f32.partialorder %v2084, %v2163
        %vm2245 = vcmp.eq.f32.partialorder %v2085, %v2163
        %vm2246 = vcmp.eq.f32.partialorder %v2086, %v2166
        %vm2247 = vcmp.eq.f32.partialorder %v2087, %v2166
        %vm2248 = vcmp.eq.f32.partialorder %v2088, %v2169
        %vm2249 = vcmp.eq.f32.partialorder %v2089, %v2169
        %vm2250 = vcmp.eq.f32.partialorder %v2090, %v2172
        %vm2251 = vcmp.eq.f32.partialorder %v2091, %v2172
        %vm2252 = vcmp.eq.f32.partialorder %v2092, %v2175
        %vm2253 = vcmp.eq.f32.partialorder %v2093, %v2175
        %vm2254 = vcmp.eq.f32.partialorder %v2094, %v2178
        %vm2255 = vcmp.eq.f32.partialorder %v2095, %v2178
        %vm2256 = vcmp.eq.f32.partialorder %v2096, %v2181
        %vm2257 = vcmp.eq.f32.partialorder %v2097, %v2181
        %vm2258 = vcmp.eq.f32.partialorder %v2098, %v2184
        %vm2259 = vcmp.eq.f32.partialorder %v2099, %v2184
        %vm2260 = vcmp.eq.f32.partialorder %v2100, %v2187
        %vm2261 = vcmp.eq.f32.partialorder %v2101, %v2187
        %vm2262 = vcmp.eq.f32.partialorder %v2102, %v2190
        %vm2263 = vcmp.eq.f32.partialorder %v2103, %v2190
        %vm2264 = vcmp.eq.f32.partialorder %v2104, %v2193
        %vm2265 = vcmp.eq.f32.partialorder %v2105, %v2193
        %vm2266 = vcmp.eq.f32.partialorder %v2106, %v2196
        %vm2267 = vcmp.eq.f32.partialorder %v2107, %v2196
        %vm2268 = vcmp.eq.f32.partialorder %v2108, %v2199
        %vm2269 = vcmp.eq.f32.partialorder %v2109, %v2199
        %vm2270 = vcmp.eq.f32.partialorder %v2110, %v2202
        %vm2271 = vcmp.eq.f32.partialorder %v2111, %v2202
        %vm2272 = vcmp.eq.f32.partialorder %v2112, %v2205
        %vm2273 = vcmp.eq.f32.partialorder %v2113, %v2205
        %vm2274 = vcmp.eq.f32.partialorder %v2114, %v2208
        %vm2275 = vcmp.eq.f32.partialorder %v2115, %v2208
        %vm2276 = vcmp.eq.f32.partialorder %v2116, %v2211
        %vm2277 = vcmp.eq.f32.partialorder %v2117, %v2211
        %vm2278 = vcmp.eq.f32.partialorder %v2118, %v2214
        %vm2279 = vcmp.eq.f32.partialorder %v2119, %v2214
        %vm2280 = vcmp.eq.f32.partialorder %v2120, %v2217
        %vm2281 = vcmp.eq.f32.partialorder %v2121, %v2217
        %v2282 = vsel %vm2218, -inf, %v2058
        %v2283 = vsel %vm2219, -inf, %v2059
        %v2284 = vsel %vm2220, -inf, %v2060
        %v2285 = vsel %vm2221, -inf, %v2061
        %v2286 = vsel %vm2222, -inf, %v2062
        %v2287 = vsel %vm2223, -inf, %v2063
        %v2288 = vsel %vm2224, -inf, %v2064
        %v2289 = vsel %vm2225, -inf, %v2065
        %v2290 = vsel %vm2226, -inf, %v2066
        %v2291 = vsel %vm2227, -inf, %v2067
        %v2292 = vsel %vm2228, -inf, %v2068
        %v2293 = vsel %vm2229, -inf, %v2069
        %v2294 = vsel %vm2230, -inf, %v2070
        %v2295 = vsel %vm2231, -inf, %v2071
        %v2296 = vsel %vm2232, -inf, %v2072
        %v2297 = vsel %vm2233, -inf, %v2073
        %v2298 = vsel %vm2234, -inf, %v2074
        %v2299 = vsel %vm2235, -inf, %v2075
        %v2300 = vsel %vm2236, -inf, %v2076
        %v2301 = vsel %vm2237, -inf, %v2077
        %v2302 = vsel %vm2238, -inf, %v2078
        %v2303 = vsel %vm2239, -inf, %v2079
        %v2304 = vsel %vm2240, -inf, %v2080
        %v2305 = vsel %vm2241, -inf, %v2081
        %v2306 = vsel %vm2242, -inf, %v2082
        %v2307 = vsel %vm2243, -inf, %v2083
        %v2308 = vsel %vm2244, -inf, %v2084
        %v2309 = vsel %vm2245, -inf, %v2085
        %v2310 = vsel %vm2246, -inf, %v2086
        %v2311 = vsel %vm2247, -inf, %v2087
        %v2312 = vsel %vm2248, -inf, %v2088
        %v2313 = vsel %vm2249, -inf, %v2089
        %v2314 = vsel %vm2250, -inf, %v2090
        %v2315 = vsel %vm2251, -inf, %v2091
        %v2316 = vsel %vm2252, -inf, %v2092
        %v2317 = vsel %vm2253, -inf, %v2093
        %v2318 = vsel %vm2254, -inf, %v2094
        %v2319 = vsel %vm2255, -inf, %v2095
        %v2320 = vsel %vm2256, -inf, %v2096
        %v2321 = vsel %vm2257, -inf, %v2097
        %v2322 = vsel %vm2258, -inf, %v2098
        %v2323 = vsel %vm2259, -inf, %v2099
        %v2324 = vsel %vm2260, -inf, %v2100
        %v2325 = vsel %vm2261, -inf, %v2101
        %v2326 = vsel %vm2262, -inf, %v2102
        %v2327 = vsel %vm2263, -inf, %v2103
        %v2328 = vsel %vm2264, -inf, %v2104
        %v2329 = vsel %vm2265, -inf, %v2105
        %v2330 = vsel %vm2266, -inf, %v2106
        %v2331 = vsel %vm2267, -inf, %v2107
        %v2332 = vsel %vm2268, -inf, %v2108
        %v2333 = vsel %vm2269, -inf, %v2109
        %v2334 = vsel %vm2270, -inf, %v2110
        %v2335 = vsel %vm2271, -inf, %v2111
        %v2336 = vsel %vm2272, -inf, %v2112
        %v2337 = vsel %vm2273, -inf, %v2113
        %v2338 = vsel %vm2274, -inf, %v2114
        %v2339 = vsel %vm2275, -inf, %v2115
        %v2340 = vsel %vm2276, -inf, %v2116
        %v2341 = vsel %vm2277, -inf, %v2117
        %v2342 = vsel %vm2278, -inf, %v2118
        %v2343 = vsel %vm2279, -inf, %v2119
        %v2344 = vsel %vm2280, -inf, %v2120
        %v2345 = vsel %vm2281, -inf, %v2121
        %v2346 = vmax.f32 %v2282, %v2283
        %2347 = vmax.xlane.f32.xlu0 %v2346
        %v2348 = vpop.xlane.xlu0 %2347
        %v2349 = vmax.f32 %v2284, %v2285
        %2350 = vmax.xlane.f32.xlu0 %v2349
        %v2351 = vpop.xlane.xlu0 %2350
        %v2352 = vmax.f32 %v2286, %v2287
        %2353 = vmax.xlane.f32.xlu0 %v2352
        %v2354 = vpop.xlane.xlu0 %2353
        %v2355 = vmax.f32 %v2288, %v2289
        %2356 = vmax.xlane.f32.xlu0 %v2355
        %v2357 = vpop.xlane.xlu0 %2356
        %v2358 = vmax.f32 %v2290, %v2291
        %2359 = vmax.xlane.f32.xlu0 %v2358
        %v2360 = vpop.xlane.xlu0 %2359
        %v2361 = vmax.f32 %v2292, %v2293
        %2362 = vmax.xlane.f32.xlu0 %v2361
        %v2363 = vpop.xlane.xlu0 %2362
        %v2364 = vmax.f32 %v2294, %v2295
        %2365 = vmax.xlane.f32.xlu0 %v2364
        %v2366 = vpop.xlane.xlu0 %2365
        %v2367 = vmax.f32 %v2296, %v2297
        %2368 = vmax.xlane.f32.xlu0 %v2367
        %v2369 = vpop.xlane.xlu0 %2368
        %v2370 = vmax.f32 %v2298, %v2299
        %2371 = vmax.xlane.f32.xlu0 %v2370
        %v2372 = vpop.xlane.xlu0 %2371
        %v2373 = vmax.f32 %v2300, %v2301
        %2374 = vmax.xlane.f32.xlu0 %v2373
        %v2375 = vpop.xlane.xlu0 %2374
        %v2376 = vmax.f32 %v2302, %v2303
        %2377 = vmax.xlane.f32.xlu0 %v2376
        %v2378 = vpop.xlane.xlu0 %2377
        %v2379 = vmax.f32 %v2304, %v2305
        %2380 = vmax.xlane.f32.xlu0 %v2379
        %v2381 = vpop.xlane.xlu0 %2380
        %v2382 = vmax.f32 %v2306, %v2307
        %2383 = vmax.xlane.f32.xlu0 %v2382
        %v2384 = vpop.xlane.xlu0 %2383
        %v2385 = vmax.f32 %v2308, %v2309
        %2386 = vmax.xlane.f32.xlu0 %v2385
        %v2387 = vpop.xlane.xlu0 %2386
        %v2388 = vmax.f32 %v2310, %v2311
        %2389 = vmax.xlane.f32.xlu0 %v2388
        %v2390 = vpop.xlane.xlu0 %2389
        %v2391 = vmax.f32 %v2312, %v2313
        %2392 = vmax.xlane.f32.xlu0 %v2391
        %v2393 = vpop.xlane.xlu0 %2392
        %v2394 = vmax.f32 %v2314, %v2315
        %2395 = vmax.xlane.f32.xlu0 %v2394
        %v2396 = vpop.xlane.xlu0 %2395
        %v2397 = vmax.f32 %v2316, %v2317
        %2398 = vmax.xlane.f32.xlu0 %v2397
        %v2399 = vpop.xlane.xlu0 %2398
        %v2400 = vmax.f32 %v2318, %v2319
        %2401 = vmax.xlane.f32.xlu0 %v2400
        %v2402 = vpop.xlane.xlu0 %2401
        %v2403 = vmax.f32 %v2320, %v2321
        %2404 = vmax.xlane.f32.xlu0 %v2403
        %v2405 = vpop.xlane.xlu0 %2404
        %v2406 = vmax.f32 %v2322, %v2323
        %2407 = vmax.xlane.f32.xlu0 %v2406
        %v2408 = vpop.xlane.xlu0 %2407
        %v2409 = vmax.f32 %v2324, %v2325
        %2410 = vmax.xlane.f32.xlu0 %v2409
        %v2411 = vpop.xlane.xlu0 %2410
        %v2412 = vmax.f32 %v2326, %v2327
        %2413 = vmax.xlane.f32.xlu0 %v2412
        %v2414 = vpop.xlane.xlu0 %2413
        %v2415 = vmax.f32 %v2328, %v2329
        %2416 = vmax.xlane.f32.xlu0 %v2415
        %v2417 = vpop.xlane.xlu0 %2416
        %v2418 = vmax.f32 %v2330, %v2331
        %2419 = vmax.xlane.f32.xlu0 %v2418
        %v2420 = vpop.xlane.xlu0 %2419
        %v2421 = vmax.f32 %v2332, %v2333
        %2422 = vmax.xlane.f32.xlu0 %v2421
        %v2423 = vpop.xlane.xlu0 %2422
        %v2424 = vmax.f32 %v2334, %v2335
        %2425 = vmax.xlane.f32.xlu0 %v2424
        %v2426 = vpop.xlane.xlu0 %2425
        %v2427 = vmax.f32 %v2336, %v2337
        %2428 = vmax.xlane.f32.xlu0 %v2427
        %v2429 = vpop.xlane.xlu0 %2428
        %v2430 = vmax.f32 %v2338, %v2339
        %2431 = vmax.xlane.f32.xlu0 %v2430
        %v2432 = vpop.xlane.xlu0 %2431
        %v2433 = vmax.f32 %v2340, %v2341
        %2434 = vmax.xlane.f32.xlu0 %v2433
        %v2435 = vpop.xlane.xlu0 %2434
        %v2436 = vmax.f32 %v2342, %v2343
        %2437 = vmax.xlane.f32.xlu0 %v2436
        %v2438 = vpop.xlane.xlu0 %2437
        %v2439 = vmax.f32 %v2344, %v2345
        %2440 = vmax.xlane.f32.xlu0 %v2439
        %v2441 = vpop.xlane.xlu0 %2440
        %vm2442 = vcmp.eq.f32.partialorder %v2282, %v2348
        %vm2443 = vcmp.eq.f32.partialorder %v2283, %v2348
        %vm2444 = vcmp.eq.f32.partialorder %v2284, %v2351
        %vm2445 = vcmp.eq.f32.partialorder %v2285, %v2351
        %vm2446 = vcmp.eq.f32.partialorder %v2286, %v2354
        %vm2447 = vcmp.eq.f32.partialorder %v2287, %v2354
        %vm2448 = vcmp.eq.f32.partialorder %v2288, %v2357
        %vm2449 = vcmp.eq.f32.partialorder %v2289, %v2357
        %vm2450 = vcmp.eq.f32.partialorder %v2290, %v2360
        %vm2451 = vcmp.eq.f32.partialorder %v2291, %v2360
        %vm2452 = vcmp.eq.f32.partialorder %v2292, %v2363
        %vm2453 = vcmp.eq.f32.partialorder %v2293, %v2363
        %vm2454 = vcmp.eq.f32.partialorder %v2294, %v2366
        %vm2455 = vcmp.eq.f32.partialorder %v2295, %v2366
        %vm2456 = vcmp.eq.f32.partialorder %v2296, %v2369
        %vm2457 = vcmp.eq.f32.partialorder %v2297, %v2369
        %vm2458 = vcmp.eq.f32.partialorder %v2298, %v2372
        %vm2459 = vcmp.eq.f32.partialorder %v2299, %v2372
        %vm2460 = vcmp.eq.f32.partialorder %v2300, %v2375
        %vm2461 = vcmp.eq.f32.partialorder %v2301, %v2375
        %vm2462 = vcmp.eq.f32.partialorder %v2302, %v2378
        %vm2463 = vcmp.eq.f32.partialorder %v2303, %v2378
        %vm2464 = vcmp.eq.f32.partialorder %v2304, %v2381
        %vm2465 = vcmp.eq.f32.partialorder %v2305, %v2381
        %vm2466 = vcmp.eq.f32.partialorder %v2306, %v2384
        %vm2467 = vcmp.eq.f32.partialorder %v2307, %v2384
        %vm2468 = vcmp.eq.f32.partialorder %v2308, %v2387
        %vm2469 = vcmp.eq.f32.partialorder %v2309, %v2387
        %vm2470 = vcmp.eq.f32.partialorder %v2310, %v2390
        %vm2471 = vcmp.eq.f32.partialorder %v2311, %v2390
        %vm2472 = vcmp.eq.f32.partialorder %v2312, %v2393
        %vm2473 = vcmp.eq.f32.partialorder %v2313, %v2393
        %vm2474 = vcmp.eq.f32.partialorder %v2314, %v2396
        %vm2475 = vcmp.eq.f32.partialorder %v2315, %v2396
        %vm2476 = vcmp.eq.f32.partialorder %v2316, %v2399
        %vm2477 = vcmp.eq.f32.partialorder %v2317, %v2399
        %vm2478 = vcmp.eq.f32.partialorder %v2318, %v2402
        %vm2479 = vcmp.eq.f32.partialorder %v2319, %v2402
        %vm2480 = vcmp.eq.f32.partialorder %v2320, %v2405
        %vm2481 = vcmp.eq.f32.partialorder %v2321, %v2405
        %vm2482 = vcmp.eq.f32.partialorder %v2322, %v2408
        %vm2483 = vcmp.eq.f32.partialorder %v2323, %v2408
        %vm2484 = vcmp.eq.f32.partialorder %v2324, %v2411
        %vm2485 = vcmp.eq.f32.partialorder %v2325, %v2411
        %vm2486 = vcmp.eq.f32.partialorder %v2326, %v2414
        %vm2487 = vcmp.eq.f32.partialorder %v2327, %v2414
        %vm2488 = vcmp.eq.f32.partialorder %v2328, %v2417
        %vm2489 = vcmp.eq.f32.partialorder %v2329, %v2417
        %vm2490 = vcmp.eq.f32.partialorder %v2330, %v2420
        %vm2491 = vcmp.eq.f32.partialorder %v2331, %v2420
        %vm2492 = vcmp.eq.f32.partialorder %v2332, %v2423
        %vm2493 = vcmp.eq.f32.partialorder %v2333, %v2423
        %vm2494 = vcmp.eq.f32.partialorder %v2334, %v2426
        %vm2495 = vcmp.eq.f32.partialorder %v2335, %v2426
        %vm2496 = vcmp.eq.f32.partialorder %v2336, %v2429
        %vm2497 = vcmp.eq.f32.partialorder %v2337, %v2429
        %vm2498 = vcmp.eq.f32.partialorder %v2338, %v2432
        %vm2499 = vcmp.eq.f32.partialorder %v2339, %v2432
        %vm2500 = vcmp.eq.f32.partialorder %v2340, %v2435
        %vm2501 = vcmp.eq.f32.partialorder %v2341, %v2435
        %vm2502 = vcmp.eq.f32.partialorder %v2342, %v2438
        %vm2503 = vcmp.eq.f32.partialorder %v2343, %v2438
        %vm2504 = vcmp.eq.f32.partialorder %v2344, %v2441
        %vm2505 = vcmp.eq.f32.partialorder %v2345, %v2441
        %v2506 = vsel %vm2442, -inf, %v2282
        %v2507 = vsel %vm2443, -inf, %v2283
        %v2508 = vsel %vm2444, -inf, %v2284
        %v2509 = vsel %vm2445, -inf, %v2285
        %v2510 = vsel %vm2446, -inf, %v2286
        %v2511 = vsel %vm2447, -inf, %v2287
        %v2512 = vsel %vm2448, -inf, %v2288
        %v2513 = vsel %vm2449, -inf, %v2289
        %v2514 = vsel %vm2450, -inf, %v2290
        %v2515 = vsel %vm2451, -inf, %v2291
        %v2516 = vsel %vm2452, -inf, %v2292
        %v2517 = vsel %vm2453, -inf, %v2293
        %v2518 = vsel %vm2454, -inf, %v2294
        %v2519 = vsel %vm2455, -inf, %v2295
        %v2520 = vsel %vm2456, -inf, %v2296
        %v2521 = vsel %vm2457, -inf, %v2297
        %v2522 = vsel %vm2458, -inf, %v2298
        %v2523 = vsel %vm2459, -inf, %v2299
        %v2524 = vsel %vm2460, -inf, %v2300
        %v2525 = vsel %vm2461, -inf, %v2301
        %v2526 = vsel %vm2462, -inf, %v2302
        %v2527 = vsel %vm2463, -inf, %v2303
        %v2528 = vsel %vm2464, -inf, %v2304
        %v2529 = vsel %vm2465, -inf, %v2305
        %v2530 = vsel %vm2466, -inf, %v2306
        %v2531 = vsel %vm2467, -inf, %v2307
        %v2532 = vsel %vm2468, -inf, %v2308
        %v2533 = vsel %vm2469, -inf, %v2309
        %v2534 = vsel %vm2470, -inf, %v2310
        %v2535 = vsel %vm2471, -inf, %v2311
        %v2536 = vsel %vm2472, -inf, %v2312
        %v2537 = vsel %vm2473, -inf, %v2313
        %v2538 = vsel %vm2474, -inf, %v2314
        %v2539 = vsel %vm2475, -inf, %v2315
        %v2540 = vsel %vm2476, -inf, %v2316
        %v2541 = vsel %vm2477, -inf, %v2317
        %v2542 = vsel %vm2478, -inf, %v2318
        %v2543 = vsel %vm2479, -inf, %v2319
        %v2544 = vsel %vm2480, -inf, %v2320
        %v2545 = vsel %vm2481, -inf, %v2321
        %v2546 = vsel %vm2482, -inf, %v2322
        %v2547 = vsel %vm2483, -inf, %v2323
        %v2548 = vsel %vm2484, -inf, %v2324
        %v2549 = vsel %vm2485, -inf, %v2325
        %v2550 = vsel %vm2486, -inf, %v2326
        %v2551 = vsel %vm2487, -inf, %v2327
        %v2552 = vsel %vm2488, -inf, %v2328
        %v2553 = vsel %vm2489, -inf, %v2329
        %v2554 = vsel %vm2490, -inf, %v2330
        %v2555 = vsel %vm2491, -inf, %v2331
        %v2556 = vsel %vm2492, -inf, %v2332
        %v2557 = vsel %vm2493, -inf, %v2333
        %v2558 = vsel %vm2494, -inf, %v2334
        %v2559 = vsel %vm2495, -inf, %v2335
        %v2560 = vsel %vm2496, -inf, %v2336
        %v2561 = vsel %vm2497, -inf, %v2337
        %v2562 = vsel %vm2498, -inf, %v2338
        %v2563 = vsel %vm2499, -inf, %v2339
        %v2564 = vsel %vm2500, -inf, %v2340
        %v2565 = vsel %vm2501, -inf, %v2341
        %v2566 = vsel %vm2502, -inf, %v2342
        %v2567 = vsel %vm2503, -inf, %v2343
        %v2568 = vsel %vm2504, -inf, %v2344
        %v2569 = vsel %vm2505, -inf, %v2345
        %v2570 = vmax.f32 %v2506, %v2507
        %2571 = vmax.xlane.f32.xlu0 %v2570
        %v2572 = vpop.xlane.xlu0 %2571
        %v2573 = vmax.f32 %v2508, %v2509
        %2574 = vmax.xlane.f32.xlu0 %v2573
        %v2575 = vpop.xlane.xlu0 %2574
        %v2576 = vmax.f32 %v2510, %v2511
        %2577 = vmax.xlane.f32.xlu0 %v2576
        %v2578 = vpop.xlane.xlu0 %2577
        %v2579 = vmax.f32 %v2512, %v2513
        %2580 = vmax.xlane.f32.xlu0 %v2579
        %v2581 = vpop.xlane.xlu0 %2580
        %v2582 = vmax.f32 %v2514, %v2515
        %2583 = vmax.xlane.f32.xlu0 %v2582
        %v2584 = vpop.xlane.xlu0 %2583
        %v2585 = vmax.f32 %v2516, %v2517
        %2586 = vmax.xlane.f32.xlu0 %v2585
        %v2587 = vpop.xlane.xlu0 %2586
        %v2588 = vmax.f32 %v2518, %v2519
        %2589 = vmax.xlane.f32.xlu0 %v2588
        %v2590 = vpop.xlane.xlu0 %2589
        %v2591 = vmax.f32 %v2520, %v2521
        %2592 = vmax.xlane.f32.xlu0 %v2591
        %v2593 = vpop.xlane.xlu0 %2592
        %v2594 = vmax.f32 %v2522, %v2523
        %2595 = vmax.xlane.f32.xlu0 %v2594
        %v2596 = vpop.xlane.xlu0 %2595
        %v2597 = vmax.f32 %v2524, %v2525
        %2598 = vmax.xlane.f32.xlu0 %v2597
        %v2599 = vpop.xlane.xlu0 %2598
        %v2600 = vmax.f32 %v2526, %v2527
        %2601 = vmax.xlane.f32.xlu0 %v2600
        %v2602 = vpop.xlane.xlu0 %2601
        %v2603 = vmax.f32 %v2528, %v2529
        %2604 = vmax.xlane.f32.xlu0 %v2603
        %v2605 = vpop.xlane.xlu0 %2604
        %v2606 = vmax.f32 %v2530, %v2531
        %2607 = vmax.xlane.f32.xlu0 %v2606
        %v2608 = vpop.xlane.xlu0 %2607
        %v2609 = vmax.f32 %v2532, %v2533
        %2610 = vmax.xlane.f32.xlu0 %v2609
        %v2611 = vpop.xlane.xlu0 %2610
        %v2612 = vmax.f32 %v2534, %v2535
        %2613 = vmax.xlane.f32.xlu0 %v2612
        %v2614 = vpop.xlane.xlu0 %2613
        %v2615 = vmax.f32 %v2536, %v2537
        %2616 = vmax.xlane.f32.xlu0 %v2615
        %v2617 = vpop.xlane.xlu0 %2616
        %v2618 = vmax.f32 %v2538, %v2539
        %2619 = vmax.xlane.f32.xlu0 %v2618
        %v2620 = vpop.xlane.xlu0 %2619
        %v2621 = vmax.f32 %v2540, %v2541
        %2622 = vmax.xlane.f32.xlu0 %v2621
        %v2623 = vpop.xlane.xlu0 %2622
        %v2624 = vmax.f32 %v2542, %v2543
        %2625 = vmax.xlane.f32.xlu0 %v2624
        %v2626 = vpop.xlane.xlu0 %2625
        %v2627 = vmax.f32 %v2544, %v2545
        %2628 = vmax.xlane.f32.xlu0 %v2627
        %v2629 = vpop.xlane.xlu0 %2628
        %v2630 = vmax.f32 %v2546, %v2547
        %2631 = vmax.xlane.f32.xlu0 %v2630
        %v2632 = vpop.xlane.xlu0 %2631
        %v2633 = vmax.f32 %v2548, %v2549
        %2634 = vmax.xlane.f32.xlu0 %v2633
        %v2635 = vpop.xlane.xlu0 %2634
        %v2636 = vmax.f32 %v2550, %v2551
        %2637 = vmax.xlane.f32.xlu0 %v2636
        %v2638 = vpop.xlane.xlu0 %2637
        %v2639 = vmax.f32 %v2552, %v2553
        %2640 = vmax.xlane.f32.xlu0 %v2639
        %v2641 = vpop.xlane.xlu0 %2640
        %v2642 = vmax.f32 %v2554, %v2555
        %2643 = vmax.xlane.f32.xlu0 %v2642
        %v2644 = vpop.xlane.xlu0 %2643
        %v2645 = vmax.f32 %v2556, %v2557
        %2646 = vmax.xlane.f32.xlu0 %v2645
        %v2647 = vpop.xlane.xlu0 %2646
        %v2648 = vmax.f32 %v2558, %v2559
        %2649 = vmax.xlane.f32.xlu0 %v2648
        %v2650 = vpop.xlane.xlu0 %2649
        %v2651 = vmax.f32 %v2560, %v2561
        %2652 = vmax.xlane.f32.xlu0 %v2651
        %v2653 = vpop.xlane.xlu0 %2652
        %v2654 = vmax.f32 %v2562, %v2563
        %2655 = vmax.xlane.f32.xlu0 %v2654
        %v2656 = vpop.xlane.xlu0 %2655
        %v2657 = vmax.f32 %v2564, %v2565
        %2658 = vmax.xlane.f32.xlu0 %v2657
        %v2659 = vpop.xlane.xlu0 %2658
        %v2660 = vmax.f32 %v2566, %v2567
        %2661 = vmax.xlane.f32.xlu0 %v2660
        %v2662 = vpop.xlane.xlu0 %2661
        %v2663 = vmax.f32 %v2568, %v2569
        %2664 = vmax.xlane.f32.xlu0 %v2663
        %v2665 = vpop.xlane.xlu0 %2664
        %vm2666 = vcmp.eq.f32.partialorder %v2506, %v2572
        %vm2667 = vcmp.eq.f32.partialorder %v2507, %v2572
        %vm2668 = vcmp.eq.f32.partialorder %v2508, %v2575
        %vm2669 = vcmp.eq.f32.partialorder %v2509, %v2575
        %vm2670 = vcmp.eq.f32.partialorder %v2510, %v2578
        %vm2671 = vcmp.eq.f32.partialorder %v2511, %v2578
        %vm2672 = vcmp.eq.f32.partialorder %v2512, %v2581
        %vm2673 = vcmp.eq.f32.partialorder %v2513, %v2581
        %vm2674 = vcmp.eq.f32.partialorder %v2514, %v2584
        %vm2675 = vcmp.eq.f32.partialorder %v2515, %v2584
        %vm2676 = vcmp.eq.f32.partialorder %v2516, %v2587
        %vm2677 = vcmp.eq.f32.partialorder %v2517, %v2587
        %vm2678 = vcmp.eq.f32.partialorder %v2518, %v2590
        %vm2679 = vcmp.eq.f32.partialorder %v2519, %v2590
        %vm2680 = vcmp.eq.f32.partialorder %v2520, %v2593
        %vm2681 = vcmp.eq.f32.partialorder %v2521, %v2593
        %vm2682 = vcmp.eq.f32.partialorder %v2522, %v2596
        %vm2683 = vcmp.eq.f32.partialorder %v2523, %v2596
        %vm2684 = vcmp.eq.f32.partialorder %v2524, %v2599
        %vm2685 = vcmp.eq.f32.partialorder %v2525, %v2599
        %vm2686 = vcmp.eq.f32.partialorder %v2526, %v2602
        %vm2687 = vcmp.eq.f32.partialorder %v2527, %v2602
        %vm2688 = vcmp.eq.f32.partialorder %v2528, %v2605
        %vm2689 = vcmp.eq.f32.partialorder %v2529, %v2605
        %vm2690 = vcmp.eq.f32.partialorder %v2530, %v2608
        %vm2691 = vcmp.eq.f32.partialorder %v2531, %v2608
        %vm2692 = vcmp.eq.f32.partialorder %v2532, %v2611
        %vm2693 = vcmp.eq.f32.partialorder %v2533, %v2611
        %vm2694 = vcmp.eq.f32.partialorder %v2534, %v2614
        %vm2695 = vcmp.eq.f32.partialorder %v2535, %v2614
        %vm2696 = vcmp.eq.f32.partialorder %v2536, %v2617
        %vm2697 = vcmp.eq.f32.partialorder %v2537, %v2617
        %vm2698 = vcmp.eq.f32.partialorder %v2538, %v2620
        %vm2699 = vcmp.eq.f32.partialorder %v2539, %v2620
        %vm2700 = vcmp.eq.f32.partialorder %v2540, %v2623
        %vm2701 = vcmp.eq.f32.partialorder %v2541, %v2623
        %vm2702 = vcmp.eq.f32.partialorder %v2542, %v2626
        %vm2703 = vcmp.eq.f32.partialorder %v2543, %v2626
        %vm2704 = vcmp.eq.f32.partialorder %v2544, %v2629
        %vm2705 = vcmp.eq.f32.partialorder %v2545, %v2629
        %vm2706 = vcmp.eq.f32.partialorder %v2546, %v2632
        %vm2707 = vcmp.eq.f32.partialorder %v2547, %v2632
        %vm2708 = vcmp.eq.f32.partialorder %v2548, %v2635
        %vm2709 = vcmp.eq.f32.partialorder %v2549, %v2635
        %vm2710 = vcmp.eq.f32.partialorder %v2550, %v2638
        %vm2711 = vcmp.eq.f32.partialorder %v2551, %v2638
        %vm2712 = vcmp.eq.f32.partialorder %v2552, %v2641
        %vm2713 = vcmp.eq.f32.partialorder %v2553, %v2641
        %vm2714 = vcmp.eq.f32.partialorder %v2554, %v2644
        %vm2715 = vcmp.eq.f32.partialorder %v2555, %v2644
        %vm2716 = vcmp.eq.f32.partialorder %v2556, %v2647
        %vm2717 = vcmp.eq.f32.partialorder %v2557, %v2647
        %vm2718 = vcmp.eq.f32.partialorder %v2558, %v2650
        %vm2719 = vcmp.eq.f32.partialorder %v2559, %v2650
        %vm2720 = vcmp.eq.f32.partialorder %v2560, %v2653
        %vm2721 = vcmp.eq.f32.partialorder %v2561, %v2653
        %vm2722 = vcmp.eq.f32.partialorder %v2562, %v2656
        %vm2723 = vcmp.eq.f32.partialorder %v2563, %v2656
        %vm2724 = vcmp.eq.f32.partialorder %v2564, %v2659
        %vm2725 = vcmp.eq.f32.partialorder %v2565, %v2659
        %vm2726 = vcmp.eq.f32.partialorder %v2566, %v2662
        %vm2727 = vcmp.eq.f32.partialorder %v2567, %v2662
        %vm2728 = vcmp.eq.f32.partialorder %v2568, %v2665
        %vm2729 = vcmp.eq.f32.partialorder %v2569, %v2665
        %v2730 = vsel %vm2666, -inf, %v2506
        %v2731 = vsel %vm2667, -inf, %v2507
        %v2732 = vsel %vm2668, -inf, %v2508
        %v2733 = vsel %vm2669, -inf, %v2509
        %v2734 = vsel %vm2670, -inf, %v2510
        %v2735 = vsel %vm2671, -inf, %v2511
        %v2736 = vsel %vm2672, -inf, %v2512
        %v2737 = vsel %vm2673, -inf, %v2513
        %v2738 = vsel %vm2674, -inf, %v2514
        %v2739 = vsel %vm2675, -inf, %v2515
        %v2740 = vsel %vm2676, -inf, %v2516
        %v2741 = vsel %vm2677, -inf, %v2517
        %v2742 = vsel %vm2678, -inf, %v2518
        %v2743 = vsel %vm2679, -inf, %v2519
        %v2744 = vsel %vm2680, -inf, %v2520
        %v2745 = vsel %vm2681, -inf, %v2521
        %v2746 = vsel %vm2682, -inf, %v2522
        %v2747 = vsel %vm2683, -inf, %v2523
        %v2748 = vsel %vm2684, -inf, %v2524
        %v2749 = vsel %vm2685, -inf, %v2525
        %v2750 = vsel %vm2686, -inf, %v2526
        %v2751 = vsel %vm2687, -inf, %v2527
        %v2752 = vsel %vm2688, -inf, %v2528
        %v2753 = vsel %vm2689, -inf, %v2529
        %v2754 = vsel %vm2690, -inf, %v2530
        %v2755 = vsel %vm2691, -inf, %v2531
        %v2756 = vsel %vm2692, -inf, %v2532
        %v2757 = vsel %vm2693, -inf, %v2533
        %v2758 = vsel %vm2694, -inf, %v2534
        %v2759 = vsel %vm2695, -inf, %v2535
        %v2760 = vsel %vm2696, -inf, %v2536
        %v2761 = vsel %vm2697, -inf, %v2537
        %v2762 = vsel %vm2698, -inf, %v2538
        %v2763 = vsel %vm2699, -inf, %v2539
        %v2764 = vsel %vm2700, -inf, %v2540
        %v2765 = vsel %vm2701, -inf, %v2541
        %v2766 = vsel %vm2702, -inf, %v2542
        %v2767 = vsel %vm2703, -inf, %v2543
        %v2768 = vsel %vm2704, -inf, %v2544
        %v2769 = vsel %vm2705, -inf, %v2545
        %v2770 = vsel %vm2706, -inf, %v2546
        %v2771 = vsel %vm2707, -inf, %v2547
        %v2772 = vsel %vm2708, -inf, %v2548
        %v2773 = vsel %vm2709, -inf, %v2549
        %v2774 = vsel %vm2710, -inf, %v2550
        %v2775 = vsel %vm2711, -inf, %v2551
        %v2776 = vsel %vm2712, -inf, %v2552
        %v2777 = vsel %vm2713, -inf, %v2553
        %v2778 = vsel %vm2714, -inf, %v2554
        %v2779 = vsel %vm2715, -inf, %v2555
        %v2780 = vsel %vm2716, -inf, %v2556
        %v2781 = vsel %vm2717, -inf, %v2557
        %v2782 = vsel %vm2718, -inf, %v2558
        %v2783 = vsel %vm2719, -inf, %v2559
        %v2784 = vsel %vm2720, -inf, %v2560
        %v2785 = vsel %vm2721, -inf, %v2561
        %v2786 = vsel %vm2722, -inf, %v2562
        %v2787 = vsel %vm2723, -inf, %v2563
        %v2788 = vsel %vm2724, -inf, %v2564
        %v2789 = vsel %vm2725, -inf, %v2565
        %v2790 = vsel %vm2726, -inf, %v2566
        %v2791 = vsel %vm2727, -inf, %v2567
        %v2792 = vsel %vm2728, -inf, %v2568
        %v2793 = vsel %vm2729, -inf, %v2569
        %v2794 = vmax.f32 %v2730, %v2731
        %2795 = vmax.xlane.f32.xlu0 %v2794
        %v2796 = vpop.xlane.xlu0 %2795
        %v2797 = vmax.f32 %v2732, %v2733
        %2798 = vmax.xlane.f32.xlu0 %v2797
        %v2799 = vpop.xlane.xlu0 %2798
        %v2800 = vmax.f32 %v2734, %v2735
        %2801 = vmax.xlane.f32.xlu0 %v2800
        %v2802 = vpop.xlane.xlu0 %2801
        %v2803 = vmax.f32 %v2736, %v2737
        %2804 = vmax.xlane.f32.xlu0 %v2803
        %v2805 = vpop.xlane.xlu0 %2804
        %v2806 = vmax.f32 %v2738, %v2739
        %2807 = vmax.xlane.f32.xlu0 %v2806
        %v2808 = vpop.xlane.xlu0 %2807
        %v2809 = vmax.f32 %v2740, %v2741
        %2810 = vmax.xlane.f32.xlu0 %v2809
        %v2811 = vpop.xlane.xlu0 %2810
        %v2812 = vmax.f32 %v2742, %v2743
        %2813 = vmax.xlane.f32.xlu0 %v2812
        %v2814 = vpop.xlane.xlu0 %2813
        %v2815 = vmax.f32 %v2744, %v2745
        %2816 = vmax.xlane.f32.xlu0 %v2815
        %v2817 = vpop.xlane.xlu0 %2816
        %v2818 = vmax.f32 %v2746, %v2747
        %2819 = vmax.xlane.f32.xlu0 %v2818
        %v2820 = vpop.xlane.xlu0 %2819
        %v2821 = vmax.f32 %v2748, %v2749
        %2822 = vmax.xlane.f32.xlu0 %v2821
        %v2823 = vpop.xlane.xlu0 %2822
        %v2824 = vmax.f32 %v2750, %v2751
        %2825 = vmax.xlane.f32.xlu0 %v2824
        %v2826 = vpop.xlane.xlu0 %2825
        %v2827 = vmax.f32 %v2752, %v2753
        %2828 = vmax.xlane.f32.xlu0 %v2827
        %v2829 = vpop.xlane.xlu0 %2828
        %v2830 = vmax.f32 %v2754, %v2755
        %2831 = vmax.xlane.f32.xlu0 %v2830
        %v2832 = vpop.xlane.xlu0 %2831
        %v2833 = vmax.f32 %v2756, %v2757
        %2834 = vmax.xlane.f32.xlu0 %v2833
        %v2835 = vpop.xlane.xlu0 %2834
        %v2836 = vmax.f32 %v2758, %v2759
        %2837 = vmax.xlane.f32.xlu0 %v2836
        %v2838 = vpop.xlane.xlu0 %2837
        %v2839 = vmax.f32 %v2760, %v2761
        %2840 = vmax.xlane.f32.xlu0 %v2839
        %v2841 = vpop.xlane.xlu0 %2840
        %v2842 = vmax.f32 %v2762, %v2763
        %2843 = vmax.xlane.f32.xlu0 %v2842
        %v2844 = vpop.xlane.xlu0 %2843
        %v2845 = vmax.f32 %v2764, %v2765
        %2846 = vmax.xlane.f32.xlu0 %v2845
        %v2847 = vpop.xlane.xlu0 %2846
        %v2848 = vmax.f32 %v2766, %v2767
        %2849 = vmax.xlane.f32.xlu0 %v2848
        %v2850 = vpop.xlane.xlu0 %2849
        %v2851 = vmax.f32 %v2768, %v2769
        %2852 = vmax.xlane.f32.xlu0 %v2851
        %v2853 = vpop.xlane.xlu0 %2852
        %v2854 = vmax.f32 %v2770, %v2771
        %2855 = vmax.xlane.f32.xlu0 %v2854
        %v2856 = vpop.xlane.xlu0 %2855
        %v2857 = vmax.f32 %v2772, %v2773
        %2858 = vmax.xlane.f32.xlu0 %v2857
        %v2859 = vpop.xlane.xlu0 %2858
        %v2860 = vmax.f32 %v2774, %v2775
        %2861 = vmax.xlane.f32.xlu0 %v2860
        %v2862 = vpop.xlane.xlu0 %2861
        %v2863 = vmax.f32 %v2776, %v2777
        %2864 = vmax.xlane.f32.xlu0 %v2863
        %v2865 = vpop.xlane.xlu0 %2864
        %v2866 = vmax.f32 %v2778, %v2779
        %2867 = vmax.xlane.f32.xlu0 %v2866
        %v2868 = vpop.xlane.xlu0 %2867
        %v2869 = vmax.f32 %v2780, %v2781
        %2870 = vmax.xlane.f32.xlu0 %v2869
        %v2871 = vpop.xlane.xlu0 %2870
        %v2872 = vmax.f32 %v2782, %v2783
        %2873 = vmax.xlane.f32.xlu0 %v2872
        %v2874 = vpop.xlane.xlu0 %2873
        %v2875 = vmax.f32 %v2784, %v2785
        %2876 = vmax.xlane.f32.xlu0 %v2875
        %v2877 = vpop.xlane.xlu0 %2876
        %v2878 = vmax.f32 %v2786, %v2787
        %2879 = vmax.xlane.f32.xlu0 %v2878
        %v2880 = vpop.xlane.xlu0 %2879
        %v2881 = vmax.f32 %v2788, %v2789
        %2882 = vmax.xlane.f32.xlu0 %v2881
        %v2883 = vpop.xlane.xlu0 %2882
        %v2884 = vmax.f32 %v2790, %v2791
        %2885 = vmax.xlane.f32.xlu0 %v2884
        %v2886 = vpop.xlane.xlu0 %2885
        %v2887 = vmax.f32 %v2792, %v2793
        %2888 = vmax.xlane.f32.xlu0 %v2887
        %v2889 = vpop.xlane.xlu0 %2888
        %vm2890 = vcmp.eq.f32.partialorder %v2730, %v2796
        %vm2891 = vcmp.eq.f32.partialorder %v2731, %v2796
        %vm2892 = vcmp.eq.f32.partialorder %v2732, %v2799
        %vm2893 = vcmp.eq.f32.partialorder %v2733, %v2799
        %vm2894 = vcmp.eq.f32.partialorder %v2734, %v2802
        %vm2895 = vcmp.eq.f32.partialorder %v2735, %v2802
        %vm2896 = vcmp.eq.f32.partialorder %v2736, %v2805
        %vm2897 = vcmp.eq.f32.partialorder %v2737, %v2805
        %vm2898 = vcmp.eq.f32.partialorder %v2738, %v2808
        %vm2899 = vcmp.eq.f32.partialorder %v2739, %v2808
        %vm2900 = vcmp.eq.f32.partialorder %v2740, %v2811
        %vm2901 = vcmp.eq.f32.partialorder %v2741, %v2811
        %vm2902 = vcmp.eq.f32.partialorder %v2742, %v2814
        %vm2903 = vcmp.eq.f32.partialorder %v2743, %v2814
        %vm2904 = vcmp.eq.f32.partialorder %v2744, %v2817
        %vm2905 = vcmp.eq.f32.partialorder %v2745, %v2817
        %vm2906 = vcmp.eq.f32.partialorder %v2746, %v2820
        %vm2907 = vcmp.eq.f32.partialorder %v2747, %v2820
        %vm2908 = vcmp.eq.f32.partialorder %v2748, %v2823
        %vm2909 = vcmp.eq.f32.partialorder %v2749, %v2823
        %vm2910 = vcmp.eq.f32.partialorder %v2750, %v2826
        %vm2911 = vcmp.eq.f32.partialorder %v2751, %v2826
        %vm2912 = vcmp.eq.f32.partialorder %v2752, %v2829
        %vm2913 = vcmp.eq.f32.partialorder %v2753, %v2829
        %vm2914 = vcmp.eq.f32.partialorder %v2754, %v2832
        %vm2915 = vcmp.eq.f32.partialorder %v2755, %v2832
        %vm2916 = vcmp.eq.f32.partialorder %v2756, %v2835
        %vm2917 = vcmp.eq.f32.partialorder %v2757, %v2835
        %vm2918 = vcmp.eq.f32.partialorder %v2758, %v2838
        %vm2919 = vcmp.eq.f32.partialorder %v2759, %v2838
        %vm2920 = vcmp.eq.f32.partialorder %v2760, %v2841
        %vm2921 = vcmp.eq.f32.partialorder %v2761, %v2841
        %vm2922 = vcmp.eq.f32.partialorder %v2762, %v2844
        %vm2923 = vcmp.eq.f32.partialorder %v2763, %v2844
        %vm2924 = vcmp.eq.f32.partialorder %v2764, %v2847
        %vm2925 = vcmp.eq.f32.partialorder %v2765, %v2847
        %vm2926 = vcmp.eq.f32.partialorder %v2766, %v2850
        %vm2927 = vcmp.eq.f32.partialorder %v2767, %v2850
        %vm2928 = vcmp.eq.f32.partialorder %v2768, %v2853
        %vm2929 = vcmp.eq.f32.partialorder %v2769, %v2853
        %vm2930 = vcmp.eq.f32.partialorder %v2770, %v2856
        %vm2931 = vcmp.eq.f32.partialorder %v2771, %v2856
        %vm2932 = vcmp.eq.f32.partialorder %v2772, %v2859
        %vm2933 = vcmp.eq.f32.partialorder %v2773, %v2859
        %vm2934 = vcmp.eq.f32.partialorder %v2774, %v2862
        %vm2935 = vcmp.eq.f32.partialorder %v2775, %v2862
        %vm2936 = vcmp.eq.f32.partialorder %v2776, %v2865
        %vm2937 = vcmp.eq.f32.partialorder %v2777, %v2865
        %vm2938 = vcmp.eq.f32.partialorder %v2778, %v2868
        %vm2939 = vcmp.eq.f32.partialorder %v2779, %v2868
        %vm2940 = vcmp.eq.f32.partialorder %v2780, %v2871
        %vm2941 = vcmp.eq.f32.partialorder %v2781, %v2871
        %vm2942 = vcmp.eq.f32.partialorder %v2782, %v2874
        %vm2943 = vcmp.eq.f32.partialorder %v2783, %v2874
        %vm2944 = vcmp.eq.f32.partialorder %v2784, %v2877
        %vm2945 = vcmp.eq.f32.partialorder %v2785, %v2877
        %vm2946 = vcmp.eq.f32.partialorder %v2786, %v2880
        %vm2947 = vcmp.eq.f32.partialorder %v2787, %v2880
        %vm2948 = vcmp.eq.f32.partialorder %v2788, %v2883
        %vm2949 = vcmp.eq.f32.partialorder %v2789, %v2883
        %vm2950 = vcmp.eq.f32.partialorder %v2790, %v2886
        %vm2951 = vcmp.eq.f32.partialorder %v2791, %v2886
        %vm2952 = vcmp.eq.f32.partialorder %v2792, %v2889
        %vm2953 = vcmp.eq.f32.partialorder %v2793, %v2889
        %v2954 = vsel %vm2890, -inf, %v2730
        %v2955 = vsel %vm2891, -inf, %v2731
        %v2956 = vsel %vm2892, -inf, %v2732
        %v2957 = vsel %vm2893, -inf, %v2733
        %v2958 = vsel %vm2894, -inf, %v2734
        %v2959 = vsel %vm2895, -inf, %v2735
        %v2960 = vsel %vm2896, -inf, %v2736
        %v2961 = vsel %vm2897, -inf, %v2737
        %v2962 = vsel %vm2898, -inf, %v2738
        %v2963 = vsel %vm2899, -inf, %v2739
        %v2964 = vsel %vm2900, -inf, %v2740
        %v2965 = vsel %vm2901, -inf, %v2741
        %v2966 = vsel %vm2902, -inf, %v2742
        %v2967 = vsel %vm2903, -inf, %v2743
        %v2968 = vsel %vm2904, -inf, %v2744
        %v2969 = vsel %vm2905, -inf, %v2745
        %v2970 = vsel %vm2906, -inf, %v2746
        %v2971 = vsel %vm2907, -inf, %v2747
        %v2972 = vsel %vm2908, -inf, %v2748
        %v2973 = vsel %vm2909, -inf, %v2749
        %v2974 = vsel %vm2910, -inf, %v2750
        %v2975 = vsel %vm2911, -inf, %v2751
        %v2976 = vsel %vm2912, -inf, %v2752
        %v2977 = vsel %vm2913, -inf, %v2753
        %v2978 = vsel %vm2914, -inf, %v2754
        %v2979 = vsel %vm2915, -inf, %v2755
        %v2980 = vsel %vm2916, -inf, %v2756
        %v2981 = vsel %vm2917, -inf, %v2757
        %v2982 = vsel %vm2918, -inf, %v2758
        %v2983 = vsel %vm2919, -inf, %v2759
        %v2984 = vsel %vm2920, -inf, %v2760
        %v2985 = vsel %vm2921, -inf, %v2761
        %v2986 = vsel %vm2922, -inf, %v2762
        %v2987 = vsel %vm2923, -inf, %v2763
        %v2988 = vsel %vm2924, -inf, %v2764
        %v2989 = vsel %vm2925, -inf, %v2765
        %v2990 = vsel %vm2926, -inf, %v2766
        %v2991 = vsel %vm2927, -inf, %v2767
        %v2992 = vsel %vm2928, -inf, %v2768
        %v2993 = vsel %vm2929, -inf, %v2769
        %v2994 = vsel %vm2930, -inf, %v2770
        %v2995 = vsel %vm2931, -inf, %v2771
        %v2996 = vsel %vm2932, -inf, %v2772
        %v2997 = vsel %vm2933, -inf, %v2773
        %v2998 = vsel %vm2934, -inf, %v2774
        %v2999 = vsel %vm2935, -inf, %v2775
        %v3000 = vsel %vm2936, -inf, %v2776
        %v3001 = vsel %vm2937, -inf, %v2777
        %v3002 = vsel %vm2938, -inf, %v2778
        %v3003 = vsel %vm2939, -inf, %v2779
        %v3004 = vsel %vm2940, -inf, %v2780
        %v3005 = vsel %vm2941, -inf, %v2781
        %v3006 = vsel %vm2942, -inf, %v2782
        %v3007 = vsel %vm2943, -inf, %v2783
        %v3008 = vsel %vm2944, -inf, %v2784
        %v3009 = vsel %vm2945, -inf, %v2785
        %v3010 = vsel %vm2946, -inf, %v2786
        %v3011 = vsel %vm2947, -inf, %v2787
        %v3012 = vsel %vm2948, -inf, %v2788
        %v3013 = vsel %vm2949, -inf, %v2789
        %v3014 = vsel %vm2950, -inf, %v2790
        %v3015 = vsel %vm2951, -inf, %v2791
        %v3016 = vsel %vm2952, -inf, %v2792
        %v3017 = vsel %vm2953, -inf, %v2793
        %v3018 = vmax.f32 %v2954, %v2955
        %3019 = vmax.xlane.f32.xlu0 %v3018
        %v3020 = vpop.xlane.xlu0 %3019
        %v3021 = vmax.f32 %v2956, %v2957
        %3022 = vmax.xlane.f32.xlu0 %v3021
        %v3023 = vpop.xlane.xlu0 %3022
        %v3024 = vmax.f32 %v2958, %v2959
        %3025 = vmax.xlane.f32.xlu0 %v3024
        %v3026 = vpop.xlane.xlu0 %3025
        %v3027 = vmax.f32 %v2960, %v2961
        %3028 = vmax.xlane.f32.xlu0 %v3027
        %v3029 = vpop.xlane.xlu0 %3028
        %v3030 = vmax.f32 %v2962, %v2963
        %3031 = vmax.xlane.f32.xlu0 %v3030
        %v3032 = vpop.xlane.xlu0 %3031
        %v3033 = vmax.f32 %v2964, %v2965
        %3034 = vmax.xlane.f32.xlu0 %v3033
        %v3035 = vpop.xlane.xlu0 %3034
        %v3036 = vmax.f32 %v2966, %v2967
        %3037 = vmax.xlane.f32.xlu0 %v3036
        %v3038 = vpop.xlane.xlu0 %3037
        %v3039 = vmax.f32 %v2968, %v2969
        %3040 = vmax.xlane.f32.xlu0 %v3039
        %v3041 = vpop.xlane.xlu0 %3040
        %v3042 = vmax.f32 %v2970, %v2971
        %3043 = vmax.xlane.f32.xlu0 %v3042
        %v3044 = vpop.xlane.xlu0 %3043
        %v3045 = vmax.f32 %v2972, %v2973
        %3046 = vmax.xlane.f32.xlu0 %v3045
        %v3047 = vpop.xlane.xlu0 %3046
        %v3048 = vmax.f32 %v2974, %v2975
        %3049 = vmax.xlane.f32.xlu0 %v3048
        %v3050 = vpop.xlane.xlu0 %3049
        %v3051 = vmax.f32 %v2976, %v2977
        %3052 = vmax.xlane.f32.xlu0 %v3051
        %v3053 = vpop.xlane.xlu0 %3052
        %v3054 = vmax.f32 %v2978, %v2979
        %3055 = vmax.xlane.f32.xlu0 %v3054
        %v3056 = vpop.xlane.xlu0 %3055
        %v3057 = vmax.f32 %v2980, %v2981
        %3058 = vmax.xlane.f32.xlu0 %v3057
        %v3059 = vpop.xlane.xlu0 %3058
        %v3060 = vmax.f32 %v2982, %v2983
        %3061 = vmax.xlane.f32.xlu0 %v3060
        %v3062 = vpop.xlane.xlu0 %3061
        %v3063 = vmax.f32 %v2984, %v2985
        %3064 = vmax.xlane.f32.xlu0 %v3063
        %v3065 = vpop.xlane.xlu0 %3064
        %v3066 = vmax.f32 %v2986, %v2987
        %3067 = vmax.xlane.f32.xlu0 %v3066
        %v3068 = vpop.xlane.xlu0 %3067
        %v3069 = vmax.f32 %v2988, %v2989
        %3070 = vmax.xlane.f32.xlu0 %v3069
        %v3071 = vpop.xlane.xlu0 %3070
        %v3072 = vmax.f32 %v2990, %v2991
        %3073 = vmax.xlane.f32.xlu0 %v3072
        %v3074 = vpop.xlane.xlu0 %3073
        %v3075 = vmax.f32 %v2992, %v2993
        %3076 = vmax.xlane.f32.xlu0 %v3075
        %v3077 = vpop.xlane.xlu0 %3076
        %v3078 = vmax.f32 %v2994, %v2995
        %3079 = vmax.xlane.f32.xlu0 %v3078
        %v3080 = vpop.xlane.xlu0 %3079
        %v3081 = vmax.f32 %v2996, %v2997
        %3082 = vmax.xlane.f32.xlu0 %v3081
        %v3083 = vpop.xlane.xlu0 %3082
        %v3084 = vmax.f32 %v2998, %v2999
        %3085 = vmax.xlane.f32.xlu0 %v3084
        %v3086 = vpop.xlane.xlu0 %3085
        %v3087 = vmax.f32 %v3000, %v3001
        %3088 = vmax.xlane.f32.xlu0 %v3087
        %v3089 = vpop.xlane.xlu0 %3088
        %v3090 = vmax.f32 %v3002, %v3003
        %3091 = vmax.xlane.f32.xlu0 %v3090
        %v3092 = vpop.xlane.xlu0 %3091
        %v3093 = vmax.f32 %v3004, %v3005
        %3094 = vmax.xlane.f32.xlu0 %v3093
        %v3095 = vpop.xlane.xlu0 %3094
        %v3096 = vmax.f32 %v3006, %v3007
        %3097 = vmax.xlane.f32.xlu0 %v3096
        %v3098 = vpop.xlane.xlu0 %3097
        %v3099 = vmax.f32 %v3008, %v3009
        %3100 = vmax.xlane.f32.xlu0 %v3099
        %v3101 = vpop.xlane.xlu0 %3100
        %v3102 = vmax.f32 %v3010, %v3011
        %3103 = vmax.xlane.f32.xlu0 %v3102
        %v3104 = vpop.xlane.xlu0 %3103
        %v3105 = vmax.f32 %v3012, %v3013
        %3106 = vmax.xlane.f32.xlu0 %v3105
        %v3107 = vpop.xlane.xlu0 %3106
        %v3108 = vmax.f32 %v3014, %v3015
        %3109 = vmax.xlane.f32.xlu0 %v3108
        %v3110 = vpop.xlane.xlu0 %3109
        %v3111 = vmax.f32 %v3016, %v3017
        %3112 = vmax.xlane.f32.xlu0 %v3111
        %v3113 = vpop.xlane.xlu0 %3112
        %vm3114 = vcmp.eq.f32.partialorder %v2954, %v3020
        %vm3115 = vcmp.eq.f32.partialorder %v2955, %v3020
        %vm3116 = vcmp.eq.f32.partialorder %v2956, %v3023
        %vm3117 = vcmp.eq.f32.partialorder %v2957, %v3023
        %vm3118 = vcmp.eq.f32.partialorder %v2958, %v3026
        %vm3119 = vcmp.eq.f32.partialorder %v2959, %v3026
        %vm3120 = vcmp.eq.f32.partialorder %v2960, %v3029
        %vm3121 = vcmp.eq.f32.partialorder %v2961, %v3029
        %vm3122 = vcmp.eq.f32.partialorder %v2962, %v3032
        %vm3123 = vcmp.eq.f32.partialorder %v2963, %v3032
        %vm3124 = vcmp.eq.f32.partialorder %v2964, %v3035
        %vm3125 = vcmp.eq.f32.partialorder %v2965, %v3035
        %vm3126 = vcmp.eq.f32.partialorder %v2966, %v3038
        %vm3127 = vcmp.eq.f32.partialorder %v2967, %v3038
        %vm3128 = vcmp.eq.f32.partialorder %v2968, %v3041
        %vm3129 = vcmp.eq.f32.partialorder %v2969, %v3041
        %vm3130 = vcmp.eq.f32.partialorder %v2970, %v3044
        %vm3131 = vcmp.eq.f32.partialorder %v2971, %v3044
        %vm3132 = vcmp.eq.f32.partialorder %v2972, %v3047
        %vm3133 = vcmp.eq.f32.partialorder %v2973, %v3047
        %vm3134 = vcmp.eq.f32.partialorder %v2974, %v3050
        %vm3135 = vcmp.eq.f32.partialorder %v2975, %v3050
        %vm3136 = vcmp.eq.f32.partialorder %v2976, %v3053
        %vm3137 = vcmp.eq.f32.partialorder %v2977, %v3053
        %vm3138 = vcmp.eq.f32.partialorder %v2978, %v3056
        %vm3139 = vcmp.eq.f32.partialorder %v2979, %v3056
        %vm3140 = vcmp.eq.f32.partialorder %v2980, %v3059
        %vm3141 = vcmp.eq.f32.partialorder %v2981, %v3059
        %vm3142 = vcmp.eq.f32.partialorder %v2982, %v3062
        %vm3143 = vcmp.eq.f32.partialorder %v2983, %v3062
        %vm3144 = vcmp.eq.f32.partialorder %v2984, %v3065
        %vm3145 = vcmp.eq.f32.partialorder %v2985, %v3065
        %vm3146 = vcmp.eq.f32.partialorder %v2986, %v3068
        %vm3147 = vcmp.eq.f32.partialorder %v2987, %v3068
        %vm3148 = vcmp.eq.f32.partialorder %v2988, %v3071
        %vm3149 = vcmp.eq.f32.partialorder %v2989, %v3071
        %vm3150 = vcmp.eq.f32.partialorder %v2990, %v3074
        %vm3151 = vcmp.eq.f32.partialorder %v2991, %v3074
        %vm3152 = vcmp.eq.f32.partialorder %v2992, %v3077
        %vm3153 = vcmp.eq.f32.partialorder %v2993, %v3077
        %vm3154 = vcmp.eq.f32.partialorder %v2994, %v3080
        %vm3155 = vcmp.eq.f32.partialorder %v2995, %v3080
        %vm3156 = vcmp.eq.f32.partialorder %v2996, %v3083
        %vm3157 = vcmp.eq.f32.partialorder %v2997, %v3083
        %vm3158 = vcmp.eq.f32.partialorder %v2998, %v3086
        %vm3159 = vcmp.eq.f32.partialorder %v2999, %v3086
        %vm3160 = vcmp.eq.f32.partialorder %v3000, %v3089
        %vm3161 = vcmp.eq.f32.partialorder %v3001, %v3089
        %vm3162 = vcmp.eq.f32.partialorder %v3002, %v3092
        %vm3163 = vcmp.eq.f32.partialorder %v3003, %v3092
        %vm3164 = vcmp.eq.f32.partialorder %v3004, %v3095
        %vm3165 = vcmp.eq.f32.partialorder %v3005, %v3095
        %vm3166 = vcmp.eq.f32.partialorder %v3006, %v3098
        %vm3167 = vcmp.eq.f32.partialorder %v3007, %v3098
        %vm3168 = vcmp.eq.f32.partialorder %v3008, %v3101
        %vm3169 = vcmp.eq.f32.partialorder %v3009, %v3101
        %vm3170 = vcmp.eq.f32.partialorder %v3010, %v3104
        %vm3171 = vcmp.eq.f32.partialorder %v3011, %v3104
        %vm3172 = vcmp.eq.f32.partialorder %v3012, %v3107
        %vm3173 = vcmp.eq.f32.partialorder %v3013, %v3107
        %vm3174 = vcmp.eq.f32.partialorder %v3014, %v3110
        %vm3175 = vcmp.eq.f32.partialorder %v3015, %v3110
        %vm3176 = vcmp.eq.f32.partialorder %v3016, %v3113
        %vm3177 = vcmp.eq.f32.partialorder %v3017, %v3113
        %v3178 = vsel %vm3114, -inf, %v2954
        %v3179 = vsel %vm3115, -inf, %v2955
        %v3180 = vsel %vm3116, -inf, %v2956
        %v3181 = vsel %vm3117, -inf, %v2957
        %v3182 = vsel %vm3118, -inf, %v2958
        %v3183 = vsel %vm3119, -inf, %v2959
        %v3184 = vsel %vm3120, -inf, %v2960
        %v3185 = vsel %vm3121, -inf, %v2961
        %v3186 = vsel %vm3122, -inf, %v2962
        %v3187 = vsel %vm3123, -inf, %v2963
        %v3188 = vsel %vm3124, -inf, %v2964
        %v3189 = vsel %vm3125, -inf, %v2965
        %v3190 = vsel %vm3126, -inf, %v2966
        %v3191 = vsel %vm3127, -inf, %v2967
        %v3192 = vsel %vm3128, -inf, %v2968
        %v3193 = vsel %vm3129, -inf, %v2969
        %v3194 = vsel %vm3130, -inf, %v2970
        %v3195 = vsel %vm3131, -inf, %v2971
        %v3196 = vsel %vm3132, -inf, %v2972
        %v3197 = vsel %vm3133, -inf, %v2973
        %v3198 = vsel %vm3134, -inf, %v2974
        %v3199 = vsel %vm3135, -inf, %v2975
        %v3200 = vsel %vm3136, -inf, %v2976
        %v3201 = vsel %vm3137, -inf, %v2977
        %v3202 = vsel %vm3138, -inf, %v2978
        %v3203 = vsel %vm3139, -inf, %v2979
        %v3204 = vsel %vm3140, -inf, %v2980
        %v3205 = vsel %vm3141, -inf, %v2981
        %v3206 = vsel %vm3142, -inf, %v2982
        %v3207 = vsel %vm3143, -inf, %v2983
        %v3208 = vsel %vm3144, -inf, %v2984
        %v3209 = vsel %vm3145, -inf, %v2985
        %v3210 = vsel %vm3146, -inf, %v2986
        %v3211 = vsel %vm3147, -inf, %v2987
        %v3212 = vsel %vm3148, -inf, %v2988
        %v3213 = vsel %vm3149, -inf, %v2989
        %v3214 = vsel %vm3150, -inf, %v2990
        %v3215 = vsel %vm3151, -inf, %v2991
        %v3216 = vsel %vm3152, -inf, %v2992
        %v3217 = vsel %vm3153, -inf, %v2993
        %v3218 = vsel %vm3154, -inf, %v2994
        %v3219 = vsel %vm3155, -inf, %v2995
        %v3220 = vsel %vm3156, -inf, %v2996
        %v3221 = vsel %vm3157, -inf, %v2997
        %v3222 = vsel %vm3158, -inf, %v2998
        %v3223 = vsel %vm3159, -inf, %v2999
        %v3224 = vsel %vm3160, -inf, %v3000
        %v3225 = vsel %vm3161, -inf, %v3001
        %v3226 = vsel %vm3162, -inf, %v3002
        %v3227 = vsel %vm3163, -inf, %v3003
        %v3228 = vsel %vm3164, -inf, %v3004
        %v3229 = vsel %vm3165, -inf, %v3005
        %v3230 = vsel %vm3166, -inf, %v3006
        %v3231 = vsel %vm3167, -inf, %v3007
        %v3232 = vsel %vm3168, -inf, %v3008
        %v3233 = vsel %vm3169, -inf, %v3009
        %v3234 = vsel %vm3170, -inf, %v3010
        %v3235 = vsel %vm3171, -inf, %v3011
        %v3236 = vsel %vm3172, -inf, %v3012
        %v3237 = vsel %vm3173, -inf, %v3013
        %v3238 = vsel %vm3174, -inf, %v3014
        %v3239 = vsel %vm3175, -inf, %v3015
        %v3240 = vsel %vm3176, -inf, %v3016
        %v3241 = vsel %vm3177, -inf, %v3017
        %v3242 = vmax.f32 %v3178, %v3179
        %3243 = vmax.xlane.f32.xlu0 %v3242
        %v3244 = vpop.xlane.xlu0 %3243
        %v3245 = vmax.f32 %v3180, %v3181
        %3246 = vmax.xlane.f32.xlu0 %v3245
        %v3247 = vpop.xlane.xlu0 %3246
        %v3248 = vmax.f32 %v3182, %v3183
        %3249 = vmax.xlane.f32.xlu0 %v3248
        %v3250 = vpop.xlane.xlu0 %3249
        %v3251 = vmax.f32 %v3184, %v3185
        %3252 = vmax.xlane.f32.xlu0 %v3251
        %v3253 = vpop.xlane.xlu0 %3252
        %v3254 = vmax.f32 %v3186, %v3187
        %3255 = vmax.xlane.f32.xlu0 %v3254
        %v3256 = vpop.xlane.xlu0 %3255
        %v3257 = vmax.f32 %v3188, %v3189
        %3258 = vmax.xlane.f32.xlu0 %v3257
        %v3259 = vpop.xlane.xlu0 %3258
        %v3260 = vmax.f32 %v3190, %v3191
        %3261 = vmax.xlane.f32.xlu0 %v3260
        %v3262 = vpop.xlane.xlu0 %3261
        %v3263 = vmax.f32 %v3192, %v3193
        %3264 = vmax.xlane.f32.xlu0 %v3263
        %v3265 = vpop.xlane.xlu0 %3264
        %v3266 = vmax.f32 %v3194, %v3195
        %3267 = vmax.xlane.f32.xlu0 %v3266
        %v3268 = vpop.xlane.xlu0 %3267
        %v3269 = vmax.f32 %v3196, %v3197
        %3270 = vmax.xlane.f32.xlu0 %v3269
        %v3271 = vpop.xlane.xlu0 %3270
        %v3272 = vmax.f32 %v3198, %v3199
        %3273 = vmax.xlane.f32.xlu0 %v3272
        %v3274 = vpop.xlane.xlu0 %3273
        %v3275 = vmax.f32 %v3200, %v3201
        %3276 = vmax.xlane.f32.xlu0 %v3275
        %v3277 = vpop.xlane.xlu0 %3276
        %v3278 = vmax.f32 %v3202, %v3203
        %3279 = vmax.xlane.f32.xlu0 %v3278
        %v3280 = vpop.xlane.xlu0 %3279
        %v3281 = vmax.f32 %v3204, %v3205
        %3282 = vmax.xlane.f32.xlu0 %v3281
        %v3283 = vpop.xlane.xlu0 %3282
        %v3284 = vmax.f32 %v3206, %v3207
        %3285 = vmax.xlane.f32.xlu0 %v3284
        %v3286 = vpop.xlane.xlu0 %3285
        %v3287 = vmax.f32 %v3208, %v3209
        %3288 = vmax.xlane.f32.xlu0 %v3287
        %v3289 = vpop.xlane.xlu0 %3288
        %v3290 = vmax.f32 %v3210, %v3211
        %3291 = vmax.xlane.f32.xlu0 %v3290
        %v3292 = vpop.xlane.xlu0 %3291
        %v3293 = vmax.f32 %v3212, %v3213
        %3294 = vmax.xlane.f32.xlu0 %v3293
        %v3295 = vpop.xlane.xlu0 %3294
        %v3296 = vmax.f32 %v3214, %v3215
        %3297 = vmax.xlane.f32.xlu0 %v3296
        %v3298 = vpop.xlane.xlu0 %3297
        %v3299 = vmax.f32 %v3216, %v3217
        %3300 = vmax.xlane.f32.xlu0 %v3299
        %v3301 = vpop.xlane.xlu0 %3300
        %v3302 = vmax.f32 %v3218, %v3219
        %3303 = vmax.xlane.f32.xlu0 %v3302
        %v3304 = vpop.xlane.xlu0 %3303
        %v3305 = vmax.f32 %v3220, %v3221
        %3306 = vmax.xlane.f32.xlu0 %v3305
        %v3307 = vpop.xlane.xlu0 %3306
        %v3308 = vmax.f32 %v3222, %v3223
        %3309 = vmax.xlane.f32.xlu0 %v3308
        %v3310 = vpop.xlane.xlu0 %3309
        %v3311 = vmax.f32 %v3224, %v3225
        %3312 = vmax.xlane.f32.xlu0 %v3311
        %v3313 = vpop.xlane.xlu0 %3312
        %v3314 = vmax.f32 %v3226, %v3227
        %3315 = vmax.xlane.f32.xlu0 %v3314
        %v3316 = vpop.xlane.xlu0 %3315
        %v3317 = vmax.f32 %v3228, %v3229
        %3318 = vmax.xlane.f32.xlu0 %v3317
        %v3319 = vpop.xlane.xlu0 %3318
        %v3320 = vmax.f32 %v3230, %v3231
        %3321 = vmax.xlane.f32.xlu0 %v3320
        %v3322 = vpop.xlane.xlu0 %3321
        %v3323 = vmax.f32 %v3232, %v3233
        %3324 = vmax.xlane.f32.xlu0 %v3323
        %v3325 = vpop.xlane.xlu0 %3324
        %v3326 = vmax.f32 %v3234, %v3235
        %3327 = vmax.xlane.f32.xlu0 %v3326
        %v3328 = vpop.xlane.xlu0 %3327
        %v3329 = vmax.f32 %v3236, %v3237
        %3330 = vmax.xlane.f32.xlu0 %v3329
        %v3331 = vpop.xlane.xlu0 %3330
        %v3332 = vmax.f32 %v3238, %v3239
        %3333 = vmax.xlane.f32.xlu0 %v3332
        %v3334 = vpop.xlane.xlu0 %3333
        %v3335 = vmax.f32 %v3240, %v3241
        %3336 = vmax.xlane.f32.xlu0 %v3335
        %v3337 = vpop.xlane.xlu0 %3336
        %vm3338 = vcmp.ge.f32.partialorder %v1292, %v3244
        %vm3339 = vcmp.ge.f32.partialorder %v1294, %v3244
        %vm3340 = vcmp.ge.f32.partialorder %v1296, %v3247
        %vm3341 = vcmp.ge.f32.partialorder %v1298, %v3247
        %vm3342 = vcmp.ge.f32.partialorder %v1302, %v3250
        %vm3343 = vcmp.ge.f32.partialorder %v1304, %v3250
        %vm3344 = vcmp.ge.f32.partialorder %v1306, %v3253
        %vm3345 = vcmp.ge.f32.partialorder %v1308, %v3253
        %vm3346 = vcmp.ge.f32.partialorder %v1312, %v3256
        %vm3347 = vcmp.ge.f32.partialorder %v1314, %v3256
        %vm3348 = vcmp.ge.f32.partialorder %v1316, %v3259
        %vm3349 = vcmp.ge.f32.partialorder %v1318, %v3259
        %vm3350 = vcmp.ge.f32.partialorder %v1322, %v3262
        %vm3351 = vcmp.ge.f32.partialorder %v1324, %v3262
        %vm3352 = vcmp.ge.f32.partialorder %v1326, %v3265
        %vm3353 = vcmp.ge.f32.partialorder %v1328, %v3265
        %vm3354 = vcmp.ge.f32.partialorder %v1332, %v3268
        %vm3355 = vcmp.ge.f32.partialorder %v1334, %v3268
        %vm3356 = vcmp.ge.f32.partialorder %v1336, %v3271
        %vm3357 = vcmp.ge.f32.partialorder %v1338, %v3271
        %vm3358 = vcmp.ge.f32.partialorder %v1342, %v3274
        %vm3359 = vcmp.ge.f32.partialorder %v1344, %v3274
        %vm3360 = vcmp.ge.f32.partialorder %v1346, %v3277
        %vm3361 = vcmp.ge.f32.partialorder %v1348, %v3277
        %vm3362 = vcmp.ge.f32.partialorder %v1352, %v3280
        %vm3363 = vcmp.ge.f32.partialorder %v1354, %v3280
        %vm3364 = vcmp.ge.f32.partialorder %v1356, %v3283
        %vm3365 = vcmp.ge.f32.partialorder %v1358, %v3283
        %vm3366 = vcmp.ge.f32.partialorder %v1362, %v3286
        %vm3367 = vcmp.ge.f32.partialorder %v1364, %v3286
        %vm3368 = vcmp.ge.f32.partialorder %v1366, %v3289
        %vm3369 = vcmp.ge.f32.partialorder %v1368, %v3289
        %vm3370 = vcmp.ge.f32.partialorder %v1372, %v3292
        %vm3371 = vcmp.ge.f32.partialorder %v1374, %v3292
        %vm3372 = vcmp.ge.f32.partialorder %v1376, %v3295
        %vm3373 = vcmp.ge.f32.partialorder %v1378, %v3295
        %vm3374 = vcmp.ge.f32.partialorder %v1382, %v3298
        %vm3375 = vcmp.ge.f32.partialorder %v1384, %v3298
        %vm3376 = vcmp.ge.f32.partialorder %v1386, %v3301
        %vm3377 = vcmp.ge.f32.partialorder %v1388, %v3301
        %vm3378 = vcmp.ge.f32.partialorder %v1392, %v3304
        %vm3379 = vcmp.ge.f32.partialorder %v1394, %v3304
        %vm3380 = vcmp.ge.f32.partialorder %v1396, %v3307
        %vm3381 = vcmp.ge.f32.partialorder %v1398, %v3307
        %vm3382 = vcmp.ge.f32.partialorder %v1402, %v3310
        %vm3383 = vcmp.ge.f32.partialorder %v1404, %v3310
        %vm3384 = vcmp.ge.f32.partialorder %v1406, %v3313
        %vm3385 = vcmp.ge.f32.partialorder %v1408, %v3313
        %vm3386 = vcmp.ge.f32.partialorder %v1412, %v3316
        %vm3387 = vcmp.ge.f32.partialorder %v1414, %v3316
        %vm3388 = vcmp.ge.f32.partialorder %v1416, %v3319
        %vm3389 = vcmp.ge.f32.partialorder %v1418, %v3319
        %vm3390 = vcmp.ge.f32.partialorder %v1422, %v3322
        %vm3391 = vcmp.ge.f32.partialorder %v1424, %v3322
        %vm3392 = vcmp.ge.f32.partialorder %v1426, %v3325
        %vm3393 = vcmp.ge.f32.partialorder %v1428, %v3325
        %vm3394 = vcmp.ge.f32.partialorder %v1432, %v3328
        %vm3395 = vcmp.ge.f32.partialorder %v1434, %v3328
        %vm3396 = vcmp.ge.f32.partialorder %v1436, %v3331
        %vm3397 = vcmp.ge.f32.partialorder %v1438, %v3331
        %vm3398 = vcmp.ge.f32.partialorder %v1442, %v3334
        %vm3399 = vcmp.ge.f32.partialorder %v1444, %v3334
        %vm3400 = vcmp.ge.f32.partialorder %v1446, %v3337
        %vm3401 = vcmp.ge.f32.partialorder %v1448, %v3337
        %vm3402 = vcmp.gt.f32.partialorder %v1292, 0.0
        %vm3403 = vcmp.gt.f32.partialorder %v1294, 0.0
        %vm3404 = vcmp.gt.f32.partialorder %v1296, 0.0
        %vm3405 = vcmp.gt.f32.partialorder %v1298, 0.0
        %vm3406 = vcmp.gt.f32.partialorder %v1302, 0.0
        %vm3407 = vcmp.gt.f32.partialorder %v1304, 0.0
        %vm3408 = vcmp.gt.f32.partialorder %v1306, 0.0
        %vm3409 = vcmp.gt.f32.partialorder %v1308, 0.0
        %vm3410 = vcmp.gt.f32.partialorder %v1312, 0.0
        %vm3411 = vcmp.gt.f32.partialorder %v1314, 0.0
        %vm3412 = vcmp.gt.f32.partialorder %v1316, 0.0
        %vm3413 = vcmp.gt.f32.partialorder %v1318, 0.0
        %vm3414 = vcmp.gt.f32.partialorder %v1322, 0.0
        %vm3415 = vcmp.gt.f32.partialorder %v1324, 0.0
        %vm3416 = vcmp.gt.f32.partialorder %v1326, 0.0
        %vm3417 = vcmp.gt.f32.partialorder %v1328, 0.0
        %vm3418 = vcmp.gt.f32.partialorder %v1332, 0.0
        %vm3419 = vcmp.gt.f32.partialorder %v1334, 0.0
        %vm3420 = vcmp.gt.f32.partialorder %v1336, 0.0
        %vm3421 = vcmp.gt.f32.partialorder %v1338, 0.0
        %vm3422 = vcmp.gt.f32.partialorder %v1342, 0.0
        %vm3423 = vcmp.gt.f32.partialorder %v1344, 0.0
        %vm3424 = vcmp.gt.f32.partialorder %v1346, 0.0
        %vm3425 = vcmp.gt.f32.partialorder %v1348, 0.0
        %vm3426 = vcmp.gt.f32.partialorder %v1352, 0.0
        %vm3427 = vcmp.gt.f32.partialorder %v1354, 0.0
        %vm3428 = vcmp.gt.f32.partialorder %v1356, 0.0
        %vm3429 = vcmp.gt.f32.partialorder %v1358, 0.0
        %vm3430 = vcmp.gt.f32.partialorder %v1362, 0.0
        %vm3431 = vcmp.gt.f32.partialorder %v1364, 0.0
        %vm3432 = vcmp.gt.f32.partialorder %v1366, 0.0
        %vm3433 = vcmp.gt.f32.partialorder %v1368, 0.0
        %vm3434 = vcmp.gt.f32.partialorder %v1372, 0.0
        %vm3435 = vcmp.gt.f32.partialorder %v1374, 0.0
        %vm3436 = vcmp.gt.f32.partialorder %v1376, 0.0
        %vm3437 = vcmp.gt.f32.partialorder %v1378, 0.0
        %vm3438 = vcmp.gt.f32.partialorder %v1382, 0.0
        %vm3439 = vcmp.gt.f32.partialorder %v1384, 0.0
        %vm3440 = vcmp.gt.f32.partialorder %v1386, 0.0
        %vm3441 = vcmp.gt.f32.partialorder %v1388, 0.0
        %vm3442 = vcmp.gt.f32.partialorder %v1392, 0.0
        %vm3443 = vcmp.gt.f32.partialorder %v1394, 0.0
        %vm3444 = vcmp.gt.f32.partialorder %v1396, 0.0
        %vm3445 = vcmp.gt.f32.partialorder %v1398, 0.0
        %vm3446 = vcmp.gt.f32.partialorder %v1402, 0.0
        %vm3447 = vcmp.gt.f32.partialorder %v1404, 0.0
        %vm3448 = vcmp.gt.f32.partialorder %v1406, 0.0
        %vm3449 = vcmp.gt.f32.partialorder %v1408, 0.0
        %vm3450 = vcmp.gt.f32.partialorder %v1412, 0.0
        %vm3451 = vcmp.gt.f32.partialorder %v1414, 0.0
        %vm3452 = vcmp.gt.f32.partialorder %v1416, 0.0
        %vm3453 = vcmp.gt.f32.partialorder %v1418, 0.0
        %vm3454 = vcmp.gt.f32.partialorder %v1422, 0.0
        %vm3455 = vcmp.gt.f32.partialorder %v1424, 0.0
        %vm3456 = vcmp.gt.f32.partialorder %v1426, 0.0
        %vm3457 = vcmp.gt.f32.partialorder %v1428, 0.0
        %vm3458 = vcmp.gt.f32.partialorder %v1432, 0.0
        %vm3459 = vcmp.gt.f32.partialorder %v1434, 0.0
        %vm3460 = vcmp.gt.f32.partialorder %v1436, 0.0
        %vm3461 = vcmp.gt.f32.partialorder %v1438, 0.0
        %vm3462 = vcmp.gt.f32.partialorder %v1442, 0.0
        %vm3463 = vcmp.gt.f32.partialorder %v1444, 0.0
        %vm3464 = vcmp.gt.f32.partialorder %v1446, 0.0
        %vm3465 = vcmp.gt.f32.partialorder %v1448, 0.0
        %vm3466 = vmand %vm3338, %vm3402
        %vm3467 = vmand %vm3339, %vm3403
        %vm3468 = vmand %vm3340, %vm3404
        %vm3469 = vmand %vm3341, %vm3405
        %vm3470 = vmand %vm3342, %vm3406
        %vm3471 = vmand %vm3343, %vm3407
        %vm3472 = vmand %vm3344, %vm3408
        %vm3473 = vmand %vm3345, %vm3409
        %vm3474 = vmand %vm3346, %vm3410
        %vm3475 = vmand %vm3347, %vm3411
        %vm3476 = vmand %vm3348, %vm3412
        %vm3477 = vmand %vm3349, %vm3413
        %vm3478 = vmand %vm3350, %vm3414
        %vm3479 = vmand %vm3351, %vm3415
        %vm3480 = vmand %vm3352, %vm3416
        %vm3481 = vmand %vm3353, %vm3417
        %vm3482 = vmand %vm3354, %vm3418
        %vm3483 = vmand %vm3355, %vm3419
        %vm3484 = vmand %vm3356, %vm3420
        %vm3485 = vmand %vm3357, %vm3421
        %vm3486 = vmand %vm3358, %vm3422
        %vm3487 = vmand %vm3359, %vm3423
        %vm3488 = vmand %vm3360, %vm3424
        %vm3489 = vmand %vm3361, %vm3425
        %vm3490 = vmand %vm3362, %vm3426
        %vm3491 = vmand %vm3363, %vm3427
        %vm3492 = vmand %vm3364, %vm3428
        %vm3493 = vmand %vm3365, %vm3429
        %vm3494 = vmand %vm3366, %vm3430
        %vm3495 = vmand %vm3367, %vm3431
        %vm3496 = vmand %vm3368, %vm3432
        %vm3497 = vmand %vm3369, %vm3433
        %vm3498 = vmand %vm3370, %vm3434
        %vm3499 = vmand %vm3371, %vm3435
        %vm3500 = vmand %vm3372, %vm3436
        %vm3501 = vmand %vm3373, %vm3437
        %vm3502 = vmand %vm3374, %vm3438
        %vm3503 = vmand %vm3375, %vm3439
        %vm3504 = vmand %vm3376, %vm3440
        %vm3505 = vmand %vm3377, %vm3441
        %vm3506 = vmand %vm3378, %vm3442
        %vm3507 = vmand %vm3379, %vm3443
        %vm3508 = vmand %vm3380, %vm3444
        %vm3509 = vmand %vm3381, %vm3445
        %vm3510 = vmand %vm3382, %vm3446
        %vm3511 = vmand %vm3383, %vm3447
        %vm3512 = vmand %vm3384, %vm3448
        %vm3513 = vmand %vm3385, %vm3449
        %vm3514 = vmand %vm3386, %vm3450
        %vm3515 = vmand %vm3387, %vm3451
        %vm3516 = vmand %vm3388, %vm3452
        %vm3517 = vmand %vm3389, %vm3453
        %vm3518 = vmand %vm3390, %vm3454
        %vm3519 = vmand %vm3391, %vm3455
        %vm3520 = vmand %vm3392, %vm3456
        %vm3521 = vmand %vm3393, %vm3457
        %vm3522 = vmand %vm3394, %vm3458
        %vm3523 = vmand %vm3395, %vm3459
        %vm3524 = vmand %vm3396, %vm3460
        %vm3525 = vmand %vm3397, %vm3461
        %vm3526 = vmand %vm3398, %vm3462
        %vm3527 = vmand %vm3399, %vm3463
        %vm3528 = vmand %vm3400, %vm3464
        %vm3529 = vmand %vm3401, %vm3465
        %v3530 = vsel %vm3466, %v1292, 0.0
        %v3531 = vsel %vm3467, %v1294, 0.0
        %v3532 = vsel %vm3468, %v1296, 0.0
        %v3533 = vsel %vm3469, %v1298, 0.0
        %v3534 = vsel %vm3470, %v1302, 0.0
        %v3535 = vsel %vm3471, %v1304, 0.0
        %v3536 = vsel %vm3472, %v1306, 0.0
        %v3537 = vsel %vm3473, %v1308, 0.0
        %v3538 = vsel %vm3474, %v1312, 0.0
        %v3539 = vsel %vm3475, %v1314, 0.0
        %v3540 = vsel %vm3476, %v1316, 0.0
        %v3541 = vsel %vm3477, %v1318, 0.0
        %v3542 = vsel %vm3478, %v1322, 0.0
        %v3543 = vsel %vm3479, %v1324, 0.0
        %v3544 = vsel %vm3480, %v1326, 0.0
        %v3545 = vsel %vm3481, %v1328, 0.0
        %v3546 = vsel %vm3482, %v1332, 0.0
        %v3547 = vsel %vm3483, %v1334, 0.0
        %v3548 = vsel %vm3484, %v1336, 0.0
        %v3549 = vsel %vm3485, %v1338, 0.0
        %v3550 = vsel %vm3486, %v1342, 0.0
        %v3551 = vsel %vm3487, %v1344, 0.0
        %v3552 = vsel %vm3488, %v1346, 0.0
        %v3553 = vsel %vm3489, %v1348, 0.0
        %v3554 = vsel %vm3490, %v1352, 0.0
        %v3555 = vsel %vm3491, %v1354, 0.0
        %v3556 = vsel %vm3492, %v1356, 0.0
        %v3557 = vsel %vm3493, %v1358, 0.0
        %v3558 = vsel %vm3494, %v1362, 0.0
        %v3559 = vsel %vm3495, %v1364, 0.0
        %v3560 = vsel %vm3496, %v1366, 0.0
        %v3561 = vsel %vm3497, %v1368, 0.0
        %v3562 = vsel %vm3498, %v1372, 0.0
        %v3563 = vsel %vm3499, %v1374, 0.0
        %v3564 = vsel %vm3500, %v1376, 0.0
        %v3565 = vsel %vm3501, %v1378, 0.0
        %v3566 = vsel %vm3502, %v1382, 0.0
        %v3567 = vsel %vm3503, %v1384, 0.0
        %v3568 = vsel %vm3504, %v1386, 0.0
        %v3569 = vsel %vm3505, %v1388, 0.0
        %v3570 = vsel %vm3506, %v1392, 0.0
        %v3571 = vsel %vm3507, %v1394, 0.0
        %v3572 = vsel %vm3508, %v1396, 0.0
        %v3573 = vsel %vm3509, %v1398, 0.0
        %v3574 = vsel %vm3510, %v1402, 0.0
        %v3575 = vsel %vm3511, %v1404, 0.0
        %v3576 = vsel %vm3512, %v1406, 0.0
        %v3577 = vsel %vm3513, %v1408, 0.0
        %v3578 = vsel %vm3514, %v1412, 0.0
        %v3579 = vsel %vm3515, %v1414, 0.0
        %v3580 = vsel %vm3516, %v1416, 0.0
        %v3581 = vsel %vm3517, %v1418, 0.0
        %v3582 = vsel %vm3518, %v1422, 0.0
        %v3583 = vsel %vm3519, %v1424, 0.0
        %v3584 = vsel %vm3520, %v1426, 0.0
        %v3585 = vsel %vm3521, %v1428, 0.0
        %v3586 = vsel %vm3522, %v1432, 0.0
        %v3587 = vsel %vm3523, %v1434, 0.0
        %v3588 = vsel %vm3524, %v1436, 0.0
        %v3589 = vsel %vm3525, %v1438, 0.0
        %v3590 = vsel %vm3526, %v1442, 0.0
        %v3591 = vsel %vm3527, %v1444, 0.0
        %v3592 = vsel %vm3528, %v1446, 0.0
        %v3593 = vsel %vm3529, %v1448, 0.0
        %3594 = vst [vmem:[%s349] sm:$0xff] %v3530
        %3595 = vst [vmem:[%s349 + $0x8] sm:$0xff] %v3531
        %3596 = vst [vmem:[%s349 + $0x10] sm:$0xff] %v3532
        %3597 = vst [vmem:[%s349 + $0x18] sm:$0xff] %v3533
        %3598 = vst [vmem:[%s349 + $0x20] sm:$0xff] %v3534
        %3599 = vst [vmem:[%s349 + $0x28] sm:$0xff] %v3535
        %3600 = vst [vmem:[%s349 + $0x30] sm:$0xff] %v3536
        %3601 = vst [vmem:[%s349 + $0x38] sm:$0xff] %v3537
        %3602 = vst [vmem:[%s349 + $0x40] sm:$0xff] %v3538
        %3603 = vst [vmem:[%s349 + $0x48] sm:$0xff] %v3539
        %3604 = vst [vmem:[%s349 + $0x50] sm:$0xff] %v3540
        %3605 = vst [vmem:[%s349 + $0x58] sm:$0xff] %v3541
        %3606 = vst [vmem:[%s349 + $0x60] sm:$0xff] %v3542
        %3607 = vst [vmem:[%s349 + $0x68] sm:$0xff] %v3543
        %3608 = vst [vmem:[%s349 + $0x70] sm:$0xff] %v3544
        %3609 = vst [vmem:[%s349 + $0x78] sm:$0xff] %v3545
        %3610 = vst [vmem:[%s349 + $0x80] sm:$0xff] %v3546
        %3611 = vst [vmem:[%s349 + $0x88] sm:$0xff] %v3547
        %3612 = vst [vmem:[%s349 + $0x90] sm:$0xff] %v3548
        %3613 = vst [vmem:[%s349 + $0x98] sm:$0xff] %v3549
        %3614 = vst [vmem:[%s349 + $0xa0] sm:$0xff] %v3550
        %3615 = vst [vmem:[%s349 + $0xa8] sm:$0xff] %v3551
        %3616 = vst [vmem:[%s349 + $0xb0] sm:$0xff] %v3552
        %3617 = vst [vmem:[%s349 + $0xb8] sm:$0xff] %v3553
        %3618 = vst [vmem:[%s349 + $0xc0] sm:$0xff] %v3554
        %3619 = vst [vmem:[%s349 + $0xc8] sm:$0xff] %v3555
        %3620 = vst [vmem:[%s349 + $0xd0] sm:$0xff] %v3556
        %3621 = vst [vmem:[%s349 + $0xd8] sm:$0xff] %v3557
        %3622 = vst [vmem:[%s349 + $0xe0] sm:$0xff] %v3558
        %3623 = vst [vmem:[%s349 + $0xe8] sm:$0xff] %v3559
        %3624 = vst [vmem:[%s349 + $0xf0] sm:$0xff] %v3560
        %3625 = vst [vmem:[%s349 + $0xf8] sm:$0xff] %v3561
        %3626 = vst [vmem:[%s349 + $0x100] sm:$0xff] %v3562
        %3627 = vst [vmem:[%s349 + $0x108] sm:$0xff] %v3563
        %3628 = vst [vmem:[%s349 + $0x110] sm:$0xff] %v3564
        %3629 = vst [vmem:[%s349 + $0x118] sm:$0xff] %v3565
        %3630 = vst [vmem:[%s349 + $0x120] sm:$0xff] %v3566
        %3631 = vst [vmem:[%s349 + $0x128] sm:$0xff] %v3567
        %3632 = vst [vmem:[%s349 + $0x130] sm:$0xff] %v3568
        %3633 = vst [vmem:[%s349 + $0x138] sm:$0xff] %v3569
        %3634 = vst [vmem:[%s349 + $0x140] sm:$0xff] %v3570
        %3635 = vst [vmem:[%s349 + $0x148] sm:$0xff] %v3571
        %3636 = vst [vmem:[%s349 + $0x150] sm:$0xff] %v3572
        %3637 = vst [vmem:[%s349 + $0x158] sm:$0xff] %v3573
        %3638 = vst [vmem:[%s349 + $0x160] sm:$0xff] %v3574
        %3639 = vst [vmem:[%s349 + $0x168] sm:$0xff] %v3575
        %3640 = vst [vmem:[%s349 + $0x170] sm:$0xff] %v3576
        %3641 = vst [vmem:[%s349 + $0x178] sm:$0xff] %v3577
        %3642 = vst [vmem:[%s349 + $0x180] sm:$0xff] %v3578
        %3643 = vst [vmem:[%s349 + $0x188] sm:$0xff] %v3579
        %3644 = vst [vmem:[%s349 + $0x190] sm:$0xff] %v3580
        %3645 = vst [vmem:[%s349 + $0x198] sm:$0xff] %v3581
        %3646 = vst [vmem:[%s349 + $0x1a0] sm:$0xff] %v3582
        %3647 = vst [vmem:[%s349 + $0x1a8] sm:$0xff] %v3583
        %3648 = vst [vmem:[%s349 + $0x1b0] sm:$0xff] %v3584
        %3649 = vst [vmem:[%s349 + $0x1b8] sm:$0xff] %v3585
        %3650 = vst [vmem:[%s349 + $0x1c0] sm:$0xff] %v3586
        %3651 = vst [vmem:[%s349 + $0x1c8] sm:$0xff] %v3587
        %3652 = vst [vmem:[%s349 + $0x1d0] sm:$0xff] %v3588
        %3653 = vst [vmem:[%s349 + $0x1d8] sm:$0xff] %v3589
        %3654 = vst [vmem:[%s349 + $0x1e0] sm:$0xff] %v3590
        %3655 = vst [vmem:[%s349 + $0x1e8] sm:$0xff] %v3591
        %3656 = vst [vmem:[%s349 + $0x1f0] sm:$0xff] %v3592
        %3657 = vst [vmem:[%s349 + $0x1f8] sm:$0xff] %v3593
        %vm3658 = vcmp.gt.f32.partialorder %v1292, 1e-05
        %vm3659 = vcmp.gt.f32.partialorder %v1294, 1e-05
        %vm3660 = vcmp.gt.f32.partialorder %v1296, 1e-05
        %vm3661 = vcmp.gt.f32.partialorder %v1298, 1e-05
        %vm3662 = vcmp.gt.f32.partialorder %v1302, 1e-05
        %vm3663 = vcmp.gt.f32.partialorder %v1304, 1e-05
        %vm3664 = vcmp.gt.f32.partialorder %v1306, 1e-05
        %vm3665 = vcmp.gt.f32.partialorder %v1308, 1e-05
        %vm3666 = vcmp.gt.f32.partialorder %v1312, 1e-05
        %vm3667 = vcmp.gt.f32.partialorder %v1314, 1e-05
        %vm3668 = vcmp.gt.f32.partialorder %v1316, 1e-05
        %vm3669 = vcmp.gt.f32.partialorder %v1318, 1e-05
        %vm3670 = vcmp.gt.f32.partialorder %v1322, 1e-05
        %vm3671 = vcmp.gt.f32.partialorder %v1324, 1e-05
        %vm3672 = vcmp.gt.f32.partialorder %v1326, 1e-05
        %vm3673 = vcmp.gt.f32.partialorder %v1328, 1e-05
        %vm3674 = vcmp.gt.f32.partialorder %v1332, 1e-05
        %vm3675 = vcmp.gt.f32.partialorder %v1334, 1e-05
        %vm3676 = vcmp.gt.f32.partialorder %v1336, 1e-05
        %vm3677 = vcmp.gt.f32.partialorder %v1338, 1e-05
        %vm3678 = vcmp.gt.f32.partialorder %v1342, 1e-05
        %vm3679 = vcmp.gt.f32.partialorder %v1344, 1e-05
        %vm3680 = vcmp.gt.f32.partialorder %v1346, 1e-05
        %vm3681 = vcmp.gt.f32.partialorder %v1348, 1e-05
        %vm3682 = vcmp.gt.f32.partialorder %v1352, 1e-05
        %vm3683 = vcmp.gt.f32.partialorder %v1354, 1e-05
        %vm3684 = vcmp.gt.f32.partialorder %v1356, 1e-05
        %vm3685 = vcmp.gt.f32.partialorder %v1358, 1e-05
        %vm3686 = vcmp.gt.f32.partialorder %v1362, 1e-05
        %vm3687 = vcmp.gt.f32.partialorder %v1364, 1e-05
        %vm3688 = vcmp.gt.f32.partialorder %v1366, 1e-05
        %vm3689 = vcmp.gt.f32.partialorder %v1368, 1e-05
        %vm3690 = vcmp.gt.f32.partialorder %v1372, 1e-05
        %vm3691 = vcmp.gt.f32.partialorder %v1374, 1e-05
        %vm3692 = vcmp.gt.f32.partialorder %v1376, 1e-05
        %vm3693 = vcmp.gt.f32.partialorder %v1378, 1e-05
        %vm3694 = vcmp.gt.f32.partialorder %v1382, 1e-05
        %vm3695 = vcmp.gt.f32.partialorder %v1384, 1e-05
        %vm3696 = vcmp.gt.f32.partialorder %v1386, 1e-05
        %vm3697 = vcmp.gt.f32.partialorder %v1388, 1e-05
        %vm3698 = vcmp.gt.f32.partialorder %v1392, 1e-05
        %vm3699 = vcmp.gt.f32.partialorder %v1394, 1e-05
        %vm3700 = vcmp.gt.f32.partialorder %v1396, 1e-05
        %vm3701 = vcmp.gt.f32.partialorder %v1398, 1e-05
        %vm3702 = vcmp.gt.f32.partialorder %v1402, 1e-05
        %vm3703 = vcmp.gt.f32.partialorder %v1404, 1e-05
        %vm3704 = vcmp.gt.f32.partialorder %v1406, 1e-05
        %vm3705 = vcmp.gt.f32.partialorder %v1408, 1e-05
        %vm3706 = vcmp.gt.f32.partialorder %v1412, 1e-05
        %vm3707 = vcmp.gt.f32.partialorder %v1414, 1e-05
        %vm3708 = vcmp.gt.f32.partialorder %v1416, 1e-05
        %vm3709 = vcmp.gt.f32.partialorder %v1418, 1e-05
        %vm3710 = vcmp.gt.f32.partialorder %v1422, 1e-05
        %vm3711 = vcmp.gt.f32.partialorder %v1424, 1e-05
        %vm3712 = vcmp.gt.f32.partialorder %v1426, 1e-05
        %vm3713 = vcmp.gt.f32.partialorder %v1428, 1e-05
        %vm3714 = vcmp.gt.f32.partialorder %v1432, 1e-05
        %vm3715 = vcmp.gt.f32.partialorder %v1434, 1e-05
        %vm3716 = vcmp.gt.f32.partialorder %v1436, 1e-05
        %vm3717 = vcmp.gt.f32.partialorder %v1438, 1e-05
        %vm3718 = vcmp.gt.f32.partialorder %v1442, 1e-05
        %vm3719 = vcmp.gt.f32.partialorder %v1444, 1e-05
        %vm3720 = vcmp.gt.f32.partialorder %v1446, 1e-05
        %vm3721 = vcmp.gt.f32.partialorder %v1448, 1e-05
        %vm3722 = vmand %vm3338, %vm3658
        %vm3723 = vmand %vm3339, %vm3659
        %vm3724 = vmand %vm3340, %vm3660
        %vm3725 = vmand %vm3341, %vm3661
        %vm3726 = vmand %vm3342, %vm3662
        %vm3727 = vmand %vm3343, %vm3663
        %vm3728 = vmand %vm3344, %vm3664
        %vm3729 = vmand %vm3345, %vm3665
        %vm3730 = vmand %vm3346, %vm3666
        %vm3731 = vmand %vm3347, %vm3667
        %vm3732 = vmand %vm3348, %vm3668
        %vm3733 = vmand %vm3349, %vm3669
        %vm3734 = vmand %vm3350, %vm3670
        %vm3735 = vmand %vm3351, %vm3671
        %vm3736 = vmand %vm3352, %vm3672
        %vm3737 = vmand %vm3353, %vm3673
        %vm3738 = vmand %vm3354, %vm3674
        %vm3739 = vmand %vm3355, %vm3675
        %vm3740 = vmand %vm3356, %vm3676
        %vm3741 = vmand %vm3357, %vm3677
        %vm3742 = vmand %vm3358, %vm3678
        %vm3743 = vmand %vm3359, %vm3679
        %vm3744 = vmand %vm3360, %vm3680
        %vm3745 = vmand %vm3361, %vm3681
        %vm3746 = vmand %vm3362, %vm3682
        %vm3747 = vmand %vm3363, %vm3683
        %vm3748 = vmand %vm3364, %vm3684
        %vm3749 = vmand %vm3365, %vm3685
        %vm3750 = vmand %vm3366, %vm3686
        %vm3751 = vmand %vm3367, %vm3687
        %vm3752 = vmand %vm3368, %vm3688
        %vm3753 = vmand %vm3369, %vm3689
        %vm3754 = vmand %vm3370, %vm3690
        %vm3755 = vmand %vm3371, %vm3691
        %vm3756 = vmand %vm3372, %vm3692
        %vm3757 = vmand %vm3373, %vm3693
        %vm3758 = vmand %vm3374, %vm3694
        %vm3759 = vmand %vm3375, %vm3695
        %vm3760 = vmand %vm3376, %vm3696
        %vm3761 = vmand %vm3377, %vm3697
        %vm3762 = vmand %vm3378, %vm3698
        %vm3763 = vmand %vm3379, %vm3699
        %vm3764 = vmand %vm3380, %vm3700
        %vm3765 = vmand %vm3381, %vm3701
        %vm3766 = vmand %vm3382, %vm3702
        %vm3767 = vmand %vm3383, %vm3703
        %vm3768 = vmand %vm3384, %vm3704
        %vm3769 = vmand %vm3385, %vm3705
        %vm3770 = vmand %vm3386, %vm3706
        %vm3771 = vmand %vm3387, %vm3707
        %vm3772 = vmand %vm3388, %vm3708
        %vm3773 = vmand %vm3389, %vm3709
        %vm3774 = vmand %vm3390, %vm3710
        %vm3775 = vmand %vm3391, %vm3711
        %vm3776 = vmand %vm3392, %vm3712
        %vm3777 = vmand %vm3393, %vm3713
        %vm3778 = vmand %vm3394, %vm3714
        %vm3779 = vmand %vm3395, %vm3715
        %vm3780 = vmand %vm3396, %vm3716
        %vm3781 = vmand %vm3397, %vm3717
        %vm3782 = vmand %vm3398, %vm3718
        %vm3783 = vmand %vm3399, %vm3719
        %vm3784 = vmand %vm3400, %vm3720
        %vm3785 = vmand %vm3401, %vm3721
        %v3786 = vsel %vm3722, 1.0, 0.0
        %v3787 = vsel %vm3723, 1.0, 0.0
        %v3788 = vsel %vm3724, 1.0, 0.0
        %v3789 = vsel %vm3725, 1.0, 0.0
        %v3790 = vsel %vm3726, 1.0, 0.0
        %v3791 = vsel %vm3727, 1.0, 0.0
        %v3792 = vsel %vm3728, 1.0, 0.0
        %v3793 = vsel %vm3729, 1.0, 0.0
        %v3794 = vsel %vm3730, 1.0, 0.0
        %v3795 = vsel %vm3731, 1.0, 0.0
        %v3796 = vsel %vm3732, 1.0, 0.0
        %v3797 = vsel %vm3733, 1.0, 0.0
        %v3798 = vsel %vm3734, 1.0, 0.0
        %v3799 = vsel %vm3735, 1.0, 0.0
        %v3800 = vsel %vm3736, 1.0, 0.0
        %v3801 = vsel %vm3737, 1.0, 0.0
        %v3802 = vsel %vm3738, 1.0, 0.0
        %v3803 = vsel %vm3739, 1.0, 0.0
        %v3804 = vsel %vm3740, 1.0, 0.0
        %v3805 = vsel %vm3741, 1.0, 0.0
        %v3806 = vsel %vm3742, 1.0, 0.0
        %v3807 = vsel %vm3743, 1.0, 0.0
        %v3808 = vsel %vm3744, 1.0, 0.0
        %v3809 = vsel %vm3745, 1.0, 0.0
        %v3810 = vsel %vm3746, 1.0, 0.0
        %v3811 = vsel %vm3747, 1.0, 0.0
        %v3812 = vsel %vm3748, 1.0, 0.0
        %v3813 = vsel %vm3749, 1.0, 0.0
        %v3814 = vsel %vm3750, 1.0, 0.0
        %v3815 = vsel %vm3751, 1.0, 0.0
        %v3816 = vsel %vm3752, 1.0, 0.0
        %v3817 = vsel %vm3753, 1.0, 0.0
        %v3818 = vsel %vm3754, 1.0, 0.0
        %v3819 = vsel %vm3755, 1.0, 0.0
        %v3820 = vsel %vm3756, 1.0, 0.0
        %v3821 = vsel %vm3757, 1.0, 0.0
        %v3822 = vsel %vm3758, 1.0, 0.0
        %v3823 = vsel %vm3759, 1.0, 0.0
        %v3824 = vsel %vm3760, 1.0, 0.0
        %v3825 = vsel %vm3761, 1.0, 0.0
        %v3826 = vsel %vm3762, 1.0, 0.0
        %v3827 = vsel %vm3763, 1.0, 0.0
        %v3828 = vsel %vm3764, 1.0, 0.0
        %v3829 = vsel %vm3765, 1.0, 0.0
        %v3830 = vsel %vm3766, 1.0, 0.0
        %v3831 = vsel %vm3767, 1.0, 0.0
        %v3832 = vsel %vm3768, 1.0, 0.0
        %v3833 = vsel %vm3769, 1.0, 0.0
        %v3834 = vsel %vm3770, 1.0, 0.0
        %v3835 = vsel %vm3771, 1.0, 0.0
        %v3836 = vsel %vm3772, 1.0, 0.0
        %v3837 = vsel %vm3773, 1.0, 0.0
        %v3838 = vsel %vm3774, 1.0, 0.0
        %v3839 = vsel %vm3775, 1.0, 0.0
        %v3840 = vsel %vm3776, 1.0, 0.0
        %v3841 = vsel %vm3777, 1.0, 0.0
        %v3842 = vsel %vm3778, 1.0, 0.0
        %v3843 = vsel %vm3779, 1.0, 0.0
        %v3844 = vsel %vm3780, 1.0, 0.0
        %v3845 = vsel %vm3781, 1.0, 0.0
        %v3846 = vsel %vm3782, 1.0, 0.0
        %v3847 = vsel %vm3783, 1.0, 0.0
        %v3848 = vsel %vm3784, 1.0, 0.0
        %v3849 = vsel %vm3785, 1.0, 0.0
        %v3850 = vmax.f32 %v3786, %v3790
        %v3851 = vmax.f32 %v3788, %v3792
        %v3852 = vmax.f32 %v3850, %v3794
        %v3853 = vmax.f32 %v3851, %v3796
        %v3854 = vmax.f32 %v3852, %v3798
        %v3855 = vmax.f32 %v3853, %v3800
        %v3856 = vmax.f32 %v3854, %v3802
        %v3857 = vmax.f32 %v3855, %v3804
        %v3858 = vmax.f32 %v3856, %v3806
        %v3859 = vmax.f32 %v3857, %v3808
        %v3860 = vmax.f32 %v3858, %v3810
        %v3861 = vmax.f32 %v3859, %v3812
        %v3862 = vmax.f32 %v3860, %v3814
        %v3863 = vmax.f32 %v3861, %v3816
        %v3864 = vmax.f32 %v3862, %v3818
        %v3865 = vmax.f32 %v3863, %v3820
        %v3866 = vmax.f32 %v3864, %v3822
        %v3867 = vmax.f32 %v3865, %v3824
        %v3868 = vmax.f32 %v3866, %v3826
        %v3869 = vmax.f32 %v3867, %v3828
        %v3870 = vmax.f32 %v3868, %v3830
        %v3871 = vmax.f32 %v3869, %v3832
        %v3872 = vmax.f32 %v3870, %v3834
        %v3873 = vmax.f32 %v3871, %v3836
        %v3874 = vmax.f32 %v3872, %v3838
        %v3875 = vmax.f32 %v3873, %v3840
        %v3876 = vmax.f32 %v3874, %v3842
        %v3877 = vmax.f32 %v3875, %v3844
        %v3878 = vmax.f32 %v3876, %v3846
        %v3879 = vmax.f32 %v3877, %v3848
        %v3880 = vmax.f32 %v3878, %v3879
        %v3881 = vrot.slane %v3880, 4
        %v3882 = vmax.f32 %v3880, %v3881
        %v3883 = vrot.slane %v3882, 2
        %v3884 = vmax.f32 %v3882, %v3883
        %v3885 = vrot.slane %v3884, 1
        %v3886 = vmax.f32 %v3884, %v3885
        %v3887 = vmax.f32 %v3787, %v3791
        %v3888 = vmax.f32 %v3789, %v3793
        %v3889 = vmax.f32 %v3887, %v3795
        %v3890 = vmax.f32 %v3888, %v3797
        %v3891 = vmax.f32 %v3889, %v3799
        %v3892 = vmax.f32 %v3890, %v3801
        %v3893 = vmax.f32 %v3891, %v3803
        %v3894 = vmax.f32 %v3892, %v3805
        %v3895 = vmax.f32 %v3893, %v3807
        %v3896 = vmax.f32 %v3894, %v3809
        %v3897 = vmax.f32 %v3895, %v3811
        %v3898 = vmax.f32 %v3896, %v3813
        %v3899 = vmax.f32 %v3897, %v3815
        %v3900 = vmax.f32 %v3898, %v3817
        %v3901 = vmax.f32 %v3899, %v3819
        %v3902 = vmax.f32 %v3900, %v3821
        %v3903 = vmax.f32 %v3901, %v3823
        %v3904 = vmax.f32 %v3902, %v3825
        %v3905 = vmax.f32 %v3903, %v3827
        %v3906 = vmax.f32 %v3904, %v3829
        %v3907 = vmax.f32 %v3905, %v3831
        %v3908 = vmax.f32 %v3906, %v3833
        %v3909 = vmax.f32 %v3907, %v3835
        %v3910 = vmax.f32 %v3908, %v3837
        %v3911 = vmax.f32 %v3909, %v3839
        %v3912 = vmax.f32 %v3910, %v3841
        %v3913 = vmax.f32 %v3911, %v3843
        %v3914 = vmax.f32 %v3912, %v3845
        %v3915 = vmax.f32 %v3913, %v3847
        %v3916 = vmax.f32 %v3914, %v3849
        %v3917 = vmax.f32 %v3915, %v3916
        %v3918 = vrot.slane %v3917, 4
        %v3919 = vmax.f32 %v3917, %v3918
        %v3920 = vrot.slane %v3919, 2
        %v3921 = vmax.f32 %v3919, %v3920
        %v3922 = vrot.slane %v3921, 1
        %v3923 = vmax.f32 %v3921, %v3922
        %v3926 = vcombine.low %v3886, %v3923
        %v3928 = vunpack.c.l.s4 1966171168
        %v3929 = vunpack.c.0.s8 %v3928
        %v3930 = vlaneseq
        %v3931 = vshrl.u32 %v3930, 7
        %v3932 = vsub.s32 %v3929, %v3931
        %v3933 = vrot.slane %v3926, %v3932
        %v3935 = vunpack.c.l.s4 1966171168
        %v3936 = vunpack.c.0.s8 %v3935
        %v3937 = vlaneseq
        %v3938 = vshrl.u32 %v3937, 7
        %v3939 = vsub.s32 %v3936, %v3938
        %v3940 = vrot.slane %v3933, %v3939
        %v3942 = vlaneseq
        %vm3943 = vcmp.ge.s32.totalorder %v3942, 0
        %vm3944 = vcmp.lt.s32.totalorder %v3942, 256
        %vm3945 = vmand %vm3943, %vm3944
        %3946 = vst.msk [vmem:[%s370] sm:$0x3] %vm3945, %v3940
        %s3947 = sand.u32 %s127, 1
        %s3948 = scalar_lea.sflag [#allocation4], %s3947
        %s3949 = sand.u32 %s127, 1
        %s3950 = smul.addr %s3949, 256
        %s3951 = scalar_lea.vmem [#allocation7], %s3950
        %s3952 = sand.u32 %s30, 1
        %s3953 = scalar_lea.sflag [#allocation9], %s3952
        %s3954 = sand.u32 %s153, 1
        %s3955 = smul.addr %s3954, 512
        %s3956 = scalar_lea.vmem [#allocation8], %s3955
        %s3957 = smul.u32 32, %s30
        %p3958 = scmp.lt.s32.totalorder %s3957, 63
        %s3959 = scalar_select %p3958, %s3957, 63
        %s3960 = smul.addr %s3959, 8
        %s3961 = scalar_lea.vmem %s6, %s3960
        %s3962 = smul.u32 32, %s30
        %p3963 = scmp.lt.s32.totalorder %s3962, 63
        %s3964 = scalar_select %p3963, %s3962, 63
        %s3965 = smul.addr %s3964, 8
        %s3966 = scalar_lea.vmem %s7, %s3965
        %s3967 = sand.u32 %s30, 1
        %s3968 = scalar_lea.sflag [#allocation9], %s3967
        %s3969 = sand.u32 %s231, 1
        %s3970 = smul.addr %s3969, 2
        %s3971 = scalar_lea.vmem [#allocation10], %s3970
        // Predicated region
        $region45: #{tpu_custom_call.1} parent=35 // pred_check
          %p3972 = pneg %p137
        $region46: #{tpu_custom_call.1} parent=35 // pred_check_branch
          %3974 = sbr.rel (%p3972) target = $region48
        $region47: #{tpu_custom_call.1} parent=35 // pred_region
          %s3975 = smul.u32 32, %s30
          %s3977 = ssub.s32 4096, 4096
          %3978 = vsyncadd %s3948, %s3977
          %s3979 = smul.addr %s3975, 2
          %s3980 = smul.addr %s3979, 64
          %s3981 = scalar_lea.hbm %s4, %s3980
          %s3982 = sshll.u32 %s3951, 4
          %s3983 = int_to_ptr.vmem [resolvable:$true] %s3982
          %3988 = dma.vmem_to_hbm [thread:$0]  %s3983, 4096, %s3981, %s3948, 128, 128, 8
        $region48: #{tpu_custom_call.1} parent=35 // pred_fallthru
          _
        // Predicated region
        $region49: #{tpu_custom_call.1} parent=35 // pred_check
          %p3989 = pneg %p163
        $region50: #{tpu_custom_call.1} parent=35 // pred_check_branch
          %3991 = sbr.rel (%p3989) target = $region52
        $region51: #{tpu_custom_call.1} parent=35 // pred_region
          %s3992 = smul.u32 32, %s30
          %s3994 = ssub.s32 8192, 8192
          %3995 = vsyncadd %s3953, %s3994
          %s3996 = smul.addr %s3992, 2
          %s3997 = smul.addr %s3996, 128
          %s3998 = scalar_lea.hbm %s5, %s3997
          %s3999 = sshll.u32 %s3956, 4
          %s4000 = int_to_ptr.vmem [resolvable:$true] %s3999
          %4005 = dma.vmem_to_hbm [thread:$0]  %s4000, 8192, %s3998, %s3953, 256, 256, 16
        $region52: #{tpu_custom_call.1} parent=35 // pred_fallthru
          _
        // Predicated region
        $region53: #{tpu_custom_call.1} parent=35 // pred_check
          %p4006 = pneg %p189
        $region54: #{tpu_custom_call.1} parent=35 // pred_check_branch
          %4008 = sbr.rel (%p4006) target = $region56
        $region55: #{tpu_custom_call.1} parent=35 // pred_region
          %s4009 = smul.u32 32, %s30
        $region56: #{tpu_custom_call.1} parent=35 // pred_fallthru
          _
        // Predicated region
        $region57: #{tpu_custom_call.1} parent=35 // pred_check
          %p4010 = pneg %p215
        $region58: #{tpu_custom_call.1} parent=35 // pred_check_branch
          %4012 = sbr.rel (%p4010) target = $region60
        $region59: #{tpu_custom_call.1} parent=35 // pred_region
          %s4013 = smul.u32 32, %s30
        $region60: #{tpu_custom_call.1} parent=35 // pred_fallthru
          _
        // Predicated region
        $region61: #{tpu_custom_call.1} parent=35 // pred_check
          %p4014 = pneg %p241
        $region62: #{tpu_custom_call.1} parent=35 // pred_check_branch
          %4016 = sbr.rel (%p4014) target = $region64
        $region63: #{tpu_custom_call.1} parent=35 // pred_region
          %s4018 = ssub.s32 32, 32
          %4019 = vsyncadd %s3968, %s4018
          %s4020 = smul.addr %s30, 2
          %s4021 = smul.addr %s4020, 16
          %s4022 = scalar_lea.hbm %s8, %s4021
          %s4024 = sshll.u32 %s3971, 4
          %s4025 = int_to_ptr.vmem [resolvable:$true] %s4024
          %4027 = dma.vmem_to_hbm [thread:$0]  %s4025, 32, %s4022, %s3968
        $region64: #{tpu_custom_call.1} parent=35 // pred_fallthru
          _
      $region36: #{tpu_custom_call.1} parent=5 // pred_fallthru
        _
      %p4028 = scmp.le.s32.totalorder 2, %s25
      // Predicated region
      $region65: #{tpu_custom_call.1} parent=5 // pred_check
        %p4029 = pneg %p4028
      $region66: #{tpu_custom_call.1} parent=5 // pred_check_branch
        %4031 = sbr.rel (%p4029) target = $region68
      $region67: #{tpu_custom_call.1} parent=5 // pred_region
        %s4032 = ssub.s32 %s25, 2
        // Predicated region
        $region69: #{tpu_custom_call.1} parent=67 // pred_check
          %p4033 = pneg %p143
        $region70: #{tpu_custom_call.1} parent=67 // pred_check_branch
          %4035 = sbr.rel (%p4033) target = $region72
        $region71: #{tpu_custom_call.1} parent=67 // pred_region
          %s4036 = sand.u32 %s128, 1
          %s4037 = scalar_lea.sflag [#allocation4], %s4036
          %s4038 = sand.u32 %s128, 1
          %s4039 = smul.addr %s4038, 256
          %s4040 = scalar_lea.vmem [#allocation7], %s4039
          %4041 = dma.done %s4037, 4096
        $region72: #{tpu_custom_call.1} parent=67 // pred_fallthru
          _
        // Predicated region
        $region73: #{tpu_custom_call.1} parent=67 // pred_check
          %p4042 = pneg %p169
        $region74: #{tpu_custom_call.1} parent=67 // pred_check_branch
          %4044 = sbr.rel (%p4042) target = $region76
        $region75: #{tpu_custom_call.1} parent=67 // pred_region
          %s4045 = sand.u32 %s31, 1
          %s4046 = scalar_lea.sflag [#allocation9], %s4045
          %s4047 = sand.u32 %s154, 1
          %s4048 = smul.addr %s4047, 512
          %s4049 = scalar_lea.vmem [#allocation8], %s4048
          %4050 = dma.done %s4046, 8192
        $region76: #{tpu_custom_call.1} parent=67 // pred_fallthru
          _
        // Predicated region
        $region77: #{tpu_custom_call.1} parent=67 // pred_check
          %p4051 = pneg %p195
        $region78: #{tpu_custom_call.1} parent=67 // pred_check_branch
          %4053 = sbr.rel (%p4051) target = $region80
        $region79: #{tpu_custom_call.1} parent=67 // pred_region
          %s4054 = smul.u32 32, %s31
          %p4055 = scmp.lt.s32.totalorder %s4054, 63
          %s4056 = scalar_select %p4055, %s4054, 63
          %s4057 = smul.addr %s4056, 8
          %s4058 = scalar_lea.vmem %s6, %s4057
        $region80: #{tpu_custom_call.1} parent=67 // pred_fallthru
          _
        // Predicated region
        $region81: #{tpu_custom_call.1} parent=67 // pred_check
          %p4059 = pneg %p221
        $region82: #{tpu_custom_call.1} parent=67 // pred_check_branch
          %4061 = sbr.rel (%p4059) target = $region84
        $region83: #{tpu_custom_call.1} parent=67 // pred_region
          %s4062 = smul.u32 32, %s31
          %p4063 = scmp.lt.s32.totalorder %s4062, 63
          %s4064 = scalar_select %p4063, %s4062, 63
          %s4065 = smul.addr %s4064, 8
          %s4066 = scalar_lea.vmem %s7, %s4065
        $region84: #{tpu_custom_call.1} parent=67 // pred_fallthru
          _
        // Predicated region
        $region85: #{tpu_custom_call.1} parent=67 // pred_check
          %p4067 = pneg %p247
        $region86: #{tpu_custom_call.1} parent=67 // pred_check_branch
          %4069 = sbr.rel (%p4067) target = $region88
        $region87: #{tpu_custom_call.1} parent=67 // pred_region
          %s4070 = sand.u32 %s31, 1
          %s4071 = scalar_lea.sflag [#allocation9], %s4070
          %s4072 = sand.u32 %s232, 1
          %s4073 = smul.addr %s4072, 2
          %s4074 = scalar_lea.vmem [#allocation10], %s4073
          %4075 = dma.done %s4071, 32
        $region88: #{tpu_custom_call.1} parent=67 // pred_fallthru
          _
      $region68: #{tpu_custom_call.1} parent=5 // pred_fallthru
        _
    $region6: #{tpu_custom_call.1} parent=1 // loop_footer
      %s29 = sadd.s32 1, %s25
    $region7: #{tpu_custom_call.1} parent=1 // loop_footer_branch
      %24 = sbr.rel target = $region3
    $region8: #{tpu_custom_call.1} parent=1 // loop_exit
      _
    %4076 = vsyncpa [#allocation3], 1
    %s4077 = scalar_lea.sflag [#allocation3], 1
    %4078 = vsyncpa %s4077, 1
    %4079 = vsyncpa [#allocation6], 1
    %4080 = vsyncpa [#allocation4], 1
    %s4081 = scalar_lea.sflag [#allocation4], 1
    %4082 = vsyncpa %s4081, 1
    %4083 = vsyncpa [#allocation9], 1
    %s4084 = scalar_lea.sflag [#allocation9], 1
    %4085 = vsyncpa %s4084, 1

</llo_original>
